<compile_context>
chip_gen: v5e
topology: v5e:2x2
jax: 0.10.0
libtpu: 0.0.40
codegen_flags: <defaults>
</compile_context>

<pallas_src>
import functools

import jax
import jax.numpy as jnp
from jax import lax
from jax.experimental import pallas as pl
from jax.experimental.pallas import tpu as pltpu


# ----------------------------- Pallas kernels ------------------------------

def _conv_gap_kernel(p_ref, w_ref, b_ref, o_ref, *, fpt, hw, chunk):
    # p_ref: (fpt*hw, CKKp) padded im2col rows, time-major frames
    # w_ref: (F, CKKp) torch-layout conv weight (transposed contraction via dot_general)
    # b_ref: (1, F); o_ref: (1, fpt, F) per-frame pooled features
    dn = (((1,), (1,)), ((), ()))
    F = o_ref.shape[-1]
    b = b_ref[...]                                   # (1, F)
    inv_hw = jnp.float32(1.0 / hw)
    n_chunks = hw // chunk
    for f in range(fpt):                             # static, fully unrolled
        acc = jnp.zeros((1, F), jnp.float32)
        for c in range(n_chunks):
            r0 = f * hw + c * chunk                  # static offsets
            rows = p_ref[pl.ds(r0, chunk), :]        # (chunk, CKKp)
            s = lax.dot_general(rows, w_ref[...], dn,
                                preferred_element_type=jnp.float32)   # (chunk, F)
            s = jnp.maximum(s + b, 0.0)              # conv bias + ReLU, in-register
            acc = acc + jnp.sum(s, axis=0, keepdims=True)
        # One (1,1,F) store per frame; global average pool = accumulated sum / HW.
        o_ref[:, pl.ds(f, 1), :] = (acc * inv_hw).reshape(1, 1, F)


def _pick_chunk(hw):
    for c in (64, 32, 16, 8):
        if hw % c == 0:
            return c
    return hw


def _pick_fpt(n_frames, hw, ckkp, budget_bytes=6 * 1024 * 1024):
    # Largest frames/step that (a) divides n_frames, (b) keeps the double-buffered
    # patch tile within a VMEM budget (v7x has only 64 MiB physical / 32 MiB scoped),
    # and (c) leaves >= 4 grid steps so DMA pipelining works (>= 2 steps per core
    # when megacore-sharded).
    divisors = [d for d in range(1, n_frames + 1) if n_frames % d == 0]
    fits = [d for d in divisors if 2 * d * hw * ckkp * 4 <= budget_bytes]
    if not fits:
        return 1
    deep = [d for d in fits if n_frames // d >= 4]
    return max(deep) if deep else max(fits)


def conv_relu_gap(patches, w_mat, b_row, *, n_frames, hw):
    # patches: (n_frames*hw, CKKp) time-major; w_mat: (F, CKKp); b_row: (1, F)
    rows, ckkp = patches.shape
    F = w_mat.shape[0]
    fpt = _pick_fpt(n_frames, hw, ckkp)
    n_tiles = n_frames // fpt
    tile_rows = fpt * hw
    chunk = _pick_chunk(hw)

    cost = pl.CostEstimate(
        flops=int(2 * rows * ckkp * F + 3 * rows * F),
        transcendentals=0,
        bytes_accessed=int(4 * (patches.size + w_mat.size + b_row.size + n_frames * F)),
    )
    kernel = functools.partial(_conv_gap_kernel, fpt=fpt, hw=hw, chunk=chunk)
    out = pl.pallas_call(
        kernel,
        out_shape=jax.ShapeDtypeStruct((n_tiles, fpt, F), jnp.float32),
        grid=(n_tiles,),
        in_specs=[
            pl.BlockSpec((tile_rows, ckkp), lambda i: (i, 0)),
            pl.BlockSpec((F, ckkp), lambda i: (0, 0)),
            pl.BlockSpec((1, F), lambda i: (0, 0)),
        ],
        out_specs=pl.BlockSpec((1, fpt, F), lambda i: (i, 0, 0)),
        compiler_params=pltpu.CompilerParams(
            dimension_semantics=("parallel",),
            vmem_limit_bytes=32 * 1024 * 1024),
        cost_estimate=cost,
    )(patches, w_mat, b_row)
    return out.reshape(n_frames, F)


def _lstm_fc_kernel(feats_ref, w_ih_ref, b_ref, w_hh_ref, fc_w_ref, fc_b_ref,
                    o_ref, gx_ref, *, T, B, Hp):
    # feats_ref: (T*B, F) time-major; weights in (padded) torch layout, contracted
    # via dot_general.  Gate g occupies lanes [g*Hp, (g+1)*Hp) -> vreg-aligned slices.
    dn = (((1,), (1,)), ((), ()))
    # Input-to-gate matmul for all timesteps at once, stored to a VMEM scratch so
    # per-step rows are clean ref loads instead of live-vreg sublane slices.
    gx_ref[...] = lax.dot_general(feats_ref[...], w_ih_ref[...], dn,
                                  preferred_element_type=jnp.float32) + b_ref[...]

    h = jnp.zeros((B, Hp), jnp.float32)
    c = jnp.zeros((B, Hp), jnp.float32)
    for t in range(T):                               # unrolled recurrence, static offsets
        g = gx_ref[pl.ds(t * B, B), :] + lax.dot_general(
            h, w_hh_ref[...], dn, preferred_element_type=jnp.float32)  # (B, 4*Hp)
        i_g = jax.nn.sigmoid(g[:, 0 * Hp:1 * Hp])
        f_g = jax.nn.sigmoid(g[:, 1 * Hp:2 * Hp])
        g_g = jnp.tanh(g[:, 2 * Hp:3 * Hp])
        o_g = jax.nn.sigmoid(g[:, 3 * Hp:4 * Hp])
        c = f_g * c + i_g * g_g
        h = o_g * jnp.tanh(c)

    o_ref[...] = lax.dot_general(h, fc_w_ref[...], dn,
                                 preferred_element_type=jnp.float32) + fc_b_ref[...]


def lstm_fc_fused(feats, w_ih_p, bias_p, w_hh_p, fc_w_p, fc_b_row, *, T, B):
    # feats: (T*B, F) time-major; w_ih_p: (4Hp, F); w_hh_p: (4Hp, Hp);
    # fc_w_p: (n_classes, Hp)
    N, F = feats.shape
    G4p = w_ih_p.shape[0]
    Hp = w_hh_p.shape[1]
    n_classes = fc_w_p.shape[0]

    cost = pl.CostEstimate(
        flops=int(2 * N * F * G4p + 2 * T * B * Hp * G4p + 2 * B * Hp * n_classes
                  + 10 * T * B * G4p),
        transcendentals=int(5 * T * B * Hp),
        bytes_accessed=int(4 * (feats.size + w_ih_p.size + w_hh_p.size + fc_w_p.size
                                + G4p + n_classes + B * n_classes)),
    )
    kernel = functools.partial(_lstm_fc_kernel, T=T, B=B, Hp=Hp)
    return pl.pallas_call(
        kernel,
        out_shape=jax.ShapeDtypeStruct((B, n_classes), jnp.float32),
        grid=(1,),
        in_specs=[
            pl.BlockSpec((N, F), lambda i: (0, 0)),
            pl.BlockSpec((G4p, F), lambda i: (0, 0)),
            pl.BlockSpec((1, G4p), lambda i: (0, 0)),
            pl.BlockSpec((G4p, Hp), lambda i: (0, 0)),
            pl.BlockSpec((n_classes, Hp), lambda i: (0, 0)),
            pl.BlockSpec((1, n_classes), lambda i: (0, 0)),
        ],
        out_specs=pl.BlockSpec((B, n_classes), lambda i: (0, 0)),
        scratch_shapes=[pltpu.VMEM((N, G4p), jnp.float32)],
        compiler_params=pltpu.CompilerParams(dimension_semantics=("arbitrary",)),
        cost_estimate=cost,
    )(feats, w_ih_p, bias_p, w_hh_p, fc_w_p, fc_b_row)


# --------------------------------- glue ------------------------------------

def im2col_3x3_time_major(x, ckk_pad):
    # x: (B, T, C, H, W) -> (T*B*H*W, ckk_pad): 3x3/stride-1/SAME patches, time-major
    # frame rows, column order c*9 + dh*3 + dw (matches conv_w.reshape(F, C*9)).
    # The NTCHW -> time-major reorder is folded into the single patch transpose and
    # the contraction dim is emitted already zero-padded to a 128-lane multiple.
    B, T, C, H, W = x.shape
    xp = jnp.pad(x, ((0, 0), (0, 0), (0, 0), (1, 1), (1, 1)))
    taps = [xp[:, :, :, dh:dh + H, dw:dw + W] for dh in range(3) for dw in range(3)]
    p = jnp.stack(taps, axis=-1)                         # (B, T, C, H, W, 9)
    p = p.transpose(1, 0, 3, 4, 2, 5)                    # (T, B, H, W, C, 9)
    p = p.reshape(T * B * H * W, C * 9)
    if ckk_pad > C * 9:
        p = jnp.pad(p, ((0, 0), (0, ckk_pad - C * 9)))
    return p


def prepare_params(params):
    # One-time (outside the jitted forward) relayout of torch-layout weights into
    # kernel-friendly, lane-padded layouts.  Zero padding keeps the math exact:
    # padded gate lanes get bias 0 / weight 0 -> h,c padding lanes stay exactly 0.
    F, C = params["conv_w"].shape[0], params["conv_w"].shape[1]
    H = params["w_hh"].shape[1]
    ckk = C * 9
    ckkp = ((ckk + 127) // 128) * 128
    Hp = ((H + 127) // 128) * 128

    conv_w_mat = jnp.pad(params["conv_w"].reshape(F, ckk), ((0, 0), (0, ckkp - ckk)))

    def pad_gate_rows(w2d):
        # (4H, X) -> (4Hp, X): gate k rows moved to [k*Hp, k*Hp + H), rest zero.
        return jnp.concatenate(
            [jnp.pad(w2d[k * H:(k + 1) * H], ((0, Hp - H), (0, 0))) for k in range(4)],
            axis=0)

    w_ih_p = pad_gate_rows(params["w_ih"])                                   # (4Hp, F)
    w_hh_p = jnp.pad(pad_gate_rows(params["w_hh"]), ((0, 0), (0, Hp - H)))   # (4Hp, Hp)
    bias_p = pad_gate_rows(
        (params["b_ih"] + params["b_hh"])[:, None]).reshape(1, 4 * Hp)       # (1, 4Hp)
    fc_w_p = jnp.pad(params["fc_w"], ((0, 0), (0, Hp - H)))                  # (ncls, Hp)

    return {
        "conv_w_mat": conv_w_mat,
        "conv_b": params["conv_b"].reshape(1, F),
        "w_ih_p": w_ih_p,
        "w_hh_p": w_hh_p,
        "bias_p": bias_p,
        "fc_w_p": fc_w_p,
        "fc_b": params["fc_b"].reshape(1, -1),
    }


def init_params(key, n_classes=10, hidden=64, feat=512, in_ch=3):
    ks = jax.random.split(key, 8)
    s = 0.02
    return {
        "conv_w": s * jax.random.normal(ks[0], (feat, in_ch, 3, 3), jnp.float32),
        "conv_b": s * jax.random.normal(ks[1], (feat,), jnp.float32),
        "w_ih":   s * jax.random.normal(ks[2], (4 * hidden, feat), jnp.float32),
        "w_hh":   s * jax.random.normal(ks[3], (4 * hidden, hidden), jnp.float32),
        "b_ih":   s * jax.random.normal(ks[4], (4 * hidden,), jnp.float32),
        "b_hh":   s * jax.random.normal(ks[5], (4 * hidden,), jnp.float32),
        "fc_w":   s * jax.random.normal(ks[6], (n_classes, hidden), jnp.float32),
        "fc_b":   s * jax.random.normal(ks[7], (n_classes,), jnp.float32),
    }


def cnn_lstm_forward(prepared, x):
    # x: (B, T, C, H, W) -> logits (B, n_classes)
    B, T, C, H, W = x.shape
    ckkp = prepared["conv_w_mat"].shape[1]

    # CNN stage: conv3x3 + ReLU + global average pool -> per-frame feature vectors.
    # TODO(synk): the pretrained resnet18 residual stack has no clean in-script
    # equivalent; it is replaced by a single conv block producing the same 512-dim
    # per-frame feature interface.
    patches = im2col_3x3_time_major(x, ckkp)             # (T*B*HW, ckkp), time-major
    feats = conv_relu_gap(patches, prepared["conv_w_mat"], prepared["conv_b"],
                          n_frames=T * B, hw=H * W)      # (T*B, F)

    # Fused gates-linear + LSTM recurrence + final fc (single pallas_call).
    return lstm_fc_fused(feats, prepared["w_ih_p"], prepared["bias_p"],
                         prepared["w_hh_p"], prepared["fc_w_p"], prepared["fc_b"],
                         T=T, B=B)                       # (B, n_classes)


def reference_forward(params, x):
    # Pure-JAX reference with identical math (for correctness check).
    B, T, C, H, W = x.shape
    hidden = params["w_hh"].shape[1]
    c_in = x.reshape(B * T, C, H, W)
    y = jax.lax.conv_general_dilated(
        c_in, params["conv_w"], (1, 1), "SAME",
        dimension_numbers=("NCHW", "OIHW", "NCHW"))
    y = jax.nn.relu(y + params["conv_b"][None, :, None, None])
    feats = y.mean(axis=(2, 3))
    gx = feats @ params["w_ih"].T + params["b_ih"] + params["b_hh"]
    gx = gx.reshape(B, T, 4 * hidden)
    h = jnp.zeros((B, hidden), jnp.float32)
    c = jnp.zeros((B, hidden), jnp.float32)
    for t in range(T):
        g = gx[:, t] + h @ params["w_hh"].T
        i = jax.nn.sigmoid(g[:, :hidden])
        f = jax.nn.sigmoid(g[:, hidden:2 * hidden])
        gg = jnp.tanh(g[:, 2 * hidden:3 * hidden])
        o = jax.nn.sigmoid(g[:, 3 * hidden:])
        c = f * c + i * gg
        h = o * jnp.tanh(c)
    return h @ params["fc_w"].T + params["fc_b"]


if __name__ == "__main__":
    key = jax.random.PRNGKey(0)
    k_p, k_x = jax.random.split(key)

    B, T, C, H, W = 2, 8, 3, 16, 16
    n_classes, hidden, feat = 10, 64, 512

    params = init_params(k_p, n_classes=n_classes, hidden=hidden, feat=feat, in_ch=C)
    x = jax.random.normal(k_x, (B, T, C, H, W), jnp.float32)

    # Weight relayout/padding happens once, outside the jitted per-call path.
    prepared = prepare_params(params)

    fwd = jax.jit(cnn_lstm_forward)
    logits = jax.block_until_ready(fwd(prepared, x))

    ref = jax.block_until_ready(reference_forward(params, x))
    assert logits.shape == (B, n_classes)
    assert jnp.allclose(logits, ref, atol=1e-4, rtol=1e-4), (logits, ref)

    print("KERNEL_OK")
</pallas_src>

<mosaic_0001>
module attributes {stable_mosaic.version = 11 : i64} {
  func.func @_conv_gap_kernel(%arg0: i32, %arg1: memref<1024x128xf32, #tpu.memory_space<vmem>>, %arg2: memref<512x128xf32, #tpu.memory_space<vmem>>, %arg3: memref<1x512xf32, #tpu.memory_space<vmem>>, %arg4: memref<1x4x512xf32, #tpu.memory_space<vmem>>) attributes {dimension_semantics = [#tpu.dimension_semantics<parallel>], iteration_bounds = array<i64: 4>, scalar_prefetch = 0 : i64, scratch_operands = 0 : i64, tpu.core_type = #tpu.core_type<tc>, window_params = [{transform_indices = @transform_0, window_bounds = array<i64: 1024, 128>}, {pipeline_mode = #tpu.pipeline_mode<synchronous>, transform_indices = @transform_1, window_bounds = array<i64: 512, 128>}, {pipeline_mode = #tpu.pipeline_mode<synchronous>, transform_indices = @transform_2, window_bounds = array<i64: 1, 512>}, {transform_indices = @transform_3, window_bounds = array<i64: 1, 4, 512>}]} {
    %c0 = arith.constant 0 : index
    %c0_0 = arith.constant 0 : index
    %0 = vector.load %arg3[%c0, %c0_0] : memref<1x512xf32, #tpu.memory_space<vmem>>, vector<1x512xf32>
    %cst = arith.constant 0.000000e+00 : f32
    %1 = vector.broadcast %cst : f32 to vector<1x512xf32>
    %c0_1 = arith.constant 0 : index
    %c0_2 = arith.constant 0 : index
    %2 = vector.load %arg1[%c0_1, %c0_2] : memref<1024x128xf32, #tpu.memory_space<vmem>>, vector<64x128xf32>
    %c0_3 = arith.constant 0 : index
    %c0_4 = arith.constant 0 : index
    %3 = vector.load %arg2[%c0_3, %c0_4] : memref<512x128xf32, #tpu.memory_space<vmem>>, vector<512x128xf32>
    %cst_5 = arith.constant dense<0.000000e+00> : vector<64x512xf32>
    %4 = tpu.matmul %2, %3, %cst_5 {dimension_numbers = #tpu.dot_dimension_numbers<[1], [1], [0], [0], [0, 0, 1, 0], [], []>} : vector<64x128xf32>, vector<512x128xf32>, vector<64x512xf32> -> vector<64x512xf32>
    %5 = vector.broadcast %0 : vector<1x512xf32> to vector<64x512xf32>
    %6 = arith.addf %4, %5 : vector<64x512xf32>
    %cst_6 = arith.constant 0.000000e+00 : f32
    %7 = vector.broadcast %cst_6 : f32 to vector<64x512xf32>
    %8 = arith.maximumf %6, %7 : vector<64x512xf32>
    %cst_7 = arith.constant dense<0.000000e+00> : vector<512xf32>
    %9 = vector.multi_reduction <add>, %8, %cst_7 [0] : vector<64x512xf32> to vector<512xf32>
    %10 = vector.shape_cast %9 : vector<512xf32> to vector<1x512xf32>
    %11 = arith.addf %1, %10 : vector<1x512xf32>
    %c64 = arith.constant 64 : index
    %c0_8 = arith.constant 0 : index
    %12 = vector.load %arg1[%c64, %c0_8] : memref<1024x128xf32, #tpu.memory_space<vmem>>, vector<64x128xf32>
    %c0_9 = arith.constant 0 : index
    %c0_10 = arith.constant 0 : index
    %13 = vector.load %arg2[%c0_9, %c0_10] : memref<512x128xf32, #tpu.memory_space<vmem>>, vector<512x128xf32>
    %cst_11 = arith.constant dense<0.000000e+00> : vector<64x512xf32>
    %14 = tpu.matmul %12, %13, %cst_11 {dimension_numbers = #tpu.dot_dimension_numbers<[1], [1], [0], [0], [0, 0, 1, 0], [], []>} : vector<64x128xf32>, vector<512x128xf32>, vector<64x512xf32> -> vector<64x512xf32>
    %15 = vector.broadcast %0 : vector<1x512xf32> to vector<64x512xf32>
    %16 = arith.addf %14, %15 : vector<64x512xf32>
    %cst_12 = arith.constant 0.000000e+00 : f32
    %17 = vector.broadcast %cst_12 : f32 to vector<64x512xf32>
    %18 = arith.maximumf %16, %17 : vector<64x512xf32>
    %cst_13 = arith.constant dense<0.000000e+00> : vector<512xf32>
    %19 = vector.multi_reduction <add>, %18, %cst_13 [0] : vector<64x512xf32> to vector<512xf32>
    %20 = vector.shape_cast %19 : vector<512xf32> to vector<1x512xf32>
    %21 = arith.addf %11, %20 : vector<1x512xf32>
    %c128 = arith.constant 128 : index
    %c0_14 = arith.constant 0 : index
    %22 = vector.load %arg1[%c128, %c0_14] : memref<1024x128xf32, #tpu.memory_space<vmem>>, vector<64x128xf32>
    %c0_15 = arith.constant 0 : index
    %c0_16 = arith.constant 0 : index
    %23 = vector.load %arg2[%c0_15, %c0_16] : memref<512x128xf32, #tpu.memory_space<vmem>>, vector<512x128xf32>
    %cst_17 = arith.constant dense<0.000000e+00> : vector<64x512xf32>
    %24 = tpu.matmul %22, %23, %cst_17 {dimension_numbers = #tpu.dot_dimension_numbers<[1], [1], [0], [0], [0, 0, 1, 0], [], []>} : vector<64x128xf32>, vector<512x128xf32>, vector<64x512xf32> -> vector<64x512xf32>
    %25 = vector.broadcast %0 : vector<1x512xf32> to vector<64x512xf32>
    %26 = arith.addf %24, %25 : vector<64x512xf32>
    %cst_18 = arith.constant 0.000000e+00 : f32
    %27 = vector.broadcast %cst_18 : f32 to vector<64x512xf32>
    %28 = arith.maximumf %26, %27 : vector<64x512xf32>
    %cst_19 = arith.constant dense<0.000000e+00> : vector<512xf32>
    %29 = vector.multi_reduction <add>, %28, %cst_19 [0] : vector<64x512xf32> to vector<512xf32>
    %30 = vector.shape_cast %29 : vector<512xf32> to vector<1x512xf32>
    %31 = arith.addf %21, %30 : vector<1x512xf32>
    %c192 = arith.constant 192 : index
    %c0_20 = arith.constant 0 : index
    %32 = vector.load %arg1[%c192, %c0_20] : memref<1024x128xf32, #tpu.memory_space<vmem>>, vector<64x128xf32>
    %c0_21 = arith.constant 0 : index
    %c0_22 = arith.constant 0 : index
    %33 = vector.load %arg2[%c0_21, %c0_22] : memref<512x128xf32, #tpu.memory_space<vmem>>, vector<512x128xf32>
    %cst_23 = arith.constant dense<0.000000e+00> : vector<64x512xf32>
    %34 = tpu.matmul %32, %33, %cst_23 {dimension_numbers = #tpu.dot_dimension_numbers<[1], [1], [0], [0], [0, 0, 1, 0], [], []>} : vector<64x128xf32>, vector<512x128xf32>, vector<64x512xf32> -> vector<64x512xf32>
    %35 = vector.broadcast %0 : vector<1x512xf32> to vector<64x512xf32>
    %36 = arith.addf %34, %35 : vector<64x512xf32>
    %cst_24 = arith.constant 0.000000e+00 : f32
    %37 = vector.broadcast %cst_24 : f32 to vector<64x512xf32>
    %38 = arith.maximumf %36, %37 : vector<64x512xf32>
    %cst_25 = arith.constant dense<0.000000e+00> : vector<512xf32>
    %39 = vector.multi_reduction <add>, %38, %cst_25 [0] : vector<64x512xf32> to vector<512xf32>
    %40 = vector.shape_cast %39 : vector<512xf32> to vector<1x512xf32>
    %41 = arith.addf %31, %40 : vector<1x512xf32>
    %cst_26 = arith.constant 3.906250e-03 : f32
    %42 = vector.broadcast %cst_26 : f32 to vector<1x512xf32>
    %43 = arith.mulf %41, %42 : vector<1x512xf32>
    %44 = vector.shape_cast %43 : vector<1x512xf32> to vector<1x1x512xf32>
    %c0_27 = arith.constant 0 : index
    %c0_28 = arith.constant 0 : index
    %c0_29 = arith.constant 0 : index
    %45 = vector.load %arg4[%c0_27, %c0_28, %c0_29] : memref<1x4x512xf32, #tpu.memory_space<vmem>>, vector<1x1x512xf32>
    tpu.vector_store %arg4[%c0_27, %c0_28, %c0_29], %44 {strides = array<i32>} : memref<1x4x512xf32, #tpu.memory_space<vmem>>, vector<1x1x512xf32>,
    %cst_30 = arith.constant 0.000000e+00 : f32
    %46 = vector.broadcast %cst_30 : f32 to vector<1x512xf32>
    %c256 = arith.constant 256 : index
    %c0_31 = arith.constant 0 : index
    %47 = vector.load %arg1[%c256, %c0_31] : memref<1024x128xf32, #tpu.memory_space<vmem>>, vector<64x128xf32>
    %c0_32 = arith.constant 0 : index
    %c0_33 = arith.constant 0 : index
    %48 = vector.load %arg2[%c0_32, %c0_33] : memref<512x128xf32, #tpu.memory_space<vmem>>, vector<512x128xf32>
    %cst_34 = arith.constant dense<0.000000e+00> : vector<64x512xf32>
    %49 = tpu.matmul %47, %48, %cst_34 {dimension_numbers = #tpu.dot_dimension_numbers<[1], [1], [0], [0], [0, 0, 1, 0], [], []>} : vector<64x128xf32>, vector<512x128xf32>, vector<64x512xf32> -> vector<64x512xf32>
    %50 = vector.broadcast %0 : vector<1x512xf32> to vector<64x512xf32>
    %51 = arith.addf %49, %50 : vector<64x512xf32>
    %cst_35 = arith.constant 0.000000e+00 : f32
    %52 = vector.broadcast %cst_35 : f32 to vector<64x512xf32>
    %53 = arith.maximumf %51, %52 : vector<64x512xf32>
    %cst_36 = arith.constant dense<0.000000e+00> : vector<512xf32>
    %54 = vector.multi_reduction <add>, %53, %cst_36 [0] : vector<64x512xf32> to vector<512xf32>
    %55 = vector.shape_cast %54 : vector<512xf32> to vector<1x512xf32>
    %56 = arith.addf %46, %55 : vector<1x512xf32>
    %c320 = arith.constant 320 : index
    %c0_37 = arith.constant 0 : index
    %57 = vector.load %arg1[%c320, %c0_37] : memref<1024x128xf32, #tpu.memory_space<vmem>>, vector<64x128xf32>
    %c0_38 = arith.constant 0 : index
    %c0_39 = arith.constant 0 : index
    %58 = vector.load %arg2[%c0_38, %c0_39] : memref<512x128xf32, #tpu.memory_space<vmem>>, vector<512x128xf32>
    %cst_40 = arith.constant dense<0.000000e+00> : vector<64x512xf32>
    %59 = tpu.matmul %57, %58, %cst_40 {dimension_numbers = #tpu.dot_dimension_numbers<[1], [1], [0], [0], [0, 0, 1, 0], [], []>} : vector<64x128xf32>, vector<512x128xf32>, vector<64x512xf32> -> vector<64x512xf32>
    %60 = vector.broadcast %0 : vector<1x512xf32> to vector<64x512xf32>
    %61 = arith.addf %59, %60 : vector<64x512xf32>
    %cst_41 = arith.constant 0.000000e+00 : f32
    %62 = vector.broadcast %cst_41 : f32 to vector<64x512xf32>
    %63 = arith.maximumf %61, %62 : vector<64x512xf32>
    %cst_42 = arith.constant dense<0.000000e+00> : vector<512xf32>
    %64 = vector.multi_reduction <add>, %63, %cst_42 [0] : vector<64x512xf32> to vector<512xf32>
    %65 = vector.shape_cast %64 : vector<512xf32> to vector<1x512xf32>
    %66 = arith.addf %56, %65 : vector<1x512xf32>
    %c384 = arith.constant 384 : index
    %c0_43 = arith.constant 0 : index
    %67 = vector.load %arg1[%c384, %c0_43] : memref<1024x128xf32, #tpu.memory_space<vmem>>, vector<64x128xf32>
    %c0_44 = arith.constant 0 : index
    %c0_45 = arith.constant 0 : index
    %68 = vector.load %arg2[%c0_44, %c0_45] : memref<512x128xf32, #tpu.memory_space<vmem>>, vector<512x128xf32>
    %cst_46 = arith.constant dense<0.000000e+00> : vector<64x512xf32>
    %69 = tpu.matmul %67, %68, %cst_46 {dimension_numbers = #tpu.dot_dimension_numbers<[1], [1], [0], [0], [0, 0, 1, 0], [], []>} : vector<64x128xf32>, vector<512x128xf32>, vector<64x512xf32> -> vector<64x512xf32>
    %70 = vector.broadcast %0 : vector<1x512xf32> to vector<64x512xf32>
    %71 = arith.addf %69, %70 : vector<64x512xf32>
    %cst_47 = arith.constant 0.000000e+00 : f32
    %72 = vector.broadcast %cst_47 : f32 to vector<64x512xf32>
    %73 = arith.maximumf %71, %72 : vector<64x512xf32>
    %cst_48 = arith.constant dense<0.000000e+00> : vector<512xf32>
    %74 = vector.multi_reduction <add>, %73, %cst_48 [0] : vector<64x512xf32> to vector<512xf32>
    %75 = vector.shape_cast %74 : vector<512xf32> to vector<1x512xf32>
    %76 = arith.addf %66, %75 : vector<1x512xf32>
    %c448 = arith.constant 448 : index
    %c0_49 = arith.constant 0 : index
    %77 = vector.load %arg1[%c448, %c0_49] : memref<1024x128xf32, #tpu.memory_space<vmem>>, vector<64x128xf32>
    %c0_50 = arith.constant 0 : index
    %c0_51 = arith.constant 0 : index
    %78 = vector.load %arg2[%c0_50, %c0_51] : memref<512x128xf32, #tpu.memory_space<vmem>>, vector<512x128xf32>
    %cst_52 = arith.constant dense<0.000000e+00> : vector<64x512xf32>
    %79 = tpu.matmul %77, %78, %cst_52 {dimension_numbers = #tpu.dot_dimension_numbers<[1], [1], [0], [0], [0, 0, 1, 0], [], []>} : vector<64x128xf32>, vector<512x128xf32>, vector<64x512xf32> -> vector<64x512xf32>
    %80 = vector.broadcast %0 : vector<1x512xf32> to vector<64x512xf32>
    %81 = arith.addf %79, %80 : vector<64x512xf32>
    %cst_53 = arith.constant 0.000000e+00 : f32
    %82 = vector.broadcast %cst_53 : f32 to vector<64x512xf32>
    %83 = arith.maximumf %81, %82 : vector<64x512xf32>
    %cst_54 = arith.constant dense<0.000000e+00> : vector<512xf32>
    %84 = vector.multi_reduction <add>, %83, %cst_54 [0] : vector<64x512xf32> to vector<512xf32>
    %85 = vector.shape_cast %84 : vector<512xf32> to vector<1x512xf32>
    %86 = arith.addf %76, %85 : vector<1x512xf32>
    %cst_55 = arith.constant 3.906250e-03 : f32
    %87 = vector.broadcast %cst_55 : f32 to vector<1x512xf32>
    %88 = arith.mulf %86, %87 : vector<1x512xf32>
    %89 = vector.shape_cast %88 : vector<1x512xf32> to vector<1x1x512xf32>
    %c0_56 = arith.constant 0 : index
    %c1 = arith.constant 1 : index
    %c0_57 = arith.constant 0 : index
    %90 = vector.load %arg4[%c0_56, %c1, %c0_57] : memref<1x4x512xf32, #tpu.memory_space<vmem>>, vector<1x1x512xf32>
    tpu.vector_store %arg4[%c0_56, %c1, %c0_57], %89 {strides = array<i32>} : memref<1x4x512xf32, #tpu.memory_space<vmem>>, vector<1x1x512xf32>,
    %cst_58 = arith.constant 0.000000e+00 : f32
    %91 = vector.broadcast %cst_58 : f32 to vector<1x512xf32>
    %c512 = arith.constant 512 : index
    %c0_59 = arith.constant 0 : index
    %92 = vector.load %arg1[%c512, %c0_59] : memref<1024x128xf32, #tpu.memory_space<vmem>>, vector<64x128xf32>
    %c0_60 = arith.constant 0 : index
    %c0_61 = arith.constant 0 : index
    %93 = vector.load %arg2[%c0_60, %c0_61] : memref<512x128xf32, #tpu.memory_space<vmem>>, vector<512x128xf32>
    %cst_62 = arith.constant dense<0.000000e+00> : vector<64x512xf32>
    %94 = tpu.matmul %92, %93, %cst_62 {dimension_numbers = #tpu.dot_dimension_numbers<[1], [1], [0], [0], [0, 0, 1, 0], [], []>} : vector<64x128xf32>, vector<512x128xf32>, vector<64x512xf32> -> vector<64x512xf32>
    %95 = vector.broadcast %0 : vector<1x512xf32> to vector<64x512xf32>
    %96 = arith.addf %94, %95 : vector<64x512xf32>
    %cst_63 = arith.constant 0.000000e+00 : f32
    %97 = vector.broadcast %cst_63 : f32 to vector<64x512xf32>
    %98 = arith.maximumf %96, %97 : vector<64x512xf32>
    %cst_64 = arith.constant dense<0.000000e+00> : vector<512xf32>
    %99 = vector.multi_reduction <add>, %98, %cst_64 [0] : vector<64x512xf32> to vector<512xf32>
    %100 = vector.shape_cast %99 : vector<512xf32> to vector<1x512xf32>
    %101 = arith.addf %91, %100 : vector<1x512xf32>
    %c576 = arith.constant 576 : index
    %c0_65 = arith.constant 0 : index
    %102 = vector.load %arg1[%c576, %c0_65] : memref<1024x128xf32, #tpu.memory_space<vmem>>, vector<64x128xf32>
    %c0_66 = arith.constant 0 : index
    %c0_67 = arith.constant 0 : index
    %103 = vector.load %arg2[%c0_66, %c0_67] : memref<512x128xf32, #tpu.memory_space<vmem>>, vector<512x128xf32>
    %cst_68 = arith.constant dense<0.000000e+00> : vector<64x512xf32>
    %104 = tpu.matmul %102, %103, %cst_68 {dimension_numbers = #tpu.dot_dimension_numbers<[1], [1], [0], [0], [0, 0, 1, 0], [], []>} : vector<64x128xf32>, vector<512x128xf32>, vector<64x512xf32> -> vector<64x512xf32>
    %105 = vector.broadcast %0 : vector<1x512xf32> to vector<64x512xf32>
    %106 = arith.addf %104, %105 : vector<64x512xf32>
    %cst_69 = arith.constant 0.000000e+00 : f32
    %107 = vector.broadcast %cst_69 : f32 to vector<64x512xf32>
    %108 = arith.maximumf %106, %107 : vector<64x512xf32>
    %cst_70 = arith.constant dense<0.000000e+00> : vector<512xf32>
    %109 = vector.multi_reduction <add>, %108, %cst_70 [0] : vector<64x512xf32> to vector<512xf32>
    %110 = vector.shape_cast %109 : vector<512xf32> to vector<1x512xf32>
    %111 = arith.addf %101, %110 : vector<1x512xf32>
    %c640 = arith.constant 640 : index
    %c0_71 = arith.constant 0 : index
    %112 = vector.load %arg1[%c640, %c0_71] : memref<1024x128xf32, #tpu.memory_space<vmem>>, vector<64x128xf32>
    %c0_72 = arith.constant 0 : index
    %c0_73 = arith.constant 0 : index
    %113 = vector.load %arg2[%c0_72, %c0_73] : memref<512x128xf32, #tpu.memory_space<vmem>>, vector<512x128xf32>
    %cst_74 = arith.constant dense<0.000000e+00> : vector<64x512xf32>
    %114 = tpu.matmul %112, %113, %cst_74 {dimension_numbers = #tpu.dot_dimension_numbers<[1], [1], [0], [0], [0, 0, 1, 0], [], []>} : vector<64x128xf32>, vector<512x128xf32>, vector<64x512xf32> -> vector<64x512xf32>
    %115 = vector.broadcast %0 : vector<1x512xf32> to vector<64x512xf32>
    %116 = arith.addf %114, %115 : vector<64x512xf32>
    %cst_75 = arith.constant 0.000000e+00 : f32
    %117 = vector.broadcast %cst_75 : f32 to vector<64x512xf32>
    %118 = arith.maximumf %116, %117 : vector<64x512xf32>
    %cst_76 = arith.constant dense<0.000000e+00> : vector<512xf32>
    %119 = vector.multi_reduction <add>, %118, %cst_76 [0] : vector<64x512xf32> to vector<512xf32>
    %120 = vector.shape_cast %119 : vector<512xf32> to vector<1x512xf32>
    %121 = arith.addf %111, %120 : vector<1x512xf32>
    %c704 = arith.constant 704 : index
    %c0_77 = arith.constant 0 : index
    %122 = vector.load %arg1[%c704, %c0_77] : memref<1024x128xf32, #tpu.memory_space<vmem>>, vector<64x128xf32>
    %c0_78 = arith.constant 0 : index
    %c0_79 = arith.constant 0 : index
    %123 = vector.load %arg2[%c0_78, %c0_79] : memref<512x128xf32, #tpu.memory_space<vmem>>, vector<512x128xf32>
    %cst_80 = arith.constant dense<0.000000e+00> : vector<64x512xf32>
    %124 = tpu.matmul %122, %123, %cst_80 {dimension_numbers = #tpu.dot_dimension_numbers<[1], [1], [0], [0], [0, 0, 1, 0], [], []>} : vector<64x128xf32>, vector<512x128xf32>, vector<64x512xf32> -> vector<64x512xf32>
    %125 = vector.broadcast %0 : vector<1x512xf32> to vector<64x512xf32>
    %126 = arith.addf %124, %125 : vector<64x512xf32>
    %cst_81 = arith.constant 0.000000e+00 : f32
    %127 = vector.broadcast %cst_81 : f32 to vector<64x512xf32>
    %128 = arith.maximumf %126, %127 : vector<64x512xf32>
    %cst_82 = arith.constant dense<0.000000e+00> : vector<512xf32>
    %129 = vector.multi_reduction <add>, %128, %cst_82 [0] : vector<64x512xf32> to vector<512xf32>
    %130 = vector.shape_cast %129 : vector<512xf32> to vector<1x512xf32>
    %131 = arith.addf %121, %130 : vector<1x512xf32>
    %cst_83 = arith.constant 3.906250e-03 : f32
    %132 = vector.broadcast %cst_83 : f32 to vector<1x512xf32>
    %133 = arith.mulf %131, %132 : vector<1x512xf32>
    %134 = vector.shape_cast %133 : vector<1x512xf32> to vector<1x1x512xf32>
    %c0_84 = arith.constant 0 : index
    %c2 = arith.constant 2 : index
    %c0_85 = arith.constant 0 : index
    %135 = vector.load %arg4[%c0_84, %c2, %c0_85] : memref<1x4x512xf32, #tpu.memory_space<vmem>>, vector<1x1x512xf32>
    tpu.vector_store %arg4[%c0_84, %c2, %c0_85], %134 {strides = array<i32>} : memref<1x4x512xf32, #tpu.memory_space<vmem>>, vector<1x1x512xf32>,
    %cst_86 = arith.constant 0.000000e+00 : f32
    %136 = vector.broadcast %cst_86 : f32 to vector<1x512xf32>
    %c768 = arith.constant 768 : index
    %c0_87 = arith.constant 0 : index
    %137 = vector.load %arg1[%c768, %c0_87] : memref<1024x128xf32, #tpu.memory_space<vmem>>, vector<64x128xf32>
    %c0_88 = arith.constant 0 : index
    %c0_89 = arith.constant 0 : index
    %138 = vector.load %arg2[%c0_88, %c0_89] : memref<512x128xf32, #tpu.memory_space<vmem>>, vector<512x128xf32>
    %cst_90 = arith.constant dense<0.000000e+00> : vector<64x512xf32>
    %139 = tpu.matmul %137, %138, %cst_90 {dimension_numbers = #tpu.dot_dimension_numbers<[1], [1], [0], [0], [0, 0, 1, 0], [], []>} : vector<64x128xf32>, vector<512x128xf32>, vector<64x512xf32> -> vector<64x512xf32>
    %140 = vector.broadcast %0 : vector<1x512xf32> to vector<64x512xf32>
    %141 = arith.addf %139, %140 : vector<64x512xf32>
    %cst_91 = arith.constant 0.000000e+00 : f32
    %142 = vector.broadcast %cst_91 : f32 to vector<64x512xf32>
    %143 = arith.maximumf %141, %142 : vector<64x512xf32>
    %cst_92 = arith.constant dense<0.000000e+00> : vector<512xf32>
    %144 = vector.multi_reduction <add>, %143, %cst_92 [0] : vector<64x512xf32> to vector<512xf32>
    %145 = vector.shape_cast %144 : vector<512xf32> to vector<1x512xf32>
    %146 = arith.addf %136, %145 : vector<1x512xf32>
    %c832 = arith.constant 832 : index
    %c0_93 = arith.constant 0 : index
    %147 = vector.load %arg1[%c832, %c0_93] : memref<1024x128xf32, #tpu.memory_space<vmem>>, vector<64x128xf32>
    %c0_94 = arith.constant 0 : index
    %c0_95 = arith.constant 0 : index
    %148 = vector.load %arg2[%c0_94, %c0_95] : memref<512x128xf32, #tpu.memory_space<vmem>>, vector<512x128xf32>
    %cst_96 = arith.constant dense<0.000000e+00> : vector<64x512xf32>
    %149 = tpu.matmul %147, %148, %cst_96 {dimension_numbers = #tpu.dot_dimension_numbers<[1], [1], [0], [0], [0, 0, 1, 0], [], []>} : vector<64x128xf32>, vector<512x128xf32>, vector<64x512xf32> -> vector<64x512xf32>
    %150 = vector.broadcast %0 : vector<1x512xf32> to vector<64x512xf32>
    %151 = arith.addf %149, %150 : vector<64x512xf32>
    %cst_97 = arith.constant 0.000000e+00 : f32
    %152 = vector.broadcast %cst_97 : f32 to vector<64x512xf32>
    %153 = arith.maximumf %151, %152 : vector<64x512xf32>
    %cst_98 = arith.constant dense<0.000000e+00> : vector<512xf32>
    %154 = vector.multi_reduction <add>, %153, %cst_98 [0] : vector<64x512xf32> to vector<512xf32>
    %155 = vector.shape_cast %154 : vector<512xf32> to vector<1x512xf32>
    %156 = arith.addf %146, %155 : vector<1x512xf32>
    %c896 = arith.constant 896 : index
    %c0_99 = arith.constant 0 : index
    %157 = vector.load %arg1[%c896, %c0_99] : memref<1024x128xf32, #tpu.memory_space<vmem>>, vector<64x128xf32>
    %c0_100 = arith.constant 0 : index
    %c0_101 = arith.constant 0 : index
    %158 = vector.load %arg2[%c0_100, %c0_101] : memref<512x128xf32, #tpu.memory_space<vmem>>, vector<512x128xf32>
    %cst_102 = arith.constant dense<0.000000e+00> : vector<64x512xf32>
    %159 = tpu.matmul %157, %158, %cst_102 {dimension_numbers = #tpu.dot_dimension_numbers<[1], [1], [0], [0], [0, 0, 1, 0], [], []>} : vector<64x128xf32>, vector<512x128xf32>, vector<64x512xf32> -> vector<64x512xf32>
    %160 = vector.broadcast %0 : vector<1x512xf32> to vector<64x512xf32>
    %161 = arith.addf %159, %160 : vector<64x512xf32>
    %cst_103 = arith.constant 0.000000e+00 : f32
    %162 = vector.broadcast %cst_103 : f32 to vector<64x512xf32>
    %163 = arith.maximumf %161, %162 : vector<64x512xf32>
    %cst_104 = arith.constant dense<0.000000e+00> : vector<512xf32>
    %164 = vector.multi_reduction <add>, %163, %cst_104 [0] : vector<64x512xf32> to vector<512xf32>
    %165 = vector.shape_cast %164 : vector<512xf32> to vector<1x512xf32>
    %166 = arith.addf %156, %165 : vector<1x512xf32>
    %c960 = arith.constant 960 : index
    %c0_105 = arith.constant 0 : index
    %167 = vector.load %arg1[%c960, %c0_105] : memref<1024x128xf32, #tpu.memory_space<vmem>>, vector<64x128xf32>
    %c0_106 = arith.constant 0 : index
    %c0_107 = arith.constant 0 : index
    %168 = vector.load %arg2[%c0_106, %c0_107] : memref<512x128xf32, #tpu.memory_space<vmem>>, vector<512x128xf32>
    %cst_108 = arith.constant dense<0.000000e+00> : vector<64x512xf32>
    %169 = tpu.matmul %167, %168, %cst_108 {dimension_numbers = #tpu.dot_dimension_numbers<[1], [1], [0], [0], [0, 0, 1, 0], [], []>} : vector<64x128xf32>, vector<512x128xf32>, vector<64x512xf32> -> vector<64x512xf32>
    %170 = vector.broadcast %0 : vector<1x512xf32> to vector<64x512xf32>
    %171 = arith.addf %169, %170 : vector<64x512xf32>
    %cst_109 = arith.constant 0.000000e+00 : f32
    %172 = vector.broadcast %cst_109 : f32 to vector<64x512xf32>
    %173 = arith.maximumf %171, %172 : vector<64x512xf32>
    %cst_110 = arith.constant dense<0.000000e+00> : vector<512xf32>
    %174 = vector.multi_reduction <add>, %173, %cst_110 [0] : vector<64x512xf32> to vector<512xf32>
    %175 = vector.shape_cast %174 : vector<512xf32> to vector<1x512xf32>
    %176 = arith.addf %166, %175 : vector<1x512xf32>
    %cst_111 = arith.constant 3.906250e-03 : f32
    %177 = vector.broadcast %cst_111 : f32 to vector<1x512xf32>
    %178 = arith.mulf %176, %177 : vector<1x512xf32>
    %179 = vector.shape_cast %178 : vector<1x512xf32> to vector<1x1x512xf32>
    %c0_112 = arith.constant 0 : index
    %c3 = arith.constant 3 : index
    %c0_113 = arith.constant 0 : index
    %180 = vector.load %arg4[%c0_112, %c3, %c0_113] : memref<1x4x512xf32, #tpu.memory_space<vmem>>, vector<1x1x512xf32>
    tpu.vector_store %arg4[%c0_112, %c3, %c0_113], %179 {strides = array<i32>} : memref<1x4x512xf32, #tpu.memory_space<vmem>>, vector<1x1x512xf32>,
    return
  }
  func.func @transform_0(%arg0: i32) -> (i32, i32) {
    %c0_i32 = arith.constant 0 : i32
    %c0_i32_0 = arith.constant 0 : i32
    return %arg0, %c0_i32 : i32, i32
  }
  func.func @transform_1(%arg0: i32) -> (i32, i32) {
    %c0_i32 = arith.constant 0 : i32
    %c0_i32_0 = arith.constant 0 : i32
    %c0_i32_1 = arith.constant 0 : i32
    return %c0_i32, %c0_i32_0 : i32, i32
  }
  func.func @transform_2(%arg0: i32) -> (i32, i32) {
    %c0_i32 = arith.constant 0 : i32
    %c0_i32_0 = arith.constant 0 : i32
    %c0_i32_1 = arith.constant 0 : i32
    return %c0_i32, %c0_i32_0 : i32, i32
  }
  func.func @transform_3(%arg0: i32) -> (i32, i32, i32) {
    %c0_i32 = arith.constant 0 : i32
    %c0_i32_0 = arith.constant 0 : i32
    %c0_i32_1 = arith.constant 0 : i32
    return %arg0, %c0_i32, %c0_i32_0 : i32, i32, i32
  }
}

module attributes {stable_mosaic.version = 11 : i64} {
  func.func @_lstm_fc_kernel(%arg0: i32, %arg1: memref<16x512xf32, #tpu.memory_space<vmem>>, %arg2: memref<512x512xf32, #tpu.memory_space<vmem>>, %arg3: memref<1x512xf32, #tpu.memory_space<vmem>>, %arg4: memref<512x128xf32, #tpu.memory_space<vmem>>, %arg5: memref<10x128xf32, #tpu.memory_space<vmem>>, %arg6: memref<1x10xf32, #tpu.memory_space<vmem>>, %arg7: memref<2x10xf32, #tpu.memory_space<vmem>>, %arg8: memref<16x512xf32, #tpu.memory_space<vmem>>) attributes {dimension_semantics = [#tpu.dimension_semantics<arbitrary>], iteration_bounds = array<i64: 1>, scalar_prefetch = 0 : i64, scratch_operands = 1 : i64, tpu.core_type = #tpu.core_type<tc>, window_params = [{pipeline_mode = #tpu.pipeline_mode<synchronous>, transform_indices = @transform_0, window_bounds = array<i64: 16, 512>}, {pipeline_mode = #tpu.pipeline_mode<synchronous>, transform_indices = @transform_1, window_bounds = array<i64: 512, 512>}, {pipeline_mode = #tpu.pipeline_mode<synchronous>, transform_indices = @transform_2, window_bounds = array<i64: 1, 512>}, {pipeline_mode = #tpu.pipeline_mode<synchronous>, transform_indices = @transform_3, window_bounds = array<i64: 512, 128>}, {pipeline_mode = #tpu.pipeline_mode<synchronous>, transform_indices = @transform_4, window_bounds = array<i64: 10, 128>}, {pipeline_mode = #tpu.pipeline_mode<synchronous>, transform_indices = @transform_5, window_bounds = array<i64: 1, 10>}, {pipeline_mode = #tpu.pipeline_mode<synchronous>, transform_indices = @transform_6, window_bounds = array<i64: 2, 10>}]} {
    %c0 = arith.constant 0 : index
    %c0_0 = arith.constant 0 : index
    %0 = vector.load %arg1[%c0, %c0_0] : memref<16x512xf32, #tpu.memory_space<vmem>>, vector<16x512xf32>
    %c0_1 = arith.constant 0 : index
    %c0_2 = arith.constant 0 : index
    %1 = vector.load %arg2[%c0_1, %c0_2] : memref<512x512xf32, #tpu.memory_space<vmem>>, vector<512x512xf32>
    %cst = arith.constant dense<0.000000e+00> : vector<16x512xf32>
    %2 = tpu.matmul %0, %1, %cst {dimension_numbers = #tpu.dot_dimension_numbers<[1], [1], [0], [0], [0, 0, 1, 0], [], []>} : vector<16x512xf32>, vector<512x512xf32>, vector<16x512xf32> -> vector<16x512xf32>
    %c0_3 = arith.constant 0 : index
    %c0_4 = arith.constant 0 : index
    %3 = vector.load %arg3[%c0_3, %c0_4] : memref<1x512xf32, #tpu.memory_space<vmem>>, vector<1x512xf32>
    %4 = vector.broadcast %3 : vector<1x512xf32> to vector<16x512xf32>
    %5 = arith.addf %2, %4 : vector<16x512xf32>
    %c0_5 = arith.constant 0 : index
    %c0_6 = arith.constant 0 : index
    %6 = vector.load %arg8[%c0_5, %c0_6] : memref<16x512xf32, #tpu.memory_space<vmem>>, vector<16x512xf32>
    tpu.vector_store %arg8[%c0_5, %c0_6], %5 {strides = array<i32>} : memref<16x512xf32, #tpu.memory_space<vmem>>, vector<16x512xf32>,
    %cst_7 = arith.constant 0.000000e+00 : f32
    %7 = vector.broadcast %cst_7 : f32 to vector<2x128xf32>
    %cst_8 = arith.constant 0.000000e+00 : f32
    %8 = vector.broadcast %cst_8 : f32 to vector<2x128xf32>
    %c0_9 = arith.constant 0 : index
    %c0_10 = arith.constant 0 : index
    %9 = vector.load %arg8[%c0_9, %c0_10] : memref<16x512xf32, #tpu.memory_space<vmem>>, vector<2x512xf32>
    %c0_11 = arith.constant 0 : index
    %c0_12 = arith.constant 0 : index
    %10 = vector.load %arg4[%c0_11, %c0_12] : memref<512x128xf32, #tpu.memory_space<vmem>>, vector<512x128xf32>
    %cst_13 = arith.constant dense<0.000000e+00> : vector<2x512xf32>
    %11 = tpu.matmul %7, %10, %cst_13 {dimension_numbers = #tpu.dot_dimension_numbers<[1], [1], [0], [0], [0, 0, 1, 0], [], []>} : vector<2x128xf32>, vector<512x128xf32>, vector<2x512xf32> -> vector<2x512xf32>
    %12 = arith.addf %9, %11 : vector<2x512xf32>
    %13 = vector.extract_strided_slice %12 {offsets = [0, 0], sizes = [2, 128], strides = [1, 1]} : vector<2x512xf32> to vector<2x128xf32>
    %14 = arith.negf %13 : vector<2x128xf32>
    %15 = math.exp %14 : vector<2x128xf32>
    %cst_14 = arith.constant 1.000000e+00 : f32
    %16 = vector.broadcast %cst_14 : f32 to vector<2x128xf32>
    %17 = arith.addf %16, %15 : vector<2x128xf32>
    %18 = arith.divf %16, %17 : vector<2x128xf32>
    %19 = vector.extract_strided_slice %12 {offsets = [0, 128], sizes = [2, 128], strides = [1, 1]} : vector<2x512xf32> to vector<2x128xf32>
    %20 = arith.negf %19 : vector<2x128xf32>
    %21 = math.exp %20 : vector<2x128xf32>
    %cst_15 = arith.constant 1.000000e+00 : f32
    %22 = vector.broadcast %cst_15 : f32 to vector<2x128xf32>
    %23 = arith.addf %22, %21 : vector<2x128xf32>
    %24 = arith.divf %22, %23 : vector<2x128xf32>
    %25 = vector.extract_strided_slice %12 {offsets = [0, 256], sizes = [2, 128], strides = [1, 1]} : vector<2x512xf32> to vector<2x128xf32>
    %26 = math.tanh %25 : vector<2x128xf32>
    %27 = vector.extract_strided_slice %12 {offsets = [0, 384], sizes = [2, 128], strides = [1, 1]} : vector<2x512xf32> to vector<2x128xf32>
    %28 = arith.negf %27 : vector<2x128xf32>
    %29 = math.exp %28 : vector<2x128xf32>
    %cst_16 = arith.constant 1.000000e+00 : f32
    %30 = vector.broadcast %cst_16 : f32 to vector<2x128xf32>
    %31 = arith.addf %30, %29 : vector<2x128xf32>
    %32 = arith.divf %30, %31 : vector<2x128xf32>
    %33 = arith.mulf %24, %8 : vector<2x128xf32>
    %34 = arith.mulf %18, %26 : vector<2x128xf32>
    %35 = arith.addf %33, %34 : vector<2x128xf32>
    %36 = math.tanh %35 : vector<2x128xf32>
    %37 = arith.mulf %32, %36 : vector<2x128xf32>
    %c2 = arith.constant 2 : index
    %c0_17 = arith.constant 0 : index
    %38 = vector.load %arg8[%c2, %c0_17] : memref<16x512xf32, #tpu.memory_space<vmem>>, vector<2x512xf32>
    %c0_18 = arith.constant 0 : index
    %c0_19 = arith.constant 0 : index
    %39 = vector.load %arg4[%c0_18, %c0_19] : memref<512x128xf32, #tpu.memory_space<vmem>>, vector<512x128xf32>
    %cst_20 = arith.constant dense<0.000000e+00> : vector<2x512xf32>
    %40 = tpu.matmul %37, %39, %cst_20 {dimension_numbers = #tpu.dot_dimension_numbers<[1], [1], [0], [0], [0, 0, 1, 0], [], []>} : vector<2x128xf32>, vector<512x128xf32>, vector<2x512xf32> -> vector<2x512xf32>
    %41 = arith.addf %38, %40 : vector<2x512xf32>
    %42 = vector.extract_strided_slice %41 {offsets = [0, 0], sizes = [2, 128], strides = [1, 1]} : vector<2x512xf32> to vector<2x128xf32>
    %43 = arith.negf %42 : vector<2x128xf32>
    %44 = math.exp %43 : vector<2x128xf32>
    %cst_21 = arith.constant 1.000000e+00 : f32
    %45 = vector.broadcast %cst_21 : f32 to vector<2x128xf32>
    %46 = arith.addf %45, %44 : vector<2x128xf32>
    %47 = arith.divf %45, %46 : vector<2x128xf32>
    %48 = vector.extract_strided_slice %41 {offsets = [0, 128], sizes = [2, 128], strides = [1, 1]} : vector<2x512xf32> to vector<2x128xf32>
    %49 = arith.negf %48 : vector<2x128xf32>
    %50 = math.exp %49 : vector<2x128xf32>
    %cst_22 = arith.constant 1.000000e+00 : f32
    %51 = vector.broadcast %cst_22 : f32 to vector<2x128xf32>
    %52 = arith.addf %51, %50 : vector<2x128xf32>
    %53 = arith.divf %51, %52 : vector<2x128xf32>
    %54 = vector.extract_strided_slice %41 {offsets = [0, 256], sizes = [2, 128], strides = [1, 1]} : vector<2x512xf32> to vector<2x128xf32>
    %55 = math.tanh %54 : vector<2x128xf32>
    %56 = vector.extract_strided_slice %41 {offsets = [0, 384], sizes = [2, 128], strides = [1, 1]} : vector<2x512xf32> to vector<2x128xf32>
    %57 = arith.negf %56 : vector<2x128xf32>
    %58 = math.exp %57 : vector<2x128xf32>
    %cst_23 = arith.constant 1.000000e+00 : f32
    %59 = vector.broadcast %cst_23 : f32 to vector<2x128xf32>
    %60 = arith.addf %59, %58 : vector<2x128xf32>
    %61 = arith.divf %59, %60 : vector<2x128xf32>
    %62 = arith.mulf %53, %35 : vector<2x128xf32>
    %63 = arith.mulf %47, %55 : vector<2x128xf32>
    %64 = arith.addf %62, %63 : vector<2x128xf32>
    %65 = math.tanh %64 : vector<2x128xf32>
    %66 = arith.mulf %61, %65 : vector<2x128xf32>
    %c4 = arith.constant 4 : index
    %c0_24 = arith.constant 0 : index
    %67 = vector.load %arg8[%c4, %c0_24] : memref<16x512xf32, #tpu.memory_space<vmem>>, vector<2x512xf32>
    %c0_25 = arith.constant 0 : index
    %c0_26 = arith.constant 0 : index
    %68 = vector.load %arg4[%c0_25, %c0_26] : memref<512x128xf32, #tpu.memory_space<vmem>>, vector<512x128xf32>
    %cst_27 = arith.constant dense<0.000000e+00> : vector<2x512xf32>
    %69 = tpu.matmul %66, %68, %cst_27 {dimension_numbers = #tpu.dot_dimension_numbers<[1], [1], [0], [0], [0, 0, 1, 0], [], []>} : vector<2x128xf32>, vector<512x128xf32>, vector<2x512xf32> -> vector<2x512xf32>
    %70 = arith.addf %67, %69 : vector<2x512xf32>
    %71 = vector.extract_strided_slice %70 {offsets = [0, 0], sizes = [2, 128], strides = [1, 1]} : vector<2x512xf32> to vector<2x128xf32>
    %72 = arith.negf %71 : vector<2x128xf32>
    %73 = math.exp %72 : vector<2x128xf32>
    %cst_28 = arith.constant 1.000000e+00 : f32
    %74 = vector.broadcast %cst_28 : f32 to vector<2x128xf32>
    %75 = arith.addf %74, %73 : vector<2x128xf32>
    %76 = arith.divf %74, %75 : vector<2x128xf32>
    %77 = vector.extract_strided_slice %70 {offsets = [0, 128], sizes = [2, 128], strides = [1, 1]} : vector<2x512xf32> to vector<2x128xf32>
    %78 = arith.negf %77 : vector<2x128xf32>
    %79 = math.exp %78 : vector<2x128xf32>
    %cst_29 = arith.constant 1.000000e+00 : f32
    %80 = vector.broadcast %cst_29 : f32 to vector<2x128xf32>
    %81 = arith.addf %80, %79 : vector<2x128xf32>
    %82 = arith.divf %80, %81 : vector<2x128xf32>
    %83 = vector.extract_strided_slice %70 {offsets = [0, 256], sizes = [2, 128], strides = [1, 1]} : vector<2x512xf32> to vector<2x128xf32>
    %84 = math.tanh %83 : vector<2x128xf32>
    %85 = vector.extract_strided_slice %70 {offsets = [0, 384], sizes = [2, 128], strides = [1, 1]} : vector<2x512xf32> to vector<2x128xf32>
    %86 = arith.negf %85 : vector<2x128xf32>
    %87 = math.exp %86 : vector<2x128xf32>
    %cst_30 = arith.constant 1.000000e+00 : f32
    %88 = vector.broadcast %cst_30 : f32 to vector<2x128xf32>
    %89 = arith.addf %88, %87 : vector<2x128xf32>
    %90 = arith.divf %88, %89 : vector<2x128xf32>
    %91 = arith.mulf %82, %64 : vector<2x128xf32>
    %92 = arith.mulf %76, %84 : vector<2x128xf32>
    %93 = arith.addf %91, %92 : vector<2x128xf32>
    %94 = math.tanh %93 : vector<2x128xf32>
    %95 = arith.mulf %90, %94 : vector<2x128xf32>
    %c6 = arith.constant 6 : index
    %c0_31 = arith.constant 0 : index
    %96 = vector.load %arg8[%c6, %c0_31] : memref<16x512xf32, #tpu.memory_space<vmem>>, vector<2x512xf32>
    %c0_32 = arith.constant 0 : index
    %c0_33 = arith.constant 0 : index
    %97 = vector.load %arg4[%c0_32, %c0_33] : memref<512x128xf32, #tpu.memory_space<vmem>>, vector<512x128xf32>
    %cst_34 = arith.constant dense<0.000000e+00> : vector<2x512xf32>
    %98 = tpu.matmul %95, %97, %cst_34 {dimension_numbers = #tpu.dot_dimension_numbers<[1], [1], [0], [0], [0, 0, 1, 0], [], []>} : vector<2x128xf32>, vector<512x128xf32>, vector<2x512xf32> -> vector<2x512xf32>
    %99 = arith.addf %96, %98 : vector<2x512xf32>
    %100 = vector.extract_strided_slice %99 {offsets = [0, 0], sizes = [2, 128], strides = [1, 1]} : vector<2x512xf32> to vector<2x128xf32>
    %101 = arith.negf %100 : vector<2x128xf32>
    %102 = math.exp %101 : vector<2x128xf32>
    %cst_35 = arith.constant 1.000000e+00 : f32
    %103 = vector.broadcast %cst_35 : f32 to vector<2x128xf32>
    %104 = arith.addf %103, %102 : vector<2x128xf32>
    %105 = arith.divf %103, %104 : vector<2x128xf32>
    %106 = vector.extract_strided_slice %99 {offsets = [0, 128], sizes = [2, 128], strides = [1, 1]} : vector<2x512xf32> to vector<2x128xf32>
    %107 = arith.negf %106 : vector<2x128xf32>
    %108 = math.exp %107 : vector<2x128xf32>
    %cst_36 = arith.constant 1.000000e+00 : f32
    %109 = vector.broadcast %cst_36 : f32 to vector<2x128xf32>
    %110 = arith.addf %109, %108 : vector<2x128xf32>
    %111 = arith.divf %109, %110 : vector<2x128xf32>
    %112 = vector.extract_strided_slice %99 {offsets = [0, 256], sizes = [2, 128], strides = [1, 1]} : vector<2x512xf32> to vector<2x128xf32>
    %113 = math.tanh %112 : vector<2x128xf32>
    %114 = vector.extract_strided_slice %99 {offsets = [0, 384], sizes = [2, 128], strides = [1, 1]} : vector<2x512xf32> to vector<2x128xf32>
    %115 = arith.negf %114 : vector<2x128xf32>
    %116 = math.exp %115 : vector<2x128xf32>
    %cst_37 = arith.constant 1.000000e+00 : f32
    %117 = vector.broadcast %cst_37 : f32 to vector<2x128xf32>
    %118 = arith.addf %117, %116 : vector<2x128xf32>
    %119 = arith.divf %117, %118 : vector<2x128xf32>
    %120 = arith.mulf %111, %93 : vector<2x128xf32>
    %121 = arith.mulf %105, %113 : vector<2x128xf32>
    %122 = arith.addf %120, %121 : vector<2x128xf32>
    %123 = math.tanh %122 : vector<2x128xf32>
    %124 = arith.mulf %119, %123 : vector<2x128xf32>
    %c8 = arith.constant 8 : index
    %c0_38 = arith.constant 0 : index
    %125 = vector.load %arg8[%c8, %c0_38] : memref<16x512xf32, #tpu.memory_space<vmem>>, vector<2x512xf32>
    %c0_39 = arith.constant 0 : index
    %c0_40 = arith.constant 0 : index
    %126 = vector.load %arg4[%c0_39, %c0_40] : memref<512x128xf32, #tpu.memory_space<vmem>>, vector<512x128xf32>
    %cst_41 = arith.constant dense<0.000000e+00> : vector<2x512xf32>
    %127 = tpu.matmul %124, %126, %cst_41 {dimension_numbers = #tpu.dot_dimension_numbers<[1], [1], [0], [0], [0, 0, 1, 0], [], []>} : vector<2x128xf32>, vector<512x128xf32>, vector<2x512xf32> -> vector<2x512xf32>
    %128 = arith.addf %125, %127 : vector<2x512xf32>
    %129 = vector.extract_strided_slice %128 {offsets = [0, 0], sizes = [2, 128], strides = [1, 1]} : vector<2x512xf32> to vector<2x128xf32>
    %130 = arith.negf %129 : vector<2x128xf32>
    %131 = math.exp %130 : vector<2x128xf32>
    %cst_42 = arith.constant 1.000000e+00 : f32
    %132 = vector.broadcast %cst_42 : f32 to vector<2x128xf32>
    %133 = arith.addf %132, %131 : vector<2x128xf32>
    %134 = arith.divf %132, %133 : vector<2x128xf32>
    %135 = vector.extract_strided_slice %128 {offsets = [0, 128], sizes = [2, 128], strides = [1, 1]} : vector<2x512xf32> to vector<2x128xf32>
    %136 = arith.negf %135 : vector<2x128xf32>
    %137 = math.exp %136 : vector<2x128xf32>
    %cst_43 = arith.constant 1.000000e+00 : f32
    %138 = vector.broadcast %cst_43 : f32 to vector<2x128xf32>
    %139 = arith.addf %138, %137 : vector<2x128xf32>
    %140 = arith.divf %138, %139 : vector<2x128xf32>
    %141 = vector.extract_strided_slice %128 {offsets = [0, 256], sizes = [2, 128], strides = [1, 1]} : vector<2x512xf32> to vector<2x128xf32>
    %142 = math.tanh %141 : vector<2x128xf32>
    %143 = vector.extract_strided_slice %128 {offsets = [0, 384], sizes = [2, 128], strides = [1, 1]} : vector<2x512xf32> to vector<2x128xf32>
    %144 = arith.negf %143 : vector<2x128xf32>
    %145 = math.exp %144 : vector<2x128xf32>
    %cst_44 = arith.constant 1.000000e+00 : f32
    %146 = vector.broadcast %cst_44 : f32 to vector<2x128xf32>
    %147 = arith.addf %146, %145 : vector<2x128xf32>
    %148 = arith.divf %146, %147 : vector<2x128xf32>
    %149 = arith.mulf %140, %122 : vector<2x128xf32>
    %150 = arith.mulf %134, %142 : vector<2x128xf32>
    %151 = arith.addf %149, %150 : vector<2x128xf32>
    %152 = math.tanh %151 : vector<2x128xf32>
    %153 = arith.mulf %148, %152 : vector<2x128xf32>
    %c10 = arith.constant 10 : index
    %c0_45 = arith.constant 0 : index
    %154 = vector.load %arg8[%c10, %c0_45] : memref<16x512xf32, #tpu.memory_space<vmem>>, vector<2x512xf32>
    %c0_46 = arith.constant 0 : index
    %c0_47 = arith.constant 0 : index
    %155 = vector.load %arg4[%c0_46, %c0_47] : memref<512x128xf32, #tpu.memory_space<vmem>>, vector<512x128xf32>
    %cst_48 = arith.constant dense<0.000000e+00> : vector<2x512xf32>
    %156 = tpu.matmul %153, %155, %cst_48 {dimension_numbers = #tpu.dot_dimension_numbers<[1], [1], [0], [0], [0, 0, 1, 0], [], []>} : vector<2x128xf32>, vector<512x128xf32>, vector<2x512xf32> -> vector<2x512xf32>
    %157 = arith.addf %154, %156 : vector<2x512xf32>
    %158 = vector.extract_strided_slice %157 {offsets = [0, 0], sizes = [2, 128], strides = [1, 1]} : vector<2x512xf32> to vector<2x128xf32>
    %159 = arith.negf %158 : vector<2x128xf32>
    %160 = math.exp %159 : vector<2x128xf32>
    %cst_49 = arith.constant 1.000000e+00 : f32
    %161 = vector.broadcast %cst_49 : f32 to vector<2x128xf32>
    %162 = arith.addf %161, %160 : vector<2x128xf32>
    %163 = arith.divf %161, %162 : vector<2x128xf32>
    %164 = vector.extract_strided_slice %157 {offsets = [0, 128], sizes = [2, 128], strides = [1, 1]} : vector<2x512xf32> to vector<2x128xf32>
    %165 = arith.negf %164 : vector<2x128xf32>
    %166 = math.exp %165 : vector<2x128xf32>
    %cst_50 = arith.constant 1.000000e+00 : f32
    %167 = vector.broadcast %cst_50 : f32 to vector<2x128xf32>
    %168 = arith.addf %167, %166 : vector<2x128xf32>
    %169 = arith.divf %167, %168 : vector<2x128xf32>
    %170 = vector.extract_strided_slice %157 {offsets = [0, 256], sizes = [2, 128], strides = [1, 1]} : vector<2x512xf32> to vector<2x128xf32>
    %171 = math.tanh %170 : vector<2x128xf32>
    %172 = vector.extract_strided_slice %157 {offsets = [0, 384], sizes = [2, 128], strides = [1, 1]} : vector<2x512xf32> to vector<2x128xf32>
    %173 = arith.negf %172 : vector<2x128xf32>
    %174 = math.exp %173 : vector<2x128xf32>
    %cst_51 = arith.constant 1.000000e+00 : f32
    %175 = vector.broadcast %cst_51 : f32 to vector<2x128xf32>
    %176 = arith.addf %175, %174 : vector<2x128xf32>
    %177 = arith.divf %175, %176 : vector<2x128xf32>
    %178 = arith.mulf %169, %151 : vector<2x128xf32>
    %179 = arith.mulf %163, %171 : vector<2x128xf32>
    %180 = arith.addf %178, %179 : vector<2x128xf32>
    %181 = math.tanh %180 : vector<2x128xf32>
    %182 = arith.mulf %177, %181 : vector<2x128xf32>
    %c12 = arith.constant 12 : index
    %c0_52 = arith.constant 0 : index
    %183 = vector.load %arg8[%c12, %c0_52] : memref<16x512xf32, #tpu.memory_space<vmem>>, vector<2x512xf32>
    %c0_53 = arith.constant 0 : index
    %c0_54 = arith.constant 0 : index
    %184 = vector.load %arg4[%c0_53, %c0_54] : memref<512x128xf32, #tpu.memory_space<vmem>>, vector<512x128xf32>
    %cst_55 = arith.constant dense<0.000000e+00> : vector<2x512xf32>
    %185 = tpu.matmul %182, %184, %cst_55 {dimension_numbers = #tpu.dot_dimension_numbers<[1], [1], [0], [0], [0, 0, 1, 0], [], []>} : vector<2x128xf32>, vector<512x128xf32>, vector<2x512xf32> -> vector<2x512xf32>
    %186 = arith.addf %183, %185 : vector<2x512xf32>
    %187 = vector.extract_strided_slice %186 {offsets = [0, 0], sizes = [2, 128], strides = [1, 1]} : vector<2x512xf32> to vector<2x128xf32>
    %188 = arith.negf %187 : vector<2x128xf32>
    %189 = math.exp %188 : vector<2x128xf32>
    %cst_56 = arith.constant 1.000000e+00 : f32
    %190 = vector.broadcast %cst_56 : f32 to vector<2x128xf32>
    %191 = arith.addf %190, %189 : vector<2x128xf32>
    %192 = arith.divf %190, %191 : vector<2x128xf32>
    %193 = vector.extract_strided_slice %186 {offsets = [0, 128], sizes = [2, 128], strides = [1, 1]} : vector<2x512xf32> to vector<2x128xf32>
    %194 = arith.negf %193 : vector<2x128xf32>
    %195 = math.exp %194 : vector<2x128xf32>
    %cst_57 = arith.constant 1.000000e+00 : f32
    %196 = vector.broadcast %cst_57 : f32 to vector<2x128xf32>
    %197 = arith.addf %196, %195 : vector<2x128xf32>
    %198 = arith.divf %196, %197 : vector<2x128xf32>
    %199 = vector.extract_strided_slice %186 {offsets = [0, 256], sizes = [2, 128], strides = [1, 1]} : vector<2x512xf32> to vector<2x128xf32>
    %200 = math.tanh %199 : vector<2x128xf32>
    %201 = vector.extract_strided_slice %186 {offsets = [0, 384], sizes = [2, 128], strides = [1, 1]} : vector<2x512xf32> to vector<2x128xf32>
    %202 = arith.negf %201 : vector<2x128xf32>
    %203 = math.exp %202 : vector<2x128xf32>
    %cst_58 = arith.constant 1.000000e+00 : f32
    %204 = vector.broadcast %cst_58 : f32 to vector<2x128xf32>
    %205 = arith.addf %204, %203 : vector<2x128xf32>
    %206 = arith.divf %204, %205 : vector<2x128xf32>
    %207 = arith.mulf %198, %180 : vector<2x128xf32>
    %208 = arith.mulf %192, %200 : vector<2x128xf32>
    %209 = arith.addf %207, %208 : vector<2x128xf32>
    %210 = math.tanh %209 : vector<2x128xf32>
    %211 = arith.mulf %206, %210 : vector<2x128xf32>
    %c14 = arith.constant 14 : index
    %c0_59 = arith.constant 0 : index
    %212 = vector.load %arg8[%c14, %c0_59] : memref<16x512xf32, #tpu.memory_space<vmem>>, vector<2x512xf32>
    %c0_60 = arith.constant 0 : index
    %c0_61 = arith.constant 0 : index
    %213 = vector.load %arg4[%c0_60, %c0_61] : memref<512x128xf32, #tpu.memory_space<vmem>>, vector<512x128xf32>
    %cst_62 = arith.constant dense<0.000000e+00> : vector<2x512xf32>
    %214 = tpu.matmul %211, %213, %cst_62 {dimension_numbers = #tpu.dot_dimension_numbers<[1], [1], [0], [0], [0, 0, 1, 0], [], []>} : vector<2x128xf32>, vector<512x128xf32>, vector<2x512xf32> -> vector<2x512xf32>
    %215 = arith.addf %212, %214 : vector<2x512xf32>
    %216 = vector.extract_strided_slice %215 {offsets = [0, 0], sizes = [2, 128], strides = [1, 1]} : vector<2x512xf32> to vector<2x128xf32>
    %217 = arith.negf %216 : vector<2x128xf32>
    %218 = math.exp %217 : vector<2x128xf32>
    %cst_63 = arith.constant 1.000000e+00 : f32
    %219 = vector.broadcast %cst_63 : f32 to vector<2x128xf32>
    %220 = arith.addf %219, %218 : vector<2x128xf32>
    %221 = arith.divf %219, %220 : vector<2x128xf32>
    %222 = vector.extract_strided_slice %215 {offsets = [0, 128], sizes = [2, 128], strides = [1, 1]} : vector<2x512xf32> to vector<2x128xf32>
    %223 = arith.negf %222 : vector<2x128xf32>
    %224 = math.exp %223 : vector<2x128xf32>
    %cst_64 = arith.constant 1.000000e+00 : f32
    %225 = vector.broadcast %cst_64 : f32 to vector<2x128xf32>
    %226 = arith.addf %225, %224 : vector<2x128xf32>
    %227 = arith.divf %225, %226 : vector<2x128xf32>
    %228 = vector.extract_strided_slice %215 {offsets = [0, 256], sizes = [2, 128], strides = [1, 1]} : vector<2x512xf32> to vector<2x128xf32>
    %229 = math.tanh %228 : vector<2x128xf32>
    %230 = vector.extract_strided_slice %215 {offsets = [0, 384], sizes = [2, 128], strides = [1, 1]} : vector<2x512xf32> to vector<2x128xf32>
    %231 = arith.negf %230 : vector<2x128xf32>
    %232 = math.exp %231 : vector<2x128xf32>
    %cst_65 = arith.constant 1.000000e+00 : f32
    %233 = vector.broadcast %cst_65 : f32 to vector<2x128xf32>
    %234 = arith.addf %233, %232 : vector<2x128xf32>
    %235 = arith.divf %233, %234 : vector<2x128xf32>
    %236 = arith.mulf %227, %209 : vector<2x128xf32>
    %237 = arith.mulf %221, %229 : vector<2x128xf32>
    %238 = arith.addf %236, %237 : vector<2x128xf32>
    %239 = math.tanh %238 : vector<2x128xf32>
    %240 = arith.mulf %235, %239 : vector<2x128xf32>
    %c0_66 = arith.constant 0 : index
    %c0_67 = arith.constant 0 : index
    %241 = vector.load %arg5[%c0_66, %c0_67] : memref<10x128xf32, #tpu.memory_space<vmem>>, vector<10x128xf32>
    %cst_68 = arith.constant dense<0.000000e+00> : vector<2x10xf32>
    %242 = tpu.matmul %240, %241, %cst_68 {dimension_numbers = #tpu.dot_dimension_numbers<[1], [1], [0], [0], [0, 0, 1, 0], [], []>} : vector<2x128xf32>, vector<10x128xf32>, vector<2x10xf32> -> vector<2x10xf32>
    %c0_69 = arith.constant 0 : index
    %c0_70 = arith.constant 0 : index
    %243 = vector.load %arg6[%c0_69, %c0_70] : memref<1x10xf32, #tpu.memory_space<vmem>>, vector<1x10xf32>
    %244 = vector.broadcast %243 : vector<1x10xf32> to vector<2x10xf32>
    %245 = arith.addf %242, %244 : vector<2x10xf32>
    %c0_71 = arith.constant 0 : index
    %c0_72 = arith.constant 0 : index
    %246 = vector.load %arg7[%c0_71, %c0_72] : memref<2x10xf32, #tpu.memory_space<vmem>>, vector<2x10xf32>
    tpu.vector_store %arg7[%c0_71, %c0_72], %245 {strides = array<i32>} : memref<2x10xf32, #tpu.memory_space<vmem>>, vector<2x10xf32>,
    return
  }
  func.func @transform_0(%arg0: i32) -> (i32, i32) {
    %c0_i32 = arith.constant 0 : i32
    %c0_i32_0 = arith.constant 0 : i32
    %c0_i32_1 = arith.constant 0 : i32
    return %c0_i32, %c0_i32_0 : i32, i32
  }
  func.func @transform_1(%arg0: i32) -> (i32, i32) {
    %c0_i32 = arith.constant 0 : i32
    %c0_i32_0 = arith.constant 0 : i32
    %c0_i32_1 = arith.constant 0 : i32
    return %c0_i32, %c0_i32_0 : i32, i32
  }
  func.func @transform_2(%arg0: i32) -> (i32, i32) {
    %c0_i32 = arith.constant 0 : i32
    %c0_i32_0 = arith.constant 0 : i32
    %c0_i32_1 = arith.constant 0 : i32
    return %c0_i32, %c0_i32_0 : i32, i32
  }
  func.func @transform_3(%arg0: i32) -> (i32, i32) {
    %c0_i32 = arith.constant 0 : i32
    %c0_i32_0 = arith.constant 0 : i32
    %c0_i32_1 = arith.constant 0 : i32
    return %c0_i32, %c0_i32_0 : i32, i32
  }
  func.func @transform_4(%arg0: i32) -> (i32, i32) {
    %c0_i32 = arith.constant 0 : i32
    %c0_i32_0 = arith.constant 0 : i32
    %c0_i32_1 = arith.constant 0 : i32
    return %c0_i32, %c0_i32_0 : i32, i32
  }
  func.func @transform_5(%arg0: i32) -> (i32, i32) {
    %c0_i32 = arith.constant 0 : i32
    %c0_i32_0 = arith.constant 0 : i32
    %c0_i32_1 = arith.constant 0 : i32
    return %c0_i32, %c0_i32_0 : i32, i32
  }
  func.func @transform_6(%arg0: i32) -> (i32, i32) {
    %c0_i32 = arith.constant 0 : i32
    %c0_i32_0 = arith.constant 0 : i32
    %c0_i32_1 = arith.constant 0 : i32
    return %c0_i32, %c0_i32_0 : i32, i32
  }
}

</mosaic_0001>

<llo_original>
// kernel: cnn_lstm_forward.3
$region0: #{cnn_lstm_forward.3}
  #allocation0 [shape = 'u32[]', space=smem, size = 0x4, offset = 0x4, fixed_abs, tag = 'smem constant byte address 0x4 - core index']
  #allocation1 [shape = 'u32[72,128]{1,0:T(1,128)}', space=vmem, size = 0x9000, scoped, tag = 'internal scratch']
  #allocation2 [shape = 'f32[16,512]{1,0:T(8,128)}', space=vmem, size = 0x8000, scoped, tag = 'scratch operand']
  %s0 = inlined_call_operand.vmem [shape: f32[16,512], index: 0, kind: input, shape index: {}]
  %s1 = inlined_call_operand.vmem [shape: f32[512,512], index: 1, kind: input, shape index: {}]
  %s2 = inlined_call_operand.vmem [shape: f32[1,512], index: 2, kind: input, shape index: {}]
  %s3 = inlined_call_operand.vmem [shape: f32[512,128], index: 3, kind: input, shape index: {}]
  %s4 = inlined_call_operand.vmem [shape: f32[10,128], index: 4, kind: input, shape index: {}]
  %s5 = inlined_call_operand.vmem [shape: f32[1,10], index: 5, kind: input, shape index: {}]
  %s6 = inlined_call_operand.hbm [shape: f32[2,10], index: 6, kind: output, shape index: {}]
  %s7 = sld [smem:[#allocation0]]
  $region34: #{cnn_lstm_forward.3} parent=0
    _
  %s9 = ssub.s32 1, %s7
  %s10 = scalar_select 0, %s9, %s7
  $region1: #{cnn_lstm_forward.3} parent=0
    #allocation3 [shape = 'u8[1024]{0}', space=vmem, size = 0x400, scoped, tag = 'output window, operand 0, single buffered']
    #allocation4 [shape = 's32[1]{0}', space=sflag, size = 0x4, scoped, tag = 'scoped memory for cnn_lstm_forward.3']
    %11 = vsyncpa [#allocation4], 0
    // Predicated region
    $region2: #{cnn_lstm_forward.3} parent=1 // pred_check
      _
    $region3: #{cnn_lstm_forward.3} parent=1 // pred_check_branch
      %13 = sbr.rel (0) target = $region5
    $region4: #{cnn_lstm_forward.3} parent=1 // pred_region
      _
    $region5: #{cnn_lstm_forward.3} parent=1 // pred_fallthru
      _
    // Predicated region
    $region6: #{cnn_lstm_forward.3} parent=1 // pred_check
      _
    $region7: #{cnn_lstm_forward.3} parent=1 // pred_check_branch
      %15 = sbr.rel (0) target = $region9
    $region8: #{cnn_lstm_forward.3} parent=1 // pred_region
      _
    $region9: #{cnn_lstm_forward.3} parent=1 // pred_fallthru
      _
    // Predicated region
    $region10: #{cnn_lstm_forward.3} parent=1 // pred_check
      _
    $region11: #{cnn_lstm_forward.3} parent=1 // pred_check_branch
      %17 = sbr.rel (0) target = $region13
    $region12: #{cnn_lstm_forward.3} parent=1 // pred_region
      _
    $region13: #{cnn_lstm_forward.3} parent=1 // pred_fallthru
      _
    // Predicated region
    $region14: #{cnn_lstm_forward.3} parent=1 // pred_check
      _
    $region15: #{cnn_lstm_forward.3} parent=1 // pred_check_branch
      %19 = sbr.rel (0) target = $region17
    $region16: #{cnn_lstm_forward.3} parent=1 // pred_region
      _
    $region17: #{cnn_lstm_forward.3} parent=1 // pred_fallthru
      _
    // Predicated region
    $region18: #{cnn_lstm_forward.3} parent=1 // pred_check
      _
    $region19: #{cnn_lstm_forward.3} parent=1 // pred_check_branch
      %21 = sbr.rel (0) target = $region21
    $region20: #{cnn_lstm_forward.3} parent=1 // pred_region
      _
    $region21: #{cnn_lstm_forward.3} parent=1 // pred_fallthru
      _
    // Predicated region
    $region22: #{cnn_lstm_forward.3} parent=1 // pred_check
      _
    $region23: #{cnn_lstm_forward.3} parent=1 // pred_check_branch
      %23 = sbr.rel (0) target = $region25
    $region24: #{cnn_lstm_forward.3} parent=1 // pred_region
      _
    $region25: #{cnn_lstm_forward.3} parent=1 // pred_fallthru
      _
    %v24 = vld [vmem:[%s0] sm:$0xff]
    %v25 = vld [vmem:[%s0 + $0x8] sm:$0xff]
    %v26 = vld [vmem:[%s0 + $0x10] sm:$0xff]
    %v27 = vld [vmem:[%s0 + $0x18] sm:$0xff]
    %v28 = vld [vmem:[%s0 + $0x20] sm:$0xff]
    %v29 = vld [vmem:[%s0 + $0x28] sm:$0xff]
    %v30 = vld [vmem:[%s0 + $0x30] sm:$0xff]
    %v31 = vld [vmem:[%s0 + $0x38] sm:$0xff]
    %v32 = vld [vmem:[%s1] sm:$0xff]
    %v33 = vld [vmem:[%s1 + $0x8] sm:$0xff]
    %v34 = vld [vmem:[%s1 + $0x10] sm:$0xff]
    %v35 = vld [vmem:[%s1 + $0x18] sm:$0xff]
    %v36 = vld [vmem:[%s1 + $0x20] sm:$0xff]
    %v37 = vld [vmem:[%s1 + $0x28] sm:$0xff]
    %v38 = vld [vmem:[%s1 + $0x30] sm:$0xff]
    %v39 = vld [vmem:[%s1 + $0x38] sm:$0xff]
    %v40 = vld [vmem:[%s1 + $0x40] sm:$0xff]
    %v41 = vld [vmem:[%s1 + $0x48] sm:$0xff]
    %v42 = vld [vmem:[%s1 + $0x50] sm:$0xff]
    %v43 = vld [vmem:[%s1 + $0x58] sm:$0xff]
    %v44 = vld [vmem:[%s1 + $0x60] sm:$0xff]
    %v45 = vld [vmem:[%s1 + $0x68] sm:$0xff]
    %v46 = vld [vmem:[%s1 + $0x70] sm:$0xff]
    %v47 = vld [vmem:[%s1 + $0x78] sm:$0xff]
    %v48 = vld [vmem:[%s1 + $0x80] sm:$0xff]
    %v49 = vld [vmem:[%s1 + $0x88] sm:$0xff]
    %v50 = vld [vmem:[%s1 + $0x90] sm:$0xff]
    %v51 = vld [vmem:[%s1 + $0x98] sm:$0xff]
    %v52 = vld [vmem:[%s1 + $0xa0] sm:$0xff]
    %v53 = vld [vmem:[%s1 + $0xa8] sm:$0xff]
    %v54 = vld [vmem:[%s1 + $0xb0] sm:$0xff]
    %v55 = vld [vmem:[%s1 + $0xb8] sm:$0xff]
    %v56 = vld [vmem:[%s1 + $0xc0] sm:$0xff]
    %v57 = vld [vmem:[%s1 + $0xc8] sm:$0xff]
    %v58 = vld [vmem:[%s1 + $0xd0] sm:$0xff]
    %v59 = vld [vmem:[%s1 + $0xd8] sm:$0xff]
    %v60 = vld [vmem:[%s1 + $0xe0] sm:$0xff]
    %v61 = vld [vmem:[%s1 + $0xe8] sm:$0xff]
    %v62 = vld [vmem:[%s1 + $0xf0] sm:$0xff]
    %v63 = vld [vmem:[%s1 + $0xf8] sm:$0xff]
    %v64 = vld [vmem:[%s1 + $0x100] sm:$0xff]
    %v65 = vld [vmem:[%s1 + $0x108] sm:$0xff]
    %v66 = vld [vmem:[%s1 + $0x110] sm:$0xff]
    %v67 = vld [vmem:[%s1 + $0x118] sm:$0xff]
    %v68 = vld [vmem:[%s1 + $0x120] sm:$0xff]
    %v69 = vld [vmem:[%s1 + $0x128] sm:$0xff]
    %v70 = vld [vmem:[%s1 + $0x130] sm:$0xff]
    %v71 = vld [vmem:[%s1 + $0x138] sm:$0xff]
    %v72 = vld [vmem:[%s1 + $0x140] sm:$0xff]
    %v73 = vld [vmem:[%s1 + $0x148] sm:$0xff]
    %v74 = vld [vmem:[%s1 + $0x150] sm:$0xff]
    %v75 = vld [vmem:[%s1 + $0x158] sm:$0xff]
    %v76 = vld [vmem:[%s1 + $0x160] sm:$0xff]
    %v77 = vld [vmem:[%s1 + $0x168] sm:$0xff]
    %v78 = vld [vmem:[%s1 + $0x170] sm:$0xff]
    %v79 = vld [vmem:[%s1 + $0x178] sm:$0xff]
    %v80 = vld [vmem:[%s1 + $0x180] sm:$0xff]
    %v81 = vld [vmem:[%s1 + $0x188] sm:$0xff]
    %v82 = vld [vmem:[%s1 + $0x190] sm:$0xff]
    %v83 = vld [vmem:[%s1 + $0x198] sm:$0xff]
    %v84 = vld [vmem:[%s1 + $0x1a0] sm:$0xff]
    %v85 = vld [vmem:[%s1 + $0x1a8] sm:$0xff]
    %v86 = vld [vmem:[%s1 + $0x1b0] sm:$0xff]
    %v87 = vld [vmem:[%s1 + $0x1b8] sm:$0xff]
    %v88 = vld [vmem:[%s1 + $0x1c0] sm:$0xff]
    %v89 = vld [vmem:[%s1 + $0x1c8] sm:$0xff]
    %v90 = vld [vmem:[%s1 + $0x1d0] sm:$0xff]
    %v91 = vld [vmem:[%s1 + $0x1d8] sm:$0xff]
    %v92 = vld [vmem:[%s1 + $0x1e0] sm:$0xff]
    %v93 = vld [vmem:[%s1 + $0x1e8] sm:$0xff]
    %v94 = vld [vmem:[%s1 + $0x1f0] sm:$0xff]
    %v95 = vld [vmem:[%s1 + $0x1f8] sm:$0xff]
    %v96 = vld [vmem:[%s1 + $0x200] sm:$0xff]
    %v97 = vld [vmem:[%s1 + $0x208] sm:$0xff]
    %v98 = vld [vmem:[%s1 + $0x210] sm:$0xff]
    %v99 = vld [vmem:[%s1 + $0x218] sm:$0xff]
    %v100 = vld [vmem:[%s1 + $0x220] sm:$0xff]
    %v101 = vld [vmem:[%s1 + $0x228] sm:$0xff]
    %v102 = vld [vmem:[%s1 + $0x230] sm:$0xff]
    %v103 = vld [vmem:[%s1 + $0x238] sm:$0xff]
    %v104 = vld [vmem:[%s1 + $0x240] sm:$0xff]
    %v105 = vld [vmem:[%s1 + $0x248] sm:$0xff]
    %v106 = vld [vmem:[%s1 + $0x250] sm:$0xff]
    %v107 = vld [vmem:[%s1 + $0x258] sm:$0xff]
    %v108 = vld [vmem:[%s1 + $0x260] sm:$0xff]
    %v109 = vld [vmem:[%s1 + $0x268] sm:$0xff]
    %v110 = vld [vmem:[%s1 + $0x270] sm:$0xff]
    %v111 = vld [vmem:[%s1 + $0x278] sm:$0xff]
    %v112 = vld [vmem:[%s1 + $0x280] sm:$0xff]
    %v113 = vld [vmem:[%s1 + $0x288] sm:$0xff]
    %v114 = vld [vmem:[%s1 + $0x290] sm:$0xff]
    %v115 = vld [vmem:[%s1 + $0x298] sm:$0xff]
    %v116 = vld [vmem:[%s1 + $0x2a0] sm:$0xff]
    %v117 = vld [vmem:[%s1 + $0x2a8] sm:$0xff]
    %v118 = vld [vmem:[%s1 + $0x2b0] sm:$0xff]
    %v119 = vld [vmem:[%s1 + $0x2b8] sm:$0xff]
    %v120 = vld [vmem:[%s1 + $0x2c0] sm:$0xff]
    %v121 = vld [vmem:[%s1 + $0x2c8] sm:$0xff]
    %v122 = vld [vmem:[%s1 + $0x2d0] sm:$0xff]
    %v123 = vld [vmem:[%s1 + $0x2d8] sm:$0xff]
    %v124 = vld [vmem:[%s1 + $0x2e0] sm:$0xff]
    %v125 = vld [vmem:[%s1 + $0x2e8] sm:$0xff]
    %v126 = vld [vmem:[%s1 + $0x2f0] sm:$0xff]
    %v127 = vld [vmem:[%s1 + $0x2f8] sm:$0xff]
    %v128 = vld [vmem:[%s1 + $0x300] sm:$0xff]
    %v129 = vld [vmem:[%s1 + $0x308] sm:$0xff]
    %v130 = vld [vmem:[%s1 + $0x310] sm:$0xff]
    %v131 = vld [vmem:[%s1 + $0x318] sm:$0xff]
    %v132 = vld [vmem:[%s1 + $0x320] sm:$0xff]
    %v133 = vld [vmem:[%s1 + $0x328] sm:$0xff]
    %v134 = vld [vmem:[%s1 + $0x330] sm:$0xff]
    %v135 = vld [vmem:[%s1 + $0x338] sm:$0xff]
    %v136 = vld [vmem:[%s1 + $0x340] sm:$0xff]
    %v137 = vld [vmem:[%s1 + $0x348] sm:$0xff]
    %v138 = vld [vmem:[%s1 + $0x350] sm:$0xff]
    %v139 = vld [vmem:[%s1 + $0x358] sm:$0xff]
    %v140 = vld [vmem:[%s1 + $0x360] sm:$0xff]
    %v141 = vld [vmem:[%s1 + $0x368] sm:$0xff]
    %v142 = vld [vmem:[%s1 + $0x370] sm:$0xff]
    %v143 = vld [vmem:[%s1 + $0x378] sm:$0xff]
    %v144 = vld [vmem:[%s1 + $0x380] sm:$0xff]
    %v145 = vld [vmem:[%s1 + $0x388] sm:$0xff]
    %v146 = vld [vmem:[%s1 + $0x390] sm:$0xff]
    %v147 = vld [vmem:[%s1 + $0x398] sm:$0xff]
    %v148 = vld [vmem:[%s1 + $0x3a0] sm:$0xff]
    %v149 = vld [vmem:[%s1 + $0x3a8] sm:$0xff]
    %v150 = vld [vmem:[%s1 + $0x3b0] sm:$0xff]
    %v151 = vld [vmem:[%s1 + $0x3b8] sm:$0xff]
    %v152 = vld [vmem:[%s1 + $0x3c0] sm:$0xff]
    %v153 = vld [vmem:[%s1 + $0x3c8] sm:$0xff]
    %v154 = vld [vmem:[%s1 + $0x3d0] sm:$0xff]
    %v155 = vld [vmem:[%s1 + $0x3d8] sm:$0xff]
    %v156 = vld [vmem:[%s1 + $0x3e0] sm:$0xff]
    %v157 = vld [vmem:[%s1 + $0x3e8] sm:$0xff]
    %v158 = vld [vmem:[%s1 + $0x3f0] sm:$0xff]
    %v159 = vld [vmem:[%s1 + $0x3f8] sm:$0xff]
    %v160 = vld [vmem:[%s1 + $0x400] sm:$0xff]
    %v161 = vld [vmem:[%s1 + $0x408] sm:$0xff]
    %v162 = vld [vmem:[%s1 + $0x410] sm:$0xff]
    %v163 = vld [vmem:[%s1 + $0x418] sm:$0xff]
    %v164 = vld [vmem:[%s1 + $0x420] sm:$0xff]
    %v165 = vld [vmem:[%s1 + $0x428] sm:$0xff]
    %v166 = vld [vmem:[%s1 + $0x430] sm:$0xff]
    %v167 = vld [vmem:[%s1 + $0x438] sm:$0xff]
    %v168 = vld [vmem:[%s1 + $0x440] sm:$0xff]
    %v169 = vld [vmem:[%s1 + $0x448] sm:$0xff]
    %v170 = vld [vmem:[%s1 + $0x450] sm:$0xff]
    %v171 = vld [vmem:[%s1 + $0x458] sm:$0xff]
    %v172 = vld [vmem:[%s1 + $0x460] sm:$0xff]
    %v173 = vld [vmem:[%s1 + $0x468] sm:$0xff]
    %v174 = vld [vmem:[%s1 + $0x470] sm:$0xff]
    %v175 = vld [vmem:[%s1 + $0x478] sm:$0xff]
    %v176 = vld [vmem:[%s1 + $0x480] sm:$0xff]
    %v177 = vld [vmem:[%s1 + $0x488] sm:$0xff]
    %v178 = vld [vmem:[%s1 + $0x490] sm:$0xff]
    %v179 = vld [vmem:[%s1 + $0x498] sm:$0xff]
    %v180 = vld [vmem:[%s1 + $0x4a0] sm:$0xff]
    %v181 = vld [vmem:[%s1 + $0x4a8] sm:$0xff]
    %v182 = vld [vmem:[%s1 + $0x4b0] sm:$0xff]
    %v183 = vld [vmem:[%s1 + $0x4b8] sm:$0xff]
    %v184 = vld [vmem:[%s1 + $0x4c0] sm:$0xff]
    %v185 = vld [vmem:[%s1 + $0x4c8] sm:$0xff]
    %v186 = vld [vmem:[%s1 + $0x4d0] sm:$0xff]
    %v187 = vld [vmem:[%s1 + $0x4d8] sm:$0xff]
    %v188 = vld [vmem:[%s1 + $0x4e0] sm:$0xff]
    %v189 = vld [vmem:[%s1 + $0x4e8] sm:$0xff]
    %v190 = vld [vmem:[%s1 + $0x4f0] sm:$0xff]
    %v191 = vld [vmem:[%s1 + $0x4f8] sm:$0xff]
    %v192 = vld [vmem:[%s1 + $0x500] sm:$0xff]
    %v193 = vld [vmem:[%s1 + $0x508] sm:$0xff]
    %v194 = vld [vmem:[%s1 + $0x510] sm:$0xff]
    %v195 = vld [vmem:[%s1 + $0x518] sm:$0xff]
    %v196 = vld [vmem:[%s1 + $0x520] sm:$0xff]
    %v197 = vld [vmem:[%s1 + $0x528] sm:$0xff]
    %v198 = vld [vmem:[%s1 + $0x530] sm:$0xff]
    %v199 = vld [vmem:[%s1 + $0x538] sm:$0xff]
    %v200 = vld [vmem:[%s1 + $0x540] sm:$0xff]
    %v201 = vld [vmem:[%s1 + $0x548] sm:$0xff]
    %v202 = vld [vmem:[%s1 + $0x550] sm:$0xff]
    %v203 = vld [vmem:[%s1 + $0x558] sm:$0xff]
    %v204 = vld [vmem:[%s1 + $0x560] sm:$0xff]
    %v205 = vld [vmem:[%s1 + $0x568] sm:$0xff]
    %v206 = vld [vmem:[%s1 + $0x570] sm:$0xff]
    %v207 = vld [vmem:[%s1 + $0x578] sm:$0xff]
    %v208 = vld [vmem:[%s1 + $0x580] sm:$0xff]
    %v209 = vld [vmem:[%s1 + $0x588] sm:$0xff]
    %v210 = vld [vmem:[%s1 + $0x590] sm:$0xff]
    %v211 = vld [vmem:[%s1 + $0x598] sm:$0xff]
    %v212 = vld [vmem:[%s1 + $0x5a0] sm:$0xff]
    %v213 = vld [vmem:[%s1 + $0x5a8] sm:$0xff]
    %v214 = vld [vmem:[%s1 + $0x5b0] sm:$0xff]
    %v215 = vld [vmem:[%s1 + $0x5b8] sm:$0xff]
    %v216 = vld [vmem:[%s1 + $0x5c0] sm:$0xff]
    %v217 = vld [vmem:[%s1 + $0x5c8] sm:$0xff]
    %v218 = vld [vmem:[%s1 + $0x5d0] sm:$0xff]
    %v219 = vld [vmem:[%s1 + $0x5d8] sm:$0xff]
    %v220 = vld [vmem:[%s1 + $0x5e0] sm:$0xff]
    %v221 = vld [vmem:[%s1 + $0x5e8] sm:$0xff]
    %v222 = vld [vmem:[%s1 + $0x5f0] sm:$0xff]
    %v223 = vld [vmem:[%s1 + $0x5f8] sm:$0xff]
    %v224 = vld [vmem:[%s1 + $0x600] sm:$0xff]
    %v225 = vld [vmem:[%s1 + $0x608] sm:$0xff]
    %v226 = vld [vmem:[%s1 + $0x610] sm:$0xff]
    %v227 = vld [vmem:[%s1 + $0x618] sm:$0xff]
    %v228 = vld [vmem:[%s1 + $0x620] sm:$0xff]
    %v229 = vld [vmem:[%s1 + $0x628] sm:$0xff]
    %v230 = vld [vmem:[%s1 + $0x630] sm:$0xff]
    %v231 = vld [vmem:[%s1 + $0x638] sm:$0xff]
    %v232 = vld [vmem:[%s1 + $0x640] sm:$0xff]
    %v233 = vld [vmem:[%s1 + $0x648] sm:$0xff]
    %v234 = vld [vmem:[%s1 + $0x650] sm:$0xff]
    %v235 = vld [vmem:[%s1 + $0x658] sm:$0xff]
    %v236 = vld [vmem:[%s1 + $0x660] sm:$0xff]
    %v237 = vld [vmem:[%s1 + $0x668] sm:$0xff]
    %v238 = vld [vmem:[%s1 + $0x670] sm:$0xff]
    %v239 = vld [vmem:[%s1 + $0x678] sm:$0xff]
    %v240 = vld [vmem:[%s1 + $0x680] sm:$0xff]
    %v241 = vld [vmem:[%s1 + $0x688] sm:$0xff]
    %v242 = vld [vmem:[%s1 + $0x690] sm:$0xff]
    %v243 = vld [vmem:[%s1 + $0x698] sm:$0xff]
    %v244 = vld [vmem:[%s1 + $0x6a0] sm:$0xff]
    %v245 = vld [vmem:[%s1 + $0x6a8] sm:$0xff]
    %v246 = vld [vmem:[%s1 + $0x6b0] sm:$0xff]
    %v247 = vld [vmem:[%s1 + $0x6b8] sm:$0xff]
    %v248 = vld [vmem:[%s1 + $0x6c0] sm:$0xff]
    %v249 = vld [vmem:[%s1 + $0x6c8] sm:$0xff]
    %v250 = vld [vmem:[%s1 + $0x6d0] sm:$0xff]
    %v251 = vld [vmem:[%s1 + $0x6d8] sm:$0xff]
    %v252 = vld [vmem:[%s1 + $0x6e0] sm:$0xff]
    %v253 = vld [vmem:[%s1 + $0x6e8] sm:$0xff]
    %v254 = vld [vmem:[%s1 + $0x6f0] sm:$0xff]
    %v255 = vld [vmem:[%s1 + $0x6f8] sm:$0xff]
    %v256 = vld [vmem:[%s1 + $0x700] sm:$0xff]
    %v257 = vld [vmem:[%s1 + $0x708] sm:$0xff]
    %v258 = vld [vmem:[%s1 + $0x710] sm:$0xff]
    %v259 = vld [vmem:[%s1 + $0x718] sm:$0xff]
    %v260 = vld [vmem:[%s1 + $0x720] sm:$0xff]
    %v261 = vld [vmem:[%s1 + $0x728] sm:$0xff]
    %v262 = vld [vmem:[%s1 + $0x730] sm:$0xff]
    %v263 = vld [vmem:[%s1 + $0x738] sm:$0xff]
    %v264 = vld [vmem:[%s1 + $0x740] sm:$0xff]
    %v265 = vld [vmem:[%s1 + $0x748] sm:$0xff]
    %v266 = vld [vmem:[%s1 + $0x750] sm:$0xff]
    %v267 = vld [vmem:[%s1 + $0x758] sm:$0xff]
    %v268 = vld [vmem:[%s1 + $0x760] sm:$0xff]
    %v269 = vld [vmem:[%s1 + $0x768] sm:$0xff]
    %v270 = vld [vmem:[%s1 + $0x770] sm:$0xff]
    %v271 = vld [vmem:[%s1 + $0x778] sm:$0xff]
    %v272 = vld [vmem:[%s1 + $0x780] sm:$0xff]
    %v273 = vld [vmem:[%s1 + $0x788] sm:$0xff]
    %v274 = vld [vmem:[%s1 + $0x790] sm:$0xff]
    %v275 = vld [vmem:[%s1 + $0x798] sm:$0xff]
    %v276 = vld [vmem:[%s1 + $0x7a0] sm:$0xff]
    %v277 = vld [vmem:[%s1 + $0x7a8] sm:$0xff]
    %v278 = vld [vmem:[%s1 + $0x7b0] sm:$0xff]
    %v279 = vld [vmem:[%s1 + $0x7b8] sm:$0xff]
    %v280 = vld [vmem:[%s1 + $0x7c0] sm:$0xff]
    %v281 = vld [vmem:[%s1 + $0x7c8] sm:$0xff]
    %v282 = vld [vmem:[%s1 + $0x7d0] sm:$0xff]
    %v283 = vld [vmem:[%s1 + $0x7d8] sm:$0xff]
    %v284 = vld [vmem:[%s1 + $0x7e0] sm:$0xff]
    %v285 = vld [vmem:[%s1 + $0x7e8] sm:$0xff]
    %v286 = vld [vmem:[%s1 + $0x7f0] sm:$0xff]
    %v287 = vld [vmem:[%s1 + $0x7f8] sm:$0xff]
    %v288 = vld [vmem:[%s2] sm:$0xf]
    %v290 = vperm.slane %v288, 0
    %v291 = vperm.slane %v288, 1
    %v292 = vperm.slane %v288, 2
    %v293 = vperm.slane %v288, 3
    %298 = vmatpush.xpose.msra.mxu0 %v92
    %299 = vmatpush.xpose.msra.mxu0 %v88
    %300 = vmatpush.xpose.msra.mxu0 %v84
    %301 = vmatpush.xpose.msra.mxu0 %v80
    %302 = vmatpush.xpose.msra.mxu0 %v76
    %303 = vmatpush.xpose.msra.mxu0 %v72
    %304 = vmatpush.xpose.msra.mxu0 %v68
    %305 = vmatpush.xpose.msra.mxu0 %v64
    %306 = vmatpush.xpose.msra.mxu0 %v60
    %307 = vmatpush.xpose.msra.mxu0 %v56
    %308 = vmatpush.xpose.msra.mxu0 %v52
    %309 = vmatpush.xpose.msra.mxu0 %v48
    %310 = vmatpush.xpose.msra.mxu0 %v44
    %311 = vmatpush.xpose.msra.mxu0 %v40
    %312 = vmatpush.xpose.msra.mxu0 %v36
    %313 = vmatpush.xpose.msra.mxu0 %v32
    %314 = vmatmul.f32.gmra.mxu0 %v24
    %v315 = vpop.f32.mrf.mxu0
    %v316 = vadd.f32 %v290, %v315
    %317 = vmatmul.f32.gmra.mxu0 %v28
    %v318 = vpop.f32.mrf.mxu0
    %v319 = vadd.f32 %v290, %v318
    %320 = vdwg.mxu0
    %321 = vmatpush.xpose.msra.mxu0 %v93
    %322 = vmatpush.xpose.msra.mxu0 %v89
    %323 = vmatpush.xpose.msra.mxu0 %v85
    %324 = vmatpush.xpose.msra.mxu0 %v81
    %325 = vmatpush.xpose.msra.mxu0 %v77
    %326 = vmatpush.xpose.msra.mxu0 %v73
    %327 = vmatpush.xpose.msra.mxu0 %v69
    %328 = vmatpush.xpose.msra.mxu0 %v65
    %329 = vmatpush.xpose.msra.mxu0 %v61
    %330 = vmatpush.xpose.msra.mxu0 %v57
    %331 = vmatpush.xpose.msra.mxu0 %v53
    %332 = vmatpush.xpose.msra.mxu0 %v49
    %333 = vmatpush.xpose.msra.mxu0 %v45
    %334 = vmatpush.xpose.msra.mxu0 %v41
    %335 = vmatpush.xpose.msra.mxu0 %v37
    %336 = vmatpush.xpose.msra.mxu0 %v33
    %337 = vmatmul.f32.gmra.mxu0 %v25
    %v338 = vpop.f32.mrf.mxu0
    %v339 = vadd.f32 %v316, %v338
    %340 = vmatmul.f32.gmra.mxu0 %v29
    %v341 = vpop.f32.mrf.mxu0
    %v342 = vadd.f32 %v319, %v341
    %343 = vdwg.mxu0
    %344 = vmatpush.xpose.msra.mxu0 %v94
    %345 = vmatpush.xpose.msra.mxu0 %v90
    %346 = vmatpush.xpose.msra.mxu0 %v86
    %347 = vmatpush.xpose.msra.mxu0 %v82
    %348 = vmatpush.xpose.msra.mxu0 %v78
    %349 = vmatpush.xpose.msra.mxu0 %v74
    %350 = vmatpush.xpose.msra.mxu0 %v70
    %351 = vmatpush.xpose.msra.mxu0 %v66
    %352 = vmatpush.xpose.msra.mxu0 %v62
    %353 = vmatpush.xpose.msra.mxu0 %v58
    %354 = vmatpush.xpose.msra.mxu0 %v54
    %355 = vmatpush.xpose.msra.mxu0 %v50
    %356 = vmatpush.xpose.msra.mxu0 %v46
    %357 = vmatpush.xpose.msra.mxu0 %v42
    %358 = vmatpush.xpose.msra.mxu0 %v38
    %359 = vmatpush.xpose.msra.mxu0 %v34
    %360 = vmatmul.f32.gmra.mxu0 %v26
    %v361 = vpop.f32.mrf.mxu0
    %v362 = vadd.f32 %v339, %v361
    %363 = vmatmul.f32.gmra.mxu0 %v30
    %v364 = vpop.f32.mrf.mxu0
    %v365 = vadd.f32 %v342, %v364
    %366 = vdwg.mxu0
    %367 = vmatpush.xpose.msra.mxu0 %v95
    %368 = vmatpush.xpose.msra.mxu0 %v91
    %369 = vmatpush.xpose.msra.mxu0 %v87
    %370 = vmatpush.xpose.msra.mxu0 %v83
    %371 = vmatpush.xpose.msra.mxu0 %v79
    %372 = vmatpush.xpose.msra.mxu0 %v75
    %373 = vmatpush.xpose.msra.mxu0 %v71
    %374 = vmatpush.xpose.msra.mxu0 %v67
    %375 = vmatpush.xpose.msra.mxu0 %v63
    %376 = vmatpush.xpose.msra.mxu0 %v59
    %377 = vmatpush.xpose.msra.mxu0 %v55
    %378 = vmatpush.xpose.msra.mxu0 %v51
    %379 = vmatpush.xpose.msra.mxu0 %v47
    %380 = vmatpush.xpose.msra.mxu0 %v43
    %381 = vmatpush.xpose.msra.mxu0 %v39
    %382 = vmatpush.xpose.msra.mxu0 %v35
    %383 = vmatmul.f32.gmra.mxu0 %v27
    %v384 = vpop.f32.mrf.mxu0
    %v385 = vadd.f32 %v362, %v384
    %386 = vmatmul.f32.gmra.mxu0 %v31
    %v387 = vpop.f32.mrf.mxu0
    %v388 = vadd.f32 %v365, %v387
    %389 = vdwg.mxu0
    %390 = vmatpush.xpose.msra.mxu0 %v156
    %391 = vmatpush.xpose.msra.mxu0 %v152
    %392 = vmatpush.xpose.msra.mxu0 %v148
    %393 = vmatpush.xpose.msra.mxu0 %v144
    %394 = vmatpush.xpose.msra.mxu0 %v140
    %395 = vmatpush.xpose.msra.mxu0 %v136
    %396 = vmatpush.xpose.msra.mxu0 %v132
    %397 = vmatpush.xpose.msra.mxu0 %v128
    %398 = vmatpush.xpose.msra.mxu0 %v124
    %399 = vmatpush.xpose.msra.mxu0 %v120
    %400 = vmatpush.xpose.msra.mxu0 %v116
    %401 = vmatpush.xpose.msra.mxu0 %v112
    %402 = vmatpush.xpose.msra.mxu0 %v108
    %403 = vmatpush.xpose.msra.mxu0 %v104
    %404 = vmatpush.xpose.msra.mxu0 %v100
    %405 = vmatpush.xpose.msra.mxu0 %v96
    %406 = vmatmul.f32.gmra.mxu0 %v24
    %v407 = vpop.f32.mrf.mxu0
    %v408 = vadd.f32 %v291, %v407
    %409 = vmatmul.f32.gmra.mxu0 %v28
    %v410 = vpop.f32.mrf.mxu0
    %v411 = vadd.f32 %v291, %v410
    %412 = vdwg.mxu0
    %413 = vmatpush.xpose.msra.mxu0 %v157
    %414 = vmatpush.xpose.msra.mxu0 %v153
    %415 = vmatpush.xpose.msra.mxu0 %v149
    %416 = vmatpush.xpose.msra.mxu0 %v145
    %417 = vmatpush.xpose.msra.mxu0 %v141
    %418 = vmatpush.xpose.msra.mxu0 %v137
    %419 = vmatpush.xpose.msra.mxu0 %v133
    %420 = vmatpush.xpose.msra.mxu0 %v129
    %421 = vmatpush.xpose.msra.mxu0 %v125
    %422 = vmatpush.xpose.msra.mxu0 %v121
    %423 = vmatpush.xpose.msra.mxu0 %v117
    %424 = vmatpush.xpose.msra.mxu0 %v113
    %425 = vmatpush.xpose.msra.mxu0 %v109
    %426 = vmatpush.xpose.msra.mxu0 %v105
    %427 = vmatpush.xpose.msra.mxu0 %v101
    %428 = vmatpush.xpose.msra.mxu0 %v97
    %429 = vmatmul.f32.gmra.mxu0 %v25
    %v430 = vpop.f32.mrf.mxu0
    %v431 = vadd.f32 %v408, %v430
    %432 = vmatmul.f32.gmra.mxu0 %v29
    %v433 = vpop.f32.mrf.mxu0
    %v434 = vadd.f32 %v411, %v433
    %435 = vdwg.mxu0
    %436 = vmatpush.xpose.msra.mxu0 %v158
    %437 = vmatpush.xpose.msra.mxu0 %v154
    %438 = vmatpush.xpose.msra.mxu0 %v150
    %439 = vmatpush.xpose.msra.mxu0 %v146
    %440 = vmatpush.xpose.msra.mxu0 %v142
    %441 = vmatpush.xpose.msra.mxu0 %v138
    %442 = vmatpush.xpose.msra.mxu0 %v134
    %443 = vmatpush.xpose.msra.mxu0 %v130
    %444 = vmatpush.xpose.msra.mxu0 %v126
    %445 = vmatpush.xpose.msra.mxu0 %v122
    %446 = vmatpush.xpose.msra.mxu0 %v118
    %447 = vmatpush.xpose.msra.mxu0 %v114
    %448 = vmatpush.xpose.msra.mxu0 %v110
    %449 = vmatpush.xpose.msra.mxu0 %v106
    %450 = vmatpush.xpose.msra.mxu0 %v102
    %451 = vmatpush.xpose.msra.mxu0 %v98
    %452 = vmatmul.f32.gmra.mxu0 %v26
    %v453 = vpop.f32.mrf.mxu0
    %v454 = vadd.f32 %v431, %v453
    %455 = vmatmul.f32.gmra.mxu0 %v30
    %v456 = vpop.f32.mrf.mxu0
    %v457 = vadd.f32 %v434, %v456
    %458 = vdwg.mxu0
    %459 = vmatpush.xpose.msra.mxu0 %v159
    %460 = vmatpush.xpose.msra.mxu0 %v155
    %461 = vmatpush.xpose.msra.mxu0 %v151
    %462 = vmatpush.xpose.msra.mxu0 %v147
    %463 = vmatpush.xpose.msra.mxu0 %v143
    %464 = vmatpush.xpose.msra.mxu0 %v139
    %465 = vmatpush.xpose.msra.mxu0 %v135
    %466 = vmatpush.xpose.msra.mxu0 %v131
    %467 = vmatpush.xpose.msra.mxu0 %v127
    %468 = vmatpush.xpose.msra.mxu0 %v123
    %469 = vmatpush.xpose.msra.mxu0 %v119
    %470 = vmatpush.xpose.msra.mxu0 %v115
    %471 = vmatpush.xpose.msra.mxu0 %v111
    %472 = vmatpush.xpose.msra.mxu0 %v107
    %473 = vmatpush.xpose.msra.mxu0 %v103
    %474 = vmatpush.xpose.msra.mxu0 %v99
    %475 = vmatmul.f32.gmra.mxu0 %v27
    %v476 = vpop.f32.mrf.mxu0
    %v477 = vadd.f32 %v454, %v476
    %478 = vmatmul.f32.gmra.mxu0 %v31
    %v479 = vpop.f32.mrf.mxu0
    %v480 = vadd.f32 %v457, %v479
    %481 = vdwg.mxu0
    %482 = vmatpush.xpose.msra.mxu0 %v220
    %483 = vmatpush.xpose.msra.mxu0 %v216
    %484 = vmatpush.xpose.msra.mxu0 %v212
    %485 = vmatpush.xpose.msra.mxu0 %v208
    %486 = vmatpush.xpose.msra.mxu0 %v204
    %487 = vmatpush.xpose.msra.mxu0 %v200
    %488 = vmatpush.xpose.msra.mxu0 %v196
    %489 = vmatpush.xpose.msra.mxu0 %v192
    %490 = vmatpush.xpose.msra.mxu0 %v188
    %491 = vmatpush.xpose.msra.mxu0 %v184
    %492 = vmatpush.xpose.msra.mxu0 %v180
    %493 = vmatpush.xpose.msra.mxu0 %v176
    %494 = vmatpush.xpose.msra.mxu0 %v172
    %495 = vmatpush.xpose.msra.mxu0 %v168
    %496 = vmatpush.xpose.msra.mxu0 %v164
    %497 = vmatpush.xpose.msra.mxu0 %v160
    %498 = vmatmul.f32.gmra.mxu0 %v24
    %v499 = vpop.f32.mrf.mxu0
    %v500 = vadd.f32 %v292, %v499
    %501 = vmatmul.f32.gmra.mxu0 %v28
    %v502 = vpop.f32.mrf.mxu0
    %v503 = vadd.f32 %v292, %v502
    %504 = vdwg.mxu0
    %505 = vmatpush.xpose.msra.mxu0 %v221
    %506 = vmatpush.xpose.msra.mxu0 %v217
    %507 = vmatpush.xpose.msra.mxu0 %v213
    %508 = vmatpush.xpose.msra.mxu0 %v209
    %509 = vmatpush.xpose.msra.mxu0 %v205
    %510 = vmatpush.xpose.msra.mxu0 %v201
    %511 = vmatpush.xpose.msra.mxu0 %v197
    %512 = vmatpush.xpose.msra.mxu0 %v193
    %513 = vmatpush.xpose.msra.mxu0 %v189
    %514 = vmatpush.xpose.msra.mxu0 %v185
    %515 = vmatpush.xpose.msra.mxu0 %v181
    %516 = vmatpush.xpose.msra.mxu0 %v177
    %517 = vmatpush.xpose.msra.mxu0 %v173
    %518 = vmatpush.xpose.msra.mxu0 %v169
    %519 = vmatpush.xpose.msra.mxu0 %v165
    %520 = vmatpush.xpose.msra.mxu0 %v161
    %521 = vmatmul.f32.gmra.mxu0 %v25
    %v522 = vpop.f32.mrf.mxu0
    %v523 = vadd.f32 %v500, %v522
    %524 = vmatmul.f32.gmra.mxu0 %v29
    %v525 = vpop.f32.mrf.mxu0
    %v526 = vadd.f32 %v503, %v525
    %527 = vdwg.mxu0
    %528 = vmatpush.xpose.msra.mxu0 %v222
    %529 = vmatpush.xpose.msra.mxu0 %v218
    %530 = vmatpush.xpose.msra.mxu0 %v214
    %531 = vmatpush.xpose.msra.mxu0 %v210
    %532 = vmatpush.xpose.msra.mxu0 %v206
    %533 = vmatpush.xpose.msra.mxu0 %v202
    %534 = vmatpush.xpose.msra.mxu0 %v198
    %535 = vmatpush.xpose.msra.mxu0 %v194
    %536 = vmatpush.xpose.msra.mxu0 %v190
    %537 = vmatpush.xpose.msra.mxu0 %v186
    %538 = vmatpush.xpose.msra.mxu0 %v182
    %539 = vmatpush.xpose.msra.mxu0 %v178
    %540 = vmatpush.xpose.msra.mxu0 %v174
    %541 = vmatpush.xpose.msra.mxu0 %v170
    %542 = vmatpush.xpose.msra.mxu0 %v166
    %543 = vmatpush.xpose.msra.mxu0 %v162
    %544 = vmatmul.f32.gmra.mxu0 %v26
    %v545 = vpop.f32.mrf.mxu0
    %v546 = vadd.f32 %v523, %v545
    %547 = vmatmul.f32.gmra.mxu0 %v30
    %v548 = vpop.f32.mrf.mxu0
    %v549 = vadd.f32 %v526, %v548
    %550 = vdwg.mxu0
    %551 = vmatpush.xpose.msra.mxu0 %v223
    %552 = vmatpush.xpose.msra.mxu0 %v219
    %553 = vmatpush.xpose.msra.mxu0 %v215
    %554 = vmatpush.xpose.msra.mxu0 %v211
    %555 = vmatpush.xpose.msra.mxu0 %v207
    %556 = vmatpush.xpose.msra.mxu0 %v203
    %557 = vmatpush.xpose.msra.mxu0 %v199
    %558 = vmatpush.xpose.msra.mxu0 %v195
    %559 = vmatpush.xpose.msra.mxu0 %v191
    %560 = vmatpush.xpose.msra.mxu0 %v187
    %561 = vmatpush.xpose.msra.mxu0 %v183
    %562 = vmatpush.xpose.msra.mxu0 %v179
    %563 = vmatpush.xpose.msra.mxu0 %v175
    %564 = vmatpush.xpose.msra.mxu0 %v171
    %565 = vmatpush.xpose.msra.mxu0 %v167
    %566 = vmatpush.xpose.msra.mxu0 %v163
    %567 = vmatmul.f32.gmra.mxu0 %v27
    %v568 = vpop.f32.mrf.mxu0
    %v569 = vadd.f32 %v546, %v568
    %570 = vmatmul.f32.gmra.mxu0 %v31
    %v571 = vpop.f32.mrf.mxu0
    %v572 = vadd.f32 %v549, %v571
    %573 = vdwg.mxu0
    %574 = vmatpush.xpose.msra.mxu0 %v284
    %575 = vmatpush.xpose.msra.mxu0 %v280
    %576 = vmatpush.xpose.msra.mxu0 %v276
    %577 = vmatpush.xpose.msra.mxu0 %v272
    %578 = vmatpush.xpose.msra.mxu0 %v268
    %579 = vmatpush.xpose.msra.mxu0 %v264
    %580 = vmatpush.xpose.msra.mxu0 %v260
    %581 = vmatpush.xpose.msra.mxu0 %v256
    %582 = vmatpush.xpose.msra.mxu0 %v252
    %583 = vmatpush.xpose.msra.mxu0 %v248
    %584 = vmatpush.xpose.msra.mxu0 %v244
    %585 = vmatpush.xpose.msra.mxu0 %v240
    %586 = vmatpush.xpose.msra.mxu0 %v236
    %587 = vmatpush.xpose.msra.mxu0 %v232
    %588 = vmatpush.xpose.msra.mxu0 %v228
    %589 = vmatpush.xpose.msra.mxu0 %v224
    %590 = vmatmul.f32.gmra.mxu0 %v24
    %v591 = vpop.f32.mrf.mxu0
    %v592 = vadd.f32 %v293, %v591
    %593 = vmatmul.f32.gmra.mxu0 %v28
    %v594 = vpop.f32.mrf.mxu0
    %v595 = vadd.f32 %v293, %v594
    %596 = vdwg.mxu0
    %597 = vmatpush.xpose.msra.mxu0 %v285
    %598 = vmatpush.xpose.msra.mxu0 %v281
    %599 = vmatpush.xpose.msra.mxu0 %v277
    %600 = vmatpush.xpose.msra.mxu0 %v273
    %601 = vmatpush.xpose.msra.mxu0 %v269
    %602 = vmatpush.xpose.msra.mxu0 %v265
    %603 = vmatpush.xpose.msra.mxu0 %v261
    %604 = vmatpush.xpose.msra.mxu0 %v257
    %605 = vmatpush.xpose.msra.mxu0 %v253
    %606 = vmatpush.xpose.msra.mxu0 %v249
    %607 = vmatpush.xpose.msra.mxu0 %v245
    %608 = vmatpush.xpose.msra.mxu0 %v241
    %609 = vmatpush.xpose.msra.mxu0 %v237
    %610 = vmatpush.xpose.msra.mxu0 %v233
    %611 = vmatpush.xpose.msra.mxu0 %v229
    %612 = vmatpush.xpose.msra.mxu0 %v225
    %613 = vmatmul.f32.gmra.mxu0 %v25
    %v614 = vpop.f32.mrf.mxu0
    %v615 = vadd.f32 %v592, %v614
    %616 = vmatmul.f32.gmra.mxu0 %v29
    %v617 = vpop.f32.mrf.mxu0
    %v618 = vadd.f32 %v595, %v617
    %619 = vdwg.mxu0
    %620 = vmatpush.xpose.msra.mxu0 %v286
    %621 = vmatpush.xpose.msra.mxu0 %v282
    %622 = vmatpush.xpose.msra.mxu0 %v278
    %623 = vmatpush.xpose.msra.mxu0 %v274
    %624 = vmatpush.xpose.msra.mxu0 %v270
    %625 = vmatpush.xpose.msra.mxu0 %v266
    %626 = vmatpush.xpose.msra.mxu0 %v262
    %627 = vmatpush.xpose.msra.mxu0 %v258
    %628 = vmatpush.xpose.msra.mxu0 %v254
    %629 = vmatpush.xpose.msra.mxu0 %v250
    %630 = vmatpush.xpose.msra.mxu0 %v246
    %631 = vmatpush.xpose.msra.mxu0 %v242
    %632 = vmatpush.xpose.msra.mxu0 %v238
    %633 = vmatpush.xpose.msra.mxu0 %v234
    %634 = vmatpush.xpose.msra.mxu0 %v230
    %635 = vmatpush.xpose.msra.mxu0 %v226
    %636 = vmatmul.f32.gmra.mxu0 %v26
    %v637 = vpop.f32.mrf.mxu0
    %v638 = vadd.f32 %v615, %v637
    %639 = vmatmul.f32.gmra.mxu0 %v30
    %v640 = vpop.f32.mrf.mxu0
    %v641 = vadd.f32 %v618, %v640
    %642 = vdwg.mxu0
    %643 = vmatpush.xpose.msra.mxu0 %v287
    %644 = vmatpush.xpose.msra.mxu0 %v283
    %645 = vmatpush.xpose.msra.mxu0 %v279
    %646 = vmatpush.xpose.msra.mxu0 %v275
    %647 = vmatpush.xpose.msra.mxu0 %v271
    %648 = vmatpush.xpose.msra.mxu0 %v267
    %649 = vmatpush.xpose.msra.mxu0 %v263
    %650 = vmatpush.xpose.msra.mxu0 %v259
    %651 = vmatpush.xpose.msra.mxu0 %v255
    %652 = vmatpush.xpose.msra.mxu0 %v251
    %653 = vmatpush.xpose.msra.mxu0 %v247
    %654 = vmatpush.xpose.msra.mxu0 %v243
    %655 = vmatpush.xpose.msra.mxu0 %v239
    %656 = vmatpush.xpose.msra.mxu0 %v235
    %657 = vmatpush.xpose.msra.mxu0 %v231
    %658 = vmatpush.xpose.msra.mxu0 %v227
    %659 = vmatmul.f32.gmra.mxu0 %v27
    %v660 = vpop.f32.mrf.mxu0
    %v661 = vadd.f32 %v638, %v660
    %662 = vmatmul.f32.gmra.mxu0 %v31
    %v663 = vpop.f32.mrf.mxu0
    %v664 = vadd.f32 %v641, %v663
    %665 = vdwg.mxu0
    %666 = vst [vmem:[#allocation2] sm:$0xff] %v385
    %667 = vst [vmem:[#allocation2 + $0x8] sm:$0xff] %v477
    %668 = vst [vmem:[#allocation2 + $0x10] sm:$0xff] %v569
    %669 = vst [vmem:[#allocation2 + $0x18] sm:$0xff] %v661
    %670 = vst [vmem:[#allocation2 + $0x20] sm:$0xff] %v388
    %671 = vst [vmem:[#allocation2 + $0x28] sm:$0xff] %v480
    %672 = vst [vmem:[#allocation2 + $0x30] sm:$0xff] %v572
    %673 = vst [vmem:[#allocation2 + $0x38] sm:$0xff] %v664
    %v674 = vld [vmem:[#allocation2] sm:$0x3]
    %v675 = vld [vmem:[#allocation2 + $0x8] sm:$0x3]
    %v676 = vld [vmem:[#allocation2 + $0x10] sm:$0x3]
    %v677 = vld [vmem:[#allocation2 + $0x18] sm:$0x3]
    %v678 = vld [vmem:[%s3] sm:$0xff]
    %v679 = vld [vmem:[%s3 + $0x8] sm:$0xff]
    %v680 = vld [vmem:[%s3 + $0x10] sm:$0xff]
    %v681 = vld [vmem:[%s3 + $0x18] sm:$0xff]
    %v682 = vld [vmem:[%s3 + $0x20] sm:$0xff]
    %v683 = vld [vmem:[%s3 + $0x28] sm:$0xff]
    %v684 = vld [vmem:[%s3 + $0x30] sm:$0xff]
    %v685 = vld [vmem:[%s3 + $0x38] sm:$0xff]
    %v686 = vld [vmem:[%s3 + $0x40] sm:$0xff]
    %v687 = vld [vmem:[%s3 + $0x48] sm:$0xff]
    %v688 = vld [vmem:[%s3 + $0x50] sm:$0xff]
    %v689 = vld [vmem:[%s3 + $0x58] sm:$0xff]
    %v690 = vld [vmem:[%s3 + $0x60] sm:$0xff]
    %v691 = vld [vmem:[%s3 + $0x68] sm:$0xff]
    %v692 = vld [vmem:[%s3 + $0x70] sm:$0xff]
    %v693 = vld [vmem:[%s3 + $0x78] sm:$0xff]
    %v694 = vld [vmem:[%s3 + $0x80] sm:$0xff]
    %v695 = vld [vmem:[%s3 + $0x88] sm:$0xff]
    %v696 = vld [vmem:[%s3 + $0x90] sm:$0xff]
    %v697 = vld [vmem:[%s3 + $0x98] sm:$0xff]
    %v698 = vld [vmem:[%s3 + $0xa0] sm:$0xff]
    %v699 = vld [vmem:[%s3 + $0xa8] sm:$0xff]
    %v700 = vld [vmem:[%s3 + $0xb0] sm:$0xff]
    %v701 = vld [vmem:[%s3 + $0xb8] sm:$0xff]
    %v702 = vld [vmem:[%s3 + $0xc0] sm:$0xff]
    %v703 = vld [vmem:[%s3 + $0xc8] sm:$0xff]
    %v704 = vld [vmem:[%s3 + $0xd0] sm:$0xff]
    %v705 = vld [vmem:[%s3 + $0xd8] sm:$0xff]
    %v706 = vld [vmem:[%s3 + $0xe0] sm:$0xff]
    %v707 = vld [vmem:[%s3 + $0xe8] sm:$0xff]
    %v708 = vld [vmem:[%s3 + $0xf0] sm:$0xff]
    %v709 = vld [vmem:[%s3 + $0xf8] sm:$0xff]
    %v710 = vld [vmem:[%s3 + $0x100] sm:$0xff]
    %v711 = vld [vmem:[%s3 + $0x108] sm:$0xff]
    %v712 = vld [vmem:[%s3 + $0x110] sm:$0xff]
    %v713 = vld [vmem:[%s3 + $0x118] sm:$0xff]
    %v714 = vld [vmem:[%s3 + $0x120] sm:$0xff]
    %v715 = vld [vmem:[%s3 + $0x128] sm:$0xff]
    %v716 = vld [vmem:[%s3 + $0x130] sm:$0xff]
    %v717 = vld [vmem:[%s3 + $0x138] sm:$0xff]
    %v718 = vld [vmem:[%s3 + $0x140] sm:$0xff]
    %v719 = vld [vmem:[%s3 + $0x148] sm:$0xff]
    %v720 = vld [vmem:[%s3 + $0x150] sm:$0xff]
    %v721 = vld [vmem:[%s3 + $0x158] sm:$0xff]
    %v722 = vld [vmem:[%s3 + $0x160] sm:$0xff]
    %v723 = vld [vmem:[%s3 + $0x168] sm:$0xff]
    %v724 = vld [vmem:[%s3 + $0x170] sm:$0xff]
    %v725 = vld [vmem:[%s3 + $0x178] sm:$0xff]
    %v726 = vld [vmem:[%s3 + $0x180] sm:$0xff]
    %v727 = vld [vmem:[%s3 + $0x188] sm:$0xff]
    %v728 = vld [vmem:[%s3 + $0x190] sm:$0xff]
    %v729 = vld [vmem:[%s3 + $0x198] sm:$0xff]
    %v730 = vld [vmem:[%s3 + $0x1a0] sm:$0xff]
    %v731 = vld [vmem:[%s3 + $0x1a8] sm:$0xff]
    %v732 = vld [vmem:[%s3 + $0x1b0] sm:$0xff]
    %v733 = vld [vmem:[%s3 + $0x1b8] sm:$0xff]
    %v734 = vld [vmem:[%s3 + $0x1c0] sm:$0xff]
    %v735 = vld [vmem:[%s3 + $0x1c8] sm:$0xff]
    %v736 = vld [vmem:[%s3 + $0x1d0] sm:$0xff]
    %v737 = vld [vmem:[%s3 + $0x1d8] sm:$0xff]
    %v738 = vld [vmem:[%s3 + $0x1e0] sm:$0xff]
    %v739 = vld [vmem:[%s3 + $0x1e8] sm:$0xff]
    %v740 = vld [vmem:[%s3 + $0x1f0] sm:$0xff]
    %v741 = vld [vmem:[%s3 + $0x1f8] sm:$0xff]
    %742 = vmatpush.xpose.msra.mxu0 %v693
    %743 = vmatpush.xpose.msra.mxu0 %v692
    %744 = vmatpush.xpose.msra.mxu0 %v691
    %745 = vmatpush.xpose.msra.mxu0 %v690
    %746 = vmatpush.xpose.msra.mxu0 %v689
    %747 = vmatpush.xpose.msra.mxu0 %v688
    %748 = vmatpush.xpose.msra.mxu0 %v687
    %749 = vmatpush.xpose.msra.mxu0 %v686
    %750 = vmatpush.xpose.msra.mxu0 %v685
    %751 = vmatpush.xpose.msra.mxu0 %v684
    %752 = vmatpush.xpose.msra.mxu0 %v683
    %753 = vmatpush.xpose.msra.mxu0 %v682
    %754 = vmatpush.xpose.msra.mxu0 %v681
    %755 = vmatpush.xpose.msra.mxu0 %v680
    %756 = vmatpush.xpose.msra.mxu0 %v679
    %757 = vmatpush.xpose.msra.mxu0 %v678
    %758 = vmatmul.f32.gmra.mxu0 0.0
    %v759 = vpop.f32.mrf.mxu0
    %v760 = vadd.f32 0.0, %v759
    %761 = vdwg.mxu0
    %762 = vmatpush.xpose.msra.mxu0 %v709
    %763 = vmatpush.xpose.msra.mxu0 %v708
    %764 = vmatpush.xpose.msra.mxu0 %v707
    %765 = vmatpush.xpose.msra.mxu0 %v706
    %766 = vmatpush.xpose.msra.mxu0 %v705
    %767 = vmatpush.xpose.msra.mxu0 %v704
    %768 = vmatpush.xpose.msra.mxu0 %v703
    %769 = vmatpush.xpose.msra.mxu0 %v702
    %770 = vmatpush.xpose.msra.mxu0 %v701
    %771 = vmatpush.xpose.msra.mxu0 %v700
    %772 = vmatpush.xpose.msra.mxu0 %v699
    %773 = vmatpush.xpose.msra.mxu0 %v698
    %774 = vmatpush.xpose.msra.mxu0 %v697
    %775 = vmatpush.xpose.msra.mxu0 %v696
    %776 = vmatpush.xpose.msra.mxu0 %v695
    %777 = vmatpush.xpose.msra.mxu0 %v694
    %778 = vmatmul.f32.gmra.mxu0 0.0
    %v779 = vpop.f32.mrf.mxu0
    %v780 = vadd.f32 0.0, %v779
    %781 = vdwg.mxu0
    %782 = vmatpush.xpose.msra.mxu0 %v725
    %783 = vmatpush.xpose.msra.mxu0 %v724
    %784 = vmatpush.xpose.msra.mxu0 %v723
    %785 = vmatpush.xpose.msra.mxu0 %v722
    %786 = vmatpush.xpose.msra.mxu0 %v721
    %787 = vmatpush.xpose.msra.mxu0 %v720
    %788 = vmatpush.xpose.msra.mxu0 %v719
    %789 = vmatpush.xpose.msra.mxu0 %v718
    %790 = vmatpush.xpose.msra.mxu0 %v717
    %791 = vmatpush.xpose.msra.mxu0 %v716
    %792 = vmatpush.xpose.msra.mxu0 %v715
    %793 = vmatpush.xpose.msra.mxu0 %v714
    %794 = vmatpush.xpose.msra.mxu0 %v713
    %795 = vmatpush.xpose.msra.mxu0 %v712
    %796 = vmatpush.xpose.msra.mxu0 %v711
    %797 = vmatpush.xpose.msra.mxu0 %v710
    %798 = vmatmul.f32.gmra.mxu0 0.0
    %v799 = vpop.f32.mrf.mxu0
    %v800 = vadd.f32 0.0, %v799
    %801 = vdwg.mxu0
    %802 = vmatpush.xpose.msra.mxu0 %v741
    %803 = vmatpush.xpose.msra.mxu0 %v740
    %804 = vmatpush.xpose.msra.mxu0 %v739
    %805 = vmatpush.xpose.msra.mxu0 %v738
    %806 = vmatpush.xpose.msra.mxu0 %v737
    %807 = vmatpush.xpose.msra.mxu0 %v736
    %808 = vmatpush.xpose.msra.mxu0 %v735
    %809 = vmatpush.xpose.msra.mxu0 %v734
    %810 = vmatpush.xpose.msra.mxu0 %v733
    %811 = vmatpush.xpose.msra.mxu0 %v732
    %812 = vmatpush.xpose.msra.mxu0 %v731
    %813 = vmatpush.xpose.msra.mxu0 %v730
    %814 = vmatpush.xpose.msra.mxu0 %v729
    %815 = vmatpush.xpose.msra.mxu0 %v728
    %816 = vmatpush.xpose.msra.mxu0 %v727
    %817 = vmatpush.xpose.msra.mxu0 %v726
    %818 = vmatmul.f32.gmra.mxu0 0.0
    %v819 = vpop.f32.mrf.mxu0
    %v820 = vadd.f32 0.0, %v819
    %821 = vdwg.mxu0
    %v822 = vadd.f32 %v674, %v760
    %v823 = vadd.f32 %v675, %v780
    %v824 = vadd.f32 %v676, %v800
    %v825 = vadd.f32 %v677, %v820
    %v826 = vxor.u32 %v822, 2147483648
    %v827 = vmul.f32 %v826, 1.442695
    %v828 = vpow.pop %v827
    %v829 = vadd.f32 %v828, 1.0
    %v830 = vrcp.pop %v829
    %v831 = vmul.f32 %v829, %v830
    %v832 = vsub.f32 1.0, %v831
    %v833 = vmul.f32 %v830, %v832
    %v834 = vadd.f32 %v830, %v833
    %vm835 = vweird.f32 %v829
    %vm836 = vweird.f32 %v830
    %vm837 = vmor %vm835, %vm836
    %v838 = vsel %vm837, %v830, %v834
    %v839 = vand.u32 2147483647, %v829
    %vm840 = vcmp.eq.f32.partialorder %v839, 8.507059e+37
    %v841 = vand.u32 %v829, 2147483648
    %v842 = vor.u32 1.1754944e-38, %v841
    %v843 = vsel %vm840, %v842, %v838
    %v844 = vmul.f32 1.0, %v843
    %v845 = vxor.u32 %v823, 2147483648
    %v846 = vmul.f32 %v845, 1.442695
    %v847 = vpow.pop %v846
    %v848 = vadd.f32 %v847, 1.0
    %v849 = vrcp.pop %v848
    %v850 = vmul.f32 %v848, %v849
    %v851 = vsub.f32 1.0, %v850
    %v852 = vmul.f32 %v849, %v851
    %v853 = vadd.f32 %v849, %v852
    %vm854 = vweird.f32 %v848
    %vm855 = vweird.f32 %v849
    %vm856 = vmor %vm854, %vm855
    %v857 = vsel %vm856, %v849, %v853
    %v858 = vand.u32 2147483647, %v848
    %vm859 = vcmp.eq.f32.partialorder %v858, 8.507059e+37
    %v860 = vand.u32 %v848, 2147483648
    %v861 = vor.u32 1.1754944e-38, %v860
    %v862 = vsel %vm859, %v861, %v857
    %v863 = vmul.f32 1.0, %v862
    %v864 = vtanh.pop %v824
    %v865 = vxor.u32 %v825, 2147483648
    %v866 = vmul.f32 %v865, 1.442695
    %v867 = vpow.pop %v866
    %v868 = vadd.f32 %v867, 1.0
    %v869 = vrcp.pop %v868
    %v870 = vmul.f32 %v868, %v869
    %v871 = vsub.f32 1.0, %v870
    %v872 = vmul.f32 %v869, %v871
    %v873 = vadd.f32 %v869, %v872
    %vm874 = vweird.f32 %v868
    %vm875 = vweird.f32 %v869
    %vm876 = vmor %vm874, %vm875
    %v877 = vsel %vm876, %v869, %v873
    %v878 = vand.u32 2147483647, %v868
    %vm879 = vcmp.eq.f32.partialorder %v878, 8.507059e+37
    %v880 = vand.u32 %v868, 2147483648
    %v881 = vor.u32 1.1754944e-38, %v880
    %v882 = vsel %vm879, %v881, %v877
    %v883 = vmul.f32 1.0, %v882
    %v884 = vmul.f32 %v863, 0.0
    %v885 = vmul.f32 %v844, %v864
    %v886 = vadd.f32 %v884, %v885
    %v887 = vtanh.pop %v886
    %v888 = vmul.f32 %v883, %v887
    %v889 = vld [vmem:[#allocation2] sm:$0xc]
    %v890 = vld [vmem:[#allocation2 + $0x8] sm:$0xc]
    %v891 = vld [vmem:[#allocation2 + $0x10] sm:$0xc]
    %v892 = vld [vmem:[#allocation2 + $0x18] sm:$0xc]
    %893 = vmatpush.xpose.msra.mxu0 %v693
    %894 = vmatpush.xpose.msra.mxu0 %v692
    %895 = vmatpush.xpose.msra.mxu0 %v691
    %896 = vmatpush.xpose.msra.mxu0 %v690
    %897 = vmatpush.xpose.msra.mxu0 %v689
    %898 = vmatpush.xpose.msra.mxu0 %v688
    %899 = vmatpush.xpose.msra.mxu0 %v687
    %900 = vmatpush.xpose.msra.mxu0 %v686
    %901 = vmatpush.xpose.msra.mxu0 %v685
    %902 = vmatpush.xpose.msra.mxu0 %v684
    %903 = vmatpush.xpose.msra.mxu0 %v683
    %904 = vmatpush.xpose.msra.mxu0 %v682
    %905 = vmatpush.xpose.msra.mxu0 %v681
    %906 = vmatpush.xpose.msra.mxu0 %v680
    %907 = vmatpush.xpose.msra.mxu0 %v679
    %908 = vmatpush.xpose.msra.mxu0 %v678
    %909 = vmatmul.f32.gmra.mxu0 %v888
    %v910 = vpop.f32.mrf.mxu0
    %v911 = vadd.f32 0.0, %v910
    %912 = vdwg.mxu0
    %913 = vmatpush.xpose.msra.mxu0 %v709
    %914 = vmatpush.xpose.msra.mxu0 %v708
    %915 = vmatpush.xpose.msra.mxu0 %v707
    %916 = vmatpush.xpose.msra.mxu0 %v706
    %917 = vmatpush.xpose.msra.mxu0 %v705
    %918 = vmatpush.xpose.msra.mxu0 %v704
    %919 = vmatpush.xpose.msra.mxu0 %v703
    %920 = vmatpush.xpose.msra.mxu0 %v702
    %921 = vmatpush.xpose.msra.mxu0 %v701
    %922 = vmatpush.xpose.msra.mxu0 %v700
    %923 = vmatpush.xpose.msra.mxu0 %v699
    %924 = vmatpush.xpose.msra.mxu0 %v698
    %925 = vmatpush.xpose.msra.mxu0 %v697
    %926 = vmatpush.xpose.msra.mxu0 %v696
    %927 = vmatpush.xpose.msra.mxu0 %v695
    %928 = vmatpush.xpose.msra.mxu0 %v694
    %929 = vmatmul.f32.gmra.mxu0 %v888
    %v930 = vpop.f32.mrf.mxu0
    %v931 = vadd.f32 0.0, %v930
    %932 = vdwg.mxu0
    %933 = vmatpush.xpose.msra.mxu0 %v725
    %934 = vmatpush.xpose.msra.mxu0 %v724
    %935 = vmatpush.xpose.msra.mxu0 %v723
    %936 = vmatpush.xpose.msra.mxu0 %v722
    %937 = vmatpush.xpose.msra.mxu0 %v721
    %938 = vmatpush.xpose.msra.mxu0 %v720
    %939 = vmatpush.xpose.msra.mxu0 %v719
    %940 = vmatpush.xpose.msra.mxu0 %v718
    %941 = vmatpush.xpose.msra.mxu0 %v717
    %942 = vmatpush.xpose.msra.mxu0 %v716
    %943 = vmatpush.xpose.msra.mxu0 %v715
    %944 = vmatpush.xpose.msra.mxu0 %v714
    %945 = vmatpush.xpose.msra.mxu0 %v713
    %946 = vmatpush.xpose.msra.mxu0 %v712
    %947 = vmatpush.xpose.msra.mxu0 %v711
    %948 = vmatpush.xpose.msra.mxu0 %v710
    %949 = vmatmul.f32.gmra.mxu0 %v888
    %v950 = vpop.f32.mrf.mxu0
    %v951 = vadd.f32 0.0, %v950
    %952 = vdwg.mxu0
    %953 = vmatpush.xpose.msra.mxu0 %v741
    %954 = vmatpush.xpose.msra.mxu0 %v740
    %955 = vmatpush.xpose.msra.mxu0 %v739
    %956 = vmatpush.xpose.msra.mxu0 %v738
    %957 = vmatpush.xpose.msra.mxu0 %v737
    %958 = vmatpush.xpose.msra.mxu0 %v736
    %959 = vmatpush.xpose.msra.mxu0 %v735
    %960 = vmatpush.xpose.msra.mxu0 %v734
    %961 = vmatpush.xpose.msra.mxu0 %v733
    %962 = vmatpush.xpose.msra.mxu0 %v732
    %963 = vmatpush.xpose.msra.mxu0 %v731
    %964 = vmatpush.xpose.msra.mxu0 %v730
    %965 = vmatpush.xpose.msra.mxu0 %v729
    %966 = vmatpush.xpose.msra.mxu0 %v728
    %967 = vmatpush.xpose.msra.mxu0 %v727
    %968 = vmatpush.xpose.msra.mxu0 %v726
    %969 = vmatmul.f32.gmra.mxu0 %v888
    %v970 = vpop.f32.mrf.mxu0
    %v971 = vadd.f32 0.0, %v970
    %972 = vdwg.mxu0
    %v977 = vrot.slane %v911, 6
    %v978 = vrot.slane %v931, 6
    %v979 = vrot.slane %v951, 6
    %v980 = vrot.slane %v971, 6
    %v985 = vadd.f32 %v889, %v977
    %v986 = vadd.f32 %v890, %v978
    %v987 = vadd.f32 %v891, %v979
    %v988 = vadd.f32 %v892, %v980
    %v989 = vxor.u32 %v985, 2147483648
    %v990 = vmul.f32 %v989, 1.442695
    %v991 = vpow.pop %v990
    %v992 = vadd.f32 %v991, 1.0
    %v993 = vrcp.pop %v992
    %v994 = vmul.f32 %v992, %v993
    %v995 = vsub.f32 1.0, %v994
    %v996 = vmul.f32 %v993, %v995
    %v997 = vadd.f32 %v993, %v996
    %vm998 = vweird.f32 %v992
    %vm999 = vweird.f32 %v993
    %vm1000 = vmor %vm998, %vm999
    %v1001 = vsel %vm1000, %v993, %v997
    %v1002 = vand.u32 2147483647, %v992
    %vm1003 = vcmp.eq.f32.partialorder %v1002, 8.507059e+37
    %v1004 = vand.u32 %v992, 2147483648
    %v1005 = vor.u32 1.1754944e-38, %v1004
    %v1006 = vsel %vm1003, %v1005, %v1001
    %v1007 = vmul.f32 1.0, %v1006
    %v1008 = vxor.u32 %v986, 2147483648
    %v1009 = vmul.f32 %v1008, 1.442695
    %v1010 = vpow.pop %v1009
    %v1011 = vadd.f32 %v1010, 1.0
    %v1012 = vrcp.pop %v1011
    %v1013 = vmul.f32 %v1011, %v1012
    %v1014 = vsub.f32 1.0, %v1013
    %v1015 = vmul.f32 %v1012, %v1014
    %v1016 = vadd.f32 %v1012, %v1015
    %vm1017 = vweird.f32 %v1011
    %vm1018 = vweird.f32 %v1012
    %vm1019 = vmor %vm1017, %vm1018
    %v1020 = vsel %vm1019, %v1012, %v1016
    %v1021 = vand.u32 2147483647, %v1011
    %vm1022 = vcmp.eq.f32.partialorder %v1021, 8.507059e+37
    %v1023 = vand.u32 %v1011, 2147483648
    %v1024 = vor.u32 1.1754944e-38, %v1023
    %v1025 = vsel %vm1022, %v1024, %v1020
    %v1026 = vmul.f32 1.0, %v1025
    %v1027 = vtanh.pop %v987
    %v1028 = vxor.u32 %v988, 2147483648
    %v1029 = vmul.f32 %v1028, 1.442695
    %v1030 = vpow.pop %v1029
    %v1031 = vadd.f32 %v1030, 1.0
    %v1032 = vrcp.pop %v1031
    %v1033 = vmul.f32 %v1031, %v1032
    %v1034 = vsub.f32 1.0, %v1033
    %v1035 = vmul.f32 %v1032, %v1034
    %v1036 = vadd.f32 %v1032, %v1035
    %vm1037 = vweird.f32 %v1031
    %vm1038 = vweird.f32 %v1032
    %vm1039 = vmor %vm1037, %vm1038
    %v1040 = vsel %vm1039, %v1032, %v1036
    %v1041 = vand.u32 2147483647, %v1031
    %vm1042 = vcmp.eq.f32.partialorder %v1041, 8.507059e+37
    %v1043 = vand.u32 %v1031, 2147483648
    %v1044 = vor.u32 1.1754944e-38, %v1043
    %v1045 = vsel %vm1042, %v1044, %v1040
    %v1046 = vmul.f32 1.0, %v1045
    %v1048 = vrot.slane %v886, 6
    %v1050 = vmul.f32 %v1026, %v1048
    %v1051 = vmul.f32 %v1007, %v1027
    %v1052 = vadd.f32 %v1050, %v1051
    %v1053 = vtanh.pop %v1052
    %v1054 = vmul.f32 %v1046, %v1053
    %v1055 = vld [vmem:[#allocation2] sm:$0x30]
    %v1056 = vld [vmem:[#allocation2 + $0x8] sm:$0x30]
    %v1057 = vld [vmem:[#allocation2 + $0x10] sm:$0x30]
    %v1058 = vld [vmem:[#allocation2 + $0x18] sm:$0x30]
    %v1060 = vrot.slane %v1054, 2
    %1062 = vmatpush.xpose.msra.mxu0 %v693
    %1063 = vmatpush.xpose.msra.mxu0 %v692
    %1064 = vmatpush.xpose.msra.mxu0 %v691
    %1065 = vmatpush.xpose.msra.mxu0 %v690
    %1066 = vmatpush.xpose.msra.mxu0 %v689
    %1067 = vmatpush.xpose.msra.mxu0 %v688
    %1068 = vmatpush.xpose.msra.mxu0 %v687
    %1069 = vmatpush.xpose.msra.mxu0 %v686
    %1070 = vmatpush.xpose.msra.mxu0 %v685
    %1071 = vmatpush.xpose.msra.mxu0 %v684
    %1072 = vmatpush.xpose.msra.mxu0 %v683
    %1073 = vmatpush.xpose.msra.mxu0 %v682
    %1074 = vmatpush.xpose.msra.mxu0 %v681
    %1075 = vmatpush.xpose.msra.mxu0 %v680
    %1076 = vmatpush.xpose.msra.mxu0 %v679
    %1077 = vmatpush.xpose.msra.mxu0 %v678
    %1078 = vmatmul.f32.gmra.mxu0 %v1060
    %v1079 = vpop.f32.mrf.mxu0
    %v1080 = vadd.f32 0.0, %v1079
    %1081 = vdwg.mxu0
    %1082 = vmatpush.xpose.msra.mxu0 %v709
    %1083 = vmatpush.xpose.msra.mxu0 %v708
    %1084 = vmatpush.xpose.msra.mxu0 %v707
    %1085 = vmatpush.xpose.msra.mxu0 %v706
    %1086 = vmatpush.xpose.msra.mxu0 %v705
    %1087 = vmatpush.xpose.msra.mxu0 %v704
    %1088 = vmatpush.xpose.msra.mxu0 %v703
    %1089 = vmatpush.xpose.msra.mxu0 %v702
    %1090 = vmatpush.xpose.msra.mxu0 %v701
    %1091 = vmatpush.xpose.msra.mxu0 %v700
    %1092 = vmatpush.xpose.msra.mxu0 %v699
    %1093 = vmatpush.xpose.msra.mxu0 %v698
    %1094 = vmatpush.xpose.msra.mxu0 %v697
    %1095 = vmatpush.xpose.msra.mxu0 %v696
    %1096 = vmatpush.xpose.msra.mxu0 %v695
    %1097 = vmatpush.xpose.msra.mxu0 %v694
    %1098 = vmatmul.f32.gmra.mxu0 %v1060
    %v1099 = vpop.f32.mrf.mxu0
    %v1100 = vadd.f32 0.0, %v1099
    %1101 = vdwg.mxu0
    %1102 = vmatpush.xpose.msra.mxu0 %v725
    %1103 = vmatpush.xpose.msra.mxu0 %v724
    %1104 = vmatpush.xpose.msra.mxu0 %v723
    %1105 = vmatpush.xpose.msra.mxu0 %v722
    %1106 = vmatpush.xpose.msra.mxu0 %v721
    %1107 = vmatpush.xpose.msra.mxu0 %v720
    %1108 = vmatpush.xpose.msra.mxu0 %v719
    %1109 = vmatpush.xpose.msra.mxu0 %v718
    %1110 = vmatpush.xpose.msra.mxu0 %v717
    %1111 = vmatpush.xpose.msra.mxu0 %v716
    %1112 = vmatpush.xpose.msra.mxu0 %v715
    %1113 = vmatpush.xpose.msra.mxu0 %v714
    %1114 = vmatpush.xpose.msra.mxu0 %v713
    %1115 = vmatpush.xpose.msra.mxu0 %v712
    %1116 = vmatpush.xpose.msra.mxu0 %v711
    %1117 = vmatpush.xpose.msra.mxu0 %v710
    %1118 = vmatmul.f32.gmra.mxu0 %v1060
    %v1119 = vpop.f32.mrf.mxu0
    %v1120 = vadd.f32 0.0, %v1119
    %1121 = vdwg.mxu0
    %1122 = vmatpush.xpose.msra.mxu0 %v741
    %1123 = vmatpush.xpose.msra.mxu0 %v740
    %1124 = vmatpush.xpose.msra.mxu0 %v739
    %1125 = vmatpush.xpose.msra.mxu0 %v738
    %1126 = vmatpush.xpose.msra.mxu0 %v737
    %1127 = vmatpush.xpose.msra.mxu0 %v736
    %1128 = vmatpush.xpose.msra.mxu0 %v735
    %1129 = vmatpush.xpose.msra.mxu0 %v734
    %1130 = vmatpush.xpose.msra.mxu0 %v733
    %1131 = vmatpush.xpose.msra.mxu0 %v732
    %1132 = vmatpush.xpose.msra.mxu0 %v731
    %1133 = vmatpush.xpose.msra.mxu0 %v730
    %1134 = vmatpush.xpose.msra.mxu0 %v729
    %1135 = vmatpush.xpose.msra.mxu0 %v728
    %1136 = vmatpush.xpose.msra.mxu0 %v727
    %1137 = vmatpush.xpose.msra.mxu0 %v726
    %1138 = vmatmul.f32.gmra.mxu0 %v1060
    %v1139 = vpop.f32.mrf.mxu0
    %v1140 = vadd.f32 0.0, %v1139
    %1141 = vdwg.mxu0
    %v1146 = vrot.slane %v1080, 4
    %v1147 = vrot.slane %v1100, 4
    %v1148 = vrot.slane %v1120, 4
    %v1149 = vrot.slane %v1140, 4
    %v1154 = vadd.f32 %v1055, %v1146
    %v1155 = vadd.f32 %v1056, %v1147
    %v1156 = vadd.f32 %v1057, %v1148
    %v1157 = vadd.f32 %v1058, %v1149
    %v1158 = vxor.u32 %v1154, 2147483648
    %v1159 = vmul.f32 %v1158, 1.442695
    %v1160 = vpow.pop %v1159
    %v1161 = vadd.f32 %v1160, 1.0
    %v1162 = vrcp.pop %v1161
    %v1163 = vmul.f32 %v1161, %v1162
    %v1164 = vsub.f32 1.0, %v1163
    %v1165 = vmul.f32 %v1162, %v1164
    %v1166 = vadd.f32 %v1162, %v1165
    %vm1167 = vweird.f32 %v1161
    %vm1168 = vweird.f32 %v1162
    %vm1169 = vmor %vm1167, %vm1168
    %v1170 = vsel %vm1169, %v1162, %v1166
    %v1171 = vand.u32 2147483647, %v1161
    %vm1172 = vcmp.eq.f32.partialorder %v1171, 8.507059e+37
    %v1173 = vand.u32 %v1161, 2147483648
    %v1174 = vor.u32 1.1754944e-38, %v1173
    %v1175 = vsel %vm1172, %v1174, %v1170
    %v1176 = vmul.f32 1.0, %v1175
    %v1177 = vxor.u32 %v1155, 2147483648
    %v1178 = vmul.f32 %v1177, 1.442695
    %v1179 = vpow.pop %v1178
    %v1180 = vadd.f32 %v1179, 1.0
    %v1181 = vrcp.pop %v1180
    %v1182 = vmul.f32 %v1180, %v1181
    %v1183 = vsub.f32 1.0, %v1182
    %v1184 = vmul.f32 %v1181, %v1183
    %v1185 = vadd.f32 %v1181, %v1184
    %vm1186 = vweird.f32 %v1180
    %vm1187 = vweird.f32 %v1181
    %vm1188 = vmor %vm1186, %vm1187
    %v1189 = vsel %vm1188, %v1181, %v1185
    %v1190 = vand.u32 2147483647, %v1180
    %vm1191 = vcmp.eq.f32.partialorder %v1190, 8.507059e+37
    %v1192 = vand.u32 %v1180, 2147483648
    %v1193 = vor.u32 1.1754944e-38, %v1192
    %v1194 = vsel %vm1191, %v1193, %v1189
    %v1195 = vmul.f32 1.0, %v1194
    %v1196 = vtanh.pop %v1156
    %v1197 = vxor.u32 %v1157, 2147483648
    %v1198 = vmul.f32 %v1197, 1.442695
    %v1199 = vpow.pop %v1198
    %v1200 = vadd.f32 %v1199, 1.0
    %v1201 = vrcp.pop %v1200
    %v1202 = vmul.f32 %v1200, %v1201
    %v1203 = vsub.f32 1.0, %v1202
    %v1204 = vmul.f32 %v1201, %v1203
    %v1205 = vadd.f32 %v1201, %v1204
    %vm1206 = vweird.f32 %v1200
    %vm1207 = vweird.f32 %v1201
    %vm1208 = vmor %vm1206, %vm1207
    %v1209 = vsel %vm1208, %v1201, %v1205
    %v1210 = vand.u32 2147483647, %v1200
    %vm1211 = vcmp.eq.f32.partialorder %v1210, 8.507059e+37
    %v1212 = vand.u32 %v1200, 2147483648
    %v1213 = vor.u32 1.1754944e-38, %v1212
    %v1214 = vsel %vm1211, %v1213, %v1209
    %v1215 = vmul.f32 1.0, %v1214
    %v1217 = vrot.slane %v1052, 6
    %v1219 = vmul.f32 %v1195, %v1217
    %v1220 = vmul.f32 %v1176, %v1196
    %v1221 = vadd.f32 %v1219, %v1220
    %v1222 = vtanh.pop %v1221
    %v1223 = vmul.f32 %v1215, %v1222
    %v1224 = vld [vmem:[#allocation2] sm:$0xc0]
    %v1225 = vld [vmem:[#allocation2 + $0x8] sm:$0xc0]
    %v1226 = vld [vmem:[#allocation2 + $0x10] sm:$0xc0]
    %v1227 = vld [vmem:[#allocation2 + $0x18] sm:$0xc0]
    %v1229 = vrot.slane %v1223, 4
    %1231 = vmatpush.xpose.msra.mxu0 %v693
    %1232 = vmatpush.xpose.msra.mxu0 %v692
    %1233 = vmatpush.xpose.msra.mxu0 %v691
    %1234 = vmatpush.xpose.msra.mxu0 %v690
    %1235 = vmatpush.xpose.msra.mxu0 %v689
    %1236 = vmatpush.xpose.msra.mxu0 %v688
    %1237 = vmatpush.xpose.msra.mxu0 %v687
    %1238 = vmatpush.xpose.msra.mxu0 %v686
    %1239 = vmatpush.xpose.msra.mxu0 %v685
    %1240 = vmatpush.xpose.msra.mxu0 %v684
    %1241 = vmatpush.xpose.msra.mxu0 %v683
    %1242 = vmatpush.xpose.msra.mxu0 %v682
    %1243 = vmatpush.xpose.msra.mxu0 %v681
    %1244 = vmatpush.xpose.msra.mxu0 %v680
    %1245 = vmatpush.xpose.msra.mxu0 %v679
    %1246 = vmatpush.xpose.msra.mxu0 %v678
    %1247 = vmatmul.f32.gmra.mxu0 %v1229
    %v1248 = vpop.f32.mrf.mxu0
    %v1249 = vadd.f32 0.0, %v1248
    %1250 = vdwg.mxu0
    %1251 = vmatpush.xpose.msra.mxu0 %v709
    %1252 = vmatpush.xpose.msra.mxu0 %v708
    %1253 = vmatpush.xpose.msra.mxu0 %v707
    %1254 = vmatpush.xpose.msra.mxu0 %v706
    %1255 = vmatpush.xpose.msra.mxu0 %v705
    %1256 = vmatpush.xpose.msra.mxu0 %v704
    %1257 = vmatpush.xpose.msra.mxu0 %v703
    %1258 = vmatpush.xpose.msra.mxu0 %v702
    %1259 = vmatpush.xpose.msra.mxu0 %v701
    %1260 = vmatpush.xpose.msra.mxu0 %v700
    %1261 = vmatpush.xpose.msra.mxu0 %v699
    %1262 = vmatpush.xpose.msra.mxu0 %v698
    %1263 = vmatpush.xpose.msra.mxu0 %v697
    %1264 = vmatpush.xpose.msra.mxu0 %v696
    %1265 = vmatpush.xpose.msra.mxu0 %v695
    %1266 = vmatpush.xpose.msra.mxu0 %v694
    %1267 = vmatmul.f32.gmra.mxu0 %v1229
    %v1268 = vpop.f32.mrf.mxu0
    %v1269 = vadd.f32 0.0, %v1268
    %1270 = vdwg.mxu0
    %1271 = vmatpush.xpose.msra.mxu0 %v725
    %1272 = vmatpush.xpose.msra.mxu0 %v724
    %1273 = vmatpush.xpose.msra.mxu0 %v723
    %1274 = vmatpush.xpose.msra.mxu0 %v722
    %1275 = vmatpush.xpose.msra.mxu0 %v721
    %1276 = vmatpush.xpose.msra.mxu0 %v720
    %1277 = vmatpush.xpose.msra.mxu0 %v719
    %1278 = vmatpush.xpose.msra.mxu0 %v718
    %1279 = vmatpush.xpose.msra.mxu0 %v717
    %1280 = vmatpush.xpose.msra.mxu0 %v716
    %1281 = vmatpush.xpose.msra.mxu0 %v715
    %1282 = vmatpush.xpose.msra.mxu0 %v714
    %1283 = vmatpush.xpose.msra.mxu0 %v713
    %1284 = vmatpush.xpose.msra.mxu0 %v712
    %1285 = vmatpush.xpose.msra.mxu0 %v711
    %1286 = vmatpush.xpose.msra.mxu0 %v710
    %1287 = vmatmul.f32.gmra.mxu0 %v1229
    %v1288 = vpop.f32.mrf.mxu0
    %v1289 = vadd.f32 0.0, %v1288
    %1290 = vdwg.mxu0
    %1291 = vmatpush.xpose.msra.mxu0 %v741
    %1292 = vmatpush.xpose.msra.mxu0 %v740
    %1293 = vmatpush.xpose.msra.mxu0 %v739
    %1294 = vmatpush.xpose.msra.mxu0 %v738
    %1295 = vmatpush.xpose.msra.mxu0 %v737
    %1296 = vmatpush.xpose.msra.mxu0 %v736
    %1297 = vmatpush.xpose.msra.mxu0 %v735
    %1298 = vmatpush.xpose.msra.mxu0 %v734
    %1299 = vmatpush.xpose.msra.mxu0 %v733
    %1300 = vmatpush.xpose.msra.mxu0 %v732
    %1301 = vmatpush.xpose.msra.mxu0 %v731
    %1302 = vmatpush.xpose.msra.mxu0 %v730
    %1303 = vmatpush.xpose.msra.mxu0 %v729
    %1304 = vmatpush.xpose.msra.mxu0 %v728
    %1305 = vmatpush.xpose.msra.mxu0 %v727
    %1306 = vmatpush.xpose.msra.mxu0 %v726
    %1307 = vmatmul.f32.gmra.mxu0 %v1229
    %v1308 = vpop.f32.mrf.mxu0
    %v1309 = vadd.f32 0.0, %v1308
    %1310 = vdwg.mxu0
    %v1315 = vrot.slane %v1249, 2
    %v1316 = vrot.slane %v1269, 2
    %v1317 = vrot.slane %v1289, 2
    %v1318 = vrot.slane %v1309, 2
    %v1323 = vadd.f32 %v1224, %v1315
    %v1324 = vadd.f32 %v1225, %v1316
    %v1325 = vadd.f32 %v1226, %v1317
    %v1326 = vadd.f32 %v1227, %v1318
    %v1327 = vxor.u32 %v1323, 2147483648
    %v1328 = vmul.f32 %v1327, 1.442695
    %v1329 = vpow.pop %v1328
    %v1330 = vadd.f32 %v1329, 1.0
    %v1331 = vrcp.pop %v1330
    %v1332 = vmul.f32 %v1330, %v1331
    %v1333 = vsub.f32 1.0, %v1332
    %v1334 = vmul.f32 %v1331, %v1333
    %v1335 = vadd.f32 %v1331, %v1334
    %vm1336 = vweird.f32 %v1330
    %vm1337 = vweird.f32 %v1331
    %vm1338 = vmor %vm1336, %vm1337
    %v1339 = vsel %vm1338, %v1331, %v1335
    %v1340 = vand.u32 2147483647, %v1330
    %vm1341 = vcmp.eq.f32.partialorder %v1340, 8.507059e+37
    %v1342 = vand.u32 %v1330, 2147483648
    %v1343 = vor.u32 1.1754944e-38, %v1342
    %v1344 = vsel %vm1341, %v1343, %v1339
    %v1345 = vmul.f32 1.0, %v1344
    %v1346 = vxor.u32 %v1324, 2147483648
    %v1347 = vmul.f32 %v1346, 1.442695
    %v1348 = vpow.pop %v1347
    %v1349 = vadd.f32 %v1348, 1.0
    %v1350 = vrcp.pop %v1349
    %v1351 = vmul.f32 %v1349, %v1350
    %v1352 = vsub.f32 1.0, %v1351
    %v1353 = vmul.f32 %v1350, %v1352
    %v1354 = vadd.f32 %v1350, %v1353
    %vm1355 = vweird.f32 %v1349
    %vm1356 = vweird.f32 %v1350
    %vm1357 = vmor %vm1355, %vm1356
    %v1358 = vsel %vm1357, %v1350, %v1354
    %v1359 = vand.u32 2147483647, %v1349
    %vm1360 = vcmp.eq.f32.partialorder %v1359, 8.507059e+37
    %v1361 = vand.u32 %v1349, 2147483648
    %v1362 = vor.u32 1.1754944e-38, %v1361
    %v1363 = vsel %vm1360, %v1362, %v1358
    %v1364 = vmul.f32 1.0, %v1363
    %v1365 = vtanh.pop %v1325
    %v1366 = vxor.u32 %v1326, 2147483648
    %v1367 = vmul.f32 %v1366, 1.442695
    %v1368 = vpow.pop %v1367
    %v1369 = vadd.f32 %v1368, 1.0
    %v1370 = vrcp.pop %v1369
    %v1371 = vmul.f32 %v1369, %v1370
    %v1372 = vsub.f32 1.0, %v1371
    %v1373 = vmul.f32 %v1370, %v1372
    %v1374 = vadd.f32 %v1370, %v1373
    %vm1375 = vweird.f32 %v1369
    %vm1376 = vweird.f32 %v1370
    %vm1377 = vmor %vm1375, %vm1376
    %v1378 = vsel %vm1377, %v1370, %v1374
    %v1379 = vand.u32 2147483647, %v1369
    %vm1380 = vcmp.eq.f32.partialorder %v1379, 8.507059e+37
    %v1381 = vand.u32 %v1369, 2147483648
    %v1382 = vor.u32 1.1754944e-38, %v1381
    %v1383 = vsel %vm1380, %v1382, %v1378
    %v1384 = vmul.f32 1.0, %v1383
    %v1386 = vrot.slane %v1221, 6
    %v1388 = vmul.f32 %v1364, %v1386
    %v1389 = vmul.f32 %v1345, %v1365
    %v1390 = vadd.f32 %v1388, %v1389
    %v1391 = vtanh.pop %v1390
    %v1392 = vmul.f32 %v1384, %v1391
    %v1393 = vld [vmem:[#allocation2 + $0x20] sm:$0x3]
    %v1394 = vld [vmem:[#allocation2 + $0x28] sm:$0x3]
    %v1395 = vld [vmem:[#allocation2 + $0x30] sm:$0x3]
    %v1396 = vld [vmem:[#allocation2 + $0x38] sm:$0x3]
    %v1398 = vrot.slane %v1392, 6
    %1400 = vmatpush.xpose.msra.mxu0 %v693
    %1401 = vmatpush.xpose.msra.mxu0 %v692
    %1402 = vmatpush.xpose.msra.mxu0 %v691
    %1403 = vmatpush.xpose.msra.mxu0 %v690
    %1404 = vmatpush.xpose.msra.mxu0 %v689
    %1405 = vmatpush.xpose.msra.mxu0 %v688
    %1406 = vmatpush.xpose.msra.mxu0 %v687
    %1407 = vmatpush.xpose.msra.mxu0 %v686
    %1408 = vmatpush.xpose.msra.mxu0 %v685
    %1409 = vmatpush.xpose.msra.mxu0 %v684
    %1410 = vmatpush.xpose.msra.mxu0 %v683
    %1411 = vmatpush.xpose.msra.mxu0 %v682
    %1412 = vmatpush.xpose.msra.mxu0 %v681
    %1413 = vmatpush.xpose.msra.mxu0 %v680
    %1414 = vmatpush.xpose.msra.mxu0 %v679
    %1415 = vmatpush.xpose.msra.mxu0 %v678
    %1416 = vmatmul.f32.gmra.mxu0 %v1398
    %v1417 = vpop.f32.mrf.mxu0
    %v1418 = vadd.f32 0.0, %v1417
    %1419 = vdwg.mxu0
    %1420 = vmatpush.xpose.msra.mxu0 %v709
    %1421 = vmatpush.xpose.msra.mxu0 %v708
    %1422 = vmatpush.xpose.msra.mxu0 %v707
    %1423 = vmatpush.xpose.msra.mxu0 %v706
    %1424 = vmatpush.xpose.msra.mxu0 %v705
    %1425 = vmatpush.xpose.msra.mxu0 %v704
    %1426 = vmatpush.xpose.msra.mxu0 %v703
    %1427 = vmatpush.xpose.msra.mxu0 %v702
    %1428 = vmatpush.xpose.msra.mxu0 %v701
    %1429 = vmatpush.xpose.msra.mxu0 %v700
    %1430 = vmatpush.xpose.msra.mxu0 %v699
    %1431 = vmatpush.xpose.msra.mxu0 %v698
    %1432 = vmatpush.xpose.msra.mxu0 %v697
    %1433 = vmatpush.xpose.msra.mxu0 %v696
    %1434 = vmatpush.xpose.msra.mxu0 %v695
    %1435 = vmatpush.xpose.msra.mxu0 %v694
    %1436 = vmatmul.f32.gmra.mxu0 %v1398
    %v1437 = vpop.f32.mrf.mxu0
    %v1438 = vadd.f32 0.0, %v1437
    %1439 = vdwg.mxu0
    %1440 = vmatpush.xpose.msra.mxu0 %v725
    %1441 = vmatpush.xpose.msra.mxu0 %v724
    %1442 = vmatpush.xpose.msra.mxu0 %v723
    %1443 = vmatpush.xpose.msra.mxu0 %v722
    %1444 = vmatpush.xpose.msra.mxu0 %v721
    %1445 = vmatpush.xpose.msra.mxu0 %v720
    %1446 = vmatpush.xpose.msra.mxu0 %v719
    %1447 = vmatpush.xpose.msra.mxu0 %v718
    %1448 = vmatpush.xpose.msra.mxu0 %v717
    %1449 = vmatpush.xpose.msra.mxu0 %v716
    %1450 = vmatpush.xpose.msra.mxu0 %v715
    %1451 = vmatpush.xpose.msra.mxu0 %v714
    %1452 = vmatpush.xpose.msra.mxu0 %v713
    %1453 = vmatpush.xpose.msra.mxu0 %v712
    %1454 = vmatpush.xpose.msra.mxu0 %v711
    %1455 = vmatpush.xpose.msra.mxu0 %v710
    %1456 = vmatmul.f32.gmra.mxu0 %v1398
    %v1457 = vpop.f32.mrf.mxu0
    %v1458 = vadd.f32 0.0, %v1457
    %1459 = vdwg.mxu0
    %1460 = vmatpush.xpose.msra.mxu0 %v741
    %1461 = vmatpush.xpose.msra.mxu0 %v740
    %1462 = vmatpush.xpose.msra.mxu0 %v739
    %1463 = vmatpush.xpose.msra.mxu0 %v738
    %1464 = vmatpush.xpose.msra.mxu0 %v737
    %1465 = vmatpush.xpose.msra.mxu0 %v736
    %1466 = vmatpush.xpose.msra.mxu0 %v735
    %1467 = vmatpush.xpose.msra.mxu0 %v734
    %1468 = vmatpush.xpose.msra.mxu0 %v733
    %1469 = vmatpush.xpose.msra.mxu0 %v732
    %1470 = vmatpush.xpose.msra.mxu0 %v731
    %1471 = vmatpush.xpose.msra.mxu0 %v730
    %1472 = vmatpush.xpose.msra.mxu0 %v729
    %1473 = vmatpush.xpose.msra.mxu0 %v728
    %1474 = vmatpush.xpose.msra.mxu0 %v727
    %1475 = vmatpush.xpose.msra.mxu0 %v726
    %1476 = vmatmul.f32.gmra.mxu0 %v1398
    %v1477 = vpop.f32.mrf.mxu0
    %v1478 = vadd.f32 0.0, %v1477
    %1479 = vdwg.mxu0
    %v1480 = vadd.f32 %v1393, %v1418
    %v1481 = vadd.f32 %v1394, %v1438
    %v1482 = vadd.f32 %v1395, %v1458
    %v1483 = vadd.f32 %v1396, %v1478
    %v1484 = vxor.u32 %v1480, 2147483648
    %v1485 = vmul.f32 %v1484, 1.442695
    %v1486 = vpow.pop %v1485
    %v1487 = vadd.f32 %v1486, 1.0
    %v1488 = vrcp.pop %v1487
    %v1489 = vmul.f32 %v1487, %v1488
    %v1490 = vsub.f32 1.0, %v1489
    %v1491 = vmul.f32 %v1488, %v1490
    %v1492 = vadd.f32 %v1488, %v1491
    %vm1493 = vweird.f32 %v1487
    %vm1494 = vweird.f32 %v1488
    %vm1495 = vmor %vm1493, %vm1494
    %v1496 = vsel %vm1495, %v1488, %v1492
    %v1497 = vand.u32 2147483647, %v1487
    %vm1498 = vcmp.eq.f32.partialorder %v1497, 8.507059e+37
    %v1499 = vand.u32 %v1487, 2147483648
    %v1500 = vor.u32 1.1754944e-38, %v1499
    %v1501 = vsel %vm1498, %v1500, %v1496
    %v1502 = vmul.f32 1.0, %v1501
    %v1503 = vxor.u32 %v1481, 2147483648
    %v1504 = vmul.f32 %v1503, 1.442695
    %v1505 = vpow.pop %v1504
    %v1506 = vadd.f32 %v1505, 1.0
    %v1507 = vrcp.pop %v1506
    %v1508 = vmul.f32 %v1506, %v1507
    %v1509 = vsub.f32 1.0, %v1508
    %v1510 = vmul.f32 %v1507, %v1509
    %v1511 = vadd.f32 %v1507, %v1510
    %vm1512 = vweird.f32 %v1506
    %vm1513 = vweird.f32 %v1507
    %vm1514 = vmor %vm1512, %vm1513
    %v1515 = vsel %vm1514, %v1507, %v1511
    %v1516 = vand.u32 2147483647, %v1506
    %vm1517 = vcmp.eq.f32.partialorder %v1516, 8.507059e+37
    %v1518 = vand.u32 %v1506, 2147483648
    %v1519 = vor.u32 1.1754944e-38, %v1518
    %v1520 = vsel %vm1517, %v1519, %v1515
    %v1521 = vmul.f32 1.0, %v1520
    %v1522 = vtanh.pop %v1482
    %v1523 = vxor.u32 %v1483, 2147483648
    %v1524 = vmul.f32 %v1523, 1.442695
    %v1525 = vpow.pop %v1524
    %v1526 = vadd.f32 %v1525, 1.0
    %v1527 = vrcp.pop %v1526
    %v1528 = vmul.f32 %v1526, %v1527
    %v1529 = vsub.f32 1.0, %v1528
    %v1530 = vmul.f32 %v1527, %v1529
    %v1531 = vadd.f32 %v1527, %v1530
    %vm1532 = vweird.f32 %v1526
    %vm1533 = vweird.f32 %v1527
    %vm1534 = vmor %vm1532, %vm1533
    %v1535 = vsel %vm1534, %v1527, %v1531
    %v1536 = vand.u32 2147483647, %v1526
    %vm1537 = vcmp.eq.f32.partialorder %v1536, 8.507059e+37
    %v1538 = vand.u32 %v1526, 2147483648
    %v1539 = vor.u32 1.1754944e-38, %v1538
    %v1540 = vsel %vm1537, %v1539, %v1535
    %v1541 = vmul.f32 1.0, %v1540
    %v1543 = vrot.slane %v1390, 6
    %v1545 = vmul.f32 %v1521, %v1543
    %v1546 = vmul.f32 %v1502, %v1522
    %v1547 = vadd.f32 %v1545, %v1546
    %v1548 = vtanh.pop %v1547
    %v1549 = vmul.f32 %v1541, %v1548
    %v1550 = vld [vmem:[#allocation2 + $0x20] sm:$0xc]
    %v1551 = vld [vmem:[#allocation2 + $0x28] sm:$0xc]
    %v1552 = vld [vmem:[#allocation2 + $0x30] sm:$0xc]
    %v1553 = vld [vmem:[#allocation2 + $0x38] sm:$0xc]
    %1554 = vmatpush.xpose.msra.mxu0 %v693
    %1555 = vmatpush.xpose.msra.mxu0 %v692
    %1556 = vmatpush.xpose.msra.mxu0 %v691
    %1557 = vmatpush.xpose.msra.mxu0 %v690
    %1558 = vmatpush.xpose.msra.mxu0 %v689
    %1559 = vmatpush.xpose.msra.mxu0 %v688
    %1560 = vmatpush.xpose.msra.mxu0 %v687
    %1561 = vmatpush.xpose.msra.mxu0 %v686
    %1562 = vmatpush.xpose.msra.mxu0 %v685
    %1563 = vmatpush.xpose.msra.mxu0 %v684
    %1564 = vmatpush.xpose.msra.mxu0 %v683
    %1565 = vmatpush.xpose.msra.mxu0 %v682
    %1566 = vmatpush.xpose.msra.mxu0 %v681
    %1567 = vmatpush.xpose.msra.mxu0 %v680
    %1568 = vmatpush.xpose.msra.mxu0 %v679
    %1569 = vmatpush.xpose.msra.mxu0 %v678
    %1570 = vmatmul.f32.gmra.mxu0 %v1549
    %v1571 = vpop.f32.mrf.mxu0
    %v1572 = vadd.f32 0.0, %v1571
    %1573 = vdwg.mxu0
    %1574 = vmatpush.xpose.msra.mxu0 %v709
    %1575 = vmatpush.xpose.msra.mxu0 %v708
    %1576 = vmatpush.xpose.msra.mxu0 %v707
    %1577 = vmatpush.xpose.msra.mxu0 %v706
    %1578 = vmatpush.xpose.msra.mxu0 %v705
    %1579 = vmatpush.xpose.msra.mxu0 %v704
    %1580 = vmatpush.xpose.msra.mxu0 %v703
    %1581 = vmatpush.xpose.msra.mxu0 %v702
    %1582 = vmatpush.xpose.msra.mxu0 %v701
    %1583 = vmatpush.xpose.msra.mxu0 %v700
    %1584 = vmatpush.xpose.msra.mxu0 %v699
    %1585 = vmatpush.xpose.msra.mxu0 %v698
    %1586 = vmatpush.xpose.msra.mxu0 %v697
    %1587 = vmatpush.xpose.msra.mxu0 %v696
    %1588 = vmatpush.xpose.msra.mxu0 %v695
    %1589 = vmatpush.xpose.msra.mxu0 %v694
    %1590 = vmatmul.f32.gmra.mxu0 %v1549
    %v1591 = vpop.f32.mrf.mxu0
    %v1592 = vadd.f32 0.0, %v1591
    %1593 = vdwg.mxu0
    %1594 = vmatpush.xpose.msra.mxu0 %v725
    %1595 = vmatpush.xpose.msra.mxu0 %v724
    %1596 = vmatpush.xpose.msra.mxu0 %v723
    %1597 = vmatpush.xpose.msra.mxu0 %v722
    %1598 = vmatpush.xpose.msra.mxu0 %v721
    %1599 = vmatpush.xpose.msra.mxu0 %v720
    %1600 = vmatpush.xpose.msra.mxu0 %v719
    %1601 = vmatpush.xpose.msra.mxu0 %v718
    %1602 = vmatpush.xpose.msra.mxu0 %v717
    %1603 = vmatpush.xpose.msra.mxu0 %v716
    %1604 = vmatpush.xpose.msra.mxu0 %v715
    %1605 = vmatpush.xpose.msra.mxu0 %v714
    %1606 = vmatpush.xpose.msra.mxu0 %v713
    %1607 = vmatpush.xpose.msra.mxu0 %v712
    %1608 = vmatpush.xpose.msra.mxu0 %v711
    %1609 = vmatpush.xpose.msra.mxu0 %v710
    %1610 = vmatmul.f32.gmra.mxu0 %v1549
    %v1611 = vpop.f32.mrf.mxu0
    %v1612 = vadd.f32 0.0, %v1611
    %1613 = vdwg.mxu0
    %1614 = vmatpush.xpose.msra.mxu0 %v741
    %1615 = vmatpush.xpose.msra.mxu0 %v740
    %1616 = vmatpush.xpose.msra.mxu0 %v739
    %1617 = vmatpush.xpose.msra.mxu0 %v738
    %1618 = vmatpush.xpose.msra.mxu0 %v737
    %1619 = vmatpush.xpose.msra.mxu0 %v736
    %1620 = vmatpush.xpose.msra.mxu0 %v735
    %1621 = vmatpush.xpose.msra.mxu0 %v734
    %1622 = vmatpush.xpose.msra.mxu0 %v733
    %1623 = vmatpush.xpose.msra.mxu0 %v732
    %1624 = vmatpush.xpose.msra.mxu0 %v731
    %1625 = vmatpush.xpose.msra.mxu0 %v730
    %1626 = vmatpush.xpose.msra.mxu0 %v729
    %1627 = vmatpush.xpose.msra.mxu0 %v728
    %1628 = vmatpush.xpose.msra.mxu0 %v727
    %1629 = vmatpush.xpose.msra.mxu0 %v726
    %1630 = vmatmul.f32.gmra.mxu0 %v1549
    %v1631 = vpop.f32.mrf.mxu0
    %v1632 = vadd.f32 0.0, %v1631
    %1633 = vdwg.mxu0
    %v1638 = vrot.slane %v1572, 6
    %v1639 = vrot.slane %v1592, 6
    %v1640 = vrot.slane %v1612, 6
    %v1641 = vrot.slane %v1632, 6
    %v1646 = vadd.f32 %v1550, %v1638
    %v1647 = vadd.f32 %v1551, %v1639
    %v1648 = vadd.f32 %v1552, %v1640
    %v1649 = vadd.f32 %v1553, %v1641
    %v1650 = vxor.u32 %v1646, 2147483648
    %v1651 = vmul.f32 %v1650, 1.442695
    %v1652 = vpow.pop %v1651
    %v1653 = vadd.f32 %v1652, 1.0
    %v1654 = vrcp.pop %v1653
    %v1655 = vmul.f32 %v1653, %v1654
    %v1656 = vsub.f32 1.0, %v1655
    %v1657 = vmul.f32 %v1654, %v1656
    %v1658 = vadd.f32 %v1654, %v1657
    %vm1659 = vweird.f32 %v1653
    %vm1660 = vweird.f32 %v1654
    %vm1661 = vmor %vm1659, %vm1660
    %v1662 = vsel %vm1661, %v1654, %v1658
    %v1663 = vand.u32 2147483647, %v1653
    %vm1664 = vcmp.eq.f32.partialorder %v1663, 8.507059e+37
    %v1665 = vand.u32 %v1653, 2147483648
    %v1666 = vor.u32 1.1754944e-38, %v1665
    %v1667 = vsel %vm1664, %v1666, %v1662
    %v1668 = vmul.f32 1.0, %v1667
    %v1669 = vxor.u32 %v1647, 2147483648
    %v1670 = vmul.f32 %v1669, 1.442695
    %v1671 = vpow.pop %v1670
    %v1672 = vadd.f32 %v1671, 1.0
    %v1673 = vrcp.pop %v1672
    %v1674 = vmul.f32 %v1672, %v1673
    %v1675 = vsub.f32 1.0, %v1674
    %v1676 = vmul.f32 %v1673, %v1675
    %v1677 = vadd.f32 %v1673, %v1676
    %vm1678 = vweird.f32 %v1672
    %vm1679 = vweird.f32 %v1673
    %vm1680 = vmor %vm1678, %vm1679
    %v1681 = vsel %vm1680, %v1673, %v1677
    %v1682 = vand.u32 2147483647, %v1672
    %vm1683 = vcmp.eq.f32.partialorder %v1682, 8.507059e+37
    %v1684 = vand.u32 %v1672, 2147483648
    %v1685 = vor.u32 1.1754944e-38, %v1684
    %v1686 = vsel %vm1683, %v1685, %v1681
    %v1687 = vmul.f32 1.0, %v1686
    %v1688 = vtanh.pop %v1648
    %v1689 = vxor.u32 %v1649, 2147483648
    %v1690 = vmul.f32 %v1689, 1.442695
    %v1691 = vpow.pop %v1690
    %v1692 = vadd.f32 %v1691, 1.0
    %v1693 = vrcp.pop %v1692
    %v1694 = vmul.f32 %v1692, %v1693
    %v1695 = vsub.f32 1.0, %v1694
    %v1696 = vmul.f32 %v1693, %v1695
    %v1697 = vadd.f32 %v1693, %v1696
    %vm1698 = vweird.f32 %v1692
    %vm1699 = vweird.f32 %v1693
    %vm1700 = vmor %vm1698, %vm1699
    %v1701 = vsel %vm1700, %v1693, %v1697
    %v1702 = vand.u32 2147483647, %v1692
    %vm1703 = vcmp.eq.f32.partialorder %v1702, 8.507059e+37
    %v1704 = vand.u32 %v1692, 2147483648
    %v1705 = vor.u32 1.1754944e-38, %v1704
    %v1706 = vsel %vm1703, %v1705, %v1701
    %v1707 = vmul.f32 1.0, %v1706
    %v1709 = vrot.slane %v1547, 6
    %v1711 = vmul.f32 %v1687, %v1709
    %v1712 = vmul.f32 %v1668, %v1688
    %v1713 = vadd.f32 %v1711, %v1712
    %v1714 = vtanh.pop %v1713
    %v1715 = vmul.f32 %v1707, %v1714
    %v1716 = vld [vmem:[#allocation2 + $0x20] sm:$0x30]
    %v1717 = vld [vmem:[#allocation2 + $0x28] sm:$0x30]
    %v1718 = vld [vmem:[#allocation2 + $0x30] sm:$0x30]
    %v1719 = vld [vmem:[#allocation2 + $0x38] sm:$0x30]
    %v1721 = vrot.slane %v1715, 2
    %1723 = vmatpush.xpose.msra.mxu0 %v693
    %1724 = vmatpush.xpose.msra.mxu0 %v692
    %1725 = vmatpush.xpose.msra.mxu0 %v691
    %1726 = vmatpush.xpose.msra.mxu0 %v690
    %1727 = vmatpush.xpose.msra.mxu0 %v689
    %1728 = vmatpush.xpose.msra.mxu0 %v688
    %1729 = vmatpush.xpose.msra.mxu0 %v687
    %1730 = vmatpush.xpose.msra.mxu0 %v686
    %1731 = vmatpush.xpose.msra.mxu0 %v685
    %1732 = vmatpush.xpose.msra.mxu0 %v684
    %1733 = vmatpush.xpose.msra.mxu0 %v683
    %1734 = vmatpush.xpose.msra.mxu0 %v682
    %1735 = vmatpush.xpose.msra.mxu0 %v681
    %1736 = vmatpush.xpose.msra.mxu0 %v680
    %1737 = vmatpush.xpose.msra.mxu0 %v679
    %1738 = vmatpush.xpose.msra.mxu0 %v678
    %1739 = vmatmul.f32.gmra.mxu0 %v1721
    %v1740 = vpop.f32.mrf.mxu0
    %v1741 = vadd.f32 0.0, %v1740
    %1742 = vdwg.mxu0
    %1743 = vmatpush.xpose.msra.mxu0 %v709
    %1744 = vmatpush.xpose.msra.mxu0 %v708
    %1745 = vmatpush.xpose.msra.mxu0 %v707
    %1746 = vmatpush.xpose.msra.mxu0 %v706
    %1747 = vmatpush.xpose.msra.mxu0 %v705
    %1748 = vmatpush.xpose.msra.mxu0 %v704
    %1749 = vmatpush.xpose.msra.mxu0 %v703
    %1750 = vmatpush.xpose.msra.mxu0 %v702
    %1751 = vmatpush.xpose.msra.mxu0 %v701
    %1752 = vmatpush.xpose.msra.mxu0 %v700
    %1753 = vmatpush.xpose.msra.mxu0 %v699
    %1754 = vmatpush.xpose.msra.mxu0 %v698
    %1755 = vmatpush.xpose.msra.mxu0 %v697
    %1756 = vmatpush.xpose.msra.mxu0 %v696
    %1757 = vmatpush.xpose.msra.mxu0 %v695
    %1758 = vmatpush.xpose.msra.mxu0 %v694
    %1759 = vmatmul.f32.gmra.mxu0 %v1721
    %v1760 = vpop.f32.mrf.mxu0
    %v1761 = vadd.f32 0.0, %v1760
    %1762 = vdwg.mxu0
    %1763 = vmatpush.xpose.msra.mxu0 %v725
    %1764 = vmatpush.xpose.msra.mxu0 %v724
    %1765 = vmatpush.xpose.msra.mxu0 %v723
    %1766 = vmatpush.xpose.msra.mxu0 %v722
    %1767 = vmatpush.xpose.msra.mxu0 %v721
    %1768 = vmatpush.xpose.msra.mxu0 %v720
    %1769 = vmatpush.xpose.msra.mxu0 %v719
    %1770 = vmatpush.xpose.msra.mxu0 %v718
    %1771 = vmatpush.xpose.msra.mxu0 %v717
    %1772 = vmatpush.xpose.msra.mxu0 %v716
    %1773 = vmatpush.xpose.msra.mxu0 %v715
    %1774 = vmatpush.xpose.msra.mxu0 %v714
    %1775 = vmatpush.xpose.msra.mxu0 %v713
    %1776 = vmatpush.xpose.msra.mxu0 %v712
    %1777 = vmatpush.xpose.msra.mxu0 %v711
    %1778 = vmatpush.xpose.msra.mxu0 %v710
    %1779 = vmatmul.f32.gmra.mxu0 %v1721
    %v1780 = vpop.f32.mrf.mxu0
    %v1781 = vadd.f32 0.0, %v1780
    %1782 = vdwg.mxu0
    %1783 = vmatpush.xpose.msra.mxu0 %v741
    %1784 = vmatpush.xpose.msra.mxu0 %v740
    %1785 = vmatpush.xpose.msra.mxu0 %v739
    %1786 = vmatpush.xpose.msra.mxu0 %v738
    %1787 = vmatpush.xpose.msra.mxu0 %v737
    %1788 = vmatpush.xpose.msra.mxu0 %v736
    %1789 = vmatpush.xpose.msra.mxu0 %v735
    %1790 = vmatpush.xpose.msra.mxu0 %v734
    %1791 = vmatpush.xpose.msra.mxu0 %v733
    %1792 = vmatpush.xpose.msra.mxu0 %v732
    %1793 = vmatpush.xpose.msra.mxu0 %v731
    %1794 = vmatpush.xpose.msra.mxu0 %v730
    %1795 = vmatpush.xpose.msra.mxu0 %v729
    %1796 = vmatpush.xpose.msra.mxu0 %v728
    %1797 = vmatpush.xpose.msra.mxu0 %v727
    %1798 = vmatpush.xpose.msra.mxu0 %v726
    %1799 = vmatmul.f32.gmra.mxu0 %v1721
    %v1800 = vpop.f32.mrf.mxu0
    %v1801 = vadd.f32 0.0, %v1800
    %1802 = vdwg.mxu0
    %v1807 = vrot.slane %v1741, 4
    %v1808 = vrot.slane %v1761, 4
    %v1809 = vrot.slane %v1781, 4
    %v1810 = vrot.slane %v1801, 4
    %v1815 = vadd.f32 %v1716, %v1807
    %v1816 = vadd.f32 %v1717, %v1808
    %v1817 = vadd.f32 %v1718, %v1809
    %v1818 = vadd.f32 %v1719, %v1810
    %v1819 = vxor.u32 %v1815, 2147483648
    %v1820 = vmul.f32 %v1819, 1.442695
    %v1821 = vpow.pop %v1820
    %v1822 = vadd.f32 %v1821, 1.0
    %v1823 = vrcp.pop %v1822
    %v1824 = vmul.f32 %v1822, %v1823
    %v1825 = vsub.f32 1.0, %v1824
    %v1826 = vmul.f32 %v1823, %v1825
    %v1827 = vadd.f32 %v1823, %v1826
    %vm1828 = vweird.f32 %v1822
    %vm1829 = vweird.f32 %v1823
    %vm1830 = vmor %vm1828, %vm1829
    %v1831 = vsel %vm1830, %v1823, %v1827
    %v1832 = vand.u32 2147483647, %v1822
    %vm1833 = vcmp.eq.f32.partialorder %v1832, 8.507059e+37
    %v1834 = vand.u32 %v1822, 2147483648
    %v1835 = vor.u32 1.1754944e-38, %v1834
    %v1836 = vsel %vm1833, %v1835, %v1831
    %v1837 = vmul.f32 1.0, %v1836
    %v1838 = vxor.u32 %v1816, 2147483648
    %v1839 = vmul.f32 %v1838, 1.442695
    %v1840 = vpow.pop %v1839
    %v1841 = vadd.f32 %v1840, 1.0
    %v1842 = vrcp.pop %v1841
    %v1843 = vmul.f32 %v1841, %v1842
    %v1844 = vsub.f32 1.0, %v1843
    %v1845 = vmul.f32 %v1842, %v1844
    %v1846 = vadd.f32 %v1842, %v1845
    %vm1847 = vweird.f32 %v1841
    %vm1848 = vweird.f32 %v1842
    %vm1849 = vmor %vm1847, %vm1848
    %v1850 = vsel %vm1849, %v1842, %v1846
    %v1851 = vand.u32 2147483647, %v1841
    %vm1852 = vcmp.eq.f32.partialorder %v1851, 8.507059e+37
    %v1853 = vand.u32 %v1841, 2147483648
    %v1854 = vor.u32 1.1754944e-38, %v1853
    %v1855 = vsel %vm1852, %v1854, %v1850
    %v1856 = vmul.f32 1.0, %v1855
    %v1857 = vtanh.pop %v1817
    %v1858 = vxor.u32 %v1818, 2147483648
    %v1859 = vmul.f32 %v1858, 1.442695
    %v1860 = vpow.pop %v1859
    %v1861 = vadd.f32 %v1860, 1.0
    %v1862 = vrcp.pop %v1861
    %v1863 = vmul.f32 %v1861, %v1862
    %v1864 = vsub.f32 1.0, %v1863
    %v1865 = vmul.f32 %v1862, %v1864
    %v1866 = vadd.f32 %v1862, %v1865
    %vm1867 = vweird.f32 %v1861
    %vm1868 = vweird.f32 %v1862
    %vm1869 = vmor %vm1867, %vm1868
    %v1870 = vsel %vm1869, %v1862, %v1866
    %v1871 = vand.u32 2147483647, %v1861
    %vm1872 = vcmp.eq.f32.partialorder %v1871, 8.507059e+37
    %v1873 = vand.u32 %v1861, 2147483648
    %v1874 = vor.u32 1.1754944e-38, %v1873
    %v1875 = vsel %vm1872, %v1874, %v1870
    %v1876 = vmul.f32 1.0, %v1875
    %v1878 = vrot.slane %v1713, 6
    %v1880 = vmul.f32 %v1856, %v1878
    %v1881 = vmul.f32 %v1837, %v1857
    %v1882 = vadd.f32 %v1880, %v1881
    %v1883 = vtanh.pop %v1882
    %v1884 = vmul.f32 %v1876, %v1883
    %v1885 = vld [vmem:[#allocation2 + $0x20] sm:$0xc0]
    %v1886 = vld [vmem:[#allocation2 + $0x28] sm:$0xc0]
    %v1887 = vld [vmem:[#allocation2 + $0x30] sm:$0xc0]
    %v1888 = vld [vmem:[#allocation2 + $0x38] sm:$0xc0]
    %v1890 = vrot.slane %v1884, 4
    %1892 = vmatpush.xpose.msra.mxu0 %v693
    %1893 = vmatpush.xpose.msra.mxu0 %v692
    %1894 = vmatpush.xpose.msra.mxu0 %v691
    %1895 = vmatpush.xpose.msra.mxu0 %v690
    %1896 = vmatpush.xpose.msra.mxu0 %v689
    %1897 = vmatpush.xpose.msra.mxu0 %v688
    %1898 = vmatpush.xpose.msra.mxu0 %v687
    %1899 = vmatpush.xpose.msra.mxu0 %v686
    %1900 = vmatpush.xpose.msra.mxu0 %v685
    %1901 = vmatpush.xpose.msra.mxu0 %v684
    %1902 = vmatpush.xpose.msra.mxu0 %v683
    %1903 = vmatpush.xpose.msra.mxu0 %v682
    %1904 = vmatpush.xpose.msra.mxu0 %v681
    %1905 = vmatpush.xpose.msra.mxu0 %v680
    %1906 = vmatpush.xpose.msra.mxu0 %v679
    %1907 = vmatpush.xpose.msra.mxu0 %v678
    %1908 = vmatmul.f32.gmra.mxu0 %v1890
    %v1909 = vpop.f32.mrf.mxu0
    %v1910 = vadd.f32 0.0, %v1909
    %1911 = vdwg.mxu0
    %1912 = vmatpush.xpose.msra.mxu0 %v709
    %1913 = vmatpush.xpose.msra.mxu0 %v708
    %1914 = vmatpush.xpose.msra.mxu0 %v707
    %1915 = vmatpush.xpose.msra.mxu0 %v706
    %1916 = vmatpush.xpose.msra.mxu0 %v705
    %1917 = vmatpush.xpose.msra.mxu0 %v704
    %1918 = vmatpush.xpose.msra.mxu0 %v703
    %1919 = vmatpush.xpose.msra.mxu0 %v702
    %1920 = vmatpush.xpose.msra.mxu0 %v701
    %1921 = vmatpush.xpose.msra.mxu0 %v700
    %1922 = vmatpush.xpose.msra.mxu0 %v699
    %1923 = vmatpush.xpose.msra.mxu0 %v698
    %1924 = vmatpush.xpose.msra.mxu0 %v697
    %1925 = vmatpush.xpose.msra.mxu0 %v696
    %1926 = vmatpush.xpose.msra.mxu0 %v695
    %1927 = vmatpush.xpose.msra.mxu0 %v694
    %1928 = vmatmul.f32.gmra.mxu0 %v1890
    %v1929 = vpop.f32.mrf.mxu0
    %v1930 = vadd.f32 0.0, %v1929
    %1931 = vdwg.mxu0
    %1932 = vmatpush.xpose.msra.mxu0 %v725
    %1933 = vmatpush.xpose.msra.mxu0 %v724
    %1934 = vmatpush.xpose.msra.mxu0 %v723
    %1935 = vmatpush.xpose.msra.mxu0 %v722
    %1936 = vmatpush.xpose.msra.mxu0 %v721
    %1937 = vmatpush.xpose.msra.mxu0 %v720
    %1938 = vmatpush.xpose.msra.mxu0 %v719
    %1939 = vmatpush.xpose.msra.mxu0 %v718
    %1940 = vmatpush.xpose.msra.mxu0 %v717
    %1941 = vmatpush.xpose.msra.mxu0 %v716
    %1942 = vmatpush.xpose.msra.mxu0 %v715
    %1943 = vmatpush.xpose.msra.mxu0 %v714
    %1944 = vmatpush.xpose.msra.mxu0 %v713
    %1945 = vmatpush.xpose.msra.mxu0 %v712
    %1946 = vmatpush.xpose.msra.mxu0 %v711
    %1947 = vmatpush.xpose.msra.mxu0 %v710
    %1948 = vmatmul.f32.gmra.mxu0 %v1890
    %v1949 = vpop.f32.mrf.mxu0
    %v1950 = vadd.f32 0.0, %v1949
    %1951 = vdwg.mxu0
    %1952 = vmatpush.xpose.msra.mxu0 %v741
    %1953 = vmatpush.xpose.msra.mxu0 %v740
    %1954 = vmatpush.xpose.msra.mxu0 %v739
    %1955 = vmatpush.xpose.msra.mxu0 %v738
    %1956 = vmatpush.xpose.msra.mxu0 %v737
    %1957 = vmatpush.xpose.msra.mxu0 %v736
    %1958 = vmatpush.xpose.msra.mxu0 %v735
    %1959 = vmatpush.xpose.msra.mxu0 %v734
    %1960 = vmatpush.xpose.msra.mxu0 %v733
    %1961 = vmatpush.xpose.msra.mxu0 %v732
    %1962 = vmatpush.xpose.msra.mxu0 %v731
    %1963 = vmatpush.xpose.msra.mxu0 %v730
    %1964 = vmatpush.xpose.msra.mxu0 %v729
    %1965 = vmatpush.xpose.msra.mxu0 %v728
    %1966 = vmatpush.xpose.msra.mxu0 %v727
    %1967 = vmatpush.xpose.msra.mxu0 %v726
    %1968 = vmatmul.f32.gmra.mxu0 %v1890
    %v1969 = vpop.f32.mrf.mxu0
    %v1970 = vadd.f32 0.0, %v1969
    %1971 = vdwg.mxu0
    %v1976 = vrot.slane %v1910, 2
    %v1977 = vrot.slane %v1930, 2
    %v1978 = vrot.slane %v1950, 2
    %v1979 = vrot.slane %v1970, 2
    %v1984 = vadd.f32 %v1885, %v1976
    %v1985 = vadd.f32 %v1886, %v1977
    %v1986 = vadd.f32 %v1887, %v1978
    %v1987 = vadd.f32 %v1888, %v1979
    %v1988 = vxor.u32 %v1984, 2147483648
    %v1989 = vmul.f32 %v1988, 1.442695
    %v1990 = vpow.pop %v1989
    %v1991 = vadd.f32 %v1990, 1.0
    %v1992 = vrcp.pop %v1991
    %v1993 = vmul.f32 %v1991, %v1992
    %v1994 = vsub.f32 1.0, %v1993
    %v1995 = vmul.f32 %v1992, %v1994
    %v1996 = vadd.f32 %v1992, %v1995
    %vm1997 = vweird.f32 %v1991
    %vm1998 = vweird.f32 %v1992
    %vm1999 = vmor %vm1997, %vm1998
    %v2000 = vsel %vm1999, %v1992, %v1996
    %v2001 = vand.u32 2147483647, %v1991
    %vm2002 = vcmp.eq.f32.partialorder %v2001, 8.507059e+37
    %v2003 = vand.u32 %v1991, 2147483648
    %v2004 = vor.u32 1.1754944e-38, %v2003
    %v2005 = vsel %vm2002, %v2004, %v2000
    %v2006 = vmul.f32 1.0, %v2005
    %v2007 = vxor.u32 %v1985, 2147483648
    %v2008 = vmul.f32 %v2007, 1.442695
    %v2009 = vpow.pop %v2008
    %v2010 = vadd.f32 %v2009, 1.0
    %v2011 = vrcp.pop %v2010
    %v2012 = vmul.f32 %v2010, %v2011
    %v2013 = vsub.f32 1.0, %v2012
    %v2014 = vmul.f32 %v2011, %v2013
    %v2015 = vadd.f32 %v2011, %v2014
    %vm2016 = vweird.f32 %v2010
    %vm2017 = vweird.f32 %v2011
    %vm2018 = vmor %vm2016, %vm2017
    %v2019 = vsel %vm2018, %v2011, %v2015
    %v2020 = vand.u32 2147483647, %v2010
    %vm2021 = vcmp.eq.f32.partialorder %v2020, 8.507059e+37
    %v2022 = vand.u32 %v2010, 2147483648
    %v2023 = vor.u32 1.1754944e-38, %v2022
    %v2024 = vsel %vm2021, %v2023, %v2019
    %v2025 = vmul.f32 1.0, %v2024
    %v2026 = vtanh.pop %v1986
    %v2027 = vxor.u32 %v1987, 2147483648
    %v2028 = vmul.f32 %v2027, 1.442695
    %v2029 = vpow.pop %v2028
    %v2030 = vadd.f32 %v2029, 1.0
    %v2031 = vrcp.pop %v2030
    %v2032 = vmul.f32 %v2030, %v2031
    %v2033 = vsub.f32 1.0, %v2032
    %v2034 = vmul.f32 %v2031, %v2033
    %v2035 = vadd.f32 %v2031, %v2034
    %vm2036 = vweird.f32 %v2030
    %vm2037 = vweird.f32 %v2031
    %vm2038 = vmor %vm2036, %vm2037
    %v2039 = vsel %vm2038, %v2031, %v2035
    %v2040 = vand.u32 2147483647, %v2030
    %vm2041 = vcmp.eq.f32.partialorder %v2040, 8.507059e+37
    %v2042 = vand.u32 %v2030, 2147483648
    %v2043 = vor.u32 1.1754944e-38, %v2042
    %v2044 = vsel %vm2041, %v2043, %v2039
    %v2045 = vmul.f32 1.0, %v2044
    %v2047 = vrot.slane %v1882, 6
    %v2049 = vmul.f32 %v2025, %v2047
    %v2050 = vmul.f32 %v2006, %v2026
    %v2051 = vadd.f32 %v2049, %v2050
    %v2052 = vtanh.pop %v2051
    %v2053 = vmul.f32 %v2045, %v2052
    %v2054 = vld [vmem:[%s4] sm:$0xff]
    %v2055 = vld [vmem:[%s4 + $0x8] sm:$0x3]
    %v2056 = vld [vmem:[%s5] sm:$0x1]
    %v2058 = vperm.slane %v2056, 0
    %v2061 = vrot.slane %v2053, 6
    %2063 = vmatpush.xpose.msra.mxu0 0.0
    %2064 = vmatpush.xpose.msra.mxu0 0.0
    %2065 = vmatpush.xpose.msra.mxu0 0.0
    %2066 = vmatpush.xpose.msra.mxu0 0.0
    %2067 = vmatpush.xpose.msra.mxu0 0.0
    %2068 = vmatpush.xpose.msra.mxu0 0.0
    %2069 = vmatpush.xpose.msra.mxu0 0.0
    %2070 = vmatpush.xpose.msra.mxu0 0.0
    %2071 = vmatpush.xpose.msra.mxu0 0.0
    %2072 = vmatpush.xpose.msra.mxu0 0.0
    %2073 = vmatpush.xpose.msra.mxu0 0.0
    %2074 = vmatpush.xpose.msra.mxu0 0.0
    %2075 = vmatpush.xpose.msra.mxu0 0.0
    %2076 = vmatpush.xpose.msra.mxu0 0.0
    %2077 = vmatpush.xpose.msra.mxu0 %v2055
    %2078 = vmatpush.xpose.msra.mxu0 %v2054
    %2079 = vmatmul.f32.gmra.mxu0 %v2061
    %v2080 = vpop.f32.mrf.mxu0
    %v2081 = vadd.f32 %v2058, %v2080
    %2082 = vdwg.mxu0
    %vm2083 = vcmask 74752
    %2084 = vst.msk [vmem:[#allocation3] sm:$0x3] %vm2083, %v2081
    // Predicated region
    $region26: #{cnn_lstm_forward.3} parent=1 // pred_check
      _
    $region27: #{cnn_lstm_forward.3} parent=1 // pred_check_branch
      %2086 = sbr.rel (0) target = $region29
    $region28: #{cnn_lstm_forward.3} parent=1 // pred_region
      %2088 = vsyncadd [#allocation4], 0
      %s2090 = sshll.u32 [#allocation3], 4
      %s2091 = int_to_ptr.vmem [resolvable:$true] %s2090
      %s2092 = sshll.u32 %s6, 4
      %s2093 = int_to_ptr.hbm [resolvable:$true] %s2092
      %2095 = dma.vmem_to_hbm [thread:$0]  %s2091, 32, %s2093, [#allocation4]
    $region29: #{cnn_lstm_forward.3} parent=1 // pred_fallthru
      _
    // Predicated region
    $region30: #{cnn_lstm_forward.3} parent=1 // pred_check
      _
    $region31: #{cnn_lstm_forward.3} parent=1 // pred_check_branch
      %2097 = sbr.rel (0) target = $region33
    $region32: #{cnn_lstm_forward.3} parent=1 // pred_region
      %2099 = dma.done [#allocation4], 32
    $region33: #{cnn_lstm_forward.3} parent=1 // pred_fallthru
      _
    %2100 = vsyncpa [#allocation4], 1

// kernel: cnn_lstm_forward.2
$region0: #{cnn_lstm_forward.2}
  #allocation0 [shape = 'u32[]', space=smem, size = 0x4, offset = 0x4, fixed_abs, tag = 'smem constant byte address 0x4 - core index']
  #allocation1 [shape = 'u32[72,128]{1,0:T(1,128)}', space=vmem, size = 0x9000, scoped, tag = 'internal scratch']
  %s0 = inlined_call_operand.vmem [shape: f32[4096,128], index: 0, kind: input, shape index: {}]
  %s1 = inlined_call_operand.vmem [shape: f32[512,128], index: 1, kind: input, shape index: {}]
  %s2 = inlined_call_operand.vmem [shape: f32[1,512], index: 2, kind: input, shape index: {}]
  %s3 = inlined_call_operand.vmem [shape: f32[4,4,512], index: 3, kind: output, shape index: {}]
  %s4 = sld [smem:[#allocation0]]
  $region45: #{cnn_lstm_forward.2} parent=0
    _
  %s6 = ssub.s32 1, %s4
  %s7 = scalar_select 0, %s6, %s4
  loop: start=0, step=1, limit=6
  $region2: #{cnn_lstm_forward.2} parent=0 // loop_pre_header
    _
  $region3: #{cnn_lstm_forward.2} parent=0 // loop_header
    %s9 = sphi 0, %s13
    %p10 = scmp.ge.s32.totalorder %s9, 6
    %s19 = sphi 0, %s21
    %s22 = sphi 0, %s19
    %s23 = sphi 0, %s22
    %s39 = sphi 0, %s23
    %s43 = sphi 0, %s43
    %s45 = sphi 0, %s43
    %s46 = sphi 0, %s45
    %s60 = sphi 0, %s46
    %s64 = sphi 0, %s64
    %s66 = sphi 0, %s64
    %s67 = sphi 0, %s66
    %s81 = sphi 0, %s67
    %s87 = sphi 0, %s89
    %s90 = sphi 0, %s87
    %s91 = sphi 0, %s90
    %s107 = sphi 0, %s91
  $region4: #{cnn_lstm_forward.2} parent=0 // loop_header_branch
    %12 = sbr.rel (%p10) target = $region8
  $region5: #{cnn_lstm_forward.2} parent=0 // loop_body
    %s14 = ssub.s32 %s9, 1
    %s15 = ssub.s32 %s9, 2
    %s16 = sadd.s32 %s9, 1
    %s17 = ssub.s32 %s9, %s16
    %p18 = scmp.eq.s32.totalorder %s17, 0
    %s20 = sadd.s32 %s19, 1
    %s21 = scalar_select %p18, %s19, %s20
    %p24 = pneg %p18
    %p25 = scmp.eq.s32.totalorder %s9, 3
    %p26 = por %p24, %p25
    %p27 = scmp.ne.s32.totalorder %s19, %s22
    %p28 = scmp.eq.s32.totalorder %s9, 0
    %p29 = por %p27, %p28
    %p30 = scmp.ne.s32.totalorder %s19, %s22
    %p31 = scmp.eq.s32.totalorder %s14, 3
    %p32 = por %p30, %p31
    %p33 = scmp.ne.s32.totalorder %s22, %s23
    %p34 = scmp.eq.s32.totalorder %s14, 0
    %p35 = por %p33, %p34
    %p36 = scmp.ne.s32.totalorder %s22, %s23
    %p37 = scmp.eq.s32.totalorder %s15, 3
    %p38 = por %p36, %p37
    %p40 = scmp.ne.s32.totalorder %s23, %s39
    %p41 = scmp.eq.s32.totalorder %s15, 0
    %p42 = por %p40, %p41
    %s44 = sadd.s32 %s43, 1
    %p47 = scmp.eq.s32.totalorder %s9, 3
    %p48 = scmp.ne.s32.totalorder %s43, %s45
    %p49 = scmp.eq.s32.totalorder %s9, 0
    %p50 = por %p48, %p49
    %p51 = scmp.ne.s32.totalorder %s43, %s45
    %p52 = scmp.eq.s32.totalorder %s14, 3
    %p53 = por %p51, %p52
    %p54 = scmp.ne.s32.totalorder %s45, %s46
    %p55 = scmp.eq.s32.totalorder %s14, 0
    %p56 = por %p54, %p55
    %p57 = scmp.ne.s32.totalorder %s45, %s46
    %p58 = scmp.eq.s32.totalorder %s15, 3
    %p59 = por %p57, %p58
    %p61 = scmp.ne.s32.totalorder %s46, %s60
    %p62 = scmp.eq.s32.totalorder %s15, 0
    %p63 = por %p61, %p62
    %s65 = sadd.s32 %s64, 1
    %p68 = scmp.eq.s32.totalorder %s9, 3
    %p69 = scmp.ne.s32.totalorder %s64, %s66
    %p70 = scmp.eq.s32.totalorder %s9, 0
    %p71 = por %p69, %p70
    %p72 = scmp.ne.s32.totalorder %s64, %s66
    %p73 = scmp.eq.s32.totalorder %s14, 3
    %p74 = por %p72, %p73
    %p75 = scmp.ne.s32.totalorder %s66, %s67
    %p76 = scmp.eq.s32.totalorder %s14, 0
    %p77 = por %p75, %p76
    %p78 = scmp.ne.s32.totalorder %s66, %s67
    %p79 = scmp.eq.s32.totalorder %s15, 3
    %p80 = por %p78, %p79
    %p82 = scmp.ne.s32.totalorder %s67, %s81
    %p83 = scmp.eq.s32.totalorder %s15, 0
    %p84 = por %p82, %p83
    %s85 = ssub.s32 %s9, %s16
    %p86 = scmp.eq.s32.totalorder %s85, 0
    %s88 = sadd.s32 %s87, 1
    %s89 = scalar_select %p86, %s87, %s88
    %p92 = pneg %p86
    %p93 = scmp.eq.s32.totalorder %s9, 3
    %p94 = por %p92, %p93
    %p95 = scmp.ne.s32.totalorder %s87, %s90
    %p96 = scmp.eq.s32.totalorder %s9, 0
    %p97 = por %p95, %p96
    %p98 = scmp.ne.s32.totalorder %s87, %s90
    %p99 = scmp.eq.s32.totalorder %s14, 3
    %p100 = por %p98, %p99
    %p101 = scmp.ne.s32.totalorder %s90, %s91
    %p102 = scmp.eq.s32.totalorder %s14, 0
    %p103 = por %p101, %p102
    %p104 = scmp.ne.s32.totalorder %s90, %s91
    %p105 = scmp.eq.s32.totalorder %s15, 3
    %p106 = por %p104, %p105
    %p108 = scmp.ne.s32.totalorder %s91, %s107
    %p109 = scmp.eq.s32.totalorder %s15, 0
    %p110 = por %p108, %p109
    %p111 = scmp.le.s32.totalorder 1, %s9
    %p112 = scmp.lt.s32.totalorder %s9, 5
    %p113 = pnand %p111, %p112
    %p114 = pneg %p113
    // Predicated region
    $region9: #{cnn_lstm_forward.2} parent=5 // pred_check
      _
    $region10: #{cnn_lstm_forward.2} parent=5 // pred_check_branch
      %116 = sbr.rel (%p113) target = $region12
    $region11: #{cnn_lstm_forward.2} parent=5 // pred_region
      %s117 = ssub.s32 %s9, 1
      // Predicated region
      $region13: #{cnn_lstm_forward.2} parent=11 // pred_check
        %p118 = pneg %p56
      $region14: #{cnn_lstm_forward.2} parent=11 // pred_check_branch
        %120 = sbr.rel (%p118) target = $region16
      $region15: #{cnn_lstm_forward.2} parent=11 // pred_region
        _
      $region16: #{cnn_lstm_forward.2} parent=11 // pred_fallthru
        _
      // Predicated region
      $region17: #{cnn_lstm_forward.2} parent=11 // pred_check
        %p121 = pneg %p77
      $region18: #{cnn_lstm_forward.2} parent=11 // pred_check_branch
        %123 = sbr.rel (%p121) target = $region20
      $region19: #{cnn_lstm_forward.2} parent=11 // pred_region
        _
      $region20: #{cnn_lstm_forward.2} parent=11 // pred_fallthru
        _
    $region12: #{cnn_lstm_forward.2} parent=5 // pred_fallthru
      _
    %p124 = scmp.lt.s32.totalorder %s9, 4
    // Predicated region
    $region21: #{cnn_lstm_forward.2} parent=5 // pred_check
      %p125 = pneg %p124
    $region22: #{cnn_lstm_forward.2} parent=5 // pred_check_branch
      %127 = sbr.rel (%p125) target = $region24
    $region23: #{cnn_lstm_forward.2} parent=5 // pred_region
      // Predicated region
      $region25: #{cnn_lstm_forward.2} parent=23 // pred_check
        %p128 = pneg %p29
      $region26: #{cnn_lstm_forward.2} parent=23 // pred_check_branch
        %130 = sbr.rel (%p128) target = $region28
      $region27: #{cnn_lstm_forward.2} parent=23 // pred_region
        %s131 = smul.u32 128, %s9
        %p132 = scmp.lt.s32.totalorder %s131, 511
        %s133 = scalar_select %p132, %s131, 511
        %s134 = smul.addr %s133, 8
        %s135 = scalar_lea.vmem %s0, %s134
        %s136 = smul.u32 128, %s9
      $region28: #{cnn_lstm_forward.2} parent=23 // pred_fallthru
        _
    $region24: #{cnn_lstm_forward.2} parent=5 // pred_fallthru
      _
    %p137 = scmp.le.s32.totalorder 1, %s9
    %p138 = scmp.lt.s32.totalorder %s9, 5
    %p139 = pnand %p137, %p138
    %p140 = pneg %p139
    // Predicated region
    $region29: #{cnn_lstm_forward.2} parent=5 // pred_check
      _
    $region30: #{cnn_lstm_forward.2} parent=5 // pred_check_branch
      %142 = sbr.rel (%p139) target = $region32
    $region31: #{cnn_lstm_forward.2} parent=5 // pred_region
      %s143 = ssub.s32 %s9, 1
      %s144 = smul.u32 128, %s14
      %p145 = scmp.lt.s32.totalorder %s144, 511
      %s146 = scalar_select %p145, %s144, 511
      %s147 = smul.addr %s146, 8
      %s148 = scalar_lea.vmem %s0, %s147
      %p149 = pneg %p35
      %p150 = pneg %p32
      %p151 = pneg %p56
      %p152 = pneg %p53
      %p153 = pneg %p77
      %p154 = pneg %p74
      %p155 = pneg %p103
      %p156 = pneg %p100
      %p157 = scmp.lt.s32.totalorder %s14, 3
      %s158 = scalar_select %p157, %s14, 3
      %s159 = smul.addr %s158, 4
      %s160 = smul.addr %s159, 4
      %s161 = scalar_lea.vmem %s3, %s160
      %s162 = smul.u32 128, %s14
      %p163 = scmp.lt.s32.totalorder %s162, 511
      %s164 = scalar_select %p163, %s162, 511
      %s165 = smul.addr %s164, 8
      %s166 = scalar_lea.vmem %s0, %s165
      %s167 = smul.u32 128, %s14
      %p168 = scmp.lt.s32.totalorder %s14, 3
      %s169 = scalar_select %p168, %s14, 3
      %s170 = smul.addr %s169, 4
      %s171 = smul.addr %s170, 4
      %s172 = scalar_lea.vmem %s3, %s171
      %v173 = vld [vmem:[%s2] sm:$0xf]
      %v174 = vld [vmem:[%s166] sm:$0xff]
      %v175 = vld [vmem:[%s166 + $0x8] sm:$0xff]
      %v176 = vld [vmem:[%s166 + $0x10] sm:$0xff]
      %v177 = vld [vmem:[%s166 + $0x18] sm:$0xff]
      %v178 = vld [vmem:[%s166 + $0x20] sm:$0xff]
      %v179 = vld [vmem:[%s166 + $0x28] sm:$0xff]
      %v180 = vld [vmem:[%s166 + $0x30] sm:$0xff]
      %v181 = vld [vmem:[%s166 + $0x38] sm:$0xff]
      %v182 = vld [vmem:[%s1] sm:$0xff]
      %v183 = vld [vmem:[%s1 + $0x8] sm:$0xff]
      %v184 = vld [vmem:[%s1 + $0x10] sm:$0xff]
      %v185 = vld [vmem:[%s1 + $0x18] sm:$0xff]
      %v186 = vld [vmem:[%s1 + $0x20] sm:$0xff]
      %v187 = vld [vmem:[%s1 + $0x28] sm:$0xff]
      %v188 = vld [vmem:[%s1 + $0x30] sm:$0xff]
      %v189 = vld [vmem:[%s1 + $0x38] sm:$0xff]
      %v190 = vld [vmem:[%s1 + $0x40] sm:$0xff]
      %v191 = vld [vmem:[%s1 + $0x48] sm:$0xff]
      %v192 = vld [vmem:[%s1 + $0x50] sm:$0xff]
      %v193 = vld [vmem:[%s1 + $0x58] sm:$0xff]
      %v194 = vld [vmem:[%s1 + $0x60] sm:$0xff]
      %v195 = vld [vmem:[%s1 + $0x68] sm:$0xff]
      %v196 = vld [vmem:[%s1 + $0x70] sm:$0xff]
      %v197 = vld [vmem:[%s1 + $0x78] sm:$0xff]
      %v198 = vld [vmem:[%s1 + $0x80] sm:$0xff]
      %v199 = vld [vmem:[%s1 + $0x88] sm:$0xff]
      %v200 = vld [vmem:[%s1 + $0x90] sm:$0xff]
      %v201 = vld [vmem:[%s1 + $0x98] sm:$0xff]
      %v202 = vld [vmem:[%s1 + $0xa0] sm:$0xff]
      %v203 = vld [vmem:[%s1 + $0xa8] sm:$0xff]
      %v204 = vld [vmem:[%s1 + $0xb0] sm:$0xff]
      %v205 = vld [vmem:[%s1 + $0xb8] sm:$0xff]
      %v206 = vld [vmem:[%s1 + $0xc0] sm:$0xff]
      %v207 = vld [vmem:[%s1 + $0xc8] sm:$0xff]
      %v208 = vld [vmem:[%s1 + $0xd0] sm:$0xff]
      %v209 = vld [vmem:[%s1 + $0xd8] sm:$0xff]
      %v210 = vld [vmem:[%s1 + $0xe0] sm:$0xff]
      %v211 = vld [vmem:[%s1 + $0xe8] sm:$0xff]
      %v212 = vld [vmem:[%s1 + $0xf0] sm:$0xff]
      %v213 = vld [vmem:[%s1 + $0xf8] sm:$0xff]
      %v214 = vld [vmem:[%s1 + $0x100] sm:$0xff]
      %v215 = vld [vmem:[%s1 + $0x108] sm:$0xff]
      %v216 = vld [vmem:[%s1 + $0x110] sm:$0xff]
      %v217 = vld [vmem:[%s1 + $0x118] sm:$0xff]
      %v218 = vld [vmem:[%s1 + $0x120] sm:$0xff]
      %v219 = vld [vmem:[%s1 + $0x128] sm:$0xff]
      %v220 = vld [vmem:[%s1 + $0x130] sm:$0xff]
      %v221 = vld [vmem:[%s1 + $0x138] sm:$0xff]
      %v222 = vld [vmem:[%s1 + $0x140] sm:$0xff]
      %v223 = vld [vmem:[%s1 + $0x148] sm:$0xff]
      %v224 = vld [vmem:[%s1 + $0x150] sm:$0xff]
      %v225 = vld [vmem:[%s1 + $0x158] sm:$0xff]
      %v226 = vld [vmem:[%s1 + $0x160] sm:$0xff]
      %v227 = vld [vmem:[%s1 + $0x168] sm:$0xff]
      %v228 = vld [vmem:[%s1 + $0x170] sm:$0xff]
      %v229 = vld [vmem:[%s1 + $0x178] sm:$0xff]
      %v230 = vld [vmem:[%s1 + $0x180] sm:$0xff]
      %v231 = vld [vmem:[%s1 + $0x188] sm:$0xff]
      %v232 = vld [vmem:[%s1 + $0x190] sm:$0xff]
      %v233 = vld [vmem:[%s1 + $0x198] sm:$0xff]
      %v234 = vld [vmem:[%s1 + $0x1a0] sm:$0xff]
      %v235 = vld [vmem:[%s1 + $0x1a8] sm:$0xff]
      %v236 = vld [vmem:[%s1 + $0x1b0] sm:$0xff]
      %v237 = vld [vmem:[%s1 + $0x1b8] sm:$0xff]
      %v238 = vld [vmem:[%s1 + $0x1c0] sm:$0xff]
      %v239 = vld [vmem:[%s1 + $0x1c8] sm:$0xff]
      %v240 = vld [vmem:[%s1 + $0x1d0] sm:$0xff]
      %v241 = vld [vmem:[%s1 + $0x1d8] sm:$0xff]
      %v242 = vld [vmem:[%s1 + $0x1e0] sm:$0xff]
      %v243 = vld [vmem:[%s1 + $0x1e8] sm:$0xff]
      %v244 = vld [vmem:[%s1 + $0x1f0] sm:$0xff]
      %v245 = vld [vmem:[%s1 + $0x1f8] sm:$0xff]
      %v247 = vperm.slane %v173, 0
      %v248 = vperm.slane %v173, 1
      %v249 = vperm.slane %v173, 2
      %v250 = vperm.slane %v173, 3
      %255 = vmatpush.xpose.msra.mxu0 %v197
      %256 = vmatpush.xpose.msra.mxu0 %v196
      %257 = vmatpush.xpose.msra.mxu0 %v195
      %258 = vmatpush.xpose.msra.mxu0 %v194
      %259 = vmatpush.xpose.msra.mxu0 %v193
      %260 = vmatpush.xpose.msra.mxu0 %v192
      %261 = vmatpush.xpose.msra.mxu0 %v191
      %262 = vmatpush.xpose.msra.mxu0 %v190
      %263 = vmatpush.xpose.msra.mxu0 %v189
      %264 = vmatpush.xpose.msra.mxu0 %v188
      %265 = vmatpush.xpose.msra.mxu0 %v187
      %266 = vmatpush.xpose.msra.mxu0 %v186
      %267 = vmatpush.xpose.msra.mxu0 %v185
      %268 = vmatpush.xpose.msra.mxu0 %v184
      %269 = vmatpush.xpose.msra.mxu0 %v183
      %270 = vmatpush.xpose.msra.mxu0 %v182
      %271 = vmatmul.f32.gmra.mxu0 %v174
      %v272 = vpop.f32.mrf.mxu0
      %v273 = vadd.f32 %v247, %v272
      %274 = vmatmul.f32.gmra.mxu0 %v175
      %v275 = vpop.f32.mrf.mxu0
      %v276 = vadd.f32 %v247, %v275
      %277 = vmatmul.f32.gmra.mxu0 %v176
      %v278 = vpop.f32.mrf.mxu0
      %v279 = vadd.f32 %v247, %v278
      %280 = vmatmul.f32.gmra.mxu0 %v177
      %v281 = vpop.f32.mrf.mxu0
      %v282 = vadd.f32 %v247, %v281
      %283 = vmatmul.f32.gmra.mxu0 %v178
      %v284 = vpop.f32.mrf.mxu0
      %v285 = vadd.f32 %v247, %v284
      %286 = vmatmul.f32.gmra.mxu0 %v179
      %v287 = vpop.f32.mrf.mxu0
      %v288 = vadd.f32 %v247, %v287
      %289 = vmatmul.f32.gmra.mxu0 %v180
      %v290 = vpop.f32.mrf.mxu0
      %v291 = vadd.f32 %v247, %v290
      %292 = vmatmul.f32.gmra.mxu0 %v181
      %v293 = vpop.f32.mrf.mxu0
      %v294 = vadd.f32 %v247, %v293
      %295 = vdwg.mxu0
      %296 = vmatpush.xpose.msra.mxu0 %v213
      %297 = vmatpush.xpose.msra.mxu0 %v212
      %298 = vmatpush.xpose.msra.mxu0 %v211
      %299 = vmatpush.xpose.msra.mxu0 %v210
      %300 = vmatpush.xpose.msra.mxu0 %v209
      %301 = vmatpush.xpose.msra.mxu0 %v208
      %302 = vmatpush.xpose.msra.mxu0 %v207
      %303 = vmatpush.xpose.msra.mxu0 %v206
      %304 = vmatpush.xpose.msra.mxu0 %v205
      %305 = vmatpush.xpose.msra.mxu0 %v204
      %306 = vmatpush.xpose.msra.mxu0 %v203
      %307 = vmatpush.xpose.msra.mxu0 %v202
      %308 = vmatpush.xpose.msra.mxu0 %v201
      %309 = vmatpush.xpose.msra.mxu0 %v200
      %310 = vmatpush.xpose.msra.mxu0 %v199
      %311 = vmatpush.xpose.msra.mxu0 %v198
      %312 = vmatmul.f32.gmra.mxu0 %v174
      %v313 = vpop.f32.mrf.mxu0
      %v314 = vadd.f32 %v248, %v313
      %315 = vmatmul.f32.gmra.mxu0 %v175
      %v316 = vpop.f32.mrf.mxu0
      %v317 = vadd.f32 %v248, %v316
      %318 = vmatmul.f32.gmra.mxu0 %v176
      %v319 = vpop.f32.mrf.mxu0
      %v320 = vadd.f32 %v248, %v319
      %321 = vmatmul.f32.gmra.mxu0 %v177
      %v322 = vpop.f32.mrf.mxu0
      %v323 = vadd.f32 %v248, %v322
      %324 = vmatmul.f32.gmra.mxu0 %v178
      %v325 = vpop.f32.mrf.mxu0
      %v326 = vadd.f32 %v248, %v325
      %327 = vmatmul.f32.gmra.mxu0 %v179
      %v328 = vpop.f32.mrf.mxu0
      %v329 = vadd.f32 %v248, %v328
      %330 = vmatmul.f32.gmra.mxu0 %v180
      %v331 = vpop.f32.mrf.mxu0
      %v332 = vadd.f32 %v248, %v331
      %333 = vmatmul.f32.gmra.mxu0 %v181
      %v334 = vpop.f32.mrf.mxu0
      %v335 = vadd.f32 %v248, %v334
      %336 = vdwg.mxu0
      %337 = vmatpush.xpose.msra.mxu0 %v229
      %338 = vmatpush.xpose.msra.mxu0 %v228
      %339 = vmatpush.xpose.msra.mxu0 %v227
      %340 = vmatpush.xpose.msra.mxu0 %v226
      %341 = vmatpush.xpose.msra.mxu0 %v225
      %342 = vmatpush.xpose.msra.mxu0 %v224
      %343 = vmatpush.xpose.msra.mxu0 %v223
      %344 = vmatpush.xpose.msra.mxu0 %v222
      %345 = vmatpush.xpose.msra.mxu0 %v221
      %346 = vmatpush.xpose.msra.mxu0 %v220
      %347 = vmatpush.xpose.msra.mxu0 %v219
      %348 = vmatpush.xpose.msra.mxu0 %v218
      %349 = vmatpush.xpose.msra.mxu0 %v217
      %350 = vmatpush.xpose.msra.mxu0 %v216
      %351 = vmatpush.xpose.msra.mxu0 %v215
      %352 = vmatpush.xpose.msra.mxu0 %v214
      %353 = vmatmul.f32.gmra.mxu0 %v174
      %v354 = vpop.f32.mrf.mxu0
      %v355 = vadd.f32 %v249, %v354
      %356 = vmatmul.f32.gmra.mxu0 %v175
      %v357 = vpop.f32.mrf.mxu0
      %v358 = vadd.f32 %v249, %v357
      %359 = vmatmul.f32.gmra.mxu0 %v176
      %v360 = vpop.f32.mrf.mxu0
      %v361 = vadd.f32 %v249, %v360
      %362 = vmatmul.f32.gmra.mxu0 %v177
      %v363 = vpop.f32.mrf.mxu0
      %v364 = vadd.f32 %v249, %v363
      %365 = vmatmul.f32.gmra.mxu0 %v178
      %v366 = vpop.f32.mrf.mxu0
      %v367 = vadd.f32 %v249, %v366
      %368 = vmatmul.f32.gmra.mxu0 %v179
      %v369 = vpop.f32.mrf.mxu0
      %v370 = vadd.f32 %v249, %v369
      %371 = vmatmul.f32.gmra.mxu0 %v180
      %v372 = vpop.f32.mrf.mxu0
      %v373 = vadd.f32 %v249, %v372
      %374 = vmatmul.f32.gmra.mxu0 %v181
      %v375 = vpop.f32.mrf.mxu0
      %v376 = vadd.f32 %v249, %v375
      %377 = vdwg.mxu0
      %378 = vmatpush.xpose.msra.mxu0 %v245
      %379 = vmatpush.xpose.msra.mxu0 %v244
      %380 = vmatpush.xpose.msra.mxu0 %v243
      %381 = vmatpush.xpose.msra.mxu0 %v242
      %382 = vmatpush.xpose.msra.mxu0 %v241
      %383 = vmatpush.xpose.msra.mxu0 %v240
      %384 = vmatpush.xpose.msra.mxu0 %v239
      %385 = vmatpush.xpose.msra.mxu0 %v238
      %386 = vmatpush.xpose.msra.mxu0 %v237
      %387 = vmatpush.xpose.msra.mxu0 %v236
      %388 = vmatpush.xpose.msra.mxu0 %v235
      %389 = vmatpush.xpose.msra.mxu0 %v234
      %390 = vmatpush.xpose.msra.mxu0 %v233
      %391 = vmatpush.xpose.msra.mxu0 %v232
      %392 = vmatpush.xpose.msra.mxu0 %v231
      %393 = vmatpush.xpose.msra.mxu0 %v230
      %394 = vmatmul.f32.gmra.mxu0 %v174
      %v395 = vpop.f32.mrf.mxu0
      %v396 = vadd.f32 %v250, %v395
      %397 = vmatmul.f32.gmra.mxu0 %v175
      %v398 = vpop.f32.mrf.mxu0
      %v399 = vadd.f32 %v250, %v398
      %400 = vmatmul.f32.gmra.mxu0 %v176
      %v401 = vpop.f32.mrf.mxu0
      %v402 = vadd.f32 %v250, %v401
      %403 = vmatmul.f32.gmra.mxu0 %v177
      %v404 = vpop.f32.mrf.mxu0
      %v405 = vadd.f32 %v250, %v404
      %406 = vmatmul.f32.gmra.mxu0 %v178
      %v407 = vpop.f32.mrf.mxu0
      %v408 = vadd.f32 %v250, %v407
      %409 = vmatmul.f32.gmra.mxu0 %v179
      %v410 = vpop.f32.mrf.mxu0
      %v411 = vadd.f32 %v250, %v410
      %412 = vmatmul.f32.gmra.mxu0 %v180
      %v413 = vpop.f32.mrf.mxu0
      %v414 = vadd.f32 %v250, %v413
      %415 = vmatmul.f32.gmra.mxu0 %v181
      %v416 = vpop.f32.mrf.mxu0
      %v417 = vadd.f32 %v250, %v416
      %418 = vdwg.mxu0
      %v419 = vmax.f32 %v273, 0.0
      %v420 = vmax.f32 %v314, 0.0
      %v421 = vmax.f32 %v355, 0.0
      %v422 = vmax.f32 %v396, 0.0
      %v423 = vmax.f32 %v276, 0.0
      %v424 = vmax.f32 %v317, 0.0
      %v425 = vmax.f32 %v358, 0.0
      %v426 = vmax.f32 %v399, 0.0
      %v427 = vmax.f32 %v279, 0.0
      %v428 = vmax.f32 %v320, 0.0
      %v429 = vmax.f32 %v361, 0.0
      %v430 = vmax.f32 %v402, 0.0
      %v431 = vmax.f32 %v282, 0.0
      %v432 = vmax.f32 %v323, 0.0
      %v433 = vmax.f32 %v364, 0.0
      %v434 = vmax.f32 %v405, 0.0
      %v435 = vmax.f32 %v285, 0.0
      %v436 = vmax.f32 %v326, 0.0
      %v437 = vmax.f32 %v367, 0.0
      %v438 = vmax.f32 %v408, 0.0
      %v439 = vmax.f32 %v288, 0.0
      %v440 = vmax.f32 %v329, 0.0
      %v441 = vmax.f32 %v370, 0.0
      %v442 = vmax.f32 %v411, 0.0
      %v443 = vmax.f32 %v291, 0.0
      %v444 = vmax.f32 %v332, 0.0
      %v445 = vmax.f32 %v373, 0.0
      %v446 = vmax.f32 %v414, 0.0
      %v447 = vmax.f32 %v294, 0.0
      %v448 = vmax.f32 %v335, 0.0
      %v449 = vmax.f32 %v376, 0.0
      %v450 = vmax.f32 %v417, 0.0
      %v451 = vadd.f32 %v419, %v423
      %v452 = vadd.f32 %v451, %v427
      %v453 = vadd.f32 %v452, %v431
      %v454 = vadd.f32 %v453, %v435
      %v455 = vadd.f32 %v454, %v439
      %v456 = vadd.f32 %v455, %v443
      %v457 = vadd.f32 %v456, %v447
      %v458 = vrot.slane %v457, 4
      %v459 = vadd.f32 %v457, %v458
      %v460 = vrot.slane %v459, 2
      %v461 = vadd.f32 %v459, %v460
      %v462 = vrot.slane %v461, 1
      %v463 = vadd.f32 %v461, %v462
      %v464 = vadd.f32 %v420, %v424
      %v465 = vadd.f32 %v464, %v428
      %v466 = vadd.f32 %v465, %v432
      %v467 = vadd.f32 %v466, %v436
      %v468 = vadd.f32 %v467, %v440
      %v469 = vadd.f32 %v468, %v444
      %v470 = vadd.f32 %v469, %v448
      %v471 = vrot.slane %v470, 4
      %v472 = vadd.f32 %v470, %v471
      %v473 = vrot.slane %v472, 2
      %v474 = vadd.f32 %v472, %v473
      %v475 = vrot.slane %v474, 1
      %v476 = vadd.f32 %v474, %v475
      %v477 = vadd.f32 %v421, %v425
      %v478 = vadd.f32 %v477, %v429
      %v479 = vadd.f32 %v478, %v433
      %v480 = vadd.f32 %v479, %v437
      %v481 = vadd.f32 %v480, %v441
      %v482 = vadd.f32 %v481, %v445
      %v483 = vadd.f32 %v482, %v449
      %v484 = vrot.slane %v483, 4
      %v485 = vadd.f32 %v483, %v484
      %v486 = vrot.slane %v485, 2
      %v487 = vadd.f32 %v485, %v486
      %v488 = vrot.slane %v487, 1
      %v489 = vadd.f32 %v487, %v488
      %v490 = vadd.f32 %v422, %v426
      %v491 = vadd.f32 %v490, %v430
      %v492 = vadd.f32 %v491, %v434
      %v493 = vadd.f32 %v492, %v438
      %v494 = vadd.f32 %v493, %v442
      %v495 = vadd.f32 %v494, %v446
      %v496 = vadd.f32 %v495, %v450
      %v497 = vrot.slane %v496, 4
      %v498 = vadd.f32 %v496, %v497
      %v499 = vrot.slane %v498, 2
      %v500 = vadd.f32 %v498, %v499
      %v501 = vrot.slane %v500, 1
      %v502 = vadd.f32 %v500, %v501
      %v503 = vadd.f32 %v463, 0.0
      %v504 = vadd.f32 %v476, 0.0
      %v505 = vadd.f32 %v489, 0.0
      %v506 = vadd.f32 %v502, 0.0
      %v507 = vld [vmem:[%s166 + $0x40] sm:$0xff]
      %v508 = vld [vmem:[%s166 + $0x48] sm:$0xff]
      %v509 = vld [vmem:[%s166 + $0x50] sm:$0xff]
      %v510 = vld [vmem:[%s166 + $0x58] sm:$0xff]
      %v511 = vld [vmem:[%s166 + $0x60] sm:$0xff]
      %v512 = vld [vmem:[%s166 + $0x68] sm:$0xff]
      %v513 = vld [vmem:[%s166 + $0x70] sm:$0xff]
      %v514 = vld [vmem:[%s166 + $0x78] sm:$0xff]
      %515 = vmatpush.xpose.msra.mxu0 %v197
      %516 = vmatpush.xpose.msra.mxu0 %v196
      %517 = vmatpush.xpose.msra.mxu0 %v195
      %518 = vmatpush.xpose.msra.mxu0 %v194
      %519 = vmatpush.xpose.msra.mxu0 %v193
      %520 = vmatpush.xpose.msra.mxu0 %v192
      %521 = vmatpush.xpose.msra.mxu0 %v191
      %522 = vmatpush.xpose.msra.mxu0 %v190
      %523 = vmatpush.xpose.msra.mxu0 %v189
      %524 = vmatpush.xpose.msra.mxu0 %v188
      %525 = vmatpush.xpose.msra.mxu0 %v187
      %526 = vmatpush.xpose.msra.mxu0 %v186
      %527 = vmatpush.xpose.msra.mxu0 %v185
      %528 = vmatpush.xpose.msra.mxu0 %v184
      %529 = vmatpush.xpose.msra.mxu0 %v183
      %530 = vmatpush.xpose.msra.mxu0 %v182
      %531 = vmatmul.f32.gmra.mxu0 %v507
      %v532 = vpop.f32.mrf.mxu0
      %v533 = vadd.f32 %v247, %v532
      %534 = vmatmul.f32.gmra.mxu0 %v508
      %v535 = vpop.f32.mrf.mxu0
      %v536 = vadd.f32 %v247, %v535
      %537 = vmatmul.f32.gmra.mxu0 %v509
      %v538 = vpop.f32.mrf.mxu0
      %v539 = vadd.f32 %v247, %v538
      %540 = vmatmul.f32.gmra.mxu0 %v510
      %v541 = vpop.f32.mrf.mxu0
      %v542 = vadd.f32 %v247, %v541
      %543 = vmatmul.f32.gmra.mxu0 %v511
      %v544 = vpop.f32.mrf.mxu0
      %v545 = vadd.f32 %v247, %v544
      %546 = vmatmul.f32.gmra.mxu0 %v512
      %v547 = vpop.f32.mrf.mxu0
      %v548 = vadd.f32 %v247, %v547
      %549 = vmatmul.f32.gmra.mxu0 %v513
      %v550 = vpop.f32.mrf.mxu0
      %v551 = vadd.f32 %v247, %v550
      %552 = vmatmul.f32.gmra.mxu0 %v514
      %v553 = vpop.f32.mrf.mxu0
      %v554 = vadd.f32 %v247, %v553
      %555 = vdwg.mxu0
      %556 = vmatpush.xpose.msra.mxu0 %v213
      %557 = vmatpush.xpose.msra.mxu0 %v212
      %558 = vmatpush.xpose.msra.mxu0 %v211
      %559 = vmatpush.xpose.msra.mxu0 %v210
      %560 = vmatpush.xpose.msra.mxu0 %v209
      %561 = vmatpush.xpose.msra.mxu0 %v208
      %562 = vmatpush.xpose.msra.mxu0 %v207
      %563 = vmatpush.xpose.msra.mxu0 %v206
      %564 = vmatpush.xpose.msra.mxu0 %v205
      %565 = vmatpush.xpose.msra.mxu0 %v204
      %566 = vmatpush.xpose.msra.mxu0 %v203
      %567 = vmatpush.xpose.msra.mxu0 %v202
      %568 = vmatpush.xpose.msra.mxu0 %v201
      %569 = vmatpush.xpose.msra.mxu0 %v200
      %570 = vmatpush.xpose.msra.mxu0 %v199
      %571 = vmatpush.xpose.msra.mxu0 %v198
      %572 = vmatmul.f32.gmra.mxu0 %v507
      %v573 = vpop.f32.mrf.mxu0
      %v574 = vadd.f32 %v248, %v573
      %575 = vmatmul.f32.gmra.mxu0 %v508
      %v576 = vpop.f32.mrf.mxu0
      %v577 = vadd.f32 %v248, %v576
      %578 = vmatmul.f32.gmra.mxu0 %v509
      %v579 = vpop.f32.mrf.mxu0
      %v580 = vadd.f32 %v248, %v579
      %581 = vmatmul.f32.gmra.mxu0 %v510
      %v582 = vpop.f32.mrf.mxu0
      %v583 = vadd.f32 %v248, %v582
      %584 = vmatmul.f32.gmra.mxu0 %v511
      %v585 = vpop.f32.mrf.mxu0
      %v586 = vadd.f32 %v248, %v585
      %587 = vmatmul.f32.gmra.mxu0 %v512
      %v588 = vpop.f32.mrf.mxu0
      %v589 = vadd.f32 %v248, %v588
      %590 = vmatmul.f32.gmra.mxu0 %v513
      %v591 = vpop.f32.mrf.mxu0
      %v592 = vadd.f32 %v248, %v591
      %593 = vmatmul.f32.gmra.mxu0 %v514
      %v594 = vpop.f32.mrf.mxu0
      %v595 = vadd.f32 %v248, %v594
      %596 = vdwg.mxu0
      %597 = vmatpush.xpose.msra.mxu0 %v229
      %598 = vmatpush.xpose.msra.mxu0 %v228
      %599 = vmatpush.xpose.msra.mxu0 %v227
      %600 = vmatpush.xpose.msra.mxu0 %v226
      %601 = vmatpush.xpose.msra.mxu0 %v225
      %602 = vmatpush.xpose.msra.mxu0 %v224
      %603 = vmatpush.xpose.msra.mxu0 %v223
      %604 = vmatpush.xpose.msra.mxu0 %v222
      %605 = vmatpush.xpose.msra.mxu0 %v221
      %606 = vmatpush.xpose.msra.mxu0 %v220
      %607 = vmatpush.xpose.msra.mxu0 %v219
      %608 = vmatpush.xpose.msra.mxu0 %v218
      %609 = vmatpush.xpose.msra.mxu0 %v217
      %610 = vmatpush.xpose.msra.mxu0 %v216
      %611 = vmatpush.xpose.msra.mxu0 %v215
      %612 = vmatpush.xpose.msra.mxu0 %v214
      %613 = vmatmul.f32.gmra.mxu0 %v507
      %v614 = vpop.f32.mrf.mxu0
      %v615 = vadd.f32 %v249, %v614
      %616 = vmatmul.f32.gmra.mxu0 %v508
      %v617 = vpop.f32.mrf.mxu0
      %v618 = vadd.f32 %v249, %v617
      %619 = vmatmul.f32.gmra.mxu0 %v509
      %v620 = vpop.f32.mrf.mxu0
      %v621 = vadd.f32 %v249, %v620
      %622 = vmatmul.f32.gmra.mxu0 %v510
      %v623 = vpop.f32.mrf.mxu0
      %v624 = vadd.f32 %v249, %v623
      %625 = vmatmul.f32.gmra.mxu0 %v511
      %v626 = vpop.f32.mrf.mxu0
      %v627 = vadd.f32 %v249, %v626
      %628 = vmatmul.f32.gmra.mxu0 %v512
      %v629 = vpop.f32.mrf.mxu0
      %v630 = vadd.f32 %v249, %v629
      %631 = vmatmul.f32.gmra.mxu0 %v513
      %v632 = vpop.f32.mrf.mxu0
      %v633 = vadd.f32 %v249, %v632
      %634 = vmatmul.f32.gmra.mxu0 %v514
      %v635 = vpop.f32.mrf.mxu0
      %v636 = vadd.f32 %v249, %v635
      %637 = vdwg.mxu0
      %638 = vmatpush.xpose.msra.mxu0 %v245
      %639 = vmatpush.xpose.msra.mxu0 %v244
      %640 = vmatpush.xpose.msra.mxu0 %v243
      %641 = vmatpush.xpose.msra.mxu0 %v242
      %642 = vmatpush.xpose.msra.mxu0 %v241
      %643 = vmatpush.xpose.msra.mxu0 %v240
      %644 = vmatpush.xpose.msra.mxu0 %v239
      %645 = vmatpush.xpose.msra.mxu0 %v238
      %646 = vmatpush.xpose.msra.mxu0 %v237
      %647 = vmatpush.xpose.msra.mxu0 %v236
      %648 = vmatpush.xpose.msra.mxu0 %v235
      %649 = vmatpush.xpose.msra.mxu0 %v234
      %650 = vmatpush.xpose.msra.mxu0 %v233
      %651 = vmatpush.xpose.msra.mxu0 %v232
      %652 = vmatpush.xpose.msra.mxu0 %v231
      %653 = vmatpush.xpose.msra.mxu0 %v230
      %654 = vmatmul.f32.gmra.mxu0 %v507
      %v655 = vpop.f32.mrf.mxu0
      %v656 = vadd.f32 %v250, %v655
      %657 = vmatmul.f32.gmra.mxu0 %v508
      %v658 = vpop.f32.mrf.mxu0
      %v659 = vadd.f32 %v250, %v658
      %660 = vmatmul.f32.gmra.mxu0 %v509
      %v661 = vpop.f32.mrf.mxu0
      %v662 = vadd.f32 %v250, %v661
      %663 = vmatmul.f32.gmra.mxu0 %v510
      %v664 = vpop.f32.mrf.mxu0
      %v665 = vadd.f32 %v250, %v664
      %666 = vmatmul.f32.gmra.mxu0 %v511
      %v667 = vpop.f32.mrf.mxu0
      %v668 = vadd.f32 %v250, %v667
      %669 = vmatmul.f32.gmra.mxu0 %v512
      %v670 = vpop.f32.mrf.mxu0
      %v671 = vadd.f32 %v250, %v670
      %672 = vmatmul.f32.gmra.mxu0 %v513
      %v673 = vpop.f32.mrf.mxu0
      %v674 = vadd.f32 %v250, %v673
      %675 = vmatmul.f32.gmra.mxu0 %v514
      %v676 = vpop.f32.mrf.mxu0
      %v677 = vadd.f32 %v250, %v676
      %678 = vdwg.mxu0
      %v679 = vmax.f32 %v533, 0.0
      %v680 = vmax.f32 %v574, 0.0
      %v681 = vmax.f32 %v615, 0.0
      %v682 = vmax.f32 %v656, 0.0
      %v683 = vmax.f32 %v536, 0.0
      %v684 = vmax.f32 %v577, 0.0
      %v685 = vmax.f32 %v618, 0.0
      %v686 = vmax.f32 %v659, 0.0
      %v687 = vmax.f32 %v539, 0.0
      %v688 = vmax.f32 %v580, 0.0
      %v689 = vmax.f32 %v621, 0.0
      %v690 = vmax.f32 %v662, 0.0
      %v691 = vmax.f32 %v542, 0.0
      %v692 = vmax.f32 %v583, 0.0
      %v693 = vmax.f32 %v624, 0.0
      %v694 = vmax.f32 %v665, 0.0
      %v695 = vmax.f32 %v545, 0.0
      %v696 = vmax.f32 %v586, 0.0
      %v697 = vmax.f32 %v627, 0.0
      %v698 = vmax.f32 %v668, 0.0
      %v699 = vmax.f32 %v548, 0.0
      %v700 = vmax.f32 %v589, 0.0
      %v701 = vmax.f32 %v630, 0.0
      %v702 = vmax.f32 %v671, 0.0
      %v703 = vmax.f32 %v551, 0.0
      %v704 = vmax.f32 %v592, 0.0
      %v705 = vmax.f32 %v633, 0.0
      %v706 = vmax.f32 %v674, 0.0
      %v707 = vmax.f32 %v554, 0.0
      %v708 = vmax.f32 %v595, 0.0
      %v709 = vmax.f32 %v636, 0.0
      %v710 = vmax.f32 %v677, 0.0
      %v711 = vadd.f32 %v679, %v683
      %v712 = vadd.f32 %v711, %v687
      %v713 = vadd.f32 %v712, %v691
      %v714 = vadd.f32 %v713, %v695
      %v715 = vadd.f32 %v714, %v699
      %v716 = vadd.f32 %v715, %v703
      %v717 = vadd.f32 %v716, %v707
      %v718 = vrot.slane %v717, 4
      %v719 = vadd.f32 %v717, %v718
      %v720 = vrot.slane %v719, 2
      %v721 = vadd.f32 %v719, %v720
      %v722 = vrot.slane %v721, 1
      %v723 = vadd.f32 %v721, %v722
      %v724 = vadd.f32 %v680, %v684
      %v725 = vadd.f32 %v724, %v688
      %v726 = vadd.f32 %v725, %v692
      %v727 = vadd.f32 %v726, %v696
      %v728 = vadd.f32 %v727, %v700
      %v729 = vadd.f32 %v728, %v704
      %v730 = vadd.f32 %v729, %v708
      %v731 = vrot.slane %v730, 4
      %v732 = vadd.f32 %v730, %v731
      %v733 = vrot.slane %v732, 2
      %v734 = vadd.f32 %v732, %v733
      %v735 = vrot.slane %v734, 1
      %v736 = vadd.f32 %v734, %v735
      %v737 = vadd.f32 %v681, %v685
      %v738 = vadd.f32 %v737, %v689
      %v739 = vadd.f32 %v738, %v693
      %v740 = vadd.f32 %v739, %v697
      %v741 = vadd.f32 %v740, %v701
      %v742 = vadd.f32 %v741, %v705
      %v743 = vadd.f32 %v742, %v709
      %v744 = vrot.slane %v743, 4
      %v745 = vadd.f32 %v743, %v744
      %v746 = vrot.slane %v745, 2
      %v747 = vadd.f32 %v745, %v746
      %v748 = vrot.slane %v747, 1
      %v749 = vadd.f32 %v747, %v748
      %v750 = vadd.f32 %v682, %v686
      %v751 = vadd.f32 %v750, %v690
      %v752 = vadd.f32 %v751, %v694
      %v753 = vadd.f32 %v752, %v698
      %v754 = vadd.f32 %v753, %v702
      %v755 = vadd.f32 %v754, %v706
      %v756 = vadd.f32 %v755, %v710
      %v757 = vrot.slane %v756, 4
      %v758 = vadd.f32 %v756, %v757
      %v759 = vrot.slane %v758, 2
      %v760 = vadd.f32 %v758, %v759
      %v761 = vrot.slane %v760, 1
      %v762 = vadd.f32 %v760, %v761
      %v763 = vadd.f32 %v503, %v723
      %v764 = vadd.f32 %v504, %v736
      %v765 = vadd.f32 %v505, %v749
      %v766 = vadd.f32 %v506, %v762
      %v767 = vld [vmem:[%s166 + $0x80] sm:$0xff]
      %v768 = vld [vmem:[%s166 + $0x88] sm:$0xff]
      %v769 = vld [vmem:[%s166 + $0x90] sm:$0xff]
      %v770 = vld [vmem:[%s166 + $0x98] sm:$0xff]
      %v771 = vld [vmem:[%s166 + $0xa0] sm:$0xff]
      %v772 = vld [vmem:[%s166 + $0xa8] sm:$0xff]
      %v773 = vld [vmem:[%s166 + $0xb0] sm:$0xff]
      %v774 = vld [vmem:[%s166 + $0xb8] sm:$0xff]
      %775 = vmatpush.xpose.msra.mxu0 %v197
      %776 = vmatpush.xpose.msra.mxu0 %v196
      %777 = vmatpush.xpose.msra.mxu0 %v195
      %778 = vmatpush.xpose.msra.mxu0 %v194
      %779 = vmatpush.xpose.msra.mxu0 %v193
      %780 = vmatpush.xpose.msra.mxu0 %v192
      %781 = vmatpush.xpose.msra.mxu0 %v191
      %782 = vmatpush.xpose.msra.mxu0 %v190
      %783 = vmatpush.xpose.msra.mxu0 %v189
      %784 = vmatpush.xpose.msra.mxu0 %v188
      %785 = vmatpush.xpose.msra.mxu0 %v187
      %786 = vmatpush.xpose.msra.mxu0 %v186
      %787 = vmatpush.xpose.msra.mxu0 %v185
      %788 = vmatpush.xpose.msra.mxu0 %v184
      %789 = vmatpush.xpose.msra.mxu0 %v183
      %790 = vmatpush.xpose.msra.mxu0 %v182
      %791 = vmatmul.f32.gmra.mxu0 %v767
      %v792 = vpop.f32.mrf.mxu0
      %v793 = vadd.f32 %v247, %v792
      %794 = vmatmul.f32.gmra.mxu0 %v768
      %v795 = vpop.f32.mrf.mxu0
      %v796 = vadd.f32 %v247, %v795
      %797 = vmatmul.f32.gmra.mxu0 %v769
      %v798 = vpop.f32.mrf.mxu0
      %v799 = vadd.f32 %v247, %v798
      %800 = vmatmul.f32.gmra.mxu0 %v770
      %v801 = vpop.f32.mrf.mxu0
      %v802 = vadd.f32 %v247, %v801
      %803 = vmatmul.f32.gmra.mxu0 %v771
      %v804 = vpop.f32.mrf.mxu0
      %v805 = vadd.f32 %v247, %v804
      %806 = vmatmul.f32.gmra.mxu0 %v772
      %v807 = vpop.f32.mrf.mxu0
      %v808 = vadd.f32 %v247, %v807
      %809 = vmatmul.f32.gmra.mxu0 %v773
      %v810 = vpop.f32.mrf.mxu0
      %v811 = vadd.f32 %v247, %v810
      %812 = vmatmul.f32.gmra.mxu0 %v774
      %v813 = vpop.f32.mrf.mxu0
      %v814 = vadd.f32 %v247, %v813
      %815 = vdwg.mxu0
      %816 = vmatpush.xpose.msra.mxu0 %v213
      %817 = vmatpush.xpose.msra.mxu0 %v212
      %818 = vmatpush.xpose.msra.mxu0 %v211
      %819 = vmatpush.xpose.msra.mxu0 %v210
      %820 = vmatpush.xpose.msra.mxu0 %v209
      %821 = vmatpush.xpose.msra.mxu0 %v208
      %822 = vmatpush.xpose.msra.mxu0 %v207
      %823 = vmatpush.xpose.msra.mxu0 %v206
      %824 = vmatpush.xpose.msra.mxu0 %v205
      %825 = vmatpush.xpose.msra.mxu0 %v204
      %826 = vmatpush.xpose.msra.mxu0 %v203
      %827 = vmatpush.xpose.msra.mxu0 %v202
      %828 = vmatpush.xpose.msra.mxu0 %v201
      %829 = vmatpush.xpose.msra.mxu0 %v200
      %830 = vmatpush.xpose.msra.mxu0 %v199
      %831 = vmatpush.xpose.msra.mxu0 %v198
      %832 = vmatmul.f32.gmra.mxu0 %v767
      %v833 = vpop.f32.mrf.mxu0
      %v834 = vadd.f32 %v248, %v833
      %835 = vmatmul.f32.gmra.mxu0 %v768
      %v836 = vpop.f32.mrf.mxu0
      %v837 = vadd.f32 %v248, %v836
      %838 = vmatmul.f32.gmra.mxu0 %v769
      %v839 = vpop.f32.mrf.mxu0
      %v840 = vadd.f32 %v248, %v839
      %841 = vmatmul.f32.gmra.mxu0 %v770
      %v842 = vpop.f32.mrf.mxu0
      %v843 = vadd.f32 %v248, %v842
      %844 = vmatmul.f32.gmra.mxu0 %v771
      %v845 = vpop.f32.mrf.mxu0
      %v846 = vadd.f32 %v248, %v845
      %847 = vmatmul.f32.gmra.mxu0 %v772
      %v848 = vpop.f32.mrf.mxu0
      %v849 = vadd.f32 %v248, %v848
      %850 = vmatmul.f32.gmra.mxu0 %v773
      %v851 = vpop.f32.mrf.mxu0
      %v852 = vadd.f32 %v248, %v851
      %853 = vmatmul.f32.gmra.mxu0 %v774
      %v854 = vpop.f32.mrf.mxu0
      %v855 = vadd.f32 %v248, %v854
      %856 = vdwg.mxu0
      %857 = vmatpush.xpose.msra.mxu0 %v229
      %858 = vmatpush.xpose.msra.mxu0 %v228
      %859 = vmatpush.xpose.msra.mxu0 %v227
      %860 = vmatpush.xpose.msra.mxu0 %v226
      %861 = vmatpush.xpose.msra.mxu0 %v225
      %862 = vmatpush.xpose.msra.mxu0 %v224
      %863 = vmatpush.xpose.msra.mxu0 %v223
      %864 = vmatpush.xpose.msra.mxu0 %v222
      %865 = vmatpush.xpose.msra.mxu0 %v221
      %866 = vmatpush.xpose.msra.mxu0 %v220
      %867 = vmatpush.xpose.msra.mxu0 %v219
      %868 = vmatpush.xpose.msra.mxu0 %v218
      %869 = vmatpush.xpose.msra.mxu0 %v217
      %870 = vmatpush.xpose.msra.mxu0 %v216
      %871 = vmatpush.xpose.msra.mxu0 %v215
      %872 = vmatpush.xpose.msra.mxu0 %v214
      %873 = vmatmul.f32.gmra.mxu0 %v767
      %v874 = vpop.f32.mrf.mxu0
      %v875 = vadd.f32 %v249, %v874
      %876 = vmatmul.f32.gmra.mxu0 %v768
      %v877 = vpop.f32.mrf.mxu0
      %v878 = vadd.f32 %v249, %v877
      %879 = vmatmul.f32.gmra.mxu0 %v769
      %v880 = vpop.f32.mrf.mxu0
      %v881 = vadd.f32 %v249, %v880
      %882 = vmatmul.f32.gmra.mxu0 %v770
      %v883 = vpop.f32.mrf.mxu0
      %v884 = vadd.f32 %v249, %v883
      %885 = vmatmul.f32.gmra.mxu0 %v771
      %v886 = vpop.f32.mrf.mxu0
      %v887 = vadd.f32 %v249, %v886
      %888 = vmatmul.f32.gmra.mxu0 %v772
      %v889 = vpop.f32.mrf.mxu0
      %v890 = vadd.f32 %v249, %v889
      %891 = vmatmul.f32.gmra.mxu0 %v773
      %v892 = vpop.f32.mrf.mxu0
      %v893 = vadd.f32 %v249, %v892
      %894 = vmatmul.f32.gmra.mxu0 %v774
      %v895 = vpop.f32.mrf.mxu0
      %v896 = vadd.f32 %v249, %v895
      %897 = vdwg.mxu0
      %898 = vmatpush.xpose.msra.mxu0 %v245
      %899 = vmatpush.xpose.msra.mxu0 %v244
      %900 = vmatpush.xpose.msra.mxu0 %v243
      %901 = vmatpush.xpose.msra.mxu0 %v242
      %902 = vmatpush.xpose.msra.mxu0 %v241
      %903 = vmatpush.xpose.msra.mxu0 %v240
      %904 = vmatpush.xpose.msra.mxu0 %v239
      %905 = vmatpush.xpose.msra.mxu0 %v238
      %906 = vmatpush.xpose.msra.mxu0 %v237
      %907 = vmatpush.xpose.msra.mxu0 %v236
      %908 = vmatpush.xpose.msra.mxu0 %v235
      %909 = vmatpush.xpose.msra.mxu0 %v234
      %910 = vmatpush.xpose.msra.mxu0 %v233
      %911 = vmatpush.xpose.msra.mxu0 %v232
      %912 = vmatpush.xpose.msra.mxu0 %v231
      %913 = vmatpush.xpose.msra.mxu0 %v230
      %914 = vmatmul.f32.gmra.mxu0 %v767
      %v915 = vpop.f32.mrf.mxu0
      %v916 = vadd.f32 %v250, %v915
      %917 = vmatmul.f32.gmra.mxu0 %v768
      %v918 = vpop.f32.mrf.mxu0
      %v919 = vadd.f32 %v250, %v918
      %920 = vmatmul.f32.gmra.mxu0 %v769
      %v921 = vpop.f32.mrf.mxu0
      %v922 = vadd.f32 %v250, %v921
      %923 = vmatmul.f32.gmra.mxu0 %v770
      %v924 = vpop.f32.mrf.mxu0
      %v925 = vadd.f32 %v250, %v924
      %926 = vmatmul.f32.gmra.mxu0 %v771
      %v927 = vpop.f32.mrf.mxu0
      %v928 = vadd.f32 %v250, %v927
      %929 = vmatmul.f32.gmra.mxu0 %v772
      %v930 = vpop.f32.mrf.mxu0
      %v931 = vadd.f32 %v250, %v930
      %932 = vmatmul.f32.gmra.mxu0 %v773
      %v933 = vpop.f32.mrf.mxu0
      %v934 = vadd.f32 %v250, %v933
      %935 = vmatmul.f32.gmra.mxu0 %v774
      %v936 = vpop.f32.mrf.mxu0
      %v937 = vadd.f32 %v250, %v936
      %938 = vdwg.mxu0
      %v939 = vmax.f32 %v793, 0.0
      %v940 = vmax.f32 %v834, 0.0
      %v941 = vmax.f32 %v875, 0.0
      %v942 = vmax.f32 %v916, 0.0
      %v943 = vmax.f32 %v796, 0.0
      %v944 = vmax.f32 %v837, 0.0
      %v945 = vmax.f32 %v878, 0.0
      %v946 = vmax.f32 %v919, 0.0
      %v947 = vmax.f32 %v799, 0.0
      %v948 = vmax.f32 %v840, 0.0
      %v949 = vmax.f32 %v881, 0.0
      %v950 = vmax.f32 %v922, 0.0
      %v951 = vmax.f32 %v802, 0.0
      %v952 = vmax.f32 %v843, 0.0
      %v953 = vmax.f32 %v884, 0.0
      %v954 = vmax.f32 %v925, 0.0
      %v955 = vmax.f32 %v805, 0.0
      %v956 = vmax.f32 %v846, 0.0
      %v957 = vmax.f32 %v887, 0.0
      %v958 = vmax.f32 %v928, 0.0
      %v959 = vmax.f32 %v808, 0.0
      %v960 = vmax.f32 %v849, 0.0
      %v961 = vmax.f32 %v890, 0.0
      %v962 = vmax.f32 %v931, 0.0
      %v963 = vmax.f32 %v811, 0.0
      %v964 = vmax.f32 %v852, 0.0
      %v965 = vmax.f32 %v893, 0.0
      %v966 = vmax.f32 %v934, 0.0
      %v967 = vmax.f32 %v814, 0.0
      %v968 = vmax.f32 %v855, 0.0
      %v969 = vmax.f32 %v896, 0.0
      %v970 = vmax.f32 %v937, 0.0
      %v971 = vadd.f32 %v939, %v943
      %v972 = vadd.f32 %v971, %v947
      %v973 = vadd.f32 %v972, %v951
      %v974 = vadd.f32 %v973, %v955
      %v975 = vadd.f32 %v974, %v959
      %v976 = vadd.f32 %v975, %v963
      %v977 = vadd.f32 %v976, %v967
      %v978 = vrot.slane %v977, 4
      %v979 = vadd.f32 %v977, %v978
      %v980 = vrot.slane %v979, 2
      %v981 = vadd.f32 %v979, %v980
      %v982 = vrot.slane %v981, 1
      %v983 = vadd.f32 %v981, %v982
      %v984 = vadd.f32 %v940, %v944
      %v985 = vadd.f32 %v984, %v948
      %v986 = vadd.f32 %v985, %v952
      %v987 = vadd.f32 %v986, %v956
      %v988 = vadd.f32 %v987, %v960
      %v989 = vadd.f32 %v988, %v964
      %v990 = vadd.f32 %v989, %v968
      %v991 = vrot.slane %v990, 4
      %v992 = vadd.f32 %v990, %v991
      %v993 = vrot.slane %v992, 2
      %v994 = vadd.f32 %v992, %v993
      %v995 = vrot.slane %v994, 1
      %v996 = vadd.f32 %v994, %v995
      %v997 = vadd.f32 %v941, %v945
      %v998 = vadd.f32 %v997, %v949
      %v999 = vadd.f32 %v998, %v953
      %v1000 = vadd.f32 %v999, %v957
      %v1001 = vadd.f32 %v1000, %v961
      %v1002 = vadd.f32 %v1001, %v965
      %v1003 = vadd.f32 %v1002, %v969
      %v1004 = vrot.slane %v1003, 4
      %v1005 = vadd.f32 %v1003, %v1004
      %v1006 = vrot.slane %v1005, 2
      %v1007 = vadd.f32 %v1005, %v1006
      %v1008 = vrot.slane %v1007, 1
      %v1009 = vadd.f32 %v1007, %v1008
      %v1010 = vadd.f32 %v942, %v946
      %v1011 = vadd.f32 %v1010, %v950
      %v1012 = vadd.f32 %v1011, %v954
      %v1013 = vadd.f32 %v1012, %v958
      %v1014 = vadd.f32 %v1013, %v962
      %v1015 = vadd.f32 %v1014, %v966
      %v1016 = vadd.f32 %v1015, %v970
      %v1017 = vrot.slane %v1016, 4
      %v1018 = vadd.f32 %v1016, %v1017
      %v1019 = vrot.slane %v1018, 2
      %v1020 = vadd.f32 %v1018, %v1019
      %v1021 = vrot.slane %v1020, 1
      %v1022 = vadd.f32 %v1020, %v1021
      %v1023 = vadd.f32 %v763, %v983
      %v1024 = vadd.f32 %v764, %v996
      %v1025 = vadd.f32 %v765, %v1009
      %v1026 = vadd.f32 %v766, %v1022
      %v1027 = vld [vmem:[%s166 + $0xc0] sm:$0xff]
      %v1028 = vld [vmem:[%s166 + $0xc8] sm:$0xff]
      %v1029 = vld [vmem:[%s166 + $0xd0] sm:$0xff]
      %v1030 = vld [vmem:[%s166 + $0xd8] sm:$0xff]
      %v1031 = vld [vmem:[%s166 + $0xe0] sm:$0xff]
      %v1032 = vld [vmem:[%s166 + $0xe8] sm:$0xff]
      %v1033 = vld [vmem:[%s166 + $0xf0] sm:$0xff]
      %v1034 = vld [vmem:[%s166 + $0xf8] sm:$0xff]
      %1035 = vmatpush.xpose.msra.mxu0 %v197
      %1036 = vmatpush.xpose.msra.mxu0 %v196
      %1037 = vmatpush.xpose.msra.mxu0 %v195
      %1038 = vmatpush.xpose.msra.mxu0 %v194
      %1039 = vmatpush.xpose.msra.mxu0 %v193
      %1040 = vmatpush.xpose.msra.mxu0 %v192
      %1041 = vmatpush.xpose.msra.mxu0 %v191
      %1042 = vmatpush.xpose.msra.mxu0 %v190
      %1043 = vmatpush.xpose.msra.mxu0 %v189
      %1044 = vmatpush.xpose.msra.mxu0 %v188
      %1045 = vmatpush.xpose.msra.mxu0 %v187
      %1046 = vmatpush.xpose.msra.mxu0 %v186
      %1047 = vmatpush.xpose.msra.mxu0 %v185
      %1048 = vmatpush.xpose.msra.mxu0 %v184
      %1049 = vmatpush.xpose.msra.mxu0 %v183
      %1050 = vmatpush.xpose.msra.mxu0 %v182
      %1051 = vmatmul.f32.gmra.mxu0 %v1027
      %v1052 = vpop.f32.mrf.mxu0
      %v1053 = vadd.f32 %v247, %v1052
      %1054 = vmatmul.f32.gmra.mxu0 %v1028
      %v1055 = vpop.f32.mrf.mxu0
      %v1056 = vadd.f32 %v247, %v1055
      %1057 = vmatmul.f32.gmra.mxu0 %v1029
      %v1058 = vpop.f32.mrf.mxu0
      %v1059 = vadd.f32 %v247, %v1058
      %1060 = vmatmul.f32.gmra.mxu0 %v1030
      %v1061 = vpop.f32.mrf.mxu0
      %v1062 = vadd.f32 %v247, %v1061
      %1063 = vmatmul.f32.gmra.mxu0 %v1031
      %v1064 = vpop.f32.mrf.mxu0
      %v1065 = vadd.f32 %v247, %v1064
      %1066 = vmatmul.f32.gmra.mxu0 %v1032
      %v1067 = vpop.f32.mrf.mxu0
      %v1068 = vadd.f32 %v247, %v1067
      %1069 = vmatmul.f32.gmra.mxu0 %v1033
      %v1070 = vpop.f32.mrf.mxu0
      %v1071 = vadd.f32 %v247, %v1070
      %1072 = vmatmul.f32.gmra.mxu0 %v1034
      %v1073 = vpop.f32.mrf.mxu0
      %v1074 = vadd.f32 %v247, %v1073
      %1075 = vdwg.mxu0
      %1076 = vmatpush.xpose.msra.mxu0 %v213
      %1077 = vmatpush.xpose.msra.mxu0 %v212
      %1078 = vmatpush.xpose.msra.mxu0 %v211
      %1079 = vmatpush.xpose.msra.mxu0 %v210
      %1080 = vmatpush.xpose.msra.mxu0 %v209
      %1081 = vmatpush.xpose.msra.mxu0 %v208
      %1082 = vmatpush.xpose.msra.mxu0 %v207
      %1083 = vmatpush.xpose.msra.mxu0 %v206
      %1084 = vmatpush.xpose.msra.mxu0 %v205
      %1085 = vmatpush.xpose.msra.mxu0 %v204
      %1086 = vmatpush.xpose.msra.mxu0 %v203
      %1087 = vmatpush.xpose.msra.mxu0 %v202
      %1088 = vmatpush.xpose.msra.mxu0 %v201
      %1089 = vmatpush.xpose.msra.mxu0 %v200
      %1090 = vmatpush.xpose.msra.mxu0 %v199
      %1091 = vmatpush.xpose.msra.mxu0 %v198
      %1092 = vmatmul.f32.gmra.mxu0 %v1027
      %v1093 = vpop.f32.mrf.mxu0
      %v1094 = vadd.f32 %v248, %v1093
      %1095 = vmatmul.f32.gmra.mxu0 %v1028
      %v1096 = vpop.f32.mrf.mxu0
      %v1097 = vadd.f32 %v248, %v1096
      %1098 = vmatmul.f32.gmra.mxu0 %v1029
      %v1099 = vpop.f32.mrf.mxu0
      %v1100 = vadd.f32 %v248, %v1099
      %1101 = vmatmul.f32.gmra.mxu0 %v1030
      %v1102 = vpop.f32.mrf.mxu0
      %v1103 = vadd.f32 %v248, %v1102
      %1104 = vmatmul.f32.gmra.mxu0 %v1031
      %v1105 = vpop.f32.mrf.mxu0
      %v1106 = vadd.f32 %v248, %v1105
      %1107 = vmatmul.f32.gmra.mxu0 %v1032
      %v1108 = vpop.f32.mrf.mxu0
      %v1109 = vadd.f32 %v248, %v1108
      %1110 = vmatmul.f32.gmra.mxu0 %v1033
      %v1111 = vpop.f32.mrf.mxu0
      %v1112 = vadd.f32 %v248, %v1111
      %1113 = vmatmul.f32.gmra.mxu0 %v1034
      %v1114 = vpop.f32.mrf.mxu0
      %v1115 = vadd.f32 %v248, %v1114
      %1116 = vdwg.mxu0
      %1117 = vmatpush.xpose.msra.mxu0 %v229
      %1118 = vmatpush.xpose.msra.mxu0 %v228
      %1119 = vmatpush.xpose.msra.mxu0 %v227
      %1120 = vmatpush.xpose.msra.mxu0 %v226
      %1121 = vmatpush.xpose.msra.mxu0 %v225
      %1122 = vmatpush.xpose.msra.mxu0 %v224
      %1123 = vmatpush.xpose.msra.mxu0 %v223
      %1124 = vmatpush.xpose.msra.mxu0 %v222
      %1125 = vmatpush.xpose.msra.mxu0 %v221
      %1126 = vmatpush.xpose.msra.mxu0 %v220
      %1127 = vmatpush.xpose.msra.mxu0 %v219
      %1128 = vmatpush.xpose.msra.mxu0 %v218
      %1129 = vmatpush.xpose.msra.mxu0 %v217
      %1130 = vmatpush.xpose.msra.mxu0 %v216
      %1131 = vmatpush.xpose.msra.mxu0 %v215
      %1132 = vmatpush.xpose.msra.mxu0 %v214
      %1133 = vmatmul.f32.gmra.mxu0 %v1027
      %v1134 = vpop.f32.mrf.mxu0
      %v1135 = vadd.f32 %v249, %v1134
      %1136 = vmatmul.f32.gmra.mxu0 %v1028
      %v1137 = vpop.f32.mrf.mxu0
      %v1138 = vadd.f32 %v249, %v1137
      %1139 = vmatmul.f32.gmra.mxu0 %v1029
      %v1140 = vpop.f32.mrf.mxu0
      %v1141 = vadd.f32 %v249, %v1140
      %1142 = vmatmul.f32.gmra.mxu0 %v1030
      %v1143 = vpop.f32.mrf.mxu0
      %v1144 = vadd.f32 %v249, %v1143
      %1145 = vmatmul.f32.gmra.mxu0 %v1031
      %v1146 = vpop.f32.mrf.mxu0
      %v1147 = vadd.f32 %v249, %v1146
      %1148 = vmatmul.f32.gmra.mxu0 %v1032
      %v1149 = vpop.f32.mrf.mxu0
      %v1150 = vadd.f32 %v249, %v1149
      %1151 = vmatmul.f32.gmra.mxu0 %v1033
      %v1152 = vpop.f32.mrf.mxu0
      %v1153 = vadd.f32 %v249, %v1152
      %1154 = vmatmul.f32.gmra.mxu0 %v1034
      %v1155 = vpop.f32.mrf.mxu0
      %v1156 = vadd.f32 %v249, %v1155
      %1157 = vdwg.mxu0
      %1158 = vmatpush.xpose.msra.mxu0 %v245
      %1159 = vmatpush.xpose.msra.mxu0 %v244
      %1160 = vmatpush.xpose.msra.mxu0 %v243
      %1161 = vmatpush.xpose.msra.mxu0 %v242
      %1162 = vmatpush.xpose.msra.mxu0 %v241
      %1163 = vmatpush.xpose.msra.mxu0 %v240
      %1164 = vmatpush.xpose.msra.mxu0 %v239
      %1165 = vmatpush.xpose.msra.mxu0 %v238
      %1166 = vmatpush.xpose.msra.mxu0 %v237
      %1167 = vmatpush.xpose.msra.mxu0 %v236
      %1168 = vmatpush.xpose.msra.mxu0 %v235
      %1169 = vmatpush.xpose.msra.mxu0 %v234
      %1170 = vmatpush.xpose.msra.mxu0 %v233
      %1171 = vmatpush.xpose.msra.mxu0 %v232
      %1172 = vmatpush.xpose.msra.mxu0 %v231
      %1173 = vmatpush.xpose.msra.mxu0 %v230
      %1174 = vmatmul.f32.gmra.mxu0 %v1027
      %v1175 = vpop.f32.mrf.mxu0
      %v1176 = vadd.f32 %v250, %v1175
      %1177 = vmatmul.f32.gmra.mxu0 %v1028
      %v1178 = vpop.f32.mrf.mxu0
      %v1179 = vadd.f32 %v250, %v1178
      %1180 = vmatmul.f32.gmra.mxu0 %v1029
      %v1181 = vpop.f32.mrf.mxu0
      %v1182 = vadd.f32 %v250, %v1181
      %1183 = vmatmul.f32.gmra.mxu0 %v1030
      %v1184 = vpop.f32.mrf.mxu0
      %v1185 = vadd.f32 %v250, %v1184
      %1186 = vmatmul.f32.gmra.mxu0 %v1031
      %v1187 = vpop.f32.mrf.mxu0
      %v1188 = vadd.f32 %v250, %v1187
      %1189 = vmatmul.f32.gmra.mxu0 %v1032
      %v1190 = vpop.f32.mrf.mxu0
      %v1191 = vadd.f32 %v250, %v1190
      %1192 = vmatmul.f32.gmra.mxu0 %v1033
      %v1193 = vpop.f32.mrf.mxu0
      %v1194 = vadd.f32 %v250, %v1193
      %1195 = vmatmul.f32.gmra.mxu0 %v1034
      %v1196 = vpop.f32.mrf.mxu0
      %v1197 = vadd.f32 %v250, %v1196
      %1198 = vdwg.mxu0
      %v1199 = vmax.f32 %v1053, 0.0
      %v1200 = vmax.f32 %v1094, 0.0
      %v1201 = vmax.f32 %v1135, 0.0
      %v1202 = vmax.f32 %v1176, 0.0
      %v1203 = vmax.f32 %v1056, 0.0
      %v1204 = vmax.f32 %v1097, 0.0
      %v1205 = vmax.f32 %v1138, 0.0
      %v1206 = vmax.f32 %v1179, 0.0
      %v1207 = vmax.f32 %v1059, 0.0
      %v1208 = vmax.f32 %v1100, 0.0
      %v1209 = vmax.f32 %v1141, 0.0
      %v1210 = vmax.f32 %v1182, 0.0
      %v1211 = vmax.f32 %v1062, 0.0
      %v1212 = vmax.f32 %v1103, 0.0
      %v1213 = vmax.f32 %v1144, 0.0
      %v1214 = vmax.f32 %v1185, 0.0
      %v1215 = vmax.f32 %v1065, 0.0
      %v1216 = vmax.f32 %v1106, 0.0
      %v1217 = vmax.f32 %v1147, 0.0
      %v1218 = vmax.f32 %v1188, 0.0
      %v1219 = vmax.f32 %v1068, 0.0
      %v1220 = vmax.f32 %v1109, 0.0
      %v1221 = vmax.f32 %v1150, 0.0
      %v1222 = vmax.f32 %v1191, 0.0
      %v1223 = vmax.f32 %v1071, 0.0
      %v1224 = vmax.f32 %v1112, 0.0
      %v1225 = vmax.f32 %v1153, 0.0
      %v1226 = vmax.f32 %v1194, 0.0
      %v1227 = vmax.f32 %v1074, 0.0
      %v1228 = vmax.f32 %v1115, 0.0
      %v1229 = vmax.f32 %v1156, 0.0
      %v1230 = vmax.f32 %v1197, 0.0
      %v1231 = vadd.f32 %v1199, %v1203
      %v1232 = vadd.f32 %v1231, %v1207
      %v1233 = vadd.f32 %v1232, %v1211
      %v1234 = vadd.f32 %v1233, %v1215
      %v1235 = vadd.f32 %v1234, %v1219
      %v1236 = vadd.f32 %v1235, %v1223
      %v1237 = vadd.f32 %v1236, %v1227
      %v1238 = vrot.slane %v1237, 4
      %v1239 = vadd.f32 %v1237, %v1238
      %v1240 = vrot.slane %v1239, 2
      %v1241 = vadd.f32 %v1239, %v1240
      %v1242 = vrot.slane %v1241, 1
      %v1243 = vadd.f32 %v1241, %v1242
      %v1244 = vadd.f32 %v1200, %v1204
      %v1245 = vadd.f32 %v1244, %v1208
      %v1246 = vadd.f32 %v1245, %v1212
      %v1247 = vadd.f32 %v1246, %v1216
      %v1248 = vadd.f32 %v1247, %v1220
      %v1249 = vadd.f32 %v1248, %v1224
      %v1250 = vadd.f32 %v1249, %v1228
      %v1251 = vrot.slane %v1250, 4
      %v1252 = vadd.f32 %v1250, %v1251
      %v1253 = vrot.slane %v1252, 2
      %v1254 = vadd.f32 %v1252, %v1253
      %v1255 = vrot.slane %v1254, 1
      %v1256 = vadd.f32 %v1254, %v1255
      %v1257 = vadd.f32 %v1201, %v1205
      %v1258 = vadd.f32 %v1257, %v1209
      %v1259 = vadd.f32 %v1258, %v1213
      %v1260 = vadd.f32 %v1259, %v1217
      %v1261 = vadd.f32 %v1260, %v1221
      %v1262 = vadd.f32 %v1261, %v1225
      %v1263 = vadd.f32 %v1262, %v1229
      %v1264 = vrot.slane %v1263, 4
      %v1265 = vadd.f32 %v1263, %v1264
      %v1266 = vrot.slane %v1265, 2
      %v1267 = vadd.f32 %v1265, %v1266
      %v1268 = vrot.slane %v1267, 1
      %v1269 = vadd.f32 %v1267, %v1268
      %v1270 = vadd.f32 %v1202, %v1206
      %v1271 = vadd.f32 %v1270, %v1210
      %v1272 = vadd.f32 %v1271, %v1214
      %v1273 = vadd.f32 %v1272, %v1218
      %v1274 = vadd.f32 %v1273, %v1222
      %v1275 = vadd.f32 %v1274, %v1226
      %v1276 = vadd.f32 %v1275, %v1230
      %v1277 = vrot.slane %v1276, 4
      %v1278 = vadd.f32 %v1276, %v1277
      %v1279 = vrot.slane %v1278, 2
      %v1280 = vadd.f32 %v1278, %v1279
      %v1281 = vrot.slane %v1280, 1
      %v1282 = vadd.f32 %v1280, %v1281
      %v1283 = vadd.f32 %v1023, %v1243
      %v1284 = vadd.f32 %v1024, %v1256
      %v1285 = vadd.f32 %v1025, %v1269
      %v1286 = vadd.f32 %v1026, %v1282
      %v1287 = vmul.f32 %v1283, 0.00390625
      %v1288 = vmul.f32 %v1284, 0.00390625
      %v1289 = vmul.f32 %v1285, 0.00390625
      %v1290 = vmul.f32 %v1286, 0.00390625
      %v1295 = vrot.slane %v1288, 7
      %v1296 = vrot.slane %v1289, 6
      %v1297 = vrot.slane %v1290, 5
      %vm1298 = vcmask 1040384
      %v1299 = vsel %vm1298, %v1287, %v1295
      %vm1300 = vcmask 1042434
      %v1301 = vsel %vm1300, %v1296, %v1297
      %vm1302 = vcmask 1041408
      %v1303 = vsel %vm1302, %v1299, %v1301
      %v1305 = vlaneseq
      %vm1306 = vcmp.ge.s32.totalorder %v1305, 0
      %vm1307 = vcmp.lt.s32.totalorder %v1305, 512
      %vm1308 = vmand %vm1306, %vm1307
      %1309 = vst.msk [vmem:[%s172] ss:$4 sm:$0xf] %vm1308, %v1303
      %v1310 = vld [vmem:[%s166 + $0x100] sm:$0xff]
      %v1311 = vld [vmem:[%s166 + $0x108] sm:$0xff]
      %v1312 = vld [vmem:[%s166 + $0x110] sm:$0xff]
      %v1313 = vld [vmem:[%s166 + $0x118] sm:$0xff]
      %v1314 = vld [vmem:[%s166 + $0x120] sm:$0xff]
      %v1315 = vld [vmem:[%s166 + $0x128] sm:$0xff]
      %v1316 = vld [vmem:[%s166 + $0x130] sm:$0xff]
      %v1317 = vld [vmem:[%s166 + $0x138] sm:$0xff]
      %v1318 = vld [vmem:[%s1] sm:$0xff]
      %v1319 = vld [vmem:[%s1 + $0x8] sm:$0xff]
      %v1320 = vld [vmem:[%s1 + $0x10] sm:$0xff]
      %v1321 = vld [vmem:[%s1 + $0x18] sm:$0xff]
      %v1322 = vld [vmem:[%s1 + $0x20] sm:$0xff]
      %v1323 = vld [vmem:[%s1 + $0x28] sm:$0xff]
      %v1324 = vld [vmem:[%s1 + $0x30] sm:$0xff]
      %v1325 = vld [vmem:[%s1 + $0x38] sm:$0xff]
      %v1326 = vld [vmem:[%s1 + $0x40] sm:$0xff]
      %v1327 = vld [vmem:[%s1 + $0x48] sm:$0xff]
      %v1328 = vld [vmem:[%s1 + $0x50] sm:$0xff]
      %v1329 = vld [vmem:[%s1 + $0x58] sm:$0xff]
      %v1330 = vld [vmem:[%s1 + $0x60] sm:$0xff]
      %v1331 = vld [vmem:[%s1 + $0x68] sm:$0xff]
      %v1332 = vld [vmem:[%s1 + $0x70] sm:$0xff]
      %v1333 = vld [vmem:[%s1 + $0x78] sm:$0xff]
      %v1334 = vld [vmem:[%s1 + $0x80] sm:$0xff]
      %v1335 = vld [vmem:[%s1 + $0x88] sm:$0xff]
      %v1336 = vld [vmem:[%s1 + $0x90] sm:$0xff]
      %v1337 = vld [vmem:[%s1 + $0x98] sm:$0xff]
      %v1338 = vld [vmem:[%s1 + $0xa0] sm:$0xff]
      %v1339 = vld [vmem:[%s1 + $0xa8] sm:$0xff]
      %v1340 = vld [vmem:[%s1 + $0xb0] sm:$0xff]
      %v1341 = vld [vmem:[%s1 + $0xb8] sm:$0xff]
      %v1342 = vld [vmem:[%s1 + $0xc0] sm:$0xff]
      %v1343 = vld [vmem:[%s1 + $0xc8] sm:$0xff]
      %v1344 = vld [vmem:[%s1 + $0xd0] sm:$0xff]
      %v1345 = vld [vmem:[%s1 + $0xd8] sm:$0xff]
      %v1346 = vld [vmem:[%s1 + $0xe0] sm:$0xff]
      %v1347 = vld [vmem:[%s1 + $0xe8] sm:$0xff]
      %v1348 = vld [vmem:[%s1 + $0xf0] sm:$0xff]
      %v1349 = vld [vmem:[%s1 + $0xf8] sm:$0xff]
      %v1350 = vld [vmem:[%s1 + $0x100] sm:$0xff]
      %v1351 = vld [vmem:[%s1 + $0x108] sm:$0xff]
      %v1352 = vld [vmem:[%s1 + $0x110] sm:$0xff]
      %v1353 = vld [vmem:[%s1 + $0x118] sm:$0xff]
      %v1354 = vld [vmem:[%s1 + $0x120] sm:$0xff]
      %v1355 = vld [vmem:[%s1 + $0x128] sm:$0xff]
      %v1356 = vld [vmem:[%s1 + $0x130] sm:$0xff]
      %v1357 = vld [vmem:[%s1 + $0x138] sm:$0xff]
      %v1358 = vld [vmem:[%s1 + $0x140] sm:$0xff]
      %v1359 = vld [vmem:[%s1 + $0x148] sm:$0xff]
      %v1360 = vld [vmem:[%s1 + $0x150] sm:$0xff]
      %v1361 = vld [vmem:[%s1 + $0x158] sm:$0xff]
      %v1362 = vld [vmem:[%s1 + $0x160] sm:$0xff]
      %v1363 = vld [vmem:[%s1 + $0x168] sm:$0xff]
      %v1364 = vld [vmem:[%s1 + $0x170] sm:$0xff]
      %v1365 = vld [vmem:[%s1 + $0x178] sm:$0xff]
      %v1366 = vld [vmem:[%s1 + $0x180] sm:$0xff]
      %v1367 = vld [vmem:[%s1 + $0x188] sm:$0xff]
      %v1368 = vld [vmem:[%s1 + $0x190] sm:$0xff]
      %v1369 = vld [vmem:[%s1 + $0x198] sm:$0xff]
      %v1370 = vld [vmem:[%s1 + $0x1a0] sm:$0xff]
      %v1371 = vld [vmem:[%s1 + $0x1a8] sm:$0xff]
      %v1372 = vld [vmem:[%s1 + $0x1b0] sm:$0xff]
      %v1373 = vld [vmem:[%s1 + $0x1b8] sm:$0xff]
      %v1374 = vld [vmem:[%s1 + $0x1c0] sm:$0xff]
      %v1375 = vld [vmem:[%s1 + $0x1c8] sm:$0xff]
      %v1376 = vld [vmem:[%s1 + $0x1d0] sm:$0xff]
      %v1377 = vld [vmem:[%s1 + $0x1d8] sm:$0xff]
      %v1378 = vld [vmem:[%s1 + $0x1e0] sm:$0xff]
      %v1379 = vld [vmem:[%s1 + $0x1e8] sm:$0xff]
      %v1380 = vld [vmem:[%s1 + $0x1f0] sm:$0xff]
      %v1381 = vld [vmem:[%s1 + $0x1f8] sm:$0xff]
      %1382 = vmatpush.xpose.msra.mxu0 %v1333
      %1383 = vmatpush.xpose.msra.mxu0 %v1332
      %1384 = vmatpush.xpose.msra.mxu0 %v1331
      %1385 = vmatpush.xpose.msra.mxu0 %v1330
      %1386 = vmatpush.xpose.msra.mxu0 %v1329
      %1387 = vmatpush.xpose.msra.mxu0 %v1328
      %1388 = vmatpush.xpose.msra.mxu0 %v1327
      %1389 = vmatpush.xpose.msra.mxu0 %v1326
      %1390 = vmatpush.xpose.msra.mxu0 %v1325
      %1391 = vmatpush.xpose.msra.mxu0 %v1324
      %1392 = vmatpush.xpose.msra.mxu0 %v1323
      %1393 = vmatpush.xpose.msra.mxu0 %v1322
      %1394 = vmatpush.xpose.msra.mxu0 %v1321
      %1395 = vmatpush.xpose.msra.mxu0 %v1320
      %1396 = vmatpush.xpose.msra.mxu0 %v1319
      %1397 = vmatpush.xpose.msra.mxu0 %v1318
      %1398 = vmatmul.f32.gmra.mxu0 %v1310
      %v1399 = vpop.f32.mrf.mxu0
      %v1400 = vadd.f32 %v247, %v1399
      %1401 = vmatmul.f32.gmra.mxu0 %v1311
      %v1402 = vpop.f32.mrf.mxu0
      %v1403 = vadd.f32 %v247, %v1402
      %1404 = vmatmul.f32.gmra.mxu0 %v1312
      %v1405 = vpop.f32.mrf.mxu0
      %v1406 = vadd.f32 %v247, %v1405
      %1407 = vmatmul.f32.gmra.mxu0 %v1313
      %v1408 = vpop.f32.mrf.mxu0
      %v1409 = vadd.f32 %v247, %v1408
      %1410 = vmatmul.f32.gmra.mxu0 %v1314
      %v1411 = vpop.f32.mrf.mxu0
      %v1412 = vadd.f32 %v247, %v1411
      %1413 = vmatmul.f32.gmra.mxu0 %v1315
      %v1414 = vpop.f32.mrf.mxu0
      %v1415 = vadd.f32 %v247, %v1414
      %1416 = vmatmul.f32.gmra.mxu0 %v1316
      %v1417 = vpop.f32.mrf.mxu0
      %v1418 = vadd.f32 %v247, %v1417
      %1419 = vmatmul.f32.gmra.mxu0 %v1317
      %v1420 = vpop.f32.mrf.mxu0
      %v1421 = vadd.f32 %v247, %v1420
      %1422 = vdwg.mxu0
      %1423 = vmatpush.xpose.msra.mxu0 %v1349
      %1424 = vmatpush.xpose.msra.mxu0 %v1348
      %1425 = vmatpush.xpose.msra.mxu0 %v1347
      %1426 = vmatpush.xpose.msra.mxu0 %v1346
      %1427 = vmatpush.xpose.msra.mxu0 %v1345
      %1428 = vmatpush.xpose.msra.mxu0 %v1344
      %1429 = vmatpush.xpose.msra.mxu0 %v1343
      %1430 = vmatpush.xpose.msra.mxu0 %v1342
      %1431 = vmatpush.xpose.msra.mxu0 %v1341
      %1432 = vmatpush.xpose.msra.mxu0 %v1340
      %1433 = vmatpush.xpose.msra.mxu0 %v1339
      %1434 = vmatpush.xpose.msra.mxu0 %v1338
      %1435 = vmatpush.xpose.msra.mxu0 %v1337
      %1436 = vmatpush.xpose.msra.mxu0 %v1336
      %1437 = vmatpush.xpose.msra.mxu0 %v1335
      %1438 = vmatpush.xpose.msra.mxu0 %v1334
      %1439 = vmatmul.f32.gmra.mxu0 %v1310
      %v1440 = vpop.f32.mrf.mxu0
      %v1441 = vadd.f32 %v248, %v1440
      %1442 = vmatmul.f32.gmra.mxu0 %v1311
      %v1443 = vpop.f32.mrf.mxu0
      %v1444 = vadd.f32 %v248, %v1443
      %1445 = vmatmul.f32.gmra.mxu0 %v1312
      %v1446 = vpop.f32.mrf.mxu0
      %v1447 = vadd.f32 %v248, %v1446
      %1448 = vmatmul.f32.gmra.mxu0 %v1313
      %v1449 = vpop.f32.mrf.mxu0
      %v1450 = vadd.f32 %v248, %v1449
      %1451 = vmatmul.f32.gmra.mxu0 %v1314
      %v1452 = vpop.f32.mrf.mxu0
      %v1453 = vadd.f32 %v248, %v1452
      %1454 = vmatmul.f32.gmra.mxu0 %v1315
      %v1455 = vpop.f32.mrf.mxu0
      %v1456 = vadd.f32 %v248, %v1455
      %1457 = vmatmul.f32.gmra.mxu0 %v1316
      %v1458 = vpop.f32.mrf.mxu0
      %v1459 = vadd.f32 %v248, %v1458
      %1460 = vmatmul.f32.gmra.mxu0 %v1317
      %v1461 = vpop.f32.mrf.mxu0
      %v1462 = vadd.f32 %v248, %v1461
      %1463 = vdwg.mxu0
      %1464 = vmatpush.xpose.msra.mxu0 %v1365
      %1465 = vmatpush.xpose.msra.mxu0 %v1364
      %1466 = vmatpush.xpose.msra.mxu0 %v1363
      %1467 = vmatpush.xpose.msra.mxu0 %v1362
      %1468 = vmatpush.xpose.msra.mxu0 %v1361
      %1469 = vmatpush.xpose.msra.mxu0 %v1360
      %1470 = vmatpush.xpose.msra.mxu0 %v1359
      %1471 = vmatpush.xpose.msra.mxu0 %v1358
      %1472 = vmatpush.xpose.msra.mxu0 %v1357
      %1473 = vmatpush.xpose.msra.mxu0 %v1356
      %1474 = vmatpush.xpose.msra.mxu0 %v1355
      %1475 = vmatpush.xpose.msra.mxu0 %v1354
      %1476 = vmatpush.xpose.msra.mxu0 %v1353
      %1477 = vmatpush.xpose.msra.mxu0 %v1352
      %1478 = vmatpush.xpose.msra.mxu0 %v1351
      %1479 = vmatpush.xpose.msra.mxu0 %v1350
      %1480 = vmatmul.f32.gmra.mxu0 %v1310
      %v1481 = vpop.f32.mrf.mxu0
      %v1482 = vadd.f32 %v249, %v1481
      %1483 = vmatmul.f32.gmra.mxu0 %v1311
      %v1484 = vpop.f32.mrf.mxu0
      %v1485 = vadd.f32 %v249, %v1484
      %1486 = vmatmul.f32.gmra.mxu0 %v1312
      %v1487 = vpop.f32.mrf.mxu0
      %v1488 = vadd.f32 %v249, %v1487
      %1489 = vmatmul.f32.gmra.mxu0 %v1313
      %v1490 = vpop.f32.mrf.mxu0
      %v1491 = vadd.f32 %v249, %v1490
      %1492 = vmatmul.f32.gmra.mxu0 %v1314
      %v1493 = vpop.f32.mrf.mxu0
      %v1494 = vadd.f32 %v249, %v1493
      %1495 = vmatmul.f32.gmra.mxu0 %v1315
      %v1496 = vpop.f32.mrf.mxu0
      %v1497 = vadd.f32 %v249, %v1496
      %1498 = vmatmul.f32.gmra.mxu0 %v1316
      %v1499 = vpop.f32.mrf.mxu0
      %v1500 = vadd.f32 %v249, %v1499
      %1501 = vmatmul.f32.gmra.mxu0 %v1317
      %v1502 = vpop.f32.mrf.mxu0
      %v1503 = vadd.f32 %v249, %v1502
      %1504 = vdwg.mxu0
      %1505 = vmatpush.xpose.msra.mxu0 %v1381
      %1506 = vmatpush.xpose.msra.mxu0 %v1380
      %1507 = vmatpush.xpose.msra.mxu0 %v1379
      %1508 = vmatpush.xpose.msra.mxu0 %v1378
      %1509 = vmatpush.xpose.msra.mxu0 %v1377
      %1510 = vmatpush.xpose.msra.mxu0 %v1376
      %1511 = vmatpush.xpose.msra.mxu0 %v1375
      %1512 = vmatpush.xpose.msra.mxu0 %v1374
      %1513 = vmatpush.xpose.msra.mxu0 %v1373
      %1514 = vmatpush.xpose.msra.mxu0 %v1372
      %1515 = vmatpush.xpose.msra.mxu0 %v1371
      %1516 = vmatpush.xpose.msra.mxu0 %v1370
      %1517 = vmatpush.xpose.msra.mxu0 %v1369
      %1518 = vmatpush.xpose.msra.mxu0 %v1368
      %1519 = vmatpush.xpose.msra.mxu0 %v1367
      %1520 = vmatpush.xpose.msra.mxu0 %v1366
      %1521 = vmatmul.f32.gmra.mxu0 %v1310
      %v1522 = vpop.f32.mrf.mxu0
      %v1523 = vadd.f32 %v250, %v1522
      %1524 = vmatmul.f32.gmra.mxu0 %v1311
      %v1525 = vpop.f32.mrf.mxu0
      %v1526 = vadd.f32 %v250, %v1525
      %1527 = vmatmul.f32.gmra.mxu0 %v1312
      %v1528 = vpop.f32.mrf.mxu0
      %v1529 = vadd.f32 %v250, %v1528
      %1530 = vmatmul.f32.gmra.mxu0 %v1313
      %v1531 = vpop.f32.mrf.mxu0
      %v1532 = vadd.f32 %v250, %v1531
      %1533 = vmatmul.f32.gmra.mxu0 %v1314
      %v1534 = vpop.f32.mrf.mxu0
      %v1535 = vadd.f32 %v250, %v1534
      %1536 = vmatmul.f32.gmra.mxu0 %v1315
      %v1537 = vpop.f32.mrf.mxu0
      %v1538 = vadd.f32 %v250, %v1537
      %1539 = vmatmul.f32.gmra.mxu0 %v1316
      %v1540 = vpop.f32.mrf.mxu0
      %v1541 = vadd.f32 %v250, %v1540
      %1542 = vmatmul.f32.gmra.mxu0 %v1317
      %v1543 = vpop.f32.mrf.mxu0
      %v1544 = vadd.f32 %v250, %v1543
      %1545 = vdwg.mxu0
      %v1546 = vmax.f32 %v1400, 0.0
      %v1547 = vmax.f32 %v1441, 0.0
      %v1548 = vmax.f32 %v1482, 0.0
      %v1549 = vmax.f32 %v1523, 0.0
      %v1550 = vmax.f32 %v1403, 0.0
      %v1551 = vmax.f32 %v1444, 0.0
      %v1552 = vmax.f32 %v1485, 0.0
      %v1553 = vmax.f32 %v1526, 0.0
      %v1554 = vmax.f32 %v1406, 0.0
      %v1555 = vmax.f32 %v1447, 0.0
      %v1556 = vmax.f32 %v1488, 0.0
      %v1557 = vmax.f32 %v1529, 0.0
      %v1558 = vmax.f32 %v1409, 0.0
      %v1559 = vmax.f32 %v1450, 0.0
      %v1560 = vmax.f32 %v1491, 0.0
      %v1561 = vmax.f32 %v1532, 0.0
      %v1562 = vmax.f32 %v1412, 0.0
      %v1563 = vmax.f32 %v1453, 0.0
      %v1564 = vmax.f32 %v1494, 0.0
      %v1565 = vmax.f32 %v1535, 0.0
      %v1566 = vmax.f32 %v1415, 0.0
      %v1567 = vmax.f32 %v1456, 0.0
      %v1568 = vmax.f32 %v1497, 0.0
      %v1569 = vmax.f32 %v1538, 0.0
      %v1570 = vmax.f32 %v1418, 0.0
      %v1571 = vmax.f32 %v1459, 0.0
      %v1572 = vmax.f32 %v1500, 0.0
      %v1573 = vmax.f32 %v1541, 0.0
      %v1574 = vmax.f32 %v1421, 0.0
      %v1575 = vmax.f32 %v1462, 0.0
      %v1576 = vmax.f32 %v1503, 0.0
      %v1577 = vmax.f32 %v1544, 0.0
      %v1578 = vadd.f32 %v1546, %v1550
      %v1579 = vadd.f32 %v1578, %v1554
      %v1580 = vadd.f32 %v1579, %v1558
      %v1581 = vadd.f32 %v1580, %v1562
      %v1582 = vadd.f32 %v1581, %v1566
      %v1583 = vadd.f32 %v1582, %v1570
      %v1584 = vadd.f32 %v1583, %v1574
      %v1585 = vrot.slane %v1584, 4
      %v1586 = vadd.f32 %v1584, %v1585
      %v1587 = vrot.slane %v1586, 2
      %v1588 = vadd.f32 %v1586, %v1587
      %v1589 = vrot.slane %v1588, 1
      %v1590 = vadd.f32 %v1588, %v1589
      %v1591 = vadd.f32 %v1547, %v1551
      %v1592 = vadd.f32 %v1591, %v1555
      %v1593 = vadd.f32 %v1592, %v1559
      %v1594 = vadd.f32 %v1593, %v1563
      %v1595 = vadd.f32 %v1594, %v1567
      %v1596 = vadd.f32 %v1595, %v1571
      %v1597 = vadd.f32 %v1596, %v1575
      %v1598 = vrot.slane %v1597, 4
      %v1599 = vadd.f32 %v1597, %v1598
      %v1600 = vrot.slane %v1599, 2
      %v1601 = vadd.f32 %v1599, %v1600
      %v1602 = vrot.slane %v1601, 1
      %v1603 = vadd.f32 %v1601, %v1602
      %v1604 = vadd.f32 %v1548, %v1552
      %v1605 = vadd.f32 %v1604, %v1556
      %v1606 = vadd.f32 %v1605, %v1560
      %v1607 = vadd.f32 %v1606, %v1564
      %v1608 = vadd.f32 %v1607, %v1568
      %v1609 = vadd.f32 %v1608, %v1572
      %v1610 = vadd.f32 %v1609, %v1576
      %v1611 = vrot.slane %v1610, 4
      %v1612 = vadd.f32 %v1610, %v1611
      %v1613 = vrot.slane %v1612, 2
      %v1614 = vadd.f32 %v1612, %v1613
      %v1615 = vrot.slane %v1614, 1
      %v1616 = vadd.f32 %v1614, %v1615
      %v1617 = vadd.f32 %v1549, %v1553
      %v1618 = vadd.f32 %v1617, %v1557
      %v1619 = vadd.f32 %v1618, %v1561
      %v1620 = vadd.f32 %v1619, %v1565
      %v1621 = vadd.f32 %v1620, %v1569
      %v1622 = vadd.f32 %v1621, %v1573
      %v1623 = vadd.f32 %v1622, %v1577
      %v1624 = vrot.slane %v1623, 4
      %v1625 = vadd.f32 %v1623, %v1624
      %v1626 = vrot.slane %v1625, 2
      %v1627 = vadd.f32 %v1625, %v1626
      %v1628 = vrot.slane %v1627, 1
      %v1629 = vadd.f32 %v1627, %v1628
      %v1630 = vadd.f32 %v1590, 0.0
      %v1631 = vadd.f32 %v1603, 0.0
      %v1632 = vadd.f32 %v1616, 0.0
      %v1633 = vadd.f32 %v1629, 0.0
      %v1634 = vld [vmem:[%s166 + $0x140] sm:$0xff]
      %v1635 = vld [vmem:[%s166 + $0x148] sm:$0xff]
      %v1636 = vld [vmem:[%s166 + $0x150] sm:$0xff]
      %v1637 = vld [vmem:[%s166 + $0x158] sm:$0xff]
      %v1638 = vld [vmem:[%s166 + $0x160] sm:$0xff]
      %v1639 = vld [vmem:[%s166 + $0x168] sm:$0xff]
      %v1640 = vld [vmem:[%s166 + $0x170] sm:$0xff]
      %v1641 = vld [vmem:[%s166 + $0x178] sm:$0xff]
      %1642 = vmatpush.xpose.msra.mxu0 %v1333
      %1643 = vmatpush.xpose.msra.mxu0 %v1332
      %1644 = vmatpush.xpose.msra.mxu0 %v1331
      %1645 = vmatpush.xpose.msra.mxu0 %v1330
      %1646 = vmatpush.xpose.msra.mxu0 %v1329
      %1647 = vmatpush.xpose.msra.mxu0 %v1328
      %1648 = vmatpush.xpose.msra.mxu0 %v1327
      %1649 = vmatpush.xpose.msra.mxu0 %v1326
      %1650 = vmatpush.xpose.msra.mxu0 %v1325
      %1651 = vmatpush.xpose.msra.mxu0 %v1324
      %1652 = vmatpush.xpose.msra.mxu0 %v1323
      %1653 = vmatpush.xpose.msra.mxu0 %v1322
      %1654 = vmatpush.xpose.msra.mxu0 %v1321
      %1655 = vmatpush.xpose.msra.mxu0 %v1320
      %1656 = vmatpush.xpose.msra.mxu0 %v1319
      %1657 = vmatpush.xpose.msra.mxu0 %v1318
      %1658 = vmatmul.f32.gmra.mxu0 %v1634
      %v1659 = vpop.f32.mrf.mxu0
      %v1660 = vadd.f32 %v247, %v1659
      %1661 = vmatmul.f32.gmra.mxu0 %v1635
      %v1662 = vpop.f32.mrf.mxu0
      %v1663 = vadd.f32 %v247, %v1662
      %1664 = vmatmul.f32.gmra.mxu0 %v1636
      %v1665 = vpop.f32.mrf.mxu0
      %v1666 = vadd.f32 %v247, %v1665
      %1667 = vmatmul.f32.gmra.mxu0 %v1637
      %v1668 = vpop.f32.mrf.mxu0
      %v1669 = vadd.f32 %v247, %v1668
      %1670 = vmatmul.f32.gmra.mxu0 %v1638
      %v1671 = vpop.f32.mrf.mxu0
      %v1672 = vadd.f32 %v247, %v1671
      %1673 = vmatmul.f32.gmra.mxu0 %v1639
      %v1674 = vpop.f32.mrf.mxu0
      %v1675 = vadd.f32 %v247, %v1674
      %1676 = vmatmul.f32.gmra.mxu0 %v1640
      %v1677 = vpop.f32.mrf.mxu0
      %v1678 = vadd.f32 %v247, %v1677
      %1679 = vmatmul.f32.gmra.mxu0 %v1641
      %v1680 = vpop.f32.mrf.mxu0
      %v1681 = vadd.f32 %v247, %v1680
      %1682 = vdwg.mxu0
      %1683 = vmatpush.xpose.msra.mxu0 %v1349
      %1684 = vmatpush.xpose.msra.mxu0 %v1348
      %1685 = vmatpush.xpose.msra.mxu0 %v1347
      %1686 = vmatpush.xpose.msra.mxu0 %v1346
      %1687 = vmatpush.xpose.msra.mxu0 %v1345
      %1688 = vmatpush.xpose.msra.mxu0 %v1344
      %1689 = vmatpush.xpose.msra.mxu0 %v1343
      %1690 = vmatpush.xpose.msra.mxu0 %v1342
      %1691 = vmatpush.xpose.msra.mxu0 %v1341
      %1692 = vmatpush.xpose.msra.mxu0 %v1340
      %1693 = vmatpush.xpose.msra.mxu0 %v1339
      %1694 = vmatpush.xpose.msra.mxu0 %v1338
      %1695 = vmatpush.xpose.msra.mxu0 %v1337
      %1696 = vmatpush.xpose.msra.mxu0 %v1336
      %1697 = vmatpush.xpose.msra.mxu0 %v1335
      %1698 = vmatpush.xpose.msra.mxu0 %v1334
      %1699 = vmatmul.f32.gmra.mxu0 %v1634
      %v1700 = vpop.f32.mrf.mxu0
      %v1701 = vadd.f32 %v248, %v1700
      %1702 = vmatmul.f32.gmra.mxu0 %v1635
      %v1703 = vpop.f32.mrf.mxu0
      %v1704 = vadd.f32 %v248, %v1703
      %1705 = vmatmul.f32.gmra.mxu0 %v1636
      %v1706 = vpop.f32.mrf.mxu0
      %v1707 = vadd.f32 %v248, %v1706
      %1708 = vmatmul.f32.gmra.mxu0 %v1637
      %v1709 = vpop.f32.mrf.mxu0
      %v1710 = vadd.f32 %v248, %v1709
      %1711 = vmatmul.f32.gmra.mxu0 %v1638
      %v1712 = vpop.f32.mrf.mxu0
      %v1713 = vadd.f32 %v248, %v1712
      %1714 = vmatmul.f32.gmra.mxu0 %v1639
      %v1715 = vpop.f32.mrf.mxu0
      %v1716 = vadd.f32 %v248, %v1715
      %1717 = vmatmul.f32.gmra.mxu0 %v1640
      %v1718 = vpop.f32.mrf.mxu0
      %v1719 = vadd.f32 %v248, %v1718
      %1720 = vmatmul.f32.gmra.mxu0 %v1641
      %v1721 = vpop.f32.mrf.mxu0
      %v1722 = vadd.f32 %v248, %v1721
      %1723 = vdwg.mxu0
      %1724 = vmatpush.xpose.msra.mxu0 %v1365
      %1725 = vmatpush.xpose.msra.mxu0 %v1364
      %1726 = vmatpush.xpose.msra.mxu0 %v1363
      %1727 = vmatpush.xpose.msra.mxu0 %v1362
      %1728 = vmatpush.xpose.msra.mxu0 %v1361
      %1729 = vmatpush.xpose.msra.mxu0 %v1360
      %1730 = vmatpush.xpose.msra.mxu0 %v1359
      %1731 = vmatpush.xpose.msra.mxu0 %v1358
      %1732 = vmatpush.xpose.msra.mxu0 %v1357
      %1733 = vmatpush.xpose.msra.mxu0 %v1356
      %1734 = vmatpush.xpose.msra.mxu0 %v1355
      %1735 = vmatpush.xpose.msra.mxu0 %v1354
      %1736 = vmatpush.xpose.msra.mxu0 %v1353
      %1737 = vmatpush.xpose.msra.mxu0 %v1352
      %1738 = vmatpush.xpose.msra.mxu0 %v1351
      %1739 = vmatpush.xpose.msra.mxu0 %v1350
      %1740 = vmatmul.f32.gmra.mxu0 %v1634
      %v1741 = vpop.f32.mrf.mxu0
      %v1742 = vadd.f32 %v249, %v1741
      %1743 = vmatmul.f32.gmra.mxu0 %v1635
      %v1744 = vpop.f32.mrf.mxu0
      %v1745 = vadd.f32 %v249, %v1744
      %1746 = vmatmul.f32.gmra.mxu0 %v1636
      %v1747 = vpop.f32.mrf.mxu0
      %v1748 = vadd.f32 %v249, %v1747
      %1749 = vmatmul.f32.gmra.mxu0 %v1637
      %v1750 = vpop.f32.mrf.mxu0
      %v1751 = vadd.f32 %v249, %v1750
      %1752 = vmatmul.f32.gmra.mxu0 %v1638
      %v1753 = vpop.f32.mrf.mxu0
      %v1754 = vadd.f32 %v249, %v1753
      %1755 = vmatmul.f32.gmra.mxu0 %v1639
      %v1756 = vpop.f32.mrf.mxu0
      %v1757 = vadd.f32 %v249, %v1756
      %1758 = vmatmul.f32.gmra.mxu0 %v1640
      %v1759 = vpop.f32.mrf.mxu0
      %v1760 = vadd.f32 %v249, %v1759
      %1761 = vmatmul.f32.gmra.mxu0 %v1641
      %v1762 = vpop.f32.mrf.mxu0
      %v1763 = vadd.f32 %v249, %v1762
      %1764 = vdwg.mxu0
      %1765 = vmatpush.xpose.msra.mxu0 %v1381
      %1766 = vmatpush.xpose.msra.mxu0 %v1380
      %1767 = vmatpush.xpose.msra.mxu0 %v1379
      %1768 = vmatpush.xpose.msra.mxu0 %v1378
      %1769 = vmatpush.xpose.msra.mxu0 %v1377
      %1770 = vmatpush.xpose.msra.mxu0 %v1376
      %1771 = vmatpush.xpose.msra.mxu0 %v1375
      %1772 = vmatpush.xpose.msra.mxu0 %v1374
      %1773 = vmatpush.xpose.msra.mxu0 %v1373
      %1774 = vmatpush.xpose.msra.mxu0 %v1372
      %1775 = vmatpush.xpose.msra.mxu0 %v1371
      %1776 = vmatpush.xpose.msra.mxu0 %v1370
      %1777 = vmatpush.xpose.msra.mxu0 %v1369
      %1778 = vmatpush.xpose.msra.mxu0 %v1368
      %1779 = vmatpush.xpose.msra.mxu0 %v1367
      %1780 = vmatpush.xpose.msra.mxu0 %v1366
      %1781 = vmatmul.f32.gmra.mxu0 %v1634
      %v1782 = vpop.f32.mrf.mxu0
      %v1783 = vadd.f32 %v250, %v1782
      %1784 = vmatmul.f32.gmra.mxu0 %v1635
      %v1785 = vpop.f32.mrf.mxu0
      %v1786 = vadd.f32 %v250, %v1785
      %1787 = vmatmul.f32.gmra.mxu0 %v1636
      %v1788 = vpop.f32.mrf.mxu0
      %v1789 = vadd.f32 %v250, %v1788
      %1790 = vmatmul.f32.gmra.mxu0 %v1637
      %v1791 = vpop.f32.mrf.mxu0
      %v1792 = vadd.f32 %v250, %v1791
      %1793 = vmatmul.f32.gmra.mxu0 %v1638
      %v1794 = vpop.f32.mrf.mxu0
      %v1795 = vadd.f32 %v250, %v1794
      %1796 = vmatmul.f32.gmra.mxu0 %v1639
      %v1797 = vpop.f32.mrf.mxu0
      %v1798 = vadd.f32 %v250, %v1797
      %1799 = vmatmul.f32.gmra.mxu0 %v1640
      %v1800 = vpop.f32.mrf.mxu0
      %v1801 = vadd.f32 %v250, %v1800
      %1802 = vmatmul.f32.gmra.mxu0 %v1641
      %v1803 = vpop.f32.mrf.mxu0
      %v1804 = vadd.f32 %v250, %v1803
      %1805 = vdwg.mxu0
      %v1806 = vmax.f32 %v1660, 0.0
      %v1807 = vmax.f32 %v1701, 0.0
      %v1808 = vmax.f32 %v1742, 0.0
      %v1809 = vmax.f32 %v1783, 0.0
      %v1810 = vmax.f32 %v1663, 0.0
      %v1811 = vmax.f32 %v1704, 0.0
      %v1812 = vmax.f32 %v1745, 0.0
      %v1813 = vmax.f32 %v1786, 0.0
      %v1814 = vmax.f32 %v1666, 0.0
      %v1815 = vmax.f32 %v1707, 0.0
      %v1816 = vmax.f32 %v1748, 0.0
      %v1817 = vmax.f32 %v1789, 0.0
      %v1818 = vmax.f32 %v1669, 0.0
      %v1819 = vmax.f32 %v1710, 0.0
      %v1820 = vmax.f32 %v1751, 0.0
      %v1821 = vmax.f32 %v1792, 0.0
      %v1822 = vmax.f32 %v1672, 0.0
      %v1823 = vmax.f32 %v1713, 0.0
      %v1824 = vmax.f32 %v1754, 0.0
      %v1825 = vmax.f32 %v1795, 0.0
      %v1826 = vmax.f32 %v1675, 0.0
      %v1827 = vmax.f32 %v1716, 0.0
      %v1828 = vmax.f32 %v1757, 0.0
      %v1829 = vmax.f32 %v1798, 0.0
      %v1830 = vmax.f32 %v1678, 0.0
      %v1831 = vmax.f32 %v1719, 0.0
      %v1832 = vmax.f32 %v1760, 0.0
      %v1833 = vmax.f32 %v1801, 0.0
      %v1834 = vmax.f32 %v1681, 0.0
      %v1835 = vmax.f32 %v1722, 0.0
      %v1836 = vmax.f32 %v1763, 0.0
      %v1837 = vmax.f32 %v1804, 0.0
      %v1838 = vadd.f32 %v1806, %v1810
      %v1839 = vadd.f32 %v1838, %v1814
      %v1840 = vadd.f32 %v1839, %v1818
      %v1841 = vadd.f32 %v1840, %v1822
      %v1842 = vadd.f32 %v1841, %v1826
      %v1843 = vadd.f32 %v1842, %v1830
      %v1844 = vadd.f32 %v1843, %v1834
      %v1845 = vrot.slane %v1844, 4
      %v1846 = vadd.f32 %v1844, %v1845
      %v1847 = vrot.slane %v1846, 2
      %v1848 = vadd.f32 %v1846, %v1847
      %v1849 = vrot.slane %v1848, 1
      %v1850 = vadd.f32 %v1848, %v1849
      %v1851 = vadd.f32 %v1807, %v1811
      %v1852 = vadd.f32 %v1851, %v1815
      %v1853 = vadd.f32 %v1852, %v1819
      %v1854 = vadd.f32 %v1853, %v1823
      %v1855 = vadd.f32 %v1854, %v1827
      %v1856 = vadd.f32 %v1855, %v1831
      %v1857 = vadd.f32 %v1856, %v1835
      %v1858 = vrot.slane %v1857, 4
      %v1859 = vadd.f32 %v1857, %v1858
      %v1860 = vrot.slane %v1859, 2
      %v1861 = vadd.f32 %v1859, %v1860
      %v1862 = vrot.slane %v1861, 1
      %v1863 = vadd.f32 %v1861, %v1862
      %v1864 = vadd.f32 %v1808, %v1812
      %v1865 = vadd.f32 %v1864, %v1816
      %v1866 = vadd.f32 %v1865, %v1820
      %v1867 = vadd.f32 %v1866, %v1824
      %v1868 = vadd.f32 %v1867, %v1828
      %v1869 = vadd.f32 %v1868, %v1832
      %v1870 = vadd.f32 %v1869, %v1836
      %v1871 = vrot.slane %v1870, 4
      %v1872 = vadd.f32 %v1870, %v1871
      %v1873 = vrot.slane %v1872, 2
      %v1874 = vadd.f32 %v1872, %v1873
      %v1875 = vrot.slane %v1874, 1
      %v1876 = vadd.f32 %v1874, %v1875
      %v1877 = vadd.f32 %v1809, %v1813
      %v1878 = vadd.f32 %v1877, %v1817
      %v1879 = vadd.f32 %v1878, %v1821
      %v1880 = vadd.f32 %v1879, %v1825
      %v1881 = vadd.f32 %v1880, %v1829
      %v1882 = vadd.f32 %v1881, %v1833
      %v1883 = vadd.f32 %v1882, %v1837
      %v1884 = vrot.slane %v1883, 4
      %v1885 = vadd.f32 %v1883, %v1884
      %v1886 = vrot.slane %v1885, 2
      %v1887 = vadd.f32 %v1885, %v1886
      %v1888 = vrot.slane %v1887, 1
      %v1889 = vadd.f32 %v1887, %v1888
      %v1890 = vadd.f32 %v1630, %v1850
      %v1891 = vadd.f32 %v1631, %v1863
      %v1892 = vadd.f32 %v1632, %v1876
      %v1893 = vadd.f32 %v1633, %v1889
      %v1894 = vld [vmem:[%s166 + $0x180] sm:$0xff]
      %v1895 = vld [vmem:[%s166 + $0x188] sm:$0xff]
      %v1896 = vld [vmem:[%s166 + $0x190] sm:$0xff]
      %v1897 = vld [vmem:[%s166 + $0x198] sm:$0xff]
      %v1898 = vld [vmem:[%s166 + $0x1a0] sm:$0xff]
      %v1899 = vld [vmem:[%s166 + $0x1a8] sm:$0xff]
      %v1900 = vld [vmem:[%s166 + $0x1b0] sm:$0xff]
      %v1901 = vld [vmem:[%s166 + $0x1b8] sm:$0xff]
      %1902 = vmatpush.xpose.msra.mxu0 %v1333
      %1903 = vmatpush.xpose.msra.mxu0 %v1332
      %1904 = vmatpush.xpose.msra.mxu0 %v1331
      %1905 = vmatpush.xpose.msra.mxu0 %v1330
      %1906 = vmatpush.xpose.msra.mxu0 %v1329
      %1907 = vmatpush.xpose.msra.mxu0 %v1328
      %1908 = vmatpush.xpose.msra.mxu0 %v1327
      %1909 = vmatpush.xpose.msra.mxu0 %v1326
      %1910 = vmatpush.xpose.msra.mxu0 %v1325
      %1911 = vmatpush.xpose.msra.mxu0 %v1324
      %1912 = vmatpush.xpose.msra.mxu0 %v1323
      %1913 = vmatpush.xpose.msra.mxu0 %v1322
      %1914 = vmatpush.xpose.msra.mxu0 %v1321
      %1915 = vmatpush.xpose.msra.mxu0 %v1320
      %1916 = vmatpush.xpose.msra.mxu0 %v1319
      %1917 = vmatpush.xpose.msra.mxu0 %v1318
      %1918 = vmatmul.f32.gmra.mxu0 %v1894
      %v1919 = vpop.f32.mrf.mxu0
      %v1920 = vadd.f32 %v247, %v1919
      %1921 = vmatmul.f32.gmra.mxu0 %v1895
      %v1922 = vpop.f32.mrf.mxu0
      %v1923 = vadd.f32 %v247, %v1922
      %1924 = vmatmul.f32.gmra.mxu0 %v1896
      %v1925 = vpop.f32.mrf.mxu0
      %v1926 = vadd.f32 %v247, %v1925
      %1927 = vmatmul.f32.gmra.mxu0 %v1897
      %v1928 = vpop.f32.mrf.mxu0
      %v1929 = vadd.f32 %v247, %v1928
      %1930 = vmatmul.f32.gmra.mxu0 %v1898
      %v1931 = vpop.f32.mrf.mxu0
      %v1932 = vadd.f32 %v247, %v1931
      %1933 = vmatmul.f32.gmra.mxu0 %v1899
      %v1934 = vpop.f32.mrf.mxu0
      %v1935 = vadd.f32 %v247, %v1934
      %1936 = vmatmul.f32.gmra.mxu0 %v1900
      %v1937 = vpop.f32.mrf.mxu0
      %v1938 = vadd.f32 %v247, %v1937
      %1939 = vmatmul.f32.gmra.mxu0 %v1901
      %v1940 = vpop.f32.mrf.mxu0
      %v1941 = vadd.f32 %v247, %v1940
      %1942 = vdwg.mxu0
      %1943 = vmatpush.xpose.msra.mxu0 %v1349
      %1944 = vmatpush.xpose.msra.mxu0 %v1348
      %1945 = vmatpush.xpose.msra.mxu0 %v1347
      %1946 = vmatpush.xpose.msra.mxu0 %v1346
      %1947 = vmatpush.xpose.msra.mxu0 %v1345
      %1948 = vmatpush.xpose.msra.mxu0 %v1344
      %1949 = vmatpush.xpose.msra.mxu0 %v1343
      %1950 = vmatpush.xpose.msra.mxu0 %v1342
      %1951 = vmatpush.xpose.msra.mxu0 %v1341
      %1952 = vmatpush.xpose.msra.mxu0 %v1340
      %1953 = vmatpush.xpose.msra.mxu0 %v1339
      %1954 = vmatpush.xpose.msra.mxu0 %v1338
      %1955 = vmatpush.xpose.msra.mxu0 %v1337
      %1956 = vmatpush.xpose.msra.mxu0 %v1336
      %1957 = vmatpush.xpose.msra.mxu0 %v1335
      %1958 = vmatpush.xpose.msra.mxu0 %v1334
      %1959 = vmatmul.f32.gmra.mxu0 %v1894
      %v1960 = vpop.f32.mrf.mxu0
      %v1961 = vadd.f32 %v248, %v1960
      %1962 = vmatmul.f32.gmra.mxu0 %v1895
      %v1963 = vpop.f32.mrf.mxu0
      %v1964 = vadd.f32 %v248, %v1963
      %1965 = vmatmul.f32.gmra.mxu0 %v1896
      %v1966 = vpop.f32.mrf.mxu0
      %v1967 = vadd.f32 %v248, %v1966
      %1968 = vmatmul.f32.gmra.mxu0 %v1897
      %v1969 = vpop.f32.mrf.mxu0
      %v1970 = vadd.f32 %v248, %v1969
      %1971 = vmatmul.f32.gmra.mxu0 %v1898
      %v1972 = vpop.f32.mrf.mxu0
      %v1973 = vadd.f32 %v248, %v1972
      %1974 = vmatmul.f32.gmra.mxu0 %v1899
      %v1975 = vpop.f32.mrf.mxu0
      %v1976 = vadd.f32 %v248, %v1975
      %1977 = vmatmul.f32.gmra.mxu0 %v1900
      %v1978 = vpop.f32.mrf.mxu0
      %v1979 = vadd.f32 %v248, %v1978
      %1980 = vmatmul.f32.gmra.mxu0 %v1901
      %v1981 = vpop.f32.mrf.mxu0
      %v1982 = vadd.f32 %v248, %v1981
      %1983 = vdwg.mxu0
      %1984 = vmatpush.xpose.msra.mxu0 %v1365
      %1985 = vmatpush.xpose.msra.mxu0 %v1364
      %1986 = vmatpush.xpose.msra.mxu0 %v1363
      %1987 = vmatpush.xpose.msra.mxu0 %v1362
      %1988 = vmatpush.xpose.msra.mxu0 %v1361
      %1989 = vmatpush.xpose.msra.mxu0 %v1360
      %1990 = vmatpush.xpose.msra.mxu0 %v1359
      %1991 = vmatpush.xpose.msra.mxu0 %v1358
      %1992 = vmatpush.xpose.msra.mxu0 %v1357
      %1993 = vmatpush.xpose.msra.mxu0 %v1356
      %1994 = vmatpush.xpose.msra.mxu0 %v1355
      %1995 = vmatpush.xpose.msra.mxu0 %v1354
      %1996 = vmatpush.xpose.msra.mxu0 %v1353
      %1997 = vmatpush.xpose.msra.mxu0 %v1352
      %1998 = vmatpush.xpose.msra.mxu0 %v1351
      %1999 = vmatpush.xpose.msra.mxu0 %v1350
      %2000 = vmatmul.f32.gmra.mxu0 %v1894
      %v2001 = vpop.f32.mrf.mxu0
      %v2002 = vadd.f32 %v249, %v2001
      %2003 = vmatmul.f32.gmra.mxu0 %v1895
      %v2004 = vpop.f32.mrf.mxu0
      %v2005 = vadd.f32 %v249, %v2004
      %2006 = vmatmul.f32.gmra.mxu0 %v1896
      %v2007 = vpop.f32.mrf.mxu0
      %v2008 = vadd.f32 %v249, %v2007
      %2009 = vmatmul.f32.gmra.mxu0 %v1897
      %v2010 = vpop.f32.mrf.mxu0
      %v2011 = vadd.f32 %v249, %v2010
      %2012 = vmatmul.f32.gmra.mxu0 %v1898
      %v2013 = vpop.f32.mrf.mxu0
      %v2014 = vadd.f32 %v249, %v2013
      %2015 = vmatmul.f32.gmra.mxu0 %v1899
      %v2016 = vpop.f32.mrf.mxu0
      %v2017 = vadd.f32 %v249, %v2016
      %2018 = vmatmul.f32.gmra.mxu0 %v1900
      %v2019 = vpop.f32.mrf.mxu0
      %v2020 = vadd.f32 %v249, %v2019
      %2021 = vmatmul.f32.gmra.mxu0 %v1901
      %v2022 = vpop.f32.mrf.mxu0
      %v2023 = vadd.f32 %v249, %v2022
      %2024 = vdwg.mxu0
      %2025 = vmatpush.xpose.msra.mxu0 %v1381
      %2026 = vmatpush.xpose.msra.mxu0 %v1380
      %2027 = vmatpush.xpose.msra.mxu0 %v1379
      %2028 = vmatpush.xpose.msra.mxu0 %v1378
      %2029 = vmatpush.xpose.msra.mxu0 %v1377
      %2030 = vmatpush.xpose.msra.mxu0 %v1376
      %2031 = vmatpush.xpose.msra.mxu0 %v1375
      %2032 = vmatpush.xpose.msra.mxu0 %v1374
      %2033 = vmatpush.xpose.msra.mxu0 %v1373
      %2034 = vmatpush.xpose.msra.mxu0 %v1372
      %2035 = vmatpush.xpose.msra.mxu0 %v1371
      %2036 = vmatpush.xpose.msra.mxu0 %v1370
      %2037 = vmatpush.xpose.msra.mxu0 %v1369
      %2038 = vmatpush.xpose.msra.mxu0 %v1368
      %2039 = vmatpush.xpose.msra.mxu0 %v1367
      %2040 = vmatpush.xpose.msra.mxu0 %v1366
      %2041 = vmatmul.f32.gmra.mxu0 %v1894
      %v2042 = vpop.f32.mrf.mxu0
      %v2043 = vadd.f32 %v250, %v2042
      %2044 = vmatmul.f32.gmra.mxu0 %v1895
      %v2045 = vpop.f32.mrf.mxu0
      %v2046 = vadd.f32 %v250, %v2045
      %2047 = vmatmul.f32.gmra.mxu0 %v1896
      %v2048 = vpop.f32.mrf.mxu0
      %v2049 = vadd.f32 %v250, %v2048
      %2050 = vmatmul.f32.gmra.mxu0 %v1897
      %v2051 = vpop.f32.mrf.mxu0
      %v2052 = vadd.f32 %v250, %v2051
      %2053 = vmatmul.f32.gmra.mxu0 %v1898
      %v2054 = vpop.f32.mrf.mxu0
      %v2055 = vadd.f32 %v250, %v2054
      %2056 = vmatmul.f32.gmra.mxu0 %v1899
      %v2057 = vpop.f32.mrf.mxu0
      %v2058 = vadd.f32 %v250, %v2057
      %2059 = vmatmul.f32.gmra.mxu0 %v1900
      %v2060 = vpop.f32.mrf.mxu0
      %v2061 = vadd.f32 %v250, %v2060
      %2062 = vmatmul.f32.gmra.mxu0 %v1901
      %v2063 = vpop.f32.mrf.mxu0
      %v2064 = vadd.f32 %v250, %v2063
      %2065 = vdwg.mxu0
      %v2066 = vmax.f32 %v1920, 0.0
      %v2067 = vmax.f32 %v1961, 0.0
      %v2068 = vmax.f32 %v2002, 0.0
      %v2069 = vmax.f32 %v2043, 0.0
      %v2070 = vmax.f32 %v1923, 0.0
      %v2071 = vmax.f32 %v1964, 0.0
      %v2072 = vmax.f32 %v2005, 0.0
      %v2073 = vmax.f32 %v2046, 0.0
      %v2074 = vmax.f32 %v1926, 0.0
      %v2075 = vmax.f32 %v1967, 0.0
      %v2076 = vmax.f32 %v2008, 0.0
      %v2077 = vmax.f32 %v2049, 0.0
      %v2078 = vmax.f32 %v1929, 0.0
      %v2079 = vmax.f32 %v1970, 0.0
      %v2080 = vmax.f32 %v2011, 0.0
      %v2081 = vmax.f32 %v2052, 0.0
      %v2082 = vmax.f32 %v1932, 0.0
      %v2083 = vmax.f32 %v1973, 0.0
      %v2084 = vmax.f32 %v2014, 0.0
      %v2085 = vmax.f32 %v2055, 0.0
      %v2086 = vmax.f32 %v1935, 0.0
      %v2087 = vmax.f32 %v1976, 0.0
      %v2088 = vmax.f32 %v2017, 0.0
      %v2089 = vmax.f32 %v2058, 0.0
      %v2090 = vmax.f32 %v1938, 0.0
      %v2091 = vmax.f32 %v1979, 0.0
      %v2092 = vmax.f32 %v2020, 0.0
      %v2093 = vmax.f32 %v2061, 0.0
      %v2094 = vmax.f32 %v1941, 0.0
      %v2095 = vmax.f32 %v1982, 0.0
      %v2096 = vmax.f32 %v2023, 0.0
      %v2097 = vmax.f32 %v2064, 0.0
      %v2098 = vadd.f32 %v2066, %v2070
      %v2099 = vadd.f32 %v2098, %v2074
      %v2100 = vadd.f32 %v2099, %v2078
      %v2101 = vadd.f32 %v2100, %v2082
      %v2102 = vadd.f32 %v2101, %v2086
      %v2103 = vadd.f32 %v2102, %v2090
      %v2104 = vadd.f32 %v2103, %v2094
      %v2105 = vrot.slane %v2104, 4
      %v2106 = vadd.f32 %v2104, %v2105
      %v2107 = vrot.slane %v2106, 2
      %v2108 = vadd.f32 %v2106, %v2107
      %v2109 = vrot.slane %v2108, 1
      %v2110 = vadd.f32 %v2108, %v2109
      %v2111 = vadd.f32 %v2067, %v2071
      %v2112 = vadd.f32 %v2111, %v2075
      %v2113 = vadd.f32 %v2112, %v2079
      %v2114 = vadd.f32 %v2113, %v2083
      %v2115 = vadd.f32 %v2114, %v2087
      %v2116 = vadd.f32 %v2115, %v2091
      %v2117 = vadd.f32 %v2116, %v2095
      %v2118 = vrot.slane %v2117, 4
      %v2119 = vadd.f32 %v2117, %v2118
      %v2120 = vrot.slane %v2119, 2
      %v2121 = vadd.f32 %v2119, %v2120
      %v2122 = vrot.slane %v2121, 1
      %v2123 = vadd.f32 %v2121, %v2122
      %v2124 = vadd.f32 %v2068, %v2072
      %v2125 = vadd.f32 %v2124, %v2076
      %v2126 = vadd.f32 %v2125, %v2080
      %v2127 = vadd.f32 %v2126, %v2084
      %v2128 = vadd.f32 %v2127, %v2088
      %v2129 = vadd.f32 %v2128, %v2092
      %v2130 = vadd.f32 %v2129, %v2096
      %v2131 = vrot.slane %v2130, 4
      %v2132 = vadd.f32 %v2130, %v2131
      %v2133 = vrot.slane %v2132, 2
      %v2134 = vadd.f32 %v2132, %v2133
      %v2135 = vrot.slane %v2134, 1
      %v2136 = vadd.f32 %v2134, %v2135
      %v2137 = vadd.f32 %v2069, %v2073
      %v2138 = vadd.f32 %v2137, %v2077
      %v2139 = vadd.f32 %v2138, %v2081
      %v2140 = vadd.f32 %v2139, %v2085
      %v2141 = vadd.f32 %v2140, %v2089
      %v2142 = vadd.f32 %v2141, %v2093
      %v2143 = vadd.f32 %v2142, %v2097
      %v2144 = vrot.slane %v2143, 4
      %v2145 = vadd.f32 %v2143, %v2144
      %v2146 = vrot.slane %v2145, 2
      %v2147 = vadd.f32 %v2145, %v2146
      %v2148 = vrot.slane %v2147, 1
      %v2149 = vadd.f32 %v2147, %v2148
      %v2150 = vadd.f32 %v1890, %v2110
      %v2151 = vadd.f32 %v1891, %v2123
      %v2152 = vadd.f32 %v1892, %v2136
      %v2153 = vadd.f32 %v1893, %v2149
      %v2154 = vld [vmem:[%s166 + $0x1c0] sm:$0xff]
      %v2155 = vld [vmem:[%s166 + $0x1c8] sm:$0xff]
      %v2156 = vld [vmem:[%s166 + $0x1d0] sm:$0xff]
      %v2157 = vld [vmem:[%s166 + $0x1d8] sm:$0xff]
      %v2158 = vld [vmem:[%s166 + $0x1e0] sm:$0xff]
      %v2159 = vld [vmem:[%s166 + $0x1e8] sm:$0xff]
      %v2160 = vld [vmem:[%s166 + $0x1f0] sm:$0xff]
      %v2161 = vld [vmem:[%s166 + $0x1f8] sm:$0xff]
      %2162 = vmatpush.xpose.msra.mxu0 %v1333
      %2163 = vmatpush.xpose.msra.mxu0 %v1332
      %2164 = vmatpush.xpose.msra.mxu0 %v1331
      %2165 = vmatpush.xpose.msra.mxu0 %v1330
      %2166 = vmatpush.xpose.msra.mxu0 %v1329
      %2167 = vmatpush.xpose.msra.mxu0 %v1328
      %2168 = vmatpush.xpose.msra.mxu0 %v1327
      %2169 = vmatpush.xpose.msra.mxu0 %v1326
      %2170 = vmatpush.xpose.msra.mxu0 %v1325
      %2171 = vmatpush.xpose.msra.mxu0 %v1324
      %2172 = vmatpush.xpose.msra.mxu0 %v1323
      %2173 = vmatpush.xpose.msra.mxu0 %v1322
      %2174 = vmatpush.xpose.msra.mxu0 %v1321
      %2175 = vmatpush.xpose.msra.mxu0 %v1320
      %2176 = vmatpush.xpose.msra.mxu0 %v1319
      %2177 = vmatpush.xpose.msra.mxu0 %v1318
      %2178 = vmatmul.f32.gmra.mxu0 %v2154
      %v2179 = vpop.f32.mrf.mxu0
      %v2180 = vadd.f32 %v247, %v2179
      %2181 = vmatmul.f32.gmra.mxu0 %v2155
      %v2182 = vpop.f32.mrf.mxu0
      %v2183 = vadd.f32 %v247, %v2182
      %2184 = vmatmul.f32.gmra.mxu0 %v2156
      %v2185 = vpop.f32.mrf.mxu0
      %v2186 = vadd.f32 %v247, %v2185
      %2187 = vmatmul.f32.gmra.mxu0 %v2157
      %v2188 = vpop.f32.mrf.mxu0
      %v2189 = vadd.f32 %v247, %v2188
      %2190 = vmatmul.f32.gmra.mxu0 %v2158
      %v2191 = vpop.f32.mrf.mxu0
      %v2192 = vadd.f32 %v247, %v2191
      %2193 = vmatmul.f32.gmra.mxu0 %v2159
      %v2194 = vpop.f32.mrf.mxu0
      %v2195 = vadd.f32 %v247, %v2194
      %2196 = vmatmul.f32.gmra.mxu0 %v2160
      %v2197 = vpop.f32.mrf.mxu0
      %v2198 = vadd.f32 %v247, %v2197
      %2199 = vmatmul.f32.gmra.mxu0 %v2161
      %v2200 = vpop.f32.mrf.mxu0
      %v2201 = vadd.f32 %v247, %v2200
      %2202 = vdwg.mxu0
      %2203 = vmatpush.xpose.msra.mxu0 %v1349
      %2204 = vmatpush.xpose.msra.mxu0 %v1348
      %2205 = vmatpush.xpose.msra.mxu0 %v1347
      %2206 = vmatpush.xpose.msra.mxu0 %v1346
      %2207 = vmatpush.xpose.msra.mxu0 %v1345
      %2208 = vmatpush.xpose.msra.mxu0 %v1344
      %2209 = vmatpush.xpose.msra.mxu0 %v1343
      %2210 = vmatpush.xpose.msra.mxu0 %v1342
      %2211 = vmatpush.xpose.msra.mxu0 %v1341
      %2212 = vmatpush.xpose.msra.mxu0 %v1340
      %2213 = vmatpush.xpose.msra.mxu0 %v1339
      %2214 = vmatpush.xpose.msra.mxu0 %v1338
      %2215 = vmatpush.xpose.msra.mxu0 %v1337
      %2216 = vmatpush.xpose.msra.mxu0 %v1336
      %2217 = vmatpush.xpose.msra.mxu0 %v1335
      %2218 = vmatpush.xpose.msra.mxu0 %v1334
      %2219 = vmatmul.f32.gmra.mxu0 %v2154
      %v2220 = vpop.f32.mrf.mxu0
      %v2221 = vadd.f32 %v248, %v2220
      %2222 = vmatmul.f32.gmra.mxu0 %v2155
      %v2223 = vpop.f32.mrf.mxu0
      %v2224 = vadd.f32 %v248, %v2223
      %2225 = vmatmul.f32.gmra.mxu0 %v2156
      %v2226 = vpop.f32.mrf.mxu0
      %v2227 = vadd.f32 %v248, %v2226
      %2228 = vmatmul.f32.gmra.mxu0 %v2157
      %v2229 = vpop.f32.mrf.mxu0
      %v2230 = vadd.f32 %v248, %v2229
      %2231 = vmatmul.f32.gmra.mxu0 %v2158
      %v2232 = vpop.f32.mrf.mxu0
      %v2233 = vadd.f32 %v248, %v2232
      %2234 = vmatmul.f32.gmra.mxu0 %v2159
      %v2235 = vpop.f32.mrf.mxu0
      %v2236 = vadd.f32 %v248, %v2235
      %2237 = vmatmul.f32.gmra.mxu0 %v2160
      %v2238 = vpop.f32.mrf.mxu0
      %v2239 = vadd.f32 %v248, %v2238
      %2240 = vmatmul.f32.gmra.mxu0 %v2161
      %v2241 = vpop.f32.mrf.mxu0
      %v2242 = vadd.f32 %v248, %v2241
      %2243 = vdwg.mxu0
      %2244 = vmatpush.xpose.msra.mxu0 %v1365
      %2245 = vmatpush.xpose.msra.mxu0 %v1364
      %2246 = vmatpush.xpose.msra.mxu0 %v1363
      %2247 = vmatpush.xpose.msra.mxu0 %v1362
      %2248 = vmatpush.xpose.msra.mxu0 %v1361
      %2249 = vmatpush.xpose.msra.mxu0 %v1360
      %2250 = vmatpush.xpose.msra.mxu0 %v1359
      %2251 = vmatpush.xpose.msra.mxu0 %v1358
      %2252 = vmatpush.xpose.msra.mxu0 %v1357
      %2253 = vmatpush.xpose.msra.mxu0 %v1356
      %2254 = vmatpush.xpose.msra.mxu0 %v1355
      %2255 = vmatpush.xpose.msra.mxu0 %v1354
      %2256 = vmatpush.xpose.msra.mxu0 %v1353
      %2257 = vmatpush.xpose.msra.mxu0 %v1352
      %2258 = vmatpush.xpose.msra.mxu0 %v1351
      %2259 = vmatpush.xpose.msra.mxu0 %v1350
      %2260 = vmatmul.f32.gmra.mxu0 %v2154
      %v2261 = vpop.f32.mrf.mxu0
      %v2262 = vadd.f32 %v249, %v2261
      %2263 = vmatmul.f32.gmra.mxu0 %v2155
      %v2264 = vpop.f32.mrf.mxu0
      %v2265 = vadd.f32 %v249, %v2264
      %2266 = vmatmul.f32.gmra.mxu0 %v2156
      %v2267 = vpop.f32.mrf.mxu0
      %v2268 = vadd.f32 %v249, %v2267
      %2269 = vmatmul.f32.gmra.mxu0 %v2157
      %v2270 = vpop.f32.mrf.mxu0
      %v2271 = vadd.f32 %v249, %v2270
      %2272 = vmatmul.f32.gmra.mxu0 %v2158
      %v2273 = vpop.f32.mrf.mxu0
      %v2274 = vadd.f32 %v249, %v2273
      %2275 = vmatmul.f32.gmra.mxu0 %v2159
      %v2276 = vpop.f32.mrf.mxu0
      %v2277 = vadd.f32 %v249, %v2276
      %2278 = vmatmul.f32.gmra.mxu0 %v2160
      %v2279 = vpop.f32.mrf.mxu0
      %v2280 = vadd.f32 %v249, %v2279
      %2281 = vmatmul.f32.gmra.mxu0 %v2161
      %v2282 = vpop.f32.mrf.mxu0
      %v2283 = vadd.f32 %v249, %v2282
      %2284 = vdwg.mxu0
      %2285 = vmatpush.xpose.msra.mxu0 %v1381
      %2286 = vmatpush.xpose.msra.mxu0 %v1380
      %2287 = vmatpush.xpose.msra.mxu0 %v1379
      %2288 = vmatpush.xpose.msra.mxu0 %v1378
      %2289 = vmatpush.xpose.msra.mxu0 %v1377
      %2290 = vmatpush.xpose.msra.mxu0 %v1376
      %2291 = vmatpush.xpose.msra.mxu0 %v1375
      %2292 = vmatpush.xpose.msra.mxu0 %v1374
      %2293 = vmatpush.xpose.msra.mxu0 %v1373
      %2294 = vmatpush.xpose.msra.mxu0 %v1372
      %2295 = vmatpush.xpose.msra.mxu0 %v1371
      %2296 = vmatpush.xpose.msra.mxu0 %v1370
      %2297 = vmatpush.xpose.msra.mxu0 %v1369
      %2298 = vmatpush.xpose.msra.mxu0 %v1368
      %2299 = vmatpush.xpose.msra.mxu0 %v1367
      %2300 = vmatpush.xpose.msra.mxu0 %v1366
      %2301 = vmatmul.f32.gmra.mxu0 %v2154
      %v2302 = vpop.f32.mrf.mxu0
      %v2303 = vadd.f32 %v250, %v2302
      %2304 = vmatmul.f32.gmra.mxu0 %v2155
      %v2305 = vpop.f32.mrf.mxu0
      %v2306 = vadd.f32 %v250, %v2305
      %2307 = vmatmul.f32.gmra.mxu0 %v2156
      %v2308 = vpop.f32.mrf.mxu0
      %v2309 = vadd.f32 %v250, %v2308
      %2310 = vmatmul.f32.gmra.mxu0 %v2157
      %v2311 = vpop.f32.mrf.mxu0
      %v2312 = vadd.f32 %v250, %v2311
      %2313 = vmatmul.f32.gmra.mxu0 %v2158
      %v2314 = vpop.f32.mrf.mxu0
      %v2315 = vadd.f32 %v250, %v2314
      %2316 = vmatmul.f32.gmra.mxu0 %v2159
      %v2317 = vpop.f32.mrf.mxu0
      %v2318 = vadd.f32 %v250, %v2317
      %2319 = vmatmul.f32.gmra.mxu0 %v2160
      %v2320 = vpop.f32.mrf.mxu0
      %v2321 = vadd.f32 %v250, %v2320
      %2322 = vmatmul.f32.gmra.mxu0 %v2161
      %v2323 = vpop.f32.mrf.mxu0
      %v2324 = vadd.f32 %v250, %v2323
      %2325 = vdwg.mxu0
      %v2326 = vmax.f32 %v2180, 0.0
      %v2327 = vmax.f32 %v2221, 0.0
      %v2328 = vmax.f32 %v2262, 0.0
      %v2329 = vmax.f32 %v2303, 0.0
      %v2330 = vmax.f32 %v2183, 0.0
      %v2331 = vmax.f32 %v2224, 0.0
      %v2332 = vmax.f32 %v2265, 0.0
      %v2333 = vmax.f32 %v2306, 0.0
      %v2334 = vmax.f32 %v2186, 0.0
      %v2335 = vmax.f32 %v2227, 0.0
      %v2336 = vmax.f32 %v2268, 0.0
      %v2337 = vmax.f32 %v2309, 0.0
      %v2338 = vmax.f32 %v2189, 0.0
      %v2339 = vmax.f32 %v2230, 0.0
      %v2340 = vmax.f32 %v2271, 0.0
      %v2341 = vmax.f32 %v2312, 0.0
      %v2342 = vmax.f32 %v2192, 0.0
      %v2343 = vmax.f32 %v2233, 0.0
      %v2344 = vmax.f32 %v2274, 0.0
      %v2345 = vmax.f32 %v2315, 0.0
      %v2346 = vmax.f32 %v2195, 0.0
      %v2347 = vmax.f32 %v2236, 0.0
      %v2348 = vmax.f32 %v2277, 0.0
      %v2349 = vmax.f32 %v2318, 0.0
      %v2350 = vmax.f32 %v2198, 0.0
      %v2351 = vmax.f32 %v2239, 0.0
      %v2352 = vmax.f32 %v2280, 0.0
      %v2353 = vmax.f32 %v2321, 0.0
      %v2354 = vmax.f32 %v2201, 0.0
      %v2355 = vmax.f32 %v2242, 0.0
      %v2356 = vmax.f32 %v2283, 0.0
      %v2357 = vmax.f32 %v2324, 0.0
      %v2358 = vadd.f32 %v2326, %v2330
      %v2359 = vadd.f32 %v2358, %v2334
      %v2360 = vadd.f32 %v2359, %v2338
      %v2361 = vadd.f32 %v2360, %v2342
      %v2362 = vadd.f32 %v2361, %v2346
      %v2363 = vadd.f32 %v2362, %v2350
      %v2364 = vadd.f32 %v2363, %v2354
      %v2365 = vrot.slane %v2364, 4
      %v2366 = vadd.f32 %v2364, %v2365
      %v2367 = vrot.slane %v2366, 2
      %v2368 = vadd.f32 %v2366, %v2367
      %v2369 = vrot.slane %v2368, 1
      %v2370 = vadd.f32 %v2368, %v2369
      %v2371 = vadd.f32 %v2327, %v2331
      %v2372 = vadd.f32 %v2371, %v2335
      %v2373 = vadd.f32 %v2372, %v2339
      %v2374 = vadd.f32 %v2373, %v2343
      %v2375 = vadd.f32 %v2374, %v2347
      %v2376 = vadd.f32 %v2375, %v2351
      %v2377 = vadd.f32 %v2376, %v2355
      %v2378 = vrot.slane %v2377, 4
      %v2379 = vadd.f32 %v2377, %v2378
      %v2380 = vrot.slane %v2379, 2
      %v2381 = vadd.f32 %v2379, %v2380
      %v2382 = vrot.slane %v2381, 1
      %v2383 = vadd.f32 %v2381, %v2382
      %v2384 = vadd.f32 %v2328, %v2332
      %v2385 = vadd.f32 %v2384, %v2336
      %v2386 = vadd.f32 %v2385, %v2340
      %v2387 = vadd.f32 %v2386, %v2344
      %v2388 = vadd.f32 %v2387, %v2348
      %v2389 = vadd.f32 %v2388, %v2352
      %v2390 = vadd.f32 %v2389, %v2356
      %v2391 = vrot.slane %v2390, 4
      %v2392 = vadd.f32 %v2390, %v2391
      %v2393 = vrot.slane %v2392, 2
      %v2394 = vadd.f32 %v2392, %v2393
      %v2395 = vrot.slane %v2394, 1
      %v2396 = vadd.f32 %v2394, %v2395
      %v2397 = vadd.f32 %v2329, %v2333
      %v2398 = vadd.f32 %v2397, %v2337
      %v2399 = vadd.f32 %v2398, %v2341
      %v2400 = vadd.f32 %v2399, %v2345
      %v2401 = vadd.f32 %v2400, %v2349
      %v2402 = vadd.f32 %v2401, %v2353
      %v2403 = vadd.f32 %v2402, %v2357
      %v2404 = vrot.slane %v2403, 4
      %v2405 = vadd.f32 %v2403, %v2404
      %v2406 = vrot.slane %v2405, 2
      %v2407 = vadd.f32 %v2405, %v2406
      %v2408 = vrot.slane %v2407, 1
      %v2409 = vadd.f32 %v2407, %v2408
      %v2410 = vadd.f32 %v2150, %v2370
      %v2411 = vadd.f32 %v2151, %v2383
      %v2412 = vadd.f32 %v2152, %v2396
      %v2413 = vadd.f32 %v2153, %v2409
      %v2414 = vmul.f32 %v2410, 0.00390625
      %v2415 = vmul.f32 %v2411, 0.00390625
      %v2416 = vmul.f32 %v2412, 0.00390625
      %v2417 = vmul.f32 %v2413, 0.00390625
      %v2422 = vrot.slane %v2415, 7
      %v2423 = vrot.slane %v2416, 6
      %v2424 = vrot.slane %v2417, 5
      %v2425 = vsel %vm1298, %v2414, %v2422
      %v2426 = vsel %vm1300, %v2423, %v2424
      %v2427 = vsel %vm1302, %v2425, %v2426
      %s2429 = scalar_lea.vmem %s172, 1
      %2430 = vst.msk [vmem:[%s2429] ss:$4 sm:$0xf] %vm1308, %v2427
      %v2431 = vld [vmem:[%s166 + $0x200] sm:$0xff]
      %v2432 = vld [vmem:[%s166 + $0x208] sm:$0xff]
      %v2433 = vld [vmem:[%s166 + $0x210] sm:$0xff]
      %v2434 = vld [vmem:[%s166 + $0x218] sm:$0xff]
      %v2435 = vld [vmem:[%s166 + $0x220] sm:$0xff]
      %v2436 = vld [vmem:[%s166 + $0x228] sm:$0xff]
      %v2437 = vld [vmem:[%s166 + $0x230] sm:$0xff]
      %v2438 = vld [vmem:[%s166 + $0x238] sm:$0xff]
      %v2439 = vld [vmem:[%s1] sm:$0xff]
      %v2440 = vld [vmem:[%s1 + $0x8] sm:$0xff]
      %v2441 = vld [vmem:[%s1 + $0x10] sm:$0xff]
      %v2442 = vld [vmem:[%s1 + $0x18] sm:$0xff]
      %v2443 = vld [vmem:[%s1 + $0x20] sm:$0xff]
      %v2444 = vld [vmem:[%s1 + $0x28] sm:$0xff]
      %v2445 = vld [vmem:[%s1 + $0x30] sm:$0xff]
      %v2446 = vld [vmem:[%s1 + $0x38] sm:$0xff]
      %v2447 = vld [vmem:[%s1 + $0x40] sm:$0xff]
      %v2448 = vld [vmem:[%s1 + $0x48] sm:$0xff]
      %v2449 = vld [vmem:[%s1 + $0x50] sm:$0xff]
      %v2450 = vld [vmem:[%s1 + $0x58] sm:$0xff]
      %v2451 = vld [vmem:[%s1 + $0x60] sm:$0xff]
      %v2452 = vld [vmem:[%s1 + $0x68] sm:$0xff]
      %v2453 = vld [vmem:[%s1 + $0x70] sm:$0xff]
      %v2454 = vld [vmem:[%s1 + $0x78] sm:$0xff]
      %v2455 = vld [vmem:[%s1 + $0x80] sm:$0xff]
      %v2456 = vld [vmem:[%s1 + $0x88] sm:$0xff]
      %v2457 = vld [vmem:[%s1 + $0x90] sm:$0xff]
      %v2458 = vld [vmem:[%s1 + $0x98] sm:$0xff]
      %v2459 = vld [vmem:[%s1 + $0xa0] sm:$0xff]
      %v2460 = vld [vmem:[%s1 + $0xa8] sm:$0xff]
      %v2461 = vld [vmem:[%s1 + $0xb0] sm:$0xff]
      %v2462 = vld [vmem:[%s1 + $0xb8] sm:$0xff]
      %v2463 = vld [vmem:[%s1 + $0xc0] sm:$0xff]
      %v2464 = vld [vmem:[%s1 + $0xc8] sm:$0xff]
      %v2465 = vld [vmem:[%s1 + $0xd0] sm:$0xff]
      %v2466 = vld [vmem:[%s1 + $0xd8] sm:$0xff]
      %v2467 = vld [vmem:[%s1 + $0xe0] sm:$0xff]
      %v2468 = vld [vmem:[%s1 + $0xe8] sm:$0xff]
      %v2469 = vld [vmem:[%s1 + $0xf0] sm:$0xff]
      %v2470 = vld [vmem:[%s1 + $0xf8] sm:$0xff]
      %v2471 = vld [vmem:[%s1 + $0x100] sm:$0xff]
      %v2472 = vld [vmem:[%s1 + $0x108] sm:$0xff]
      %v2473 = vld [vmem:[%s1 + $0x110] sm:$0xff]
      %v2474 = vld [vmem:[%s1 + $0x118] sm:$0xff]
      %v2475 = vld [vmem:[%s1 + $0x120] sm:$0xff]
      %v2476 = vld [vmem:[%s1 + $0x128] sm:$0xff]
      %v2477 = vld [vmem:[%s1 + $0x130] sm:$0xff]
      %v2478 = vld [vmem:[%s1 + $0x138] sm:$0xff]
      %v2479 = vld [vmem:[%s1 + $0x140] sm:$0xff]
      %v2480 = vld [vmem:[%s1 + $0x148] sm:$0xff]
      %v2481 = vld [vmem:[%s1 + $0x150] sm:$0xff]
      %v2482 = vld [vmem:[%s1 + $0x158] sm:$0xff]
      %v2483 = vld [vmem:[%s1 + $0x160] sm:$0xff]
      %v2484 = vld [vmem:[%s1 + $0x168] sm:$0xff]
      %v2485 = vld [vmem:[%s1 + $0x170] sm:$0xff]
      %v2486 = vld [vmem:[%s1 + $0x178] sm:$0xff]
      %v2487 = vld [vmem:[%s1 + $0x180] sm:$0xff]
      %v2488 = vld [vmem:[%s1 + $0x188] sm:$0xff]
      %v2489 = vld [vmem:[%s1 + $0x190] sm:$0xff]
      %v2490 = vld [vmem:[%s1 + $0x198] sm:$0xff]
      %v2491 = vld [vmem:[%s1 + $0x1a0] sm:$0xff]
      %v2492 = vld [vmem:[%s1 + $0x1a8] sm:$0xff]
      %v2493 = vld [vmem:[%s1 + $0x1b0] sm:$0xff]
      %v2494 = vld [vmem:[%s1 + $0x1b8] sm:$0xff]
      %v2495 = vld [vmem:[%s1 + $0x1c0] sm:$0xff]
      %v2496 = vld [vmem:[%s1 + $0x1c8] sm:$0xff]
      %v2497 = vld [vmem:[%s1 + $0x1d0] sm:$0xff]
      %v2498 = vld [vmem:[%s1 + $0x1d8] sm:$0xff]
      %v2499 = vld [vmem:[%s1 + $0x1e0] sm:$0xff]
      %v2500 = vld [vmem:[%s1 + $0x1e8] sm:$0xff]
      %v2501 = vld [vmem:[%s1 + $0x1f0] sm:$0xff]
      %v2502 = vld [vmem:[%s1 + $0x1f8] sm:$0xff]
      %2503 = vmatpush.xpose.msra.mxu0 %v2454
      %2504 = vmatpush.xpose.msra.mxu0 %v2453
      %2505 = vmatpush.xpose.msra.mxu0 %v2452
      %2506 = vmatpush.xpose.msra.mxu0 %v2451
      %2507 = vmatpush.xpose.msra.mxu0 %v2450
      %2508 = vmatpush.xpose.msra.mxu0 %v2449
      %2509 = vmatpush.xpose.msra.mxu0 %v2448
      %2510 = vmatpush.xpose.msra.mxu0 %v2447
      %2511 = vmatpush.xpose.msra.mxu0 %v2446
      %2512 = vmatpush.xpose.msra.mxu0 %v2445
      %2513 = vmatpush.xpose.msra.mxu0 %v2444
      %2514 = vmatpush.xpose.msra.mxu0 %v2443
      %2515 = vmatpush.xpose.msra.mxu0 %v2442
      %2516 = vmatpush.xpose.msra.mxu0 %v2441
      %2517 = vmatpush.xpose.msra.mxu0 %v2440
      %2518 = vmatpush.xpose.msra.mxu0 %v2439
      %2519 = vmatmul.f32.gmra.mxu0 %v2431
      %v2520 = vpop.f32.mrf.mxu0
      %v2521 = vadd.f32 %v247, %v2520
      %2522 = vmatmul.f32.gmra.mxu0 %v2432
      %v2523 = vpop.f32.mrf.mxu0
      %v2524 = vadd.f32 %v247, %v2523
      %2525 = vmatmul.f32.gmra.mxu0 %v2433
      %v2526 = vpop.f32.mrf.mxu0
      %v2527 = vadd.f32 %v247, %v2526
      %2528 = vmatmul.f32.gmra.mxu0 %v2434
      %v2529 = vpop.f32.mrf.mxu0
      %v2530 = vadd.f32 %v247, %v2529
      %2531 = vmatmul.f32.gmra.mxu0 %v2435
      %v2532 = vpop.f32.mrf.mxu0
      %v2533 = vadd.f32 %v247, %v2532
      %2534 = vmatmul.f32.gmra.mxu0 %v2436
      %v2535 = vpop.f32.mrf.mxu0
      %v2536 = vadd.f32 %v247, %v2535
      %2537 = vmatmul.f32.gmra.mxu0 %v2437
      %v2538 = vpop.f32.mrf.mxu0
      %v2539 = vadd.f32 %v247, %v2538
      %2540 = vmatmul.f32.gmra.mxu0 %v2438
      %v2541 = vpop.f32.mrf.mxu0
      %v2542 = vadd.f32 %v247, %v2541
      %2543 = vdwg.mxu0
      %2544 = vmatpush.xpose.msra.mxu0 %v2470
      %2545 = vmatpush.xpose.msra.mxu0 %v2469
      %2546 = vmatpush.xpose.msra.mxu0 %v2468
      %2547 = vmatpush.xpose.msra.mxu0 %v2467
      %2548 = vmatpush.xpose.msra.mxu0 %v2466
      %2549 = vmatpush.xpose.msra.mxu0 %v2465
      %2550 = vmatpush.xpose.msra.mxu0 %v2464
      %2551 = vmatpush.xpose.msra.mxu0 %v2463
      %2552 = vmatpush.xpose.msra.mxu0 %v2462
      %2553 = vmatpush.xpose.msra.mxu0 %v2461
      %2554 = vmatpush.xpose.msra.mxu0 %v2460
      %2555 = vmatpush.xpose.msra.mxu0 %v2459
      %2556 = vmatpush.xpose.msra.mxu0 %v2458
      %2557 = vmatpush.xpose.msra.mxu0 %v2457
      %2558 = vmatpush.xpose.msra.mxu0 %v2456
      %2559 = vmatpush.xpose.msra.mxu0 %v2455
      %2560 = vmatmul.f32.gmra.mxu0 %v2431
      %v2561 = vpop.f32.mrf.mxu0
      %v2562 = vadd.f32 %v248, %v2561
      %2563 = vmatmul.f32.gmra.mxu0 %v2432
      %v2564 = vpop.f32.mrf.mxu0
      %v2565 = vadd.f32 %v248, %v2564
      %2566 = vmatmul.f32.gmra.mxu0 %v2433
      %v2567 = vpop.f32.mrf.mxu0
      %v2568 = vadd.f32 %v248, %v2567
      %2569 = vmatmul.f32.gmra.mxu0 %v2434
      %v2570 = vpop.f32.mrf.mxu0
      %v2571 = vadd.f32 %v248, %v2570
      %2572 = vmatmul.f32.gmra.mxu0 %v2435
      %v2573 = vpop.f32.mrf.mxu0
      %v2574 = vadd.f32 %v248, %v2573
      %2575 = vmatmul.f32.gmra.mxu0 %v2436
      %v2576 = vpop.f32.mrf.mxu0
      %v2577 = vadd.f32 %v248, %v2576
      %2578 = vmatmul.f32.gmra.mxu0 %v2437
      %v2579 = vpop.f32.mrf.mxu0
      %v2580 = vadd.f32 %v248, %v2579
      %2581 = vmatmul.f32.gmra.mxu0 %v2438
      %v2582 = vpop.f32.mrf.mxu0
      %v2583 = vadd.f32 %v248, %v2582
      %2584 = vdwg.mxu0
      %2585 = vmatpush.xpose.msra.mxu0 %v2486
      %2586 = vmatpush.xpose.msra.mxu0 %v2485
      %2587 = vmatpush.xpose.msra.mxu0 %v2484
      %2588 = vmatpush.xpose.msra.mxu0 %v2483
      %2589 = vmatpush.xpose.msra.mxu0 %v2482
      %2590 = vmatpush.xpose.msra.mxu0 %v2481
      %2591 = vmatpush.xpose.msra.mxu0 %v2480
      %2592 = vmatpush.xpose.msra.mxu0 %v2479
      %2593 = vmatpush.xpose.msra.mxu0 %v2478
      %2594 = vmatpush.xpose.msra.mxu0 %v2477
      %2595 = vmatpush.xpose.msra.mxu0 %v2476
      %2596 = vmatpush.xpose.msra.mxu0 %v2475
      %2597 = vmatpush.xpose.msra.mxu0 %v2474
      %2598 = vmatpush.xpose.msra.mxu0 %v2473
      %2599 = vmatpush.xpose.msra.mxu0 %v2472
      %2600 = vmatpush.xpose.msra.mxu0 %v2471
      %2601 = vmatmul.f32.gmra.mxu0 %v2431
      %v2602 = vpop.f32.mrf.mxu0
      %v2603 = vadd.f32 %v249, %v2602
      %2604 = vmatmul.f32.gmra.mxu0 %v2432
      %v2605 = vpop.f32.mrf.mxu0
      %v2606 = vadd.f32 %v249, %v2605
      %2607 = vmatmul.f32.gmra.mxu0 %v2433
      %v2608 = vpop.f32.mrf.mxu0
      %v2609 = vadd.f32 %v249, %v2608
      %2610 = vmatmul.f32.gmra.mxu0 %v2434
      %v2611 = vpop.f32.mrf.mxu0
      %v2612 = vadd.f32 %v249, %v2611
      %2613 = vmatmul.f32.gmra.mxu0 %v2435
      %v2614 = vpop.f32.mrf.mxu0
      %v2615 = vadd.f32 %v249, %v2614
      %2616 = vmatmul.f32.gmra.mxu0 %v2436
      %v2617 = vpop.f32.mrf.mxu0
      %v2618 = vadd.f32 %v249, %v2617
      %2619 = vmatmul.f32.gmra.mxu0 %v2437
      %v2620 = vpop.f32.mrf.mxu0
      %v2621 = vadd.f32 %v249, %v2620
      %2622 = vmatmul.f32.gmra.mxu0 %v2438
      %v2623 = vpop.f32.mrf.mxu0
      %v2624 = vadd.f32 %v249, %v2623
      %2625 = vdwg.mxu0
      %2626 = vmatpush.xpose.msra.mxu0 %v2502
      %2627 = vmatpush.xpose.msra.mxu0 %v2501
      %2628 = vmatpush.xpose.msra.mxu0 %v2500
      %2629 = vmatpush.xpose.msra.mxu0 %v2499
      %2630 = vmatpush.xpose.msra.mxu0 %v2498
      %2631 = vmatpush.xpose.msra.mxu0 %v2497
      %2632 = vmatpush.xpose.msra.mxu0 %v2496
      %2633 = vmatpush.xpose.msra.mxu0 %v2495
      %2634 = vmatpush.xpose.msra.mxu0 %v2494
      %2635 = vmatpush.xpose.msra.mxu0 %v2493
      %2636 = vmatpush.xpose.msra.mxu0 %v2492
      %2637 = vmatpush.xpose.msra.mxu0 %v2491
      %2638 = vmatpush.xpose.msra.mxu0 %v2490
      %2639 = vmatpush.xpose.msra.mxu0 %v2489
      %2640 = vmatpush.xpose.msra.mxu0 %v2488
      %2641 = vmatpush.xpose.msra.mxu0 %v2487
      %2642 = vmatmul.f32.gmra.mxu0 %v2431
      %v2643 = vpop.f32.mrf.mxu0
      %v2644 = vadd.f32 %v250, %v2643
      %2645 = vmatmul.f32.gmra.mxu0 %v2432
      %v2646 = vpop.f32.mrf.mxu0
      %v2647 = vadd.f32 %v250, %v2646
      %2648 = vmatmul.f32.gmra.mxu0 %v2433
      %v2649 = vpop.f32.mrf.mxu0
      %v2650 = vadd.f32 %v250, %v2649
      %2651 = vmatmul.f32.gmra.mxu0 %v2434
      %v2652 = vpop.f32.mrf.mxu0
      %v2653 = vadd.f32 %v250, %v2652
      %2654 = vmatmul.f32.gmra.mxu0 %v2435
      %v2655 = vpop.f32.mrf.mxu0
      %v2656 = vadd.f32 %v250, %v2655
      %2657 = vmatmul.f32.gmra.mxu0 %v2436
      %v2658 = vpop.f32.mrf.mxu0
      %v2659 = vadd.f32 %v250, %v2658
      %2660 = vmatmul.f32.gmra.mxu0 %v2437
      %v2661 = vpop.f32.mrf.mxu0
      %v2662 = vadd.f32 %v250, %v2661
      %2663 = vmatmul.f32.gmra.mxu0 %v2438
      %v2664 = vpop.f32.mrf.mxu0
      %v2665 = vadd.f32 %v250, %v2664
      %2666 = vdwg.mxu0
      %v2667 = vmax.f32 %v2521, 0.0
      %v2668 = vmax.f32 %v2562, 0.0
      %v2669 = vmax.f32 %v2603, 0.0
      %v2670 = vmax.f32 %v2644, 0.0
      %v2671 = vmax.f32 %v2524, 0.0
      %v2672 = vmax.f32 %v2565, 0.0
      %v2673 = vmax.f32 %v2606, 0.0
      %v2674 = vmax.f32 %v2647, 0.0
      %v2675 = vmax.f32 %v2527, 0.0
      %v2676 = vmax.f32 %v2568, 0.0
      %v2677 = vmax.f32 %v2609, 0.0
      %v2678 = vmax.f32 %v2650, 0.0
      %v2679 = vmax.f32 %v2530, 0.0
      %v2680 = vmax.f32 %v2571, 0.0
      %v2681 = vmax.f32 %v2612, 0.0
      %v2682 = vmax.f32 %v2653, 0.0
      %v2683 = vmax.f32 %v2533, 0.0
      %v2684 = vmax.f32 %v2574, 0.0
      %v2685 = vmax.f32 %v2615, 0.0
      %v2686 = vmax.f32 %v2656, 0.0
      %v2687 = vmax.f32 %v2536, 0.0
      %v2688 = vmax.f32 %v2577, 0.0
      %v2689 = vmax.f32 %v2618, 0.0
      %v2690 = vmax.f32 %v2659, 0.0
      %v2691 = vmax.f32 %v2539, 0.0
      %v2692 = vmax.f32 %v2580, 0.0
      %v2693 = vmax.f32 %v2621, 0.0
      %v2694 = vmax.f32 %v2662, 0.0
      %v2695 = vmax.f32 %v2542, 0.0
      %v2696 = vmax.f32 %v2583, 0.0
      %v2697 = vmax.f32 %v2624, 0.0
      %v2698 = vmax.f32 %v2665, 0.0
      %v2699 = vadd.f32 %v2667, %v2671
      %v2700 = vadd.f32 %v2699, %v2675
      %v2701 = vadd.f32 %v2700, %v2679
      %v2702 = vadd.f32 %v2701, %v2683
      %v2703 = vadd.f32 %v2702, %v2687
      %v2704 = vadd.f32 %v2703, %v2691
      %v2705 = vadd.f32 %v2704, %v2695
      %v2706 = vrot.slane %v2705, 4
      %v2707 = vadd.f32 %v2705, %v2706
      %v2708 = vrot.slane %v2707, 2
      %v2709 = vadd.f32 %v2707, %v2708
      %v2710 = vrot.slane %v2709, 1
      %v2711 = vadd.f32 %v2709, %v2710
      %v2712 = vadd.f32 %v2668, %v2672
      %v2713 = vadd.f32 %v2712, %v2676
      %v2714 = vadd.f32 %v2713, %v2680
      %v2715 = vadd.f32 %v2714, %v2684
      %v2716 = vadd.f32 %v2715, %v2688
      %v2717 = vadd.f32 %v2716, %v2692
      %v2718 = vadd.f32 %v2717, %v2696
      %v2719 = vrot.slane %v2718, 4
      %v2720 = vadd.f32 %v2718, %v2719
      %v2721 = vrot.slane %v2720, 2
      %v2722 = vadd.f32 %v2720, %v2721
      %v2723 = vrot.slane %v2722, 1
      %v2724 = vadd.f32 %v2722, %v2723
      %v2725 = vadd.f32 %v2669, %v2673
      %v2726 = vadd.f32 %v2725, %v2677
      %v2727 = vadd.f32 %v2726, %v2681
      %v2728 = vadd.f32 %v2727, %v2685
      %v2729 = vadd.f32 %v2728, %v2689
      %v2730 = vadd.f32 %v2729, %v2693
      %v2731 = vadd.f32 %v2730, %v2697
      %v2732 = vrot.slane %v2731, 4
      %v2733 = vadd.f32 %v2731, %v2732
      %v2734 = vrot.slane %v2733, 2
      %v2735 = vadd.f32 %v2733, %v2734
      %v2736 = vrot.slane %v2735, 1
      %v2737 = vadd.f32 %v2735, %v2736
      %v2738 = vadd.f32 %v2670, %v2674
      %v2739 = vadd.f32 %v2738, %v2678
      %v2740 = vadd.f32 %v2739, %v2682
      %v2741 = vadd.f32 %v2740, %v2686
      %v2742 = vadd.f32 %v2741, %v2690
      %v2743 = vadd.f32 %v2742, %v2694
      %v2744 = vadd.f32 %v2743, %v2698
      %v2745 = vrot.slane %v2744, 4
      %v2746 = vadd.f32 %v2744, %v2745
      %v2747 = vrot.slane %v2746, 2
      %v2748 = vadd.f32 %v2746, %v2747
      %v2749 = vrot.slane %v2748, 1
      %v2750 = vadd.f32 %v2748, %v2749
      %v2751 = vadd.f32 %v2711, 0.0
      %v2752 = vadd.f32 %v2724, 0.0
      %v2753 = vadd.f32 %v2737, 0.0
      %v2754 = vadd.f32 %v2750, 0.0
      %v2755 = vld [vmem:[%s166 + $0x240] sm:$0xff]
      %v2756 = vld [vmem:[%s166 + $0x248] sm:$0xff]
      %v2757 = vld [vmem:[%s166 + $0x250] sm:$0xff]
      %v2758 = vld [vmem:[%s166 + $0x258] sm:$0xff]
      %v2759 = vld [vmem:[%s166 + $0x260] sm:$0xff]
      %v2760 = vld [vmem:[%s166 + $0x268] sm:$0xff]
      %v2761 = vld [vmem:[%s166 + $0x270] sm:$0xff]
      %v2762 = vld [vmem:[%s166 + $0x278] sm:$0xff]
      %2763 = vmatpush.xpose.msra.mxu0 %v2454
      %2764 = vmatpush.xpose.msra.mxu0 %v2453
      %2765 = vmatpush.xpose.msra.mxu0 %v2452
      %2766 = vmatpush.xpose.msra.mxu0 %v2451
      %2767 = vmatpush.xpose.msra.mxu0 %v2450
      %2768 = vmatpush.xpose.msra.mxu0 %v2449
      %2769 = vmatpush.xpose.msra.mxu0 %v2448
      %2770 = vmatpush.xpose.msra.mxu0 %v2447
      %2771 = vmatpush.xpose.msra.mxu0 %v2446
      %2772 = vmatpush.xpose.msra.mxu0 %v2445
      %2773 = vmatpush.xpose.msra.mxu0 %v2444
      %2774 = vmatpush.xpose.msra.mxu0 %v2443
      %2775 = vmatpush.xpose.msra.mxu0 %v2442
      %2776 = vmatpush.xpose.msra.mxu0 %v2441
      %2777 = vmatpush.xpose.msra.mxu0 %v2440
      %2778 = vmatpush.xpose.msra.mxu0 %v2439
      %2779 = vmatmul.f32.gmra.mxu0 %v2755
      %v2780 = vpop.f32.mrf.mxu0
      %v2781 = vadd.f32 %v247, %v2780
      %2782 = vmatmul.f32.gmra.mxu0 %v2756
      %v2783 = vpop.f32.mrf.mxu0
      %v2784 = vadd.f32 %v247, %v2783
      %2785 = vmatmul.f32.gmra.mxu0 %v2757
      %v2786 = vpop.f32.mrf.mxu0
      %v2787 = vadd.f32 %v247, %v2786
      %2788 = vmatmul.f32.gmra.mxu0 %v2758
      %v2789 = vpop.f32.mrf.mxu0
      %v2790 = vadd.f32 %v247, %v2789
      %2791 = vmatmul.f32.gmra.mxu0 %v2759
      %v2792 = vpop.f32.mrf.mxu0
      %v2793 = vadd.f32 %v247, %v2792
      %2794 = vmatmul.f32.gmra.mxu0 %v2760
      %v2795 = vpop.f32.mrf.mxu0
      %v2796 = vadd.f32 %v247, %v2795
      %2797 = vmatmul.f32.gmra.mxu0 %v2761
      %v2798 = vpop.f32.mrf.mxu0
      %v2799 = vadd.f32 %v247, %v2798
      %2800 = vmatmul.f32.gmra.mxu0 %v2762
      %v2801 = vpop.f32.mrf.mxu0
      %v2802 = vadd.f32 %v247, %v2801
      %2803 = vdwg.mxu0
      %2804 = vmatpush.xpose.msra.mxu0 %v2470
      %2805 = vmatpush.xpose.msra.mxu0 %v2469
      %2806 = vmatpush.xpose.msra.mxu0 %v2468
      %2807 = vmatpush.xpose.msra.mxu0 %v2467
      %2808 = vmatpush.xpose.msra.mxu0 %v2466
      %2809 = vmatpush.xpose.msra.mxu0 %v2465
      %2810 = vmatpush.xpose.msra.mxu0 %v2464
      %2811 = vmatpush.xpose.msra.mxu0 %v2463
      %2812 = vmatpush.xpose.msra.mxu0 %v2462
      %2813 = vmatpush.xpose.msra.mxu0 %v2461
      %2814 = vmatpush.xpose.msra.mxu0 %v2460
      %2815 = vmatpush.xpose.msra.mxu0 %v2459
      %2816 = vmatpush.xpose.msra.mxu0 %v2458
      %2817 = vmatpush.xpose.msra.mxu0 %v2457
      %2818 = vmatpush.xpose.msra.mxu0 %v2456
      %2819 = vmatpush.xpose.msra.mxu0 %v2455
      %2820 = vmatmul.f32.gmra.mxu0 %v2755
      %v2821 = vpop.f32.mrf.mxu0
      %v2822 = vadd.f32 %v248, %v2821
      %2823 = vmatmul.f32.gmra.mxu0 %v2756
      %v2824 = vpop.f32.mrf.mxu0
      %v2825 = vadd.f32 %v248, %v2824
      %2826 = vmatmul.f32.gmra.mxu0 %v2757
      %v2827 = vpop.f32.mrf.mxu0
      %v2828 = vadd.f32 %v248, %v2827
      %2829 = vmatmul.f32.gmra.mxu0 %v2758
      %v2830 = vpop.f32.mrf.mxu0
      %v2831 = vadd.f32 %v248, %v2830
      %2832 = vmatmul.f32.gmra.mxu0 %v2759
      %v2833 = vpop.f32.mrf.mxu0
      %v2834 = vadd.f32 %v248, %v2833
      %2835 = vmatmul.f32.gmra.mxu0 %v2760
      %v2836 = vpop.f32.mrf.mxu0
      %v2837 = vadd.f32 %v248, %v2836
      %2838 = vmatmul.f32.gmra.mxu0 %v2761
      %v2839 = vpop.f32.mrf.mxu0
      %v2840 = vadd.f32 %v248, %v2839
      %2841 = vmatmul.f32.gmra.mxu0 %v2762
      %v2842 = vpop.f32.mrf.mxu0
      %v2843 = vadd.f32 %v248, %v2842
      %2844 = vdwg.mxu0
      %2845 = vmatpush.xpose.msra.mxu0 %v2486
      %2846 = vmatpush.xpose.msra.mxu0 %v2485
      %2847 = vmatpush.xpose.msra.mxu0 %v2484
      %2848 = vmatpush.xpose.msra.mxu0 %v2483
      %2849 = vmatpush.xpose.msra.mxu0 %v2482
      %2850 = vmatpush.xpose.msra.mxu0 %v2481
      %2851 = vmatpush.xpose.msra.mxu0 %v2480
      %2852 = vmatpush.xpose.msra.mxu0 %v2479
      %2853 = vmatpush.xpose.msra.mxu0 %v2478
      %2854 = vmatpush.xpose.msra.mxu0 %v2477
      %2855 = vmatpush.xpose.msra.mxu0 %v2476
      %2856 = vmatpush.xpose.msra.mxu0 %v2475
      %2857 = vmatpush.xpose.msra.mxu0 %v2474
      %2858 = vmatpush.xpose.msra.mxu0 %v2473
      %2859 = vmatpush.xpose.msra.mxu0 %v2472
      %2860 = vmatpush.xpose.msra.mxu0 %v2471
      %2861 = vmatmul.f32.gmra.mxu0 %v2755
      %v2862 = vpop.f32.mrf.mxu0
      %v2863 = vadd.f32 %v249, %v2862
      %2864 = vmatmul.f32.gmra.mxu0 %v2756
      %v2865 = vpop.f32.mrf.mxu0
      %v2866 = vadd.f32 %v249, %v2865
      %2867 = vmatmul.f32.gmra.mxu0 %v2757
      %v2868 = vpop.f32.mrf.mxu0
      %v2869 = vadd.f32 %v249, %v2868
      %2870 = vmatmul.f32.gmra.mxu0 %v2758
      %v2871 = vpop.f32.mrf.mxu0
      %v2872 = vadd.f32 %v249, %v2871
      %2873 = vmatmul.f32.gmra.mxu0 %v2759
      %v2874 = vpop.f32.mrf.mxu0
      %v2875 = vadd.f32 %v249, %v2874
      %2876 = vmatmul.f32.gmra.mxu0 %v2760
      %v2877 = vpop.f32.mrf.mxu0
      %v2878 = vadd.f32 %v249, %v2877
      %2879 = vmatmul.f32.gmra.mxu0 %v2761
      %v2880 = vpop.f32.mrf.mxu0
      %v2881 = vadd.f32 %v249, %v2880
      %2882 = vmatmul.f32.gmra.mxu0 %v2762
      %v2883 = vpop.f32.mrf.mxu0
      %v2884 = vadd.f32 %v249, %v2883
      %2885 = vdwg.mxu0
      %2886 = vmatpush.xpose.msra.mxu0 %v2502
      %2887 = vmatpush.xpose.msra.mxu0 %v2501
      %2888 = vmatpush.xpose.msra.mxu0 %v2500
      %2889 = vmatpush.xpose.msra.mxu0 %v2499
      %2890 = vmatpush.xpose.msra.mxu0 %v2498
      %2891 = vmatpush.xpose.msra.mxu0 %v2497
      %2892 = vmatpush.xpose.msra.mxu0 %v2496
      %2893 = vmatpush.xpose.msra.mxu0 %v2495
      %2894 = vmatpush.xpose.msra.mxu0 %v2494
      %2895 = vmatpush.xpose.msra.mxu0 %v2493
      %2896 = vmatpush.xpose.msra.mxu0 %v2492
      %2897 = vmatpush.xpose.msra.mxu0 %v2491
      %2898 = vmatpush.xpose.msra.mxu0 %v2490
      %2899 = vmatpush.xpose.msra.mxu0 %v2489
      %2900 = vmatpush.xpose.msra.mxu0 %v2488
      %2901 = vmatpush.xpose.msra.mxu0 %v2487
      %2902 = vmatmul.f32.gmra.mxu0 %v2755
      %v2903 = vpop.f32.mrf.mxu0
      %v2904 = vadd.f32 %v250, %v2903
      %2905 = vmatmul.f32.gmra.mxu0 %v2756
      %v2906 = vpop.f32.mrf.mxu0
      %v2907 = vadd.f32 %v250, %v2906
      %2908 = vmatmul.f32.gmra.mxu0 %v2757
      %v2909 = vpop.f32.mrf.mxu0
      %v2910 = vadd.f32 %v250, %v2909
      %2911 = vmatmul.f32.gmra.mxu0 %v2758
      %v2912 = vpop.f32.mrf.mxu0
      %v2913 = vadd.f32 %v250, %v2912
      %2914 = vmatmul.f32.gmra.mxu0 %v2759
      %v2915 = vpop.f32.mrf.mxu0
      %v2916 = vadd.f32 %v250, %v2915
      %2917 = vmatmul.f32.gmra.mxu0 %v2760
      %v2918 = vpop.f32.mrf.mxu0
      %v2919 = vadd.f32 %v250, %v2918
      %2920 = vmatmul.f32.gmra.mxu0 %v2761
      %v2921 = vpop.f32.mrf.mxu0
      %v2922 = vadd.f32 %v250, %v2921
      %2923 = vmatmul.f32.gmra.mxu0 %v2762
      %v2924 = vpop.f32.mrf.mxu0
      %v2925 = vadd.f32 %v250, %v2924
      %2926 = vdwg.mxu0
      %v2927 = vmax.f32 %v2781, 0.0
      %v2928 = vmax.f32 %v2822, 0.0
      %v2929 = vmax.f32 %v2863, 0.0
      %v2930 = vmax.f32 %v2904, 0.0
      %v2931 = vmax.f32 %v2784, 0.0
      %v2932 = vmax.f32 %v2825, 0.0
      %v2933 = vmax.f32 %v2866, 0.0
      %v2934 = vmax.f32 %v2907, 0.0
      %v2935 = vmax.f32 %v2787, 0.0
      %v2936 = vmax.f32 %v2828, 0.0
      %v2937 = vmax.f32 %v2869, 0.0
      %v2938 = vmax.f32 %v2910, 0.0
      %v2939 = vmax.f32 %v2790, 0.0
      %v2940 = vmax.f32 %v2831, 0.0
      %v2941 = vmax.f32 %v2872, 0.0
      %v2942 = vmax.f32 %v2913, 0.0
      %v2943 = vmax.f32 %v2793, 0.0
      %v2944 = vmax.f32 %v2834, 0.0
      %v2945 = vmax.f32 %v2875, 0.0
      %v2946 = vmax.f32 %v2916, 0.0
      %v2947 = vmax.f32 %v2796, 0.0
      %v2948 = vmax.f32 %v2837, 0.0
      %v2949 = vmax.f32 %v2878, 0.0
      %v2950 = vmax.f32 %v2919, 0.0
      %v2951 = vmax.f32 %v2799, 0.0
      %v2952 = vmax.f32 %v2840, 0.0
      %v2953 = vmax.f32 %v2881, 0.0
      %v2954 = vmax.f32 %v2922, 0.0
      %v2955 = vmax.f32 %v2802, 0.0
      %v2956 = vmax.f32 %v2843, 0.0
      %v2957 = vmax.f32 %v2884, 0.0
      %v2958 = vmax.f32 %v2925, 0.0
      %v2959 = vadd.f32 %v2927, %v2931
      %v2960 = vadd.f32 %v2959, %v2935
      %v2961 = vadd.f32 %v2960, %v2939
      %v2962 = vadd.f32 %v2961, %v2943
      %v2963 = vadd.f32 %v2962, %v2947
      %v2964 = vadd.f32 %v2963, %v2951
      %v2965 = vadd.f32 %v2964, %v2955
      %v2966 = vrot.slane %v2965, 4
      %v2967 = vadd.f32 %v2965, %v2966
      %v2968 = vrot.slane %v2967, 2
      %v2969 = vadd.f32 %v2967, %v2968
      %v2970 = vrot.slane %v2969, 1
      %v2971 = vadd.f32 %v2969, %v2970
      %v2972 = vadd.f32 %v2928, %v2932
      %v2973 = vadd.f32 %v2972, %v2936
      %v2974 = vadd.f32 %v2973, %v2940
      %v2975 = vadd.f32 %v2974, %v2944
      %v2976 = vadd.f32 %v2975, %v2948
      %v2977 = vadd.f32 %v2976, %v2952
      %v2978 = vadd.f32 %v2977, %v2956
      %v2979 = vrot.slane %v2978, 4
      %v2980 = vadd.f32 %v2978, %v2979
      %v2981 = vrot.slane %v2980, 2
      %v2982 = vadd.f32 %v2980, %v2981
      %v2983 = vrot.slane %v2982, 1
      %v2984 = vadd.f32 %v2982, %v2983
      %v2985 = vadd.f32 %v2929, %v2933
      %v2986 = vadd.f32 %v2985, %v2937
      %v2987 = vadd.f32 %v2986, %v2941
      %v2988 = vadd.f32 %v2987, %v2945
      %v2989 = vadd.f32 %v2988, %v2949
      %v2990 = vadd.f32 %v2989, %v2953
      %v2991 = vadd.f32 %v2990, %v2957
      %v2992 = vrot.slane %v2991, 4
      %v2993 = vadd.f32 %v2991, %v2992
      %v2994 = vrot.slane %v2993, 2
      %v2995 = vadd.f32 %v2993, %v2994
      %v2996 = vrot.slane %v2995, 1
      %v2997 = vadd.f32 %v2995, %v2996
      %v2998 = vadd.f32 %v2930, %v2934
      %v2999 = vadd.f32 %v2998, %v2938
      %v3000 = vadd.f32 %v2999, %v2942
      %v3001 = vadd.f32 %v3000, %v2946
      %v3002 = vadd.f32 %v3001, %v2950
      %v3003 = vadd.f32 %v3002, %v2954
      %v3004 = vadd.f32 %v3003, %v2958
      %v3005 = vrot.slane %v3004, 4
      %v3006 = vadd.f32 %v3004, %v3005
      %v3007 = vrot.slane %v3006, 2
      %v3008 = vadd.f32 %v3006, %v3007
      %v3009 = vrot.slane %v3008, 1
      %v3010 = vadd.f32 %v3008, %v3009
      %v3011 = vadd.f32 %v2751, %v2971
      %v3012 = vadd.f32 %v2752, %v2984
      %v3013 = vadd.f32 %v2753, %v2997
      %v3014 = vadd.f32 %v2754, %v3010
      %v3015 = vld [vmem:[%s166 + $0x280] sm:$0xff]
      %v3016 = vld [vmem:[%s166 + $0x288] sm:$0xff]
      %v3017 = vld [vmem:[%s166 + $0x290] sm:$0xff]
      %v3018 = vld [vmem:[%s166 + $0x298] sm:$0xff]
      %v3019 = vld [vmem:[%s166 + $0x2a0] sm:$0xff]
      %v3020 = vld [vmem:[%s166 + $0x2a8] sm:$0xff]
      %v3021 = vld [vmem:[%s166 + $0x2b0] sm:$0xff]
      %v3022 = vld [vmem:[%s166 + $0x2b8] sm:$0xff]
      %3023 = vmatpush.xpose.msra.mxu0 %v2454
      %3024 = vmatpush.xpose.msra.mxu0 %v2453
      %3025 = vmatpush.xpose.msra.mxu0 %v2452
      %3026 = vmatpush.xpose.msra.mxu0 %v2451
      %3027 = vmatpush.xpose.msra.mxu0 %v2450
      %3028 = vmatpush.xpose.msra.mxu0 %v2449
      %3029 = vmatpush.xpose.msra.mxu0 %v2448
      %3030 = vmatpush.xpose.msra.mxu0 %v2447
      %3031 = vmatpush.xpose.msra.mxu0 %v2446
      %3032 = vmatpush.xpose.msra.mxu0 %v2445
      %3033 = vmatpush.xpose.msra.mxu0 %v2444
      %3034 = vmatpush.xpose.msra.mxu0 %v2443
      %3035 = vmatpush.xpose.msra.mxu0 %v2442
      %3036 = vmatpush.xpose.msra.mxu0 %v2441
      %3037 = vmatpush.xpose.msra.mxu0 %v2440
      %3038 = vmatpush.xpose.msra.mxu0 %v2439
      %3039 = vmatmul.f32.gmra.mxu0 %v3015
      %v3040 = vpop.f32.mrf.mxu0
      %v3041 = vadd.f32 %v247, %v3040
      %3042 = vmatmul.f32.gmra.mxu0 %v3016
      %v3043 = vpop.f32.mrf.mxu0
      %v3044 = vadd.f32 %v247, %v3043
      %3045 = vmatmul.f32.gmra.mxu0 %v3017
      %v3046 = vpop.f32.mrf.mxu0
      %v3047 = vadd.f32 %v247, %v3046
      %3048 = vmatmul.f32.gmra.mxu0 %v3018
      %v3049 = vpop.f32.mrf.mxu0
      %v3050 = vadd.f32 %v247, %v3049
      %3051 = vmatmul.f32.gmra.mxu0 %v3019
      %v3052 = vpop.f32.mrf.mxu0
      %v3053 = vadd.f32 %v247, %v3052
      %3054 = vmatmul.f32.gmra.mxu0 %v3020
      %v3055 = vpop.f32.mrf.mxu0
      %v3056 = vadd.f32 %v247, %v3055
      %3057 = vmatmul.f32.gmra.mxu0 %v3021
      %v3058 = vpop.f32.mrf.mxu0
      %v3059 = vadd.f32 %v247, %v3058
      %3060 = vmatmul.f32.gmra.mxu0 %v3022
      %v3061 = vpop.f32.mrf.mxu0
      %v3062 = vadd.f32 %v247, %v3061
      %3063 = vdwg.mxu0
      %3064 = vmatpush.xpose.msra.mxu0 %v2470
      %3065 = vmatpush.xpose.msra.mxu0 %v2469
      %3066 = vmatpush.xpose.msra.mxu0 %v2468
      %3067 = vmatpush.xpose.msra.mxu0 %v2467
      %3068 = vmatpush.xpose.msra.mxu0 %v2466
      %3069 = vmatpush.xpose.msra.mxu0 %v2465
      %3070 = vmatpush.xpose.msra.mxu0 %v2464
      %3071 = vmatpush.xpose.msra.mxu0 %v2463
      %3072 = vmatpush.xpose.msra.mxu0 %v2462
      %3073 = vmatpush.xpose.msra.mxu0 %v2461
      %3074 = vmatpush.xpose.msra.mxu0 %v2460
      %3075 = vmatpush.xpose.msra.mxu0 %v2459
      %3076 = vmatpush.xpose.msra.mxu0 %v2458
      %3077 = vmatpush.xpose.msra.mxu0 %v2457
      %3078 = vmatpush.xpose.msra.mxu0 %v2456
      %3079 = vmatpush.xpose.msra.mxu0 %v2455
      %3080 = vmatmul.f32.gmra.mxu0 %v3015
      %v3081 = vpop.f32.mrf.mxu0
      %v3082 = vadd.f32 %v248, %v3081
      %3083 = vmatmul.f32.gmra.mxu0 %v3016
      %v3084 = vpop.f32.mrf.mxu0
      %v3085 = vadd.f32 %v248, %v3084
      %3086 = vmatmul.f32.gmra.mxu0 %v3017
      %v3087 = vpop.f32.mrf.mxu0
      %v3088 = vadd.f32 %v248, %v3087
      %3089 = vmatmul.f32.gmra.mxu0 %v3018
      %v3090 = vpop.f32.mrf.mxu0
      %v3091 = vadd.f32 %v248, %v3090
      %3092 = vmatmul.f32.gmra.mxu0 %v3019
      %v3093 = vpop.f32.mrf.mxu0
      %v3094 = vadd.f32 %v248, %v3093
      %3095 = vmatmul.f32.gmra.mxu0 %v3020
      %v3096 = vpop.f32.mrf.mxu0
      %v3097 = vadd.f32 %v248, %v3096
      %3098 = vmatmul.f32.gmra.mxu0 %v3021
      %v3099 = vpop.f32.mrf.mxu0
      %v3100 = vadd.f32 %v248, %v3099
      %3101 = vmatmul.f32.gmra.mxu0 %v3022
      %v3102 = vpop.f32.mrf.mxu0
      %v3103 = vadd.f32 %v248, %v3102
      %3104 = vdwg.mxu0
      %3105 = vmatpush.xpose.msra.mxu0 %v2486
      %3106 = vmatpush.xpose.msra.mxu0 %v2485
      %3107 = vmatpush.xpose.msra.mxu0 %v2484
      %3108 = vmatpush.xpose.msra.mxu0 %v2483
      %3109 = vmatpush.xpose.msra.mxu0 %v2482
      %3110 = vmatpush.xpose.msra.mxu0 %v2481
      %3111 = vmatpush.xpose.msra.mxu0 %v2480
      %3112 = vmatpush.xpose.msra.mxu0 %v2479
      %3113 = vmatpush.xpose.msra.mxu0 %v2478
      %3114 = vmatpush.xpose.msra.mxu0 %v2477
      %3115 = vmatpush.xpose.msra.mxu0 %v2476
      %3116 = vmatpush.xpose.msra.mxu0 %v2475
      %3117 = vmatpush.xpose.msra.mxu0 %v2474
      %3118 = vmatpush.xpose.msra.mxu0 %v2473
      %3119 = vmatpush.xpose.msra.mxu0 %v2472
      %3120 = vmatpush.xpose.msra.mxu0 %v2471
      %3121 = vmatmul.f32.gmra.mxu0 %v3015
      %v3122 = vpop.f32.mrf.mxu0
      %v3123 = vadd.f32 %v249, %v3122
      %3124 = vmatmul.f32.gmra.mxu0 %v3016
      %v3125 = vpop.f32.mrf.mxu0
      %v3126 = vadd.f32 %v249, %v3125
      %3127 = vmatmul.f32.gmra.mxu0 %v3017
      %v3128 = vpop.f32.mrf.mxu0
      %v3129 = vadd.f32 %v249, %v3128
      %3130 = vmatmul.f32.gmra.mxu0 %v3018
      %v3131 = vpop.f32.mrf.mxu0
      %v3132 = vadd.f32 %v249, %v3131
      %3133 = vmatmul.f32.gmra.mxu0 %v3019
      %v3134 = vpop.f32.mrf.mxu0
      %v3135 = vadd.f32 %v249, %v3134
      %3136 = vmatmul.f32.gmra.mxu0 %v3020
      %v3137 = vpop.f32.mrf.mxu0
      %v3138 = vadd.f32 %v249, %v3137
      %3139 = vmatmul.f32.gmra.mxu0 %v3021
      %v3140 = vpop.f32.mrf.mxu0
      %v3141 = vadd.f32 %v249, %v3140
      %3142 = vmatmul.f32.gmra.mxu0 %v3022
      %v3143 = vpop.f32.mrf.mxu0
      %v3144 = vadd.f32 %v249, %v3143
      %3145 = vdwg.mxu0
      %3146 = vmatpush.xpose.msra.mxu0 %v2502
      %3147 = vmatpush.xpose.msra.mxu0 %v2501
      %3148 = vmatpush.xpose.msra.mxu0 %v2500
      %3149 = vmatpush.xpose.msra.mxu0 %v2499
      %3150 = vmatpush.xpose.msra.mxu0 %v2498
      %3151 = vmatpush.xpose.msra.mxu0 %v2497
      %3152 = vmatpush.xpose.msra.mxu0 %v2496
      %3153 = vmatpush.xpose.msra.mxu0 %v2495
      %3154 = vmatpush.xpose.msra.mxu0 %v2494
      %3155 = vmatpush.xpose.msra.mxu0 %v2493
      %3156 = vmatpush.xpose.msra.mxu0 %v2492
      %3157 = vmatpush.xpose.msra.mxu0 %v2491
      %3158 = vmatpush.xpose.msra.mxu0 %v2490
      %3159 = vmatpush.xpose.msra.mxu0 %v2489
      %3160 = vmatpush.xpose.msra.mxu0 %v2488
      %3161 = vmatpush.xpose.msra.mxu0 %v2487
      %3162 = vmatmul.f32.gmra.mxu0 %v3015
      %v3163 = vpop.f32.mrf.mxu0
      %v3164 = vadd.f32 %v250, %v3163
      %3165 = vmatmul.f32.gmra.mxu0 %v3016
      %v3166 = vpop.f32.mrf.mxu0
      %v3167 = vadd.f32 %v250, %v3166
      %3168 = vmatmul.f32.gmra.mxu0 %v3017
      %v3169 = vpop.f32.mrf.mxu0
      %v3170 = vadd.f32 %v250, %v3169
      %3171 = vmatmul.f32.gmra.mxu0 %v3018
      %v3172 = vpop.f32.mrf.mxu0
      %v3173 = vadd.f32 %v250, %v3172
      %3174 = vmatmul.f32.gmra.mxu0 %v3019
      %v3175 = vpop.f32.mrf.mxu0
      %v3176 = vadd.f32 %v250, %v3175
      %3177 = vmatmul.f32.gmra.mxu0 %v3020
      %v3178 = vpop.f32.mrf.mxu0
      %v3179 = vadd.f32 %v250, %v3178
      %3180 = vmatmul.f32.gmra.mxu0 %v3021
      %v3181 = vpop.f32.mrf.mxu0
      %v3182 = vadd.f32 %v250, %v3181
      %3183 = vmatmul.f32.gmra.mxu0 %v3022
      %v3184 = vpop.f32.mrf.mxu0
      %v3185 = vadd.f32 %v250, %v3184
      %3186 = vdwg.mxu0
      %v3187 = vmax.f32 %v3041, 0.0
      %v3188 = vmax.f32 %v3082, 0.0
      %v3189 = vmax.f32 %v3123, 0.0
      %v3190 = vmax.f32 %v3164, 0.0
      %v3191 = vmax.f32 %v3044, 0.0
      %v3192 = vmax.f32 %v3085, 0.0
      %v3193 = vmax.f32 %v3126, 0.0
      %v3194 = vmax.f32 %v3167, 0.0
      %v3195 = vmax.f32 %v3047, 0.0
      %v3196 = vmax.f32 %v3088, 0.0
      %v3197 = vmax.f32 %v3129, 0.0
      %v3198 = vmax.f32 %v3170, 0.0
      %v3199 = vmax.f32 %v3050, 0.0
      %v3200 = vmax.f32 %v3091, 0.0
      %v3201 = vmax.f32 %v3132, 0.0
      %v3202 = vmax.f32 %v3173, 0.0
      %v3203 = vmax.f32 %v3053, 0.0
      %v3204 = vmax.f32 %v3094, 0.0
      %v3205 = vmax.f32 %v3135, 0.0
      %v3206 = vmax.f32 %v3176, 0.0
      %v3207 = vmax.f32 %v3056, 0.0
      %v3208 = vmax.f32 %v3097, 0.0
      %v3209 = vmax.f32 %v3138, 0.0
      %v3210 = vmax.f32 %v3179, 0.0
      %v3211 = vmax.f32 %v3059, 0.0
      %v3212 = vmax.f32 %v3100, 0.0
      %v3213 = vmax.f32 %v3141, 0.0
      %v3214 = vmax.f32 %v3182, 0.0
      %v3215 = vmax.f32 %v3062, 0.0
      %v3216 = vmax.f32 %v3103, 0.0
      %v3217 = vmax.f32 %v3144, 0.0
      %v3218 = vmax.f32 %v3185, 0.0
      %v3219 = vadd.f32 %v3187, %v3191
      %v3220 = vadd.f32 %v3219, %v3195
      %v3221 = vadd.f32 %v3220, %v3199
      %v3222 = vadd.f32 %v3221, %v3203
      %v3223 = vadd.f32 %v3222, %v3207
      %v3224 = vadd.f32 %v3223, %v3211
      %v3225 = vadd.f32 %v3224, %v3215
      %v3226 = vrot.slane %v3225, 4
      %v3227 = vadd.f32 %v3225, %v3226
      %v3228 = vrot.slane %v3227, 2
      %v3229 = vadd.f32 %v3227, %v3228
      %v3230 = vrot.slane %v3229, 1
      %v3231 = vadd.f32 %v3229, %v3230
      %v3232 = vadd.f32 %v3188, %v3192
      %v3233 = vadd.f32 %v3232, %v3196
      %v3234 = vadd.f32 %v3233, %v3200
      %v3235 = vadd.f32 %v3234, %v3204
      %v3236 = vadd.f32 %v3235, %v3208
      %v3237 = vadd.f32 %v3236, %v3212
      %v3238 = vadd.f32 %v3237, %v3216
      %v3239 = vrot.slane %v3238, 4
      %v3240 = vadd.f32 %v3238, %v3239
      %v3241 = vrot.slane %v3240, 2
      %v3242 = vadd.f32 %v3240, %v3241
      %v3243 = vrot.slane %v3242, 1
      %v3244 = vadd.f32 %v3242, %v3243
      %v3245 = vadd.f32 %v3189, %v3193
      %v3246 = vadd.f32 %v3245, %v3197
      %v3247 = vadd.f32 %v3246, %v3201
      %v3248 = vadd.f32 %v3247, %v3205
      %v3249 = vadd.f32 %v3248, %v3209
      %v3250 = vadd.f32 %v3249, %v3213
      %v3251 = vadd.f32 %v3250, %v3217
      %v3252 = vrot.slane %v3251, 4
      %v3253 = vadd.f32 %v3251, %v3252
      %v3254 = vrot.slane %v3253, 2
      %v3255 = vadd.f32 %v3253, %v3254
      %v3256 = vrot.slane %v3255, 1
      %v3257 = vadd.f32 %v3255, %v3256
      %v3258 = vadd.f32 %v3190, %v3194
      %v3259 = vadd.f32 %v3258, %v3198
      %v3260 = vadd.f32 %v3259, %v3202
      %v3261 = vadd.f32 %v3260, %v3206
      %v3262 = vadd.f32 %v3261, %v3210
      %v3263 = vadd.f32 %v3262, %v3214
      %v3264 = vadd.f32 %v3263, %v3218
      %v3265 = vrot.slane %v3264, 4
      %v3266 = vadd.f32 %v3264, %v3265
      %v3267 = vrot.slane %v3266, 2
      %v3268 = vadd.f32 %v3266, %v3267
      %v3269 = vrot.slane %v3268, 1
      %v3270 = vadd.f32 %v3268, %v3269
      %v3271 = vadd.f32 %v3011, %v3231
      %v3272 = vadd.f32 %v3012, %v3244
      %v3273 = vadd.f32 %v3013, %v3257
      %v3274 = vadd.f32 %v3014, %v3270
      %v3275 = vld [vmem:[%s166 + $0x2c0] sm:$0xff]
      %v3276 = vld [vmem:[%s166 + $0x2c8] sm:$0xff]
      %v3277 = vld [vmem:[%s166 + $0x2d0] sm:$0xff]
      %v3278 = vld [vmem:[%s166 + $0x2d8] sm:$0xff]
      %v3279 = vld [vmem:[%s166 + $0x2e0] sm:$0xff]
      %v3280 = vld [vmem:[%s166 + $0x2e8] sm:$0xff]
      %v3281 = vld [vmem:[%s166 + $0x2f0] sm:$0xff]
      %v3282 = vld [vmem:[%s166 + $0x2f8] sm:$0xff]
      %3283 = vmatpush.xpose.msra.mxu0 %v2454
      %3284 = vmatpush.xpose.msra.mxu0 %v2453
      %3285 = vmatpush.xpose.msra.mxu0 %v2452
      %3286 = vmatpush.xpose.msra.mxu0 %v2451
      %3287 = vmatpush.xpose.msra.mxu0 %v2450
      %3288 = vmatpush.xpose.msra.mxu0 %v2449
      %3289 = vmatpush.xpose.msra.mxu0 %v2448
      %3290 = vmatpush.xpose.msra.mxu0 %v2447
      %3291 = vmatpush.xpose.msra.mxu0 %v2446
      %3292 = vmatpush.xpose.msra.mxu0 %v2445
      %3293 = vmatpush.xpose.msra.mxu0 %v2444
      %3294 = vmatpush.xpose.msra.mxu0 %v2443
      %3295 = vmatpush.xpose.msra.mxu0 %v2442
      %3296 = vmatpush.xpose.msra.mxu0 %v2441
      %3297 = vmatpush.xpose.msra.mxu0 %v2440
      %3298 = vmatpush.xpose.msra.mxu0 %v2439
      %3299 = vmatmul.f32.gmra.mxu0 %v3275
      %v3300 = vpop.f32.mrf.mxu0
      %v3301 = vadd.f32 %v247, %v3300
      %3302 = vmatmul.f32.gmra.mxu0 %v3276
      %v3303 = vpop.f32.mrf.mxu0
      %v3304 = vadd.f32 %v247, %v3303
      %3305 = vmatmul.f32.gmra.mxu0 %v3277
      %v3306 = vpop.f32.mrf.mxu0
      %v3307 = vadd.f32 %v247, %v3306
      %3308 = vmatmul.f32.gmra.mxu0 %v3278
      %v3309 = vpop.f32.mrf.mxu0
      %v3310 = vadd.f32 %v247, %v3309
      %3311 = vmatmul.f32.gmra.mxu0 %v3279
      %v3312 = vpop.f32.mrf.mxu0
      %v3313 = vadd.f32 %v247, %v3312
      %3314 = vmatmul.f32.gmra.mxu0 %v3280
      %v3315 = vpop.f32.mrf.mxu0
      %v3316 = vadd.f32 %v247, %v3315
      %3317 = vmatmul.f32.gmra.mxu0 %v3281
      %v3318 = vpop.f32.mrf.mxu0
      %v3319 = vadd.f32 %v247, %v3318
      %3320 = vmatmul.f32.gmra.mxu0 %v3282
      %v3321 = vpop.f32.mrf.mxu0
      %v3322 = vadd.f32 %v247, %v3321
      %3323 = vdwg.mxu0
      %3324 = vmatpush.xpose.msra.mxu0 %v2470
      %3325 = vmatpush.xpose.msra.mxu0 %v2469
      %3326 = vmatpush.xpose.msra.mxu0 %v2468
      %3327 = vmatpush.xpose.msra.mxu0 %v2467
      %3328 = vmatpush.xpose.msra.mxu0 %v2466
      %3329 = vmatpush.xpose.msra.mxu0 %v2465
      %3330 = vmatpush.xpose.msra.mxu0 %v2464
      %3331 = vmatpush.xpose.msra.mxu0 %v2463
      %3332 = vmatpush.xpose.msra.mxu0 %v2462
      %3333 = vmatpush.xpose.msra.mxu0 %v2461
      %3334 = vmatpush.xpose.msra.mxu0 %v2460
      %3335 = vmatpush.xpose.msra.mxu0 %v2459
      %3336 = vmatpush.xpose.msra.mxu0 %v2458
      %3337 = vmatpush.xpose.msra.mxu0 %v2457
      %3338 = vmatpush.xpose.msra.mxu0 %v2456
      %3339 = vmatpush.xpose.msra.mxu0 %v2455
      %3340 = vmatmul.f32.gmra.mxu0 %v3275
      %v3341 = vpop.f32.mrf.mxu0
      %v3342 = vadd.f32 %v248, %v3341
      %3343 = vmatmul.f32.gmra.mxu0 %v3276
      %v3344 = vpop.f32.mrf.mxu0
      %v3345 = vadd.f32 %v248, %v3344
      %3346 = vmatmul.f32.gmra.mxu0 %v3277
      %v3347 = vpop.f32.mrf.mxu0
      %v3348 = vadd.f32 %v248, %v3347
      %3349 = vmatmul.f32.gmra.mxu0 %v3278
      %v3350 = vpop.f32.mrf.mxu0
      %v3351 = vadd.f32 %v248, %v3350
      %3352 = vmatmul.f32.gmra.mxu0 %v3279
      %v3353 = vpop.f32.mrf.mxu0
      %v3354 = vadd.f32 %v248, %v3353
      %3355 = vmatmul.f32.gmra.mxu0 %v3280
      %v3356 = vpop.f32.mrf.mxu0
      %v3357 = vadd.f32 %v248, %v3356
      %3358 = vmatmul.f32.gmra.mxu0 %v3281
      %v3359 = vpop.f32.mrf.mxu0
      %v3360 = vadd.f32 %v248, %v3359
      %3361 = vmatmul.f32.gmra.mxu0 %v3282
      %v3362 = vpop.f32.mrf.mxu0
      %v3363 = vadd.f32 %v248, %v3362
      %3364 = vdwg.mxu0
      %3365 = vmatpush.xpose.msra.mxu0 %v2486
      %3366 = vmatpush.xpose.msra.mxu0 %v2485
      %3367 = vmatpush.xpose.msra.mxu0 %v2484
      %3368 = vmatpush.xpose.msra.mxu0 %v2483
      %3369 = vmatpush.xpose.msra.mxu0 %v2482
      %3370 = vmatpush.xpose.msra.mxu0 %v2481
      %3371 = vmatpush.xpose.msra.mxu0 %v2480
      %3372 = vmatpush.xpose.msra.mxu0 %v2479
      %3373 = vmatpush.xpose.msra.mxu0 %v2478
      %3374 = vmatpush.xpose.msra.mxu0 %v2477
      %3375 = vmatpush.xpose.msra.mxu0 %v2476
      %3376 = vmatpush.xpose.msra.mxu0 %v2475
      %3377 = vmatpush.xpose.msra.mxu0 %v2474
      %3378 = vmatpush.xpose.msra.mxu0 %v2473
      %3379 = vmatpush.xpose.msra.mxu0 %v2472
      %3380 = vmatpush.xpose.msra.mxu0 %v2471
      %3381 = vmatmul.f32.gmra.mxu0 %v3275
      %v3382 = vpop.f32.mrf.mxu0
      %v3383 = vadd.f32 %v249, %v3382
      %3384 = vmatmul.f32.gmra.mxu0 %v3276
      %v3385 = vpop.f32.mrf.mxu0
      %v3386 = vadd.f32 %v249, %v3385
      %3387 = vmatmul.f32.gmra.mxu0 %v3277
      %v3388 = vpop.f32.mrf.mxu0
      %v3389 = vadd.f32 %v249, %v3388
      %3390 = vmatmul.f32.gmra.mxu0 %v3278
      %v3391 = vpop.f32.mrf.mxu0
      %v3392 = vadd.f32 %v249, %v3391
      %3393 = vmatmul.f32.gmra.mxu0 %v3279
      %v3394 = vpop.f32.mrf.mxu0
      %v3395 = vadd.f32 %v249, %v3394
      %3396 = vmatmul.f32.gmra.mxu0 %v3280
      %v3397 = vpop.f32.mrf.mxu0
      %v3398 = vadd.f32 %v249, %v3397
      %3399 = vmatmul.f32.gmra.mxu0 %v3281
      %v3400 = vpop.f32.mrf.mxu0
      %v3401 = vadd.f32 %v249, %v3400
      %3402 = vmatmul.f32.gmra.mxu0 %v3282
      %v3403 = vpop.f32.mrf.mxu0
      %v3404 = vadd.f32 %v249, %v3403
      %3405 = vdwg.mxu0
      %3406 = vmatpush.xpose.msra.mxu0 %v2502
      %3407 = vmatpush.xpose.msra.mxu0 %v2501
      %3408 = vmatpush.xpose.msra.mxu0 %v2500
      %3409 = vmatpush.xpose.msra.mxu0 %v2499
      %3410 = vmatpush.xpose.msra.mxu0 %v2498
      %3411 = vmatpush.xpose.msra.mxu0 %v2497
      %3412 = vmatpush.xpose.msra.mxu0 %v2496
      %3413 = vmatpush.xpose.msra.mxu0 %v2495
      %3414 = vmatpush.xpose.msra.mxu0 %v2494
      %3415 = vmatpush.xpose.msra.mxu0 %v2493
      %3416 = vmatpush.xpose.msra.mxu0 %v2492
      %3417 = vmatpush.xpose.msra.mxu0 %v2491
      %3418 = vmatpush.xpose.msra.mxu0 %v2490
      %3419 = vmatpush.xpose.msra.mxu0 %v2489
      %3420 = vmatpush.xpose.msra.mxu0 %v2488
      %3421 = vmatpush.xpose.msra.mxu0 %v2487
      %3422 = vmatmul.f32.gmra.mxu0 %v3275
      %v3423 = vpop.f32.mrf.mxu0
      %v3424 = vadd.f32 %v250, %v3423
      %3425 = vmatmul.f32.gmra.mxu0 %v3276
      %v3426 = vpop.f32.mrf.mxu0
      %v3427 = vadd.f32 %v250, %v3426
      %3428 = vmatmul.f32.gmra.mxu0 %v3277
      %v3429 = vpop.f32.mrf.mxu0
      %v3430 = vadd.f32 %v250, %v3429
      %3431 = vmatmul.f32.gmra.mxu0 %v3278
      %v3432 = vpop.f32.mrf.mxu0
      %v3433 = vadd.f32 %v250, %v3432
      %3434 = vmatmul.f32.gmra.mxu0 %v3279
      %v3435 = vpop.f32.mrf.mxu0
      %v3436 = vadd.f32 %v250, %v3435
      %3437 = vmatmul.f32.gmra.mxu0 %v3280
      %v3438 = vpop.f32.mrf.mxu0
      %v3439 = vadd.f32 %v250, %v3438
      %3440 = vmatmul.f32.gmra.mxu0 %v3281
      %v3441 = vpop.f32.mrf.mxu0
      %v3442 = vadd.f32 %v250, %v3441
      %3443 = vmatmul.f32.gmra.mxu0 %v3282
      %v3444 = vpop.f32.mrf.mxu0
      %v3445 = vadd.f32 %v250, %v3444
      %3446 = vdwg.mxu0
      %v3447 = vmax.f32 %v3301, 0.0
      %v3448 = vmax.f32 %v3342, 0.0
      %v3449 = vmax.f32 %v3383, 0.0
      %v3450 = vmax.f32 %v3424, 0.0
      %v3451 = vmax.f32 %v3304, 0.0
      %v3452 = vmax.f32 %v3345, 0.0
      %v3453 = vmax.f32 %v3386, 0.0
      %v3454 = vmax.f32 %v3427, 0.0
      %v3455 = vmax.f32 %v3307, 0.0
      %v3456 = vmax.f32 %v3348, 0.0
      %v3457 = vmax.f32 %v3389, 0.0
      %v3458 = vmax.f32 %v3430, 0.0
      %v3459 = vmax.f32 %v3310, 0.0
      %v3460 = vmax.f32 %v3351, 0.0
      %v3461 = vmax.f32 %v3392, 0.0
      %v3462 = vmax.f32 %v3433, 0.0
      %v3463 = vmax.f32 %v3313, 0.0
      %v3464 = vmax.f32 %v3354, 0.0
      %v3465 = vmax.f32 %v3395, 0.0
      %v3466 = vmax.f32 %v3436, 0.0
      %v3467 = vmax.f32 %v3316, 0.0
      %v3468 = vmax.f32 %v3357, 0.0
      %v3469 = vmax.f32 %v3398, 0.0
      %v3470 = vmax.f32 %v3439, 0.0
      %v3471 = vmax.f32 %v3319, 0.0
      %v3472 = vmax.f32 %v3360, 0.0
      %v3473 = vmax.f32 %v3401, 0.0
      %v3474 = vmax.f32 %v3442, 0.0
      %v3475 = vmax.f32 %v3322, 0.0
      %v3476 = vmax.f32 %v3363, 0.0
      %v3477 = vmax.f32 %v3404, 0.0
      %v3478 = vmax.f32 %v3445, 0.0
      %v3479 = vadd.f32 %v3447, %v3451
      %v3480 = vadd.f32 %v3479, %v3455
      %v3481 = vadd.f32 %v3480, %v3459
      %v3482 = vadd.f32 %v3481, %v3463
      %v3483 = vadd.f32 %v3482, %v3467
      %v3484 = vadd.f32 %v3483, %v3471
      %v3485 = vadd.f32 %v3484, %v3475
      %v3486 = vrot.slane %v3485, 4
      %v3487 = vadd.f32 %v3485, %v3486
      %v3488 = vrot.slane %v3487, 2
      %v3489 = vadd.f32 %v3487, %v3488
      %v3490 = vrot.slane %v3489, 1
      %v3491 = vadd.f32 %v3489, %v3490
      %v3492 = vadd.f32 %v3448, %v3452
      %v3493 = vadd.f32 %v3492, %v3456
      %v3494 = vadd.f32 %v3493, %v3460
      %v3495 = vadd.f32 %v3494, %v3464
      %v3496 = vadd.f32 %v3495, %v3468
      %v3497 = vadd.f32 %v3496, %v3472
      %v3498 = vadd.f32 %v3497, %v3476
      %v3499 = vrot.slane %v3498, 4
      %v3500 = vadd.f32 %v3498, %v3499
      %v3501 = vrot.slane %v3500, 2
      %v3502 = vadd.f32 %v3500, %v3501
      %v3503 = vrot.slane %v3502, 1
      %v3504 = vadd.f32 %v3502, %v3503
      %v3505 = vadd.f32 %v3449, %v3453
      %v3506 = vadd.f32 %v3505, %v3457
      %v3507 = vadd.f32 %v3506, %v3461
      %v3508 = vadd.f32 %v3507, %v3465
      %v3509 = vadd.f32 %v3508, %v3469
      %v3510 = vadd.f32 %v3509, %v3473
      %v3511 = vadd.f32 %v3510, %v3477
      %v3512 = vrot.slane %v3511, 4
      %v3513 = vadd.f32 %v3511, %v3512
      %v3514 = vrot.slane %v3513, 2
      %v3515 = vadd.f32 %v3513, %v3514
      %v3516 = vrot.slane %v3515, 1
      %v3517 = vadd.f32 %v3515, %v3516
      %v3518 = vadd.f32 %v3450, %v3454
      %v3519 = vadd.f32 %v3518, %v3458
      %v3520 = vadd.f32 %v3519, %v3462
      %v3521 = vadd.f32 %v3520, %v3466
      %v3522 = vadd.f32 %v3521, %v3470
      %v3523 = vadd.f32 %v3522, %v3474
      %v3524 = vadd.f32 %v3523, %v3478
      %v3525 = vrot.slane %v3524, 4
      %v3526 = vadd.f32 %v3524, %v3525
      %v3527 = vrot.slane %v3526, 2
      %v3528 = vadd.f32 %v3526, %v3527
      %v3529 = vrot.slane %v3528, 1
      %v3530 = vadd.f32 %v3528, %v3529
      %v3531 = vadd.f32 %v3271, %v3491
      %v3532 = vadd.f32 %v3272, %v3504
      %v3533 = vadd.f32 %v3273, %v3517
      %v3534 = vadd.f32 %v3274, %v3530
      %v3535 = vmul.f32 %v3531, 0.00390625
      %v3536 = vmul.f32 %v3532, 0.00390625
      %v3537 = vmul.f32 %v3533, 0.00390625
      %v3538 = vmul.f32 %v3534, 0.00390625
      %v3543 = vrot.slane %v3536, 7
      %v3544 = vrot.slane %v3537, 6
      %v3545 = vrot.slane %v3538, 5
      %v3546 = vsel %vm1298, %v3535, %v3543
      %v3547 = vsel %vm1300, %v3544, %v3545
      %v3548 = vsel %vm1302, %v3546, %v3547
      %s3550 = scalar_lea.vmem %s172, 2
      %3551 = vst.msk [vmem:[%s3550] ss:$4 sm:$0xf] %vm1308, %v3548
      %v3552 = vld [vmem:[%s166 + $0x300] sm:$0xff]
      %v3553 = vld [vmem:[%s166 + $0x308] sm:$0xff]
      %v3554 = vld [vmem:[%s166 + $0x310] sm:$0xff]
      %v3555 = vld [vmem:[%s166 + $0x318] sm:$0xff]
      %v3556 = vld [vmem:[%s166 + $0x320] sm:$0xff]
      %v3557 = vld [vmem:[%s166 + $0x328] sm:$0xff]
      %v3558 = vld [vmem:[%s166 + $0x330] sm:$0xff]
      %v3559 = vld [vmem:[%s166 + $0x338] sm:$0xff]
      %v3560 = vld [vmem:[%s1] sm:$0xff]
      %v3561 = vld [vmem:[%s1 + $0x8] sm:$0xff]
      %v3562 = vld [vmem:[%s1 + $0x10] sm:$0xff]
      %v3563 = vld [vmem:[%s1 + $0x18] sm:$0xff]
      %v3564 = vld [vmem:[%s1 + $0x20] sm:$0xff]
      %v3565 = vld [vmem:[%s1 + $0x28] sm:$0xff]
      %v3566 = vld [vmem:[%s1 + $0x30] sm:$0xff]
      %v3567 = vld [vmem:[%s1 + $0x38] sm:$0xff]
      %v3568 = vld [vmem:[%s1 + $0x40] sm:$0xff]
      %v3569 = vld [vmem:[%s1 + $0x48] sm:$0xff]
      %v3570 = vld [vmem:[%s1 + $0x50] sm:$0xff]
      %v3571 = vld [vmem:[%s1 + $0x58] sm:$0xff]
      %v3572 = vld [vmem:[%s1 + $0x60] sm:$0xff]
      %v3573 = vld [vmem:[%s1 + $0x68] sm:$0xff]
      %v3574 = vld [vmem:[%s1 + $0x70] sm:$0xff]
      %v3575 = vld [vmem:[%s1 + $0x78] sm:$0xff]
      %v3576 = vld [vmem:[%s1 + $0x80] sm:$0xff]
      %v3577 = vld [vmem:[%s1 + $0x88] sm:$0xff]
      %v3578 = vld [vmem:[%s1 + $0x90] sm:$0xff]
      %v3579 = vld [vmem:[%s1 + $0x98] sm:$0xff]
      %v3580 = vld [vmem:[%s1 + $0xa0] sm:$0xff]
      %v3581 = vld [vmem:[%s1 + $0xa8] sm:$0xff]
      %v3582 = vld [vmem:[%s1 + $0xb0] sm:$0xff]
      %v3583 = vld [vmem:[%s1 + $0xb8] sm:$0xff]
      %v3584 = vld [vmem:[%s1 + $0xc0] sm:$0xff]
      %v3585 = vld [vmem:[%s1 + $0xc8] sm:$0xff]
      %v3586 = vld [vmem:[%s1 + $0xd0] sm:$0xff]
      %v3587 = vld [vmem:[%s1 + $0xd8] sm:$0xff]
      %v3588 = vld [vmem:[%s1 + $0xe0] sm:$0xff]
      %v3589 = vld [vmem:[%s1 + $0xe8] sm:$0xff]
      %v3590 = vld [vmem:[%s1 + $0xf0] sm:$0xff]
      %v3591 = vld [vmem:[%s1 + $0xf8] sm:$0xff]
      %v3592 = vld [vmem:[%s1 + $0x100] sm:$0xff]
      %v3593 = vld [vmem:[%s1 + $0x108] sm:$0xff]
      %v3594 = vld [vmem:[%s1 + $0x110] sm:$0xff]
      %v3595 = vld [vmem:[%s1 + $0x118] sm:$0xff]
      %v3596 = vld [vmem:[%s1 + $0x120] sm:$0xff]
      %v3597 = vld [vmem:[%s1 + $0x128] sm:$0xff]
      %v3598 = vld [vmem:[%s1 + $0x130] sm:$0xff]
      %v3599 = vld [vmem:[%s1 + $0x138] sm:$0xff]
      %v3600 = vld [vmem:[%s1 + $0x140] sm:$0xff]
      %v3601 = vld [vmem:[%s1 + $0x148] sm:$0xff]
      %v3602 = vld [vmem:[%s1 + $0x150] sm:$0xff]
      %v3603 = vld [vmem:[%s1 + $0x158] sm:$0xff]
      %v3604 = vld [vmem:[%s1 + $0x160] sm:$0xff]
      %v3605 = vld [vmem:[%s1 + $0x168] sm:$0xff]
      %v3606 = vld [vmem:[%s1 + $0x170] sm:$0xff]
      %v3607 = vld [vmem:[%s1 + $0x178] sm:$0xff]
      %v3608 = vld [vmem:[%s1 + $0x180] sm:$0xff]
      %v3609 = vld [vmem:[%s1 + $0x188] sm:$0xff]
      %v3610 = vld [vmem:[%s1 + $0x190] sm:$0xff]
      %v3611 = vld [vmem:[%s1 + $0x198] sm:$0xff]
      %v3612 = vld [vmem:[%s1 + $0x1a0] sm:$0xff]
      %v3613 = vld [vmem:[%s1 + $0x1a8] sm:$0xff]
      %v3614 = vld [vmem:[%s1 + $0x1b0] sm:$0xff]
      %v3615 = vld [vmem:[%s1 + $0x1b8] sm:$0xff]
      %v3616 = vld [vmem:[%s1 + $0x1c0] sm:$0xff]
      %v3617 = vld [vmem:[%s1 + $0x1c8] sm:$0xff]
      %v3618 = vld [vmem:[%s1 + $0x1d0] sm:$0xff]
      %v3619 = vld [vmem:[%s1 + $0x1d8] sm:$0xff]
      %v3620 = vld [vmem:[%s1 + $0x1e0] sm:$0xff]
      %v3621 = vld [vmem:[%s1 + $0x1e8] sm:$0xff]
      %v3622 = vld [vmem:[%s1 + $0x1f0] sm:$0xff]
      %v3623 = vld [vmem:[%s1 + $0x1f8] sm:$0xff]
      %3624 = vmatpush.xpose.msra.mxu0 %v3575
      %3625 = vmatpush.xpose.msra.mxu0 %v3574
      %3626 = vmatpush.xpose.msra.mxu0 %v3573
      %3627 = vmatpush.xpose.msra.mxu0 %v3572
      %3628 = vmatpush.xpose.msra.mxu0 %v3571
      %3629 = vmatpush.xpose.msra.mxu0 %v3570
      %3630 = vmatpush.xpose.msra.mxu0 %v3569
      %3631 = vmatpush.xpose.msra.mxu0 %v3568
      %3632 = vmatpush.xpose.msra.mxu0 %v3567
      %3633 = vmatpush.xpose.msra.mxu0 %v3566
      %3634 = vmatpush.xpose.msra.mxu0 %v3565
      %3635 = vmatpush.xpose.msra.mxu0 %v3564
      %3636 = vmatpush.xpose.msra.mxu0 %v3563
      %3637 = vmatpush.xpose.msra.mxu0 %v3562
      %3638 = vmatpush.xpose.msra.mxu0 %v3561
      %3639 = vmatpush.xpose.msra.mxu0 %v3560
      %3640 = vmatmul.f32.gmra.mxu0 %v3552
      %v3641 = vpop.f32.mrf.mxu0
      %v3642 = vadd.f32 %v247, %v3641
      %3643 = vmatmul.f32.gmra.mxu0 %v3553
      %v3644 = vpop.f32.mrf.mxu0
      %v3645 = vadd.f32 %v247, %v3644
      %3646 = vmatmul.f32.gmra.mxu0 %v3554
      %v3647 = vpop.f32.mrf.mxu0
      %v3648 = vadd.f32 %v247, %v3647
      %3649 = vmatmul.f32.gmra.mxu0 %v3555
      %v3650 = vpop.f32.mrf.mxu0
      %v3651 = vadd.f32 %v247, %v3650
      %3652 = vmatmul.f32.gmra.mxu0 %v3556
      %v3653 = vpop.f32.mrf.mxu0
      %v3654 = vadd.f32 %v247, %v3653
      %3655 = vmatmul.f32.gmra.mxu0 %v3557
      %v3656 = vpop.f32.mrf.mxu0
      %v3657 = vadd.f32 %v247, %v3656
      %3658 = vmatmul.f32.gmra.mxu0 %v3558
      %v3659 = vpop.f32.mrf.mxu0
      %v3660 = vadd.f32 %v247, %v3659
      %3661 = vmatmul.f32.gmra.mxu0 %v3559
      %v3662 = vpop.f32.mrf.mxu0
      %v3663 = vadd.f32 %v247, %v3662
      %3664 = vdwg.mxu0
      %3665 = vmatpush.xpose.msra.mxu0 %v3591
      %3666 = vmatpush.xpose.msra.mxu0 %v3590
      %3667 = vmatpush.xpose.msra.mxu0 %v3589
      %3668 = vmatpush.xpose.msra.mxu0 %v3588
      %3669 = vmatpush.xpose.msra.mxu0 %v3587
      %3670 = vmatpush.xpose.msra.mxu0 %v3586
      %3671 = vmatpush.xpose.msra.mxu0 %v3585
      %3672 = vmatpush.xpose.msra.mxu0 %v3584
      %3673 = vmatpush.xpose.msra.mxu0 %v3583
      %3674 = vmatpush.xpose.msra.mxu0 %v3582
      %3675 = vmatpush.xpose.msra.mxu0 %v3581
      %3676 = vmatpush.xpose.msra.mxu0 %v3580
      %3677 = vmatpush.xpose.msra.mxu0 %v3579
      %3678 = vmatpush.xpose.msra.mxu0 %v3578
      %3679 = vmatpush.xpose.msra.mxu0 %v3577
      %3680 = vmatpush.xpose.msra.mxu0 %v3576
      %3681 = vmatmul.f32.gmra.mxu0 %v3552
      %v3682 = vpop.f32.mrf.mxu0
      %v3683 = vadd.f32 %v248, %v3682
      %3684 = vmatmul.f32.gmra.mxu0 %v3553
      %v3685 = vpop.f32.mrf.mxu0
      %v3686 = vadd.f32 %v248, %v3685
      %3687 = vmatmul.f32.gmra.mxu0 %v3554
      %v3688 = vpop.f32.mrf.mxu0
      %v3689 = vadd.f32 %v248, %v3688
      %3690 = vmatmul.f32.gmra.mxu0 %v3555
      %v3691 = vpop.f32.mrf.mxu0
      %v3692 = vadd.f32 %v248, %v3691
      %3693 = vmatmul.f32.gmra.mxu0 %v3556
      %v3694 = vpop.f32.mrf.mxu0
      %v3695 = vadd.f32 %v248, %v3694
      %3696 = vmatmul.f32.gmra.mxu0 %v3557
      %v3697 = vpop.f32.mrf.mxu0
      %v3698 = vadd.f32 %v248, %v3697
      %3699 = vmatmul.f32.gmra.mxu0 %v3558
      %v3700 = vpop.f32.mrf.mxu0
      %v3701 = vadd.f32 %v248, %v3700
      %3702 = vmatmul.f32.gmra.mxu0 %v3559
      %v3703 = vpop.f32.mrf.mxu0
      %v3704 = vadd.f32 %v248, %v3703
      %3705 = vdwg.mxu0
      %3706 = vmatpush.xpose.msra.mxu0 %v3607
      %3707 = vmatpush.xpose.msra.mxu0 %v3606
      %3708 = vmatpush.xpose.msra.mxu0 %v3605
      %3709 = vmatpush.xpose.msra.mxu0 %v3604
      %3710 = vmatpush.xpose.msra.mxu0 %v3603
      %3711 = vmatpush.xpose.msra.mxu0 %v3602
      %3712 = vmatpush.xpose.msra.mxu0 %v3601
      %3713 = vmatpush.xpose.msra.mxu0 %v3600
      %3714 = vmatpush.xpose.msra.mxu0 %v3599
      %3715 = vmatpush.xpose.msra.mxu0 %v3598
      %3716 = vmatpush.xpose.msra.mxu0 %v3597
      %3717 = vmatpush.xpose.msra.mxu0 %v3596
      %3718 = vmatpush.xpose.msra.mxu0 %v3595
      %3719 = vmatpush.xpose.msra.mxu0 %v3594
      %3720 = vmatpush.xpose.msra.mxu0 %v3593
      %3721 = vmatpush.xpose.msra.mxu0 %v3592
      %3722 = vmatmul.f32.gmra.mxu0 %v3552
      %v3723 = vpop.f32.mrf.mxu0
      %v3724 = vadd.f32 %v249, %v3723
      %3725 = vmatmul.f32.gmra.mxu0 %v3553
      %v3726 = vpop.f32.mrf.mxu0
      %v3727 = vadd.f32 %v249, %v3726
      %3728 = vmatmul.f32.gmra.mxu0 %v3554
      %v3729 = vpop.f32.mrf.mxu0
      %v3730 = vadd.f32 %v249, %v3729
      %3731 = vmatmul.f32.gmra.mxu0 %v3555
      %v3732 = vpop.f32.mrf.mxu0
      %v3733 = vadd.f32 %v249, %v3732
      %3734 = vmatmul.f32.gmra.mxu0 %v3556
      %v3735 = vpop.f32.mrf.mxu0
      %v3736 = vadd.f32 %v249, %v3735
      %3737 = vmatmul.f32.gmra.mxu0 %v3557
      %v3738 = vpop.f32.mrf.mxu0
      %v3739 = vadd.f32 %v249, %v3738
      %3740 = vmatmul.f32.gmra.mxu0 %v3558
      %v3741 = vpop.f32.mrf.mxu0
      %v3742 = vadd.f32 %v249, %v3741
      %3743 = vmatmul.f32.gmra.mxu0 %v3559
      %v3744 = vpop.f32.mrf.mxu0
      %v3745 = vadd.f32 %v249, %v3744
      %3746 = vdwg.mxu0
      %3747 = vmatpush.xpose.msra.mxu0 %v3623
      %3748 = vmatpush.xpose.msra.mxu0 %v3622
      %3749 = vmatpush.xpose.msra.mxu0 %v3621
      %3750 = vmatpush.xpose.msra.mxu0 %v3620
      %3751 = vmatpush.xpose.msra.mxu0 %v3619
      %3752 = vmatpush.xpose.msra.mxu0 %v3618
      %3753 = vmatpush.xpose.msra.mxu0 %v3617
      %3754 = vmatpush.xpose.msra.mxu0 %v3616
      %3755 = vmatpush.xpose.msra.mxu0 %v3615
      %3756 = vmatpush.xpose.msra.mxu0 %v3614
      %3757 = vmatpush.xpose.msra.mxu0 %v3613
      %3758 = vmatpush.xpose.msra.mxu0 %v3612
      %3759 = vmatpush.xpose.msra.mxu0 %v3611
      %3760 = vmatpush.xpose.msra.mxu0 %v3610
      %3761 = vmatpush.xpose.msra.mxu0 %v3609
      %3762 = vmatpush.xpose.msra.mxu0 %v3608
      %3763 = vmatmul.f32.gmra.mxu0 %v3552
      %v3764 = vpop.f32.mrf.mxu0
      %v3765 = vadd.f32 %v250, %v3764
      %3766 = vmatmul.f32.gmra.mxu0 %v3553
      %v3767 = vpop.f32.mrf.mxu0
      %v3768 = vadd.f32 %v250, %v3767
      %3769 = vmatmul.f32.gmra.mxu0 %v3554
      %v3770 = vpop.f32.mrf.mxu0
      %v3771 = vadd.f32 %v250, %v3770
      %3772 = vmatmul.f32.gmra.mxu0 %v3555
      %v3773 = vpop.f32.mrf.mxu0
      %v3774 = vadd.f32 %v250, %v3773
      %3775 = vmatmul.f32.gmra.mxu0 %v3556
      %v3776 = vpop.f32.mrf.mxu0
      %v3777 = vadd.f32 %v250, %v3776
      %3778 = vmatmul.f32.gmra.mxu0 %v3557
      %v3779 = vpop.f32.mrf.mxu0
      %v3780 = vadd.f32 %v250, %v3779
      %3781 = vmatmul.f32.gmra.mxu0 %v3558
      %v3782 = vpop.f32.mrf.mxu0
      %v3783 = vadd.f32 %v250, %v3782
      %3784 = vmatmul.f32.gmra.mxu0 %v3559
      %v3785 = vpop.f32.mrf.mxu0
      %v3786 = vadd.f32 %v250, %v3785
      %3787 = vdwg.mxu0
      %v3788 = vmax.f32 %v3642, 0.0
      %v3789 = vmax.f32 %v3683, 0.0
      %v3790 = vmax.f32 %v3724, 0.0
      %v3791 = vmax.f32 %v3765, 0.0
      %v3792 = vmax.f32 %v3645, 0.0
      %v3793 = vmax.f32 %v3686, 0.0
      %v3794 = vmax.f32 %v3727, 0.0
      %v3795 = vmax.f32 %v3768, 0.0
      %v3796 = vmax.f32 %v3648, 0.0
      %v3797 = vmax.f32 %v3689, 0.0
      %v3798 = vmax.f32 %v3730, 0.0
      %v3799 = vmax.f32 %v3771, 0.0
      %v3800 = vmax.f32 %v3651, 0.0
      %v3801 = vmax.f32 %v3692, 0.0
      %v3802 = vmax.f32 %v3733, 0.0
      %v3803 = vmax.f32 %v3774, 0.0
      %v3804 = vmax.f32 %v3654, 0.0
      %v3805 = vmax.f32 %v3695, 0.0
      %v3806 = vmax.f32 %v3736, 0.0
      %v3807 = vmax.f32 %v3777, 0.0
      %v3808 = vmax.f32 %v3657, 0.0
      %v3809 = vmax.f32 %v3698, 0.0
      %v3810 = vmax.f32 %v3739, 0.0
      %v3811 = vmax.f32 %v3780, 0.0
      %v3812 = vmax.f32 %v3660, 0.0
      %v3813 = vmax.f32 %v3701, 0.0
      %v3814 = vmax.f32 %v3742, 0.0
      %v3815 = vmax.f32 %v3783, 0.0
      %v3816 = vmax.f32 %v3663, 0.0
      %v3817 = vmax.f32 %v3704, 0.0
      %v3818 = vmax.f32 %v3745, 0.0
      %v3819 = vmax.f32 %v3786, 0.0
      %v3820 = vadd.f32 %v3788, %v3792
      %v3821 = vadd.f32 %v3820, %v3796
      %v3822 = vadd.f32 %v3821, %v3800
      %v3823 = vadd.f32 %v3822, %v3804
      %v3824 = vadd.f32 %v3823, %v3808
      %v3825 = vadd.f32 %v3824, %v3812
      %v3826 = vadd.f32 %v3825, %v3816
      %v3827 = vrot.slane %v3826, 4
      %v3828 = vadd.f32 %v3826, %v3827
      %v3829 = vrot.slane %v3828, 2
      %v3830 = vadd.f32 %v3828, %v3829
      %v3831 = vrot.slane %v3830, 1
      %v3832 = vadd.f32 %v3830, %v3831
      %v3833 = vadd.f32 %v3789, %v3793
      %v3834 = vadd.f32 %v3833, %v3797
      %v3835 = vadd.f32 %v3834, %v3801
      %v3836 = vadd.f32 %v3835, %v3805
      %v3837 = vadd.f32 %v3836, %v3809
      %v3838 = vadd.f32 %v3837, %v3813
      %v3839 = vadd.f32 %v3838, %v3817
      %v3840 = vrot.slane %v3839, 4
      %v3841 = vadd.f32 %v3839, %v3840
      %v3842 = vrot.slane %v3841, 2
      %v3843 = vadd.f32 %v3841, %v3842
      %v3844 = vrot.slane %v3843, 1
      %v3845 = vadd.f32 %v3843, %v3844
      %v3846 = vadd.f32 %v3790, %v3794
      %v3847 = vadd.f32 %v3846, %v3798
      %v3848 = vadd.f32 %v3847, %v3802
      %v3849 = vadd.f32 %v3848, %v3806
      %v3850 = vadd.f32 %v3849, %v3810
      %v3851 = vadd.f32 %v3850, %v3814
      %v3852 = vadd.f32 %v3851, %v3818
      %v3853 = vrot.slane %v3852, 4
      %v3854 = vadd.f32 %v3852, %v3853
      %v3855 = vrot.slane %v3854, 2
      %v3856 = vadd.f32 %v3854, %v3855
      %v3857 = vrot.slane %v3856, 1
      %v3858 = vadd.f32 %v3856, %v3857
      %v3859 = vadd.f32 %v3791, %v3795
      %v3860 = vadd.f32 %v3859, %v3799
      %v3861 = vadd.f32 %v3860, %v3803
      %v3862 = vadd.f32 %v3861, %v3807
      %v3863 = vadd.f32 %v3862, %v3811
      %v3864 = vadd.f32 %v3863, %v3815
      %v3865 = vadd.f32 %v3864, %v3819
      %v3866 = vrot.slane %v3865, 4
      %v3867 = vadd.f32 %v3865, %v3866
      %v3868 = vrot.slane %v3867, 2
      %v3869 = vadd.f32 %v3867, %v3868
      %v3870 = vrot.slane %v3869, 1
      %v3871 = vadd.f32 %v3869, %v3870
      %v3872 = vadd.f32 %v3832, 0.0
      %v3873 = vadd.f32 %v3845, 0.0
      %v3874 = vadd.f32 %v3858, 0.0
      %v3875 = vadd.f32 %v3871, 0.0
      %v3876 = vld [vmem:[%s166 + $0x340] sm:$0xff]
      %v3877 = vld [vmem:[%s166 + $0x348] sm:$0xff]
      %v3878 = vld [vmem:[%s166 + $0x350] sm:$0xff]
      %v3879 = vld [vmem:[%s166 + $0x358] sm:$0xff]
      %v3880 = vld [vmem:[%s166 + $0x360] sm:$0xff]
      %v3881 = vld [vmem:[%s166 + $0x368] sm:$0xff]
      %v3882 = vld [vmem:[%s166 + $0x370] sm:$0xff]
      %v3883 = vld [vmem:[%s166 + $0x378] sm:$0xff]
      %3884 = vmatpush.xpose.msra.mxu0 %v3575
      %3885 = vmatpush.xpose.msra.mxu0 %v3574
      %3886 = vmatpush.xpose.msra.mxu0 %v3573
      %3887 = vmatpush.xpose.msra.mxu0 %v3572
      %3888 = vmatpush.xpose.msra.mxu0 %v3571
      %3889 = vmatpush.xpose.msra.mxu0 %v3570
      %3890 = vmatpush.xpose.msra.mxu0 %v3569
      %3891 = vmatpush.xpose.msra.mxu0 %v3568
      %3892 = vmatpush.xpose.msra.mxu0 %v3567
      %3893 = vmatpush.xpose.msra.mxu0 %v3566
      %3894 = vmatpush.xpose.msra.mxu0 %v3565
      %3895 = vmatpush.xpose.msra.mxu0 %v3564
      %3896 = vmatpush.xpose.msra.mxu0 %v3563
      %3897 = vmatpush.xpose.msra.mxu0 %v3562
      %3898 = vmatpush.xpose.msra.mxu0 %v3561
      %3899 = vmatpush.xpose.msra.mxu0 %v3560
      %3900 = vmatmul.f32.gmra.mxu0 %v3876
      %v3901 = vpop.f32.mrf.mxu0
      %v3902 = vadd.f32 %v247, %v3901
      %3903 = vmatmul.f32.gmra.mxu0 %v3877
      %v3904 = vpop.f32.mrf.mxu0
      %v3905 = vadd.f32 %v247, %v3904
      %3906 = vmatmul.f32.gmra.mxu0 %v3878
      %v3907 = vpop.f32.mrf.mxu0
      %v3908 = vadd.f32 %v247, %v3907
      %3909 = vmatmul.f32.gmra.mxu0 %v3879
      %v3910 = vpop.f32.mrf.mxu0
      %v3911 = vadd.f32 %v247, %v3910
      %3912 = vmatmul.f32.gmra.mxu0 %v3880
      %v3913 = vpop.f32.mrf.mxu0
      %v3914 = vadd.f32 %v247, %v3913
      %3915 = vmatmul.f32.gmra.mxu0 %v3881
      %v3916 = vpop.f32.mrf.mxu0
      %v3917 = vadd.f32 %v247, %v3916
      %3918 = vmatmul.f32.gmra.mxu0 %v3882
      %v3919 = vpop.f32.mrf.mxu0
      %v3920 = vadd.f32 %v247, %v3919
      %3921 = vmatmul.f32.gmra.mxu0 %v3883
      %v3922 = vpop.f32.mrf.mxu0
      %v3923 = vadd.f32 %v247, %v3922
      %3924 = vdwg.mxu0
      %3925 = vmatpush.xpose.msra.mxu0 %v3591
      %3926 = vmatpush.xpose.msra.mxu0 %v3590
      %3927 = vmatpush.xpose.msra.mxu0 %v3589
      %3928 = vmatpush.xpose.msra.mxu0 %v3588
      %3929 = vmatpush.xpose.msra.mxu0 %v3587
      %3930 = vmatpush.xpose.msra.mxu0 %v3586
      %3931 = vmatpush.xpose.msra.mxu0 %v3585
      %3932 = vmatpush.xpose.msra.mxu0 %v3584
      %3933 = vmatpush.xpose.msra.mxu0 %v3583
      %3934 = vmatpush.xpose.msra.mxu0 %v3582
      %3935 = vmatpush.xpose.msra.mxu0 %v3581
      %3936 = vmatpush.xpose.msra.mxu0 %v3580
      %3937 = vmatpush.xpose.msra.mxu0 %v3579
      %3938 = vmatpush.xpose.msra.mxu0 %v3578
      %3939 = vmatpush.xpose.msra.mxu0 %v3577
      %3940 = vmatpush.xpose.msra.mxu0 %v3576
      %3941 = vmatmul.f32.gmra.mxu0 %v3876
      %v3942 = vpop.f32.mrf.mxu0
      %v3943 = vadd.f32 %v248, %v3942
      %3944 = vmatmul.f32.gmra.mxu0 %v3877
      %v3945 = vpop.f32.mrf.mxu0
      %v3946 = vadd.f32 %v248, %v3945
      %3947 = vmatmul.f32.gmra.mxu0 %v3878
      %v3948 = vpop.f32.mrf.mxu0
      %v3949 = vadd.f32 %v248, %v3948
      %3950 = vmatmul.f32.gmra.mxu0 %v3879
      %v3951 = vpop.f32.mrf.mxu0
      %v3952 = vadd.f32 %v248, %v3951
      %3953 = vmatmul.f32.gmra.mxu0 %v3880
      %v3954 = vpop.f32.mrf.mxu0
      %v3955 = vadd.f32 %v248, %v3954
      %3956 = vmatmul.f32.gmra.mxu0 %v3881
      %v3957 = vpop.f32.mrf.mxu0
      %v3958 = vadd.f32 %v248, %v3957
      %3959 = vmatmul.f32.gmra.mxu0 %v3882
      %v3960 = vpop.f32.mrf.mxu0
      %v3961 = vadd.f32 %v248, %v3960
      %3962 = vmatmul.f32.gmra.mxu0 %v3883
      %v3963 = vpop.f32.mrf.mxu0
      %v3964 = vadd.f32 %v248, %v3963
      %3965 = vdwg.mxu0
      %3966 = vmatpush.xpose.msra.mxu0 %v3607
      %3967 = vmatpush.xpose.msra.mxu0 %v3606
      %3968 = vmatpush.xpose.msra.mxu0 %v3605
      %3969 = vmatpush.xpose.msra.mxu0 %v3604
      %3970 = vmatpush.xpose.msra.mxu0 %v3603
      %3971 = vmatpush.xpose.msra.mxu0 %v3602
      %3972 = vmatpush.xpose.msra.mxu0 %v3601
      %3973 = vmatpush.xpose.msra.mxu0 %v3600
      %3974 = vmatpush.xpose.msra.mxu0 %v3599
      %3975 = vmatpush.xpose.msra.mxu0 %v3598
      %3976 = vmatpush.xpose.msra.mxu0 %v3597
      %3977 = vmatpush.xpose.msra.mxu0 %v3596
      %3978 = vmatpush.xpose.msra.mxu0 %v3595
      %3979 = vmatpush.xpose.msra.mxu0 %v3594
      %3980 = vmatpush.xpose.msra.mxu0 %v3593
      %3981 = vmatpush.xpose.msra.mxu0 %v3592
      %3982 = vmatmul.f32.gmra.mxu0 %v3876
      %v3983 = vpop.f32.mrf.mxu0
      %v3984 = vadd.f32 %v249, %v3983
      %3985 = vmatmul.f32.gmra.mxu0 %v3877
      %v3986 = vpop.f32.mrf.mxu0
      %v3987 = vadd.f32 %v249, %v3986
      %3988 = vmatmul.f32.gmra.mxu0 %v3878
      %v3989 = vpop.f32.mrf.mxu0
      %v3990 = vadd.f32 %v249, %v3989
      %3991 = vmatmul.f32.gmra.mxu0 %v3879
      %v3992 = vpop.f32.mrf.mxu0
      %v3993 = vadd.f32 %v249, %v3992
      %3994 = vmatmul.f32.gmra.mxu0 %v3880
      %v3995 = vpop.f32.mrf.mxu0
      %v3996 = vadd.f32 %v249, %v3995
      %3997 = vmatmul.f32.gmra.mxu0 %v3881
      %v3998 = vpop.f32.mrf.mxu0
      %v3999 = vadd.f32 %v249, %v3998
      %4000 = vmatmul.f32.gmra.mxu0 %v3882
      %v4001 = vpop.f32.mrf.mxu0
      %v4002 = vadd.f32 %v249, %v4001
      %4003 = vmatmul.f32.gmra.mxu0 %v3883
      %v4004 = vpop.f32.mrf.mxu0
      %v4005 = vadd.f32 %v249, %v4004
      %4006 = vdwg.mxu0
      %4007 = vmatpush.xpose.msra.mxu0 %v3623
      %4008 = vmatpush.xpose.msra.mxu0 %v3622
      %4009 = vmatpush.xpose.msra.mxu0 %v3621
      %4010 = vmatpush.xpose.msra.mxu0 %v3620
      %4011 = vmatpush.xpose.msra.mxu0 %v3619
      %4012 = vmatpush.xpose.msra.mxu0 %v3618
      %4013 = vmatpush.xpose.msra.mxu0 %v3617
      %4014 = vmatpush.xpose.msra.mxu0 %v3616
      %4015 = vmatpush.xpose.msra.mxu0 %v3615
      %4016 = vmatpush.xpose.msra.mxu0 %v3614
      %4017 = vmatpush.xpose.msra.mxu0 %v3613
      %4018 = vmatpush.xpose.msra.mxu0 %v3612
      %4019 = vmatpush.xpose.msra.mxu0 %v3611
      %4020 = vmatpush.xpose.msra.mxu0 %v3610
      %4021 = vmatpush.xpose.msra.mxu0 %v3609
      %4022 = vmatpush.xpose.msra.mxu0 %v3608
      %4023 = vmatmul.f32.gmra.mxu0 %v3876
      %v4024 = vpop.f32.mrf.mxu0
      %v4025 = vadd.f32 %v250, %v4024
      %4026 = vmatmul.f32.gmra.mxu0 %v3877
      %v4027 = vpop.f32.mrf.mxu0
      %v4028 = vadd.f32 %v250, %v4027
      %4029 = vmatmul.f32.gmra.mxu0 %v3878
      %v4030 = vpop.f32.mrf.mxu0
      %v4031 = vadd.f32 %v250, %v4030
      %4032 = vmatmul.f32.gmra.mxu0 %v3879
      %v4033 = vpop.f32.mrf.mxu0
      %v4034 = vadd.f32 %v250, %v4033
      %4035 = vmatmul.f32.gmra.mxu0 %v3880
      %v4036 = vpop.f32.mrf.mxu0
      %v4037 = vadd.f32 %v250, %v4036
      %4038 = vmatmul.f32.gmra.mxu0 %v3881
      %v4039 = vpop.f32.mrf.mxu0
      %v4040 = vadd.f32 %v250, %v4039
      %4041 = vmatmul.f32.gmra.mxu0 %v3882
      %v4042 = vpop.f32.mrf.mxu0
      %v4043 = vadd.f32 %v250, %v4042
      %4044 = vmatmul.f32.gmra.mxu0 %v3883
      %v4045 = vpop.f32.mrf.mxu0
      %v4046 = vadd.f32 %v250, %v4045
      %4047 = vdwg.mxu0
      %v4048 = vmax.f32 %v3902, 0.0
      %v4049 = vmax.f32 %v3943, 0.0
      %v4050 = vmax.f32 %v3984, 0.0
      %v4051 = vmax.f32 %v4025, 0.0
      %v4052 = vmax.f32 %v3905, 0.0
      %v4053 = vmax.f32 %v3946, 0.0
      %v4054 = vmax.f32 %v3987, 0.0
      %v4055 = vmax.f32 %v4028, 0.0
      %v4056 = vmax.f32 %v3908, 0.0
      %v4057 = vmax.f32 %v3949, 0.0
      %v4058 = vmax.f32 %v3990, 0.0
      %v4059 = vmax.f32 %v4031, 0.0
      %v4060 = vmax.f32 %v3911, 0.0
      %v4061 = vmax.f32 %v3952, 0.0
      %v4062 = vmax.f32 %v3993, 0.0
      %v4063 = vmax.f32 %v4034, 0.0
      %v4064 = vmax.f32 %v3914, 0.0
      %v4065 = vmax.f32 %v3955, 0.0
      %v4066 = vmax.f32 %v3996, 0.0
      %v4067 = vmax.f32 %v4037, 0.0
      %v4068 = vmax.f32 %v3917, 0.0
      %v4069 = vmax.f32 %v3958, 0.0
      %v4070 = vmax.f32 %v3999, 0.0
      %v4071 = vmax.f32 %v4040, 0.0
      %v4072 = vmax.f32 %v3920, 0.0
      %v4073 = vmax.f32 %v3961, 0.0
      %v4074 = vmax.f32 %v4002, 0.0
      %v4075 = vmax.f32 %v4043, 0.0
      %v4076 = vmax.f32 %v3923, 0.0
      %v4077 = vmax.f32 %v3964, 0.0
      %v4078 = vmax.f32 %v4005, 0.0
      %v4079 = vmax.f32 %v4046, 0.0
      %v4080 = vadd.f32 %v4048, %v4052
      %v4081 = vadd.f32 %v4080, %v4056
      %v4082 = vadd.f32 %v4081, %v4060
      %v4083 = vadd.f32 %v4082, %v4064
      %v4084 = vadd.f32 %v4083, %v4068
      %v4085 = vadd.f32 %v4084, %v4072
      %v4086 = vadd.f32 %v4085, %v4076
      %v4087 = vrot.slane %v4086, 4
      %v4088 = vadd.f32 %v4086, %v4087
      %v4089 = vrot.slane %v4088, 2
      %v4090 = vadd.f32 %v4088, %v4089
      %v4091 = vrot.slane %v4090, 1
      %v4092 = vadd.f32 %v4090, %v4091
      %v4093 = vadd.f32 %v4049, %v4053
      %v4094 = vadd.f32 %v4093, %v4057
      %v4095 = vadd.f32 %v4094, %v4061
      %v4096 = vadd.f32 %v4095, %v4065
      %v4097 = vadd.f32 %v4096, %v4069
      %v4098 = vadd.f32 %v4097, %v4073
      %v4099 = vadd.f32 %v4098, %v4077
      %v4100 = vrot.slane %v4099, 4
      %v4101 = vadd.f32 %v4099, %v4100
      %v4102 = vrot.slane %v4101, 2
      %v4103 = vadd.f32 %v4101, %v4102
      %v4104 = vrot.slane %v4103, 1
      %v4105 = vadd.f32 %v4103, %v4104
      %v4106 = vadd.f32 %v4050, %v4054
      %v4107 = vadd.f32 %v4106, %v4058
      %v4108 = vadd.f32 %v4107, %v4062
      %v4109 = vadd.f32 %v4108, %v4066
      %v4110 = vadd.f32 %v4109, %v4070
      %v4111 = vadd.f32 %v4110, %v4074
      %v4112 = vadd.f32 %v4111, %v4078
      %v4113 = vrot.slane %v4112, 4
      %v4114 = vadd.f32 %v4112, %v4113
      %v4115 = vrot.slane %v4114, 2
      %v4116 = vadd.f32 %v4114, %v4115
      %v4117 = vrot.slane %v4116, 1
      %v4118 = vadd.f32 %v4116, %v4117
      %v4119 = vadd.f32 %v4051, %v4055
      %v4120 = vadd.f32 %v4119, %v4059
      %v4121 = vadd.f32 %v4120, %v4063
      %v4122 = vadd.f32 %v4121, %v4067
      %v4123 = vadd.f32 %v4122, %v4071
      %v4124 = vadd.f32 %v4123, %v4075
      %v4125 = vadd.f32 %v4124, %v4079
      %v4126 = vrot.slane %v4125, 4
      %v4127 = vadd.f32 %v4125, %v4126
      %v4128 = vrot.slane %v4127, 2
      %v4129 = vadd.f32 %v4127, %v4128
      %v4130 = vrot.slane %v4129, 1
      %v4131 = vadd.f32 %v4129, %v4130
      %v4132 = vadd.f32 %v3872, %v4092
      %v4133 = vadd.f32 %v3873, %v4105
      %v4134 = vadd.f32 %v3874, %v4118
      %v4135 = vadd.f32 %v3875, %v4131
      %v4136 = vld [vmem:[%s166 + $0x380] sm:$0xff]
      %v4137 = vld [vmem:[%s166 + $0x388] sm:$0xff]
      %v4138 = vld [vmem:[%s166 + $0x390] sm:$0xff]
      %v4139 = vld [vmem:[%s166 + $0x398] sm:$0xff]
      %v4140 = vld [vmem:[%s166 + $0x3a0] sm:$0xff]
      %v4141 = vld [vmem:[%s166 + $0x3a8] sm:$0xff]
      %v4142 = vld [vmem:[%s166 + $0x3b0] sm:$0xff]
      %v4143 = vld [vmem:[%s166 + $0x3b8] sm:$0xff]
      %4144 = vmatpush.xpose.msra.mxu0 %v3575
      %4145 = vmatpush.xpose.msra.mxu0 %v3574
      %4146 = vmatpush.xpose.msra.mxu0 %v3573
      %4147 = vmatpush.xpose.msra.mxu0 %v3572
      %4148 = vmatpush.xpose.msra.mxu0 %v3571
      %4149 = vmatpush.xpose.msra.mxu0 %v3570
      %4150 = vmatpush.xpose.msra.mxu0 %v3569
      %4151 = vmatpush.xpose.msra.mxu0 %v3568
      %4152 = vmatpush.xpose.msra.mxu0 %v3567
      %4153 = vmatpush.xpose.msra.mxu0 %v3566
      %4154 = vmatpush.xpose.msra.mxu0 %v3565
      %4155 = vmatpush.xpose.msra.mxu0 %v3564
      %4156 = vmatpush.xpose.msra.mxu0 %v3563
      %4157 = vmatpush.xpose.msra.mxu0 %v3562
      %4158 = vmatpush.xpose.msra.mxu0 %v3561
      %4159 = vmatpush.xpose.msra.mxu0 %v3560
      %4160 = vmatmul.f32.gmra.mxu0 %v4136
      %v4161 = vpop.f32.mrf.mxu0
      %v4162 = vadd.f32 %v247, %v4161
      %4163 = vmatmul.f32.gmra.mxu0 %v4137
      %v4164 = vpop.f32.mrf.mxu0
      %v4165 = vadd.f32 %v247, %v4164
      %4166 = vmatmul.f32.gmra.mxu0 %v4138
      %v4167 = vpop.f32.mrf.mxu0
      %v4168 = vadd.f32 %v247, %v4167
      %4169 = vmatmul.f32.gmra.mxu0 %v4139
      %v4170 = vpop.f32.mrf.mxu0
      %v4171 = vadd.f32 %v247, %v4170
      %4172 = vmatmul.f32.gmra.mxu0 %v4140
      %v4173 = vpop.f32.mrf.mxu0
      %v4174 = vadd.f32 %v247, %v4173
      %4175 = vmatmul.f32.gmra.mxu0 %v4141
      %v4176 = vpop.f32.mrf.mxu0
      %v4177 = vadd.f32 %v247, %v4176
      %4178 = vmatmul.f32.gmra.mxu0 %v4142
      %v4179 = vpop.f32.mrf.mxu0
      %v4180 = vadd.f32 %v247, %v4179
      %4181 = vmatmul.f32.gmra.mxu0 %v4143
      %v4182 = vpop.f32.mrf.mxu0
      %v4183 = vadd.f32 %v247, %v4182
      %4184 = vdwg.mxu0
      %4185 = vmatpush.xpose.msra.mxu0 %v3591
      %4186 = vmatpush.xpose.msra.mxu0 %v3590
      %4187 = vmatpush.xpose.msra.mxu0 %v3589
      %4188 = vmatpush.xpose.msra.mxu0 %v3588
      %4189 = vmatpush.xpose.msra.mxu0 %v3587
      %4190 = vmatpush.xpose.msra.mxu0 %v3586
      %4191 = vmatpush.xpose.msra.mxu0 %v3585
      %4192 = vmatpush.xpose.msra.mxu0 %v3584
      %4193 = vmatpush.xpose.msra.mxu0 %v3583
      %4194 = vmatpush.xpose.msra.mxu0 %v3582
      %4195 = vmatpush.xpose.msra.mxu0 %v3581
      %4196 = vmatpush.xpose.msra.mxu0 %v3580
      %4197 = vmatpush.xpose.msra.mxu0 %v3579
      %4198 = vmatpush.xpose.msra.mxu0 %v3578
      %4199 = vmatpush.xpose.msra.mxu0 %v3577
      %4200 = vmatpush.xpose.msra.mxu0 %v3576
      %4201 = vmatmul.f32.gmra.mxu0 %v4136
      %v4202 = vpop.f32.mrf.mxu0
      %v4203 = vadd.f32 %v248, %v4202
      %4204 = vmatmul.f32.gmra.mxu0 %v4137
      %v4205 = vpop.f32.mrf.mxu0
      %v4206 = vadd.f32 %v248, %v4205
      %4207 = vmatmul.f32.gmra.mxu0 %v4138
      %v4208 = vpop.f32.mrf.mxu0
      %v4209 = vadd.f32 %v248, %v4208
      %4210 = vmatmul.f32.gmra.mxu0 %v4139
      %v4211 = vpop.f32.mrf.mxu0
      %v4212 = vadd.f32 %v248, %v4211
      %4213 = vmatmul.f32.gmra.mxu0 %v4140
      %v4214 = vpop.f32.mrf.mxu0
      %v4215 = vadd.f32 %v248, %v4214
      %4216 = vmatmul.f32.gmra.mxu0 %v4141
      %v4217 = vpop.f32.mrf.mxu0
      %v4218 = vadd.f32 %v248, %v4217
      %4219 = vmatmul.f32.gmra.mxu0 %v4142
      %v4220 = vpop.f32.mrf.mxu0
      %v4221 = vadd.f32 %v248, %v4220
      %4222 = vmatmul.f32.gmra.mxu0 %v4143
      %v4223 = vpop.f32.mrf.mxu0
      %v4224 = vadd.f32 %v248, %v4223
      %4225 = vdwg.mxu0
      %4226 = vmatpush.xpose.msra.mxu0 %v3607
      %4227 = vmatpush.xpose.msra.mxu0 %v3606
      %4228 = vmatpush.xpose.msra.mxu0 %v3605
      %4229 = vmatpush.xpose.msra.mxu0 %v3604
      %4230 = vmatpush.xpose.msra.mxu0 %v3603
      %4231 = vmatpush.xpose.msra.mxu0 %v3602
      %4232 = vmatpush.xpose.msra.mxu0 %v3601
      %4233 = vmatpush.xpose.msra.mxu0 %v3600
      %4234 = vmatpush.xpose.msra.mxu0 %v3599
      %4235 = vmatpush.xpose.msra.mxu0 %v3598
      %4236 = vmatpush.xpose.msra.mxu0 %v3597
      %4237 = vmatpush.xpose.msra.mxu0 %v3596
      %4238 = vmatpush.xpose.msra.mxu0 %v3595
      %4239 = vmatpush.xpose.msra.mxu0 %v3594
      %4240 = vmatpush.xpose.msra.mxu0 %v3593
      %4241 = vmatpush.xpose.msra.mxu0 %v3592
      %4242 = vmatmul.f32.gmra.mxu0 %v4136
      %v4243 = vpop.f32.mrf.mxu0
      %v4244 = vadd.f32 %v249, %v4243
      %4245 = vmatmul.f32.gmra.mxu0 %v4137
      %v4246 = vpop.f32.mrf.mxu0
      %v4247 = vadd.f32 %v249, %v4246
      %4248 = vmatmul.f32.gmra.mxu0 %v4138
      %v4249 = vpop.f32.mrf.mxu0
      %v4250 = vadd.f32 %v249, %v4249
      %4251 = vmatmul.f32.gmra.mxu0 %v4139
      %v4252 = vpop.f32.mrf.mxu0
      %v4253 = vadd.f32 %v249, %v4252
      %4254 = vmatmul.f32.gmra.mxu0 %v4140
      %v4255 = vpop.f32.mrf.mxu0
      %v4256 = vadd.f32 %v249, %v4255
      %4257 = vmatmul.f32.gmra.mxu0 %v4141
      %v4258 = vpop.f32.mrf.mxu0
      %v4259 = vadd.f32 %v249, %v4258
      %4260 = vmatmul.f32.gmra.mxu0 %v4142
      %v4261 = vpop.f32.mrf.mxu0
      %v4262 = vadd.f32 %v249, %v4261
      %4263 = vmatmul.f32.gmra.mxu0 %v4143
      %v4264 = vpop.f32.mrf.mxu0
      %v4265 = vadd.f32 %v249, %v4264
      %4266 = vdwg.mxu0
      %4267 = vmatpush.xpose.msra.mxu0 %v3623
      %4268 = vmatpush.xpose.msra.mxu0 %v3622
      %4269 = vmatpush.xpose.msra.mxu0 %v3621
      %4270 = vmatpush.xpose.msra.mxu0 %v3620
      %4271 = vmatpush.xpose.msra.mxu0 %v3619
      %4272 = vmatpush.xpose.msra.mxu0 %v3618
      %4273 = vmatpush.xpose.msra.mxu0 %v3617
      %4274 = vmatpush.xpose.msra.mxu0 %v3616
      %4275 = vmatpush.xpose.msra.mxu0 %v3615
      %4276 = vmatpush.xpose.msra.mxu0 %v3614
      %4277 = vmatpush.xpose.msra.mxu0 %v3613
      %4278 = vmatpush.xpose.msra.mxu0 %v3612
      %4279 = vmatpush.xpose.msra.mxu0 %v3611
      %4280 = vmatpush.xpose.msra.mxu0 %v3610
      %4281 = vmatpush.xpose.msra.mxu0 %v3609
      %4282 = vmatpush.xpose.msra.mxu0 %v3608
      %4283 = vmatmul.f32.gmra.mxu0 %v4136
      %v4284 = vpop.f32.mrf.mxu0
      %v4285 = vadd.f32 %v250, %v4284
      %4286 = vmatmul.f32.gmra.mxu0 %v4137
      %v4287 = vpop.f32.mrf.mxu0
      %v4288 = vadd.f32 %v250, %v4287
      %4289 = vmatmul.f32.gmra.mxu0 %v4138
      %v4290 = vpop.f32.mrf.mxu0
      %v4291 = vadd.f32 %v250, %v4290
      %4292 = vmatmul.f32.gmra.mxu0 %v4139
      %v4293 = vpop.f32.mrf.mxu0
      %v4294 = vadd.f32 %v250, %v4293
      %4295 = vmatmul.f32.gmra.mxu0 %v4140
      %v4296 = vpop.f32.mrf.mxu0
      %v4297 = vadd.f32 %v250, %v4296
      %4298 = vmatmul.f32.gmra.mxu0 %v4141
      %v4299 = vpop.f32.mrf.mxu0
      %v4300 = vadd.f32 %v250, %v4299
      %4301 = vmatmul.f32.gmra.mxu0 %v4142
      %v4302 = vpop.f32.mrf.mxu0
      %v4303 = vadd.f32 %v250, %v4302
      %4304 = vmatmul.f32.gmra.mxu0 %v4143
      %v4305 = vpop.f32.mrf.mxu0
      %v4306 = vadd.f32 %v250, %v4305
      %4307 = vdwg.mxu0
      %v4308 = vmax.f32 %v4162, 0.0
      %v4309 = vmax.f32 %v4203, 0.0
      %v4310 = vmax.f32 %v4244, 0.0
      %v4311 = vmax.f32 %v4285, 0.0
      %v4312 = vmax.f32 %v4165, 0.0
      %v4313 = vmax.f32 %v4206, 0.0
      %v4314 = vmax.f32 %v4247, 0.0
      %v4315 = vmax.f32 %v4288, 0.0
      %v4316 = vmax.f32 %v4168, 0.0
      %v4317 = vmax.f32 %v4209, 0.0
      %v4318 = vmax.f32 %v4250, 0.0
      %v4319 = vmax.f32 %v4291, 0.0
      %v4320 = vmax.f32 %v4171, 0.0
      %v4321 = vmax.f32 %v4212, 0.0
      %v4322 = vmax.f32 %v4253, 0.0
      %v4323 = vmax.f32 %v4294, 0.0
      %v4324 = vmax.f32 %v4174, 0.0
      %v4325 = vmax.f32 %v4215, 0.0
      %v4326 = vmax.f32 %v4256, 0.0
      %v4327 = vmax.f32 %v4297, 0.0
      %v4328 = vmax.f32 %v4177, 0.0
      %v4329 = vmax.f32 %v4218, 0.0
      %v4330 = vmax.f32 %v4259, 0.0
      %v4331 = vmax.f32 %v4300, 0.0
      %v4332 = vmax.f32 %v4180, 0.0
      %v4333 = vmax.f32 %v4221, 0.0
      %v4334 = vmax.f32 %v4262, 0.0
      %v4335 = vmax.f32 %v4303, 0.0
      %v4336 = vmax.f32 %v4183, 0.0
      %v4337 = vmax.f32 %v4224, 0.0
      %v4338 = vmax.f32 %v4265, 0.0
      %v4339 = vmax.f32 %v4306, 0.0
      %v4340 = vadd.f32 %v4308, %v4312
      %v4341 = vadd.f32 %v4340, %v4316
      %v4342 = vadd.f32 %v4341, %v4320
      %v4343 = vadd.f32 %v4342, %v4324
      %v4344 = vadd.f32 %v4343, %v4328
      %v4345 = vadd.f32 %v4344, %v4332
      %v4346 = vadd.f32 %v4345, %v4336
      %v4347 = vrot.slane %v4346, 4
      %v4348 = vadd.f32 %v4346, %v4347
      %v4349 = vrot.slane %v4348, 2
      %v4350 = vadd.f32 %v4348, %v4349
      %v4351 = vrot.slane %v4350, 1
      %v4352 = vadd.f32 %v4350, %v4351
      %v4353 = vadd.f32 %v4309, %v4313
      %v4354 = vadd.f32 %v4353, %v4317
      %v4355 = vadd.f32 %v4354, %v4321
      %v4356 = vadd.f32 %v4355, %v4325
      %v4357 = vadd.f32 %v4356, %v4329
      %v4358 = vadd.f32 %v4357, %v4333
      %v4359 = vadd.f32 %v4358, %v4337
      %v4360 = vrot.slane %v4359, 4
      %v4361 = vadd.f32 %v4359, %v4360
      %v4362 = vrot.slane %v4361, 2
      %v4363 = vadd.f32 %v4361, %v4362
      %v4364 = vrot.slane %v4363, 1
      %v4365 = vadd.f32 %v4363, %v4364
      %v4366 = vadd.f32 %v4310, %v4314
      %v4367 = vadd.f32 %v4366, %v4318
      %v4368 = vadd.f32 %v4367, %v4322
      %v4369 = vadd.f32 %v4368, %v4326
      %v4370 = vadd.f32 %v4369, %v4330
      %v4371 = vadd.f32 %v4370, %v4334
      %v4372 = vadd.f32 %v4371, %v4338
      %v4373 = vrot.slane %v4372, 4
      %v4374 = vadd.f32 %v4372, %v4373
      %v4375 = vrot.slane %v4374, 2
      %v4376 = vadd.f32 %v4374, %v4375
      %v4377 = vrot.slane %v4376, 1
      %v4378 = vadd.f32 %v4376, %v4377
      %v4379 = vadd.f32 %v4311, %v4315
      %v4380 = vadd.f32 %v4379, %v4319
      %v4381 = vadd.f32 %v4380, %v4323
      %v4382 = vadd.f32 %v4381, %v4327
      %v4383 = vadd.f32 %v4382, %v4331
      %v4384 = vadd.f32 %v4383, %v4335
      %v4385 = vadd.f32 %v4384, %v4339
      %v4386 = vrot.slane %v4385, 4
      %v4387 = vadd.f32 %v4385, %v4386
      %v4388 = vrot.slane %v4387, 2
      %v4389 = vadd.f32 %v4387, %v4388
      %v4390 = vrot.slane %v4389, 1
      %v4391 = vadd.f32 %v4389, %v4390
      %v4392 = vadd.f32 %v4132, %v4352
      %v4393 = vadd.f32 %v4133, %v4365
      %v4394 = vadd.f32 %v4134, %v4378
      %v4395 = vadd.f32 %v4135, %v4391
      %v4396 = vld [vmem:[%s166 + $0x3c0] sm:$0xff]
      %v4397 = vld [vmem:[%s166 + $0x3c8] sm:$0xff]
      %v4398 = vld [vmem:[%s166 + $0x3d0] sm:$0xff]
      %v4399 = vld [vmem:[%s166 + $0x3d8] sm:$0xff]
      %v4400 = vld [vmem:[%s166 + $0x3e0] sm:$0xff]
      %v4401 = vld [vmem:[%s166 + $0x3e8] sm:$0xff]
      %v4402 = vld [vmem:[%s166 + $0x3f0] sm:$0xff]
      %v4403 = vld [vmem:[%s166 + $0x3f8] sm:$0xff]
      %4404 = vmatpush.xpose.msra.mxu0 %v3575
      %4405 = vmatpush.xpose.msra.mxu0 %v3574
      %4406 = vmatpush.xpose.msra.mxu0 %v3573
      %4407 = vmatpush.xpose.msra.mxu0 %v3572
      %4408 = vmatpush.xpose.msra.mxu0 %v3571
      %4409 = vmatpush.xpose.msra.mxu0 %v3570
      %4410 = vmatpush.xpose.msra.mxu0 %v3569
      %4411 = vmatpush.xpose.msra.mxu0 %v3568
      %4412 = vmatpush.xpose.msra.mxu0 %v3567
      %4413 = vmatpush.xpose.msra.mxu0 %v3566
      %4414 = vmatpush.xpose.msra.mxu0 %v3565
      %4415 = vmatpush.xpose.msra.mxu0 %v3564
      %4416 = vmatpush.xpose.msra.mxu0 %v3563
      %4417 = vmatpush.xpose.msra.mxu0 %v3562
      %4418 = vmatpush.xpose.msra.mxu0 %v3561
      %4419 = vmatpush.xpose.msra.mxu0 %v3560
      %4420 = vmatmul.f32.gmra.mxu0 %v4396
      %v4421 = vpop.f32.mrf.mxu0
      %v4422 = vadd.f32 %v247, %v4421
      %4423 = vmatmul.f32.gmra.mxu0 %v4397
      %v4424 = vpop.f32.mrf.mxu0
      %v4425 = vadd.f32 %v247, %v4424
      %4426 = vmatmul.f32.gmra.mxu0 %v4398
      %v4427 = vpop.f32.mrf.mxu0
      %v4428 = vadd.f32 %v247, %v4427
      %4429 = vmatmul.f32.gmra.mxu0 %v4399
      %v4430 = vpop.f32.mrf.mxu0
      %v4431 = vadd.f32 %v247, %v4430
      %4432 = vmatmul.f32.gmra.mxu0 %v4400
      %v4433 = vpop.f32.mrf.mxu0
      %v4434 = vadd.f32 %v247, %v4433
      %4435 = vmatmul.f32.gmra.mxu0 %v4401
      %v4436 = vpop.f32.mrf.mxu0
      %v4437 = vadd.f32 %v247, %v4436
      %4438 = vmatmul.f32.gmra.mxu0 %v4402
      %v4439 = vpop.f32.mrf.mxu0
      %v4440 = vadd.f32 %v247, %v4439
      %4441 = vmatmul.f32.gmra.mxu0 %v4403
      %v4442 = vpop.f32.mrf.mxu0
      %v4443 = vadd.f32 %v247, %v4442
      %4444 = vdwg.mxu0
      %4445 = vmatpush.xpose.msra.mxu0 %v3591
      %4446 = vmatpush.xpose.msra.mxu0 %v3590
      %4447 = vmatpush.xpose.msra.mxu0 %v3589
      %4448 = vmatpush.xpose.msra.mxu0 %v3588
      %4449 = vmatpush.xpose.msra.mxu0 %v3587
      %4450 = vmatpush.xpose.msra.mxu0 %v3586
      %4451 = vmatpush.xpose.msra.mxu0 %v3585
      %4452 = vmatpush.xpose.msra.mxu0 %v3584
      %4453 = vmatpush.xpose.msra.mxu0 %v3583
      %4454 = vmatpush.xpose.msra.mxu0 %v3582
      %4455 = vmatpush.xpose.msra.mxu0 %v3581
      %4456 = vmatpush.xpose.msra.mxu0 %v3580
      %4457 = vmatpush.xpose.msra.mxu0 %v3579
      %4458 = vmatpush.xpose.msra.mxu0 %v3578
      %4459 = vmatpush.xpose.msra.mxu0 %v3577
      %4460 = vmatpush.xpose.msra.mxu0 %v3576
      %4461 = vmatmul.f32.gmra.mxu0 %v4396
      %v4462 = vpop.f32.mrf.mxu0
      %v4463 = vadd.f32 %v248, %v4462
      %4464 = vmatmul.f32.gmra.mxu0 %v4397
      %v4465 = vpop.f32.mrf.mxu0
      %v4466 = vadd.f32 %v248, %v4465
      %4467 = vmatmul.f32.gmra.mxu0 %v4398
      %v4468 = vpop.f32.mrf.mxu0
      %v4469 = vadd.f32 %v248, %v4468
      %4470 = vmatmul.f32.gmra.mxu0 %v4399
      %v4471 = vpop.f32.mrf.mxu0
      %v4472 = vadd.f32 %v248, %v4471
      %4473 = vmatmul.f32.gmra.mxu0 %v4400
      %v4474 = vpop.f32.mrf.mxu0
      %v4475 = vadd.f32 %v248, %v4474
      %4476 = vmatmul.f32.gmra.mxu0 %v4401
      %v4477 = vpop.f32.mrf.mxu0
      %v4478 = vadd.f32 %v248, %v4477
      %4479 = vmatmul.f32.gmra.mxu0 %v4402
      %v4480 = vpop.f32.mrf.mxu0
      %v4481 = vadd.f32 %v248, %v4480
      %4482 = vmatmul.f32.gmra.mxu0 %v4403
      %v4483 = vpop.f32.mrf.mxu0
      %v4484 = vadd.f32 %v248, %v4483
      %4485 = vdwg.mxu0
      %4486 = vmatpush.xpose.msra.mxu0 %v3607
      %4487 = vmatpush.xpose.msra.mxu0 %v3606
      %4488 = vmatpush.xpose.msra.mxu0 %v3605
      %4489 = vmatpush.xpose.msra.mxu0 %v3604
      %4490 = vmatpush.xpose.msra.mxu0 %v3603
      %4491 = vmatpush.xpose.msra.mxu0 %v3602
      %4492 = vmatpush.xpose.msra.mxu0 %v3601
      %4493 = vmatpush.xpose.msra.mxu0 %v3600
      %4494 = vmatpush.xpose.msra.mxu0 %v3599
      %4495 = vmatpush.xpose.msra.mxu0 %v3598
      %4496 = vmatpush.xpose.msra.mxu0 %v3597
      %4497 = vmatpush.xpose.msra.mxu0 %v3596
      %4498 = vmatpush.xpose.msra.mxu0 %v3595
      %4499 = vmatpush.xpose.msra.mxu0 %v3594
      %4500 = vmatpush.xpose.msra.mxu0 %v3593
      %4501 = vmatpush.xpose.msra.mxu0 %v3592
      %4502 = vmatmul.f32.gmra.mxu0 %v4396
      %v4503 = vpop.f32.mrf.mxu0
      %v4504 = vadd.f32 %v249, %v4503
      %4505 = vmatmul.f32.gmra.mxu0 %v4397
      %v4506 = vpop.f32.mrf.mxu0
      %v4507 = vadd.f32 %v249, %v4506
      %4508 = vmatmul.f32.gmra.mxu0 %v4398
      %v4509 = vpop.f32.mrf.mxu0
      %v4510 = vadd.f32 %v249, %v4509
      %4511 = vmatmul.f32.gmra.mxu0 %v4399
      %v4512 = vpop.f32.mrf.mxu0
      %v4513 = vadd.f32 %v249, %v4512
      %4514 = vmatmul.f32.gmra.mxu0 %v4400
      %v4515 = vpop.f32.mrf.mxu0
      %v4516 = vadd.f32 %v249, %v4515
      %4517 = vmatmul.f32.gmra.mxu0 %v4401
      %v4518 = vpop.f32.mrf.mxu0
      %v4519 = vadd.f32 %v249, %v4518
      %4520 = vmatmul.f32.gmra.mxu0 %v4402
      %v4521 = vpop.f32.mrf.mxu0
      %v4522 = vadd.f32 %v249, %v4521
      %4523 = vmatmul.f32.gmra.mxu0 %v4403
      %v4524 = vpop.f32.mrf.mxu0
      %v4525 = vadd.f32 %v249, %v4524
      %4526 = vdwg.mxu0
      %4527 = vmatpush.xpose.msra.mxu0 %v3623
      %4528 = vmatpush.xpose.msra.mxu0 %v3622
      %4529 = vmatpush.xpose.msra.mxu0 %v3621
      %4530 = vmatpush.xpose.msra.mxu0 %v3620
      %4531 = vmatpush.xpose.msra.mxu0 %v3619
      %4532 = vmatpush.xpose.msra.mxu0 %v3618
      %4533 = vmatpush.xpose.msra.mxu0 %v3617
      %4534 = vmatpush.xpose.msra.mxu0 %v3616
      %4535 = vmatpush.xpose.msra.mxu0 %v3615
      %4536 = vmatpush.xpose.msra.mxu0 %v3614
      %4537 = vmatpush.xpose.msra.mxu0 %v3613
      %4538 = vmatpush.xpose.msra.mxu0 %v3612
      %4539 = vmatpush.xpose.msra.mxu0 %v3611
      %4540 = vmatpush.xpose.msra.mxu0 %v3610
      %4541 = vmatpush.xpose.msra.mxu0 %v3609
      %4542 = vmatpush.xpose.msra.mxu0 %v3608
      %4543 = vmatmul.f32.gmra.mxu0 %v4396
      %v4544 = vpop.f32.mrf.mxu0
      %v4545 = vadd.f32 %v250, %v4544
      %4546 = vmatmul.f32.gmra.mxu0 %v4397
      %v4547 = vpop.f32.mrf.mxu0
      %v4548 = vadd.f32 %v250, %v4547
      %4549 = vmatmul.f32.gmra.mxu0 %v4398
      %v4550 = vpop.f32.mrf.mxu0
      %v4551 = vadd.f32 %v250, %v4550
      %4552 = vmatmul.f32.gmra.mxu0 %v4399
      %v4553 = vpop.f32.mrf.mxu0
      %v4554 = vadd.f32 %v250, %v4553
      %4555 = vmatmul.f32.gmra.mxu0 %v4400
      %v4556 = vpop.f32.mrf.mxu0
      %v4557 = vadd.f32 %v250, %v4556
      %4558 = vmatmul.f32.gmra.mxu0 %v4401
      %v4559 = vpop.f32.mrf.mxu0
      %v4560 = vadd.f32 %v250, %v4559
      %4561 = vmatmul.f32.gmra.mxu0 %v4402
      %v4562 = vpop.f32.mrf.mxu0
      %v4563 = vadd.f32 %v250, %v4562
      %4564 = vmatmul.f32.gmra.mxu0 %v4403
      %v4565 = vpop.f32.mrf.mxu0
      %v4566 = vadd.f32 %v250, %v4565
      %4567 = vdwg.mxu0
      %v4568 = vmax.f32 %v4422, 0.0
      %v4569 = vmax.f32 %v4463, 0.0
      %v4570 = vmax.f32 %v4504, 0.0
      %v4571 = vmax.f32 %v4545, 0.0
      %v4572 = vmax.f32 %v4425, 0.0
      %v4573 = vmax.f32 %v4466, 0.0
      %v4574 = vmax.f32 %v4507, 0.0
      %v4575 = vmax.f32 %v4548, 0.0
      %v4576 = vmax.f32 %v4428, 0.0
      %v4577 = vmax.f32 %v4469, 0.0
      %v4578 = vmax.f32 %v4510, 0.0
      %v4579 = vmax.f32 %v4551, 0.0
      %v4580 = vmax.f32 %v4431, 0.0
      %v4581 = vmax.f32 %v4472, 0.0
      %v4582 = vmax.f32 %v4513, 0.0
      %v4583 = vmax.f32 %v4554, 0.0
      %v4584 = vmax.f32 %v4434, 0.0
      %v4585 = vmax.f32 %v4475, 0.0
      %v4586 = vmax.f32 %v4516, 0.0
      %v4587 = vmax.f32 %v4557, 0.0
      %v4588 = vmax.f32 %v4437, 0.0
      %v4589 = vmax.f32 %v4478, 0.0
      %v4590 = vmax.f32 %v4519, 0.0
      %v4591 = vmax.f32 %v4560, 0.0
      %v4592 = vmax.f32 %v4440, 0.0
      %v4593 = vmax.f32 %v4481, 0.0
      %v4594 = vmax.f32 %v4522, 0.0
      %v4595 = vmax.f32 %v4563, 0.0
      %v4596 = vmax.f32 %v4443, 0.0
      %v4597 = vmax.f32 %v4484, 0.0
      %v4598 = vmax.f32 %v4525, 0.0
      %v4599 = vmax.f32 %v4566, 0.0
      %v4600 = vadd.f32 %v4568, %v4572
      %v4601 = vadd.f32 %v4600, %v4576
      %v4602 = vadd.f32 %v4601, %v4580
      %v4603 = vadd.f32 %v4602, %v4584
      %v4604 = vadd.f32 %v4603, %v4588
      %v4605 = vadd.f32 %v4604, %v4592
      %v4606 = vadd.f32 %v4605, %v4596
      %v4607 = vrot.slane %v4606, 4
      %v4608 = vadd.f32 %v4606, %v4607
      %v4609 = vrot.slane %v4608, 2
      %v4610 = vadd.f32 %v4608, %v4609
      %v4611 = vrot.slane %v4610, 1
      %v4612 = vadd.f32 %v4610, %v4611
      %v4613 = vadd.f32 %v4569, %v4573
      %v4614 = vadd.f32 %v4613, %v4577
      %v4615 = vadd.f32 %v4614, %v4581
      %v4616 = vadd.f32 %v4615, %v4585
      %v4617 = vadd.f32 %v4616, %v4589
      %v4618 = vadd.f32 %v4617, %v4593
      %v4619 = vadd.f32 %v4618, %v4597
      %v4620 = vrot.slane %v4619, 4
      %v4621 = vadd.f32 %v4619, %v4620
      %v4622 = vrot.slane %v4621, 2
      %v4623 = vadd.f32 %v4621, %v4622
      %v4624 = vrot.slane %v4623, 1
      %v4625 = vadd.f32 %v4623, %v4624
      %v4626 = vadd.f32 %v4570, %v4574
      %v4627 = vadd.f32 %v4626, %v4578
      %v4628 = vadd.f32 %v4627, %v4582
      %v4629 = vadd.f32 %v4628, %v4586
      %v4630 = vadd.f32 %v4629, %v4590
      %v4631 = vadd.f32 %v4630, %v4594
      %v4632 = vadd.f32 %v4631, %v4598
      %v4633 = vrot.slane %v4632, 4
      %v4634 = vadd.f32 %v4632, %v4633
      %v4635 = vrot.slane %v4634, 2
      %v4636 = vadd.f32 %v4634, %v4635
      %v4637 = vrot.slane %v4636, 1
      %v4638 = vadd.f32 %v4636, %v4637
      %v4639 = vadd.f32 %v4571, %v4575
      %v4640 = vadd.f32 %v4639, %v4579
      %v4641 = vadd.f32 %v4640, %v4583
      %v4642 = vadd.f32 %v4641, %v4587
      %v4643 = vadd.f32 %v4642, %v4591
      %v4644 = vadd.f32 %v4643, %v4595
      %v4645 = vadd.f32 %v4644, %v4599
      %v4646 = vrot.slane %v4645, 4
      %v4647 = vadd.f32 %v4645, %v4646
      %v4648 = vrot.slane %v4647, 2
      %v4649 = vadd.f32 %v4647, %v4648
      %v4650 = vrot.slane %v4649, 1
      %v4651 = vadd.f32 %v4649, %v4650
      %v4652 = vadd.f32 %v4392, %v4612
      %v4653 = vadd.f32 %v4393, %v4625
      %v4654 = vadd.f32 %v4394, %v4638
      %v4655 = vadd.f32 %v4395, %v4651
      %v4656 = vmul.f32 %v4652, 0.00390625
      %v4657 = vmul.f32 %v4653, 0.00390625
      %v4658 = vmul.f32 %v4654, 0.00390625
      %v4659 = vmul.f32 %v4655, 0.00390625
      %v4664 = vrot.slane %v4657, 7
      %v4665 = vrot.slane %v4658, 6
      %v4666 = vrot.slane %v4659, 5
      %v4667 = vsel %vm1298, %v4656, %v4664
      %v4668 = vsel %vm1300, %v4665, %v4666
      %v4669 = vsel %vm1302, %v4667, %v4668
      %s4671 = scalar_lea.vmem %s172, 3
      %4672 = vst.msk [vmem:[%s4671] ss:$4 sm:$0xf] %vm1308, %v4669
      %p4673 = scmp.lt.s32.totalorder %s14, 3
      %s4674 = scalar_select %p4673, %s14, 3
      %s4675 = smul.addr %s4674, 4
      %s4676 = smul.addr %s4675, 4
      %s4677 = scalar_lea.vmem %s3, %s4676
      // Predicated region
      $region33: #{cnn_lstm_forward.2} parent=31 // pred_check
        %p4678 = pneg %p100
      $region34: #{cnn_lstm_forward.2} parent=31 // pred_check_branch
        %4680 = sbr.rel (%p4678) target = $region36
      $region35: #{cnn_lstm_forward.2} parent=31 // pred_region
        _
      $region36: #{cnn_lstm_forward.2} parent=31 // pred_fallthru
        _
    $region32: #{cnn_lstm_forward.2} parent=5 // pred_fallthru
      _
    %p4681 = scmp.le.s32.totalorder 2, %s9
    // Predicated region
    $region37: #{cnn_lstm_forward.2} parent=5 // pred_check
      %p4682 = pneg %p4681
    $region38: #{cnn_lstm_forward.2} parent=5 // pred_check_branch
      %4684 = sbr.rel (%p4682) target = $region40
    $region39: #{cnn_lstm_forward.2} parent=5 // pred_region
      %s4685 = ssub.s32 %s9, 2
      // Predicated region
      $region41: #{cnn_lstm_forward.2} parent=39 // pred_check
        %p4686 = pneg %p106
      $region42: #{cnn_lstm_forward.2} parent=39 // pred_check_branch
        %4688 = sbr.rel (%p4686) target = $region44
      $region43: #{cnn_lstm_forward.2} parent=39 // pred_region
        %p4689 = scmp.lt.s32.totalorder %s15, 3
        %s4690 = scalar_select %p4689, %s15, 3
        %s4691 = smul.addr %s4690, 4
        %s4692 = smul.addr %s4691, 4
        %s4693 = scalar_lea.vmem %s3, %s4692
      $region44: #{cnn_lstm_forward.2} parent=39 // pred_fallthru
        _
    $region40: #{cnn_lstm_forward.2} parent=5 // pred_fallthru
      _
  $region6: #{cnn_lstm_forward.2} parent=0 // loop_footer
    %s13 = sadd.s32 1, %s9
  $region7: #{cnn_lstm_forward.2} parent=0 // loop_footer_branch
    %8 = sbr.rel target = $region3
  $region8: #{cnn_lstm_forward.2} parent=0 // loop_exit
    _

</llo_original>
